<compile_context>
chip_gen: v7x
topology: tpu7x:2x2x1
jax: 0.10.0
libtpu: 0.0.40
codegen_flags: <defaults>
</compile_context>

<pallas_src>
import functools

import jax
import jax.numpy as jnp
from jax.experimental import pallas as pl
from jax.experimental.pallas import tpu as pltpu

TK_MAX = 1024                      # max reduction (K) tile
VMEM_LIMIT = 32 * 1024 * 1024      # safe scoped-VMEM limit on v5e/v6e/v7x


def _round_up(x, m):
    return ((x + m - 1) // m) * m


def _choose_tile_m(M):
    # Prefer 256-row tiles (feeds the 256x256 MXU, 2+ tiles -> megacore),
    # fall back to 128; only pad M when nothing divides it.
    for t in (256, 128):
        if M % t == 0:
            return t, M
    if M < 128 and M % 8 == 0:
        return M, M
    return 128, _round_up(M, 128)


def _choose_tile_k(K):
    if K <= TK_MAX:
        return K, K                # single K step; weight block fetched once
    t = (TK_MAX // 128) * 128
    while t >= 128:                # prefer a 128-multiple that divides K
        if K % t == 0:
            return t, K
        t -= 128
    return TK_MAX, _round_up(K, TK_MAX)   # fall back to zero-padding K


# ----------------------------- fused Pallas kernel -----------------------------

def _gemm_bias_gdn_kernel(x_ref, w_ref, b_ref, *rest, mode):
    """K-tiled GEMM + bias, with optional fused GDN / IGDN epilogue."""
    if mode == "none":
        o_ref, acc_ref = rest
        g_ref = beta_ref = None
    else:
        g_ref, beta_ref, o_ref, acc_ref = rest

    k = pl.program_id(1)

    @pl.when(k == 0)
    def _():
        acc_ref[...] = jnp.zeros_like(acc_ref)

    acc_ref[...] += jnp.dot(x_ref[...], w_ref[...],
                            preferred_element_type=jnp.float32)

    @pl.when(k == pl.num_programs(1) - 1)
    def _():
        y = acc_ref[...] + b_ref[...]
        if mode != "none":
            norm = jnp.dot(y * y, g_ref[...],
                           preferred_element_type=jnp.float32) + beta_ref[...]
            if mode == "gdn":          # y / sqrt(norm) -> one EUP rsqrt + VPU mul
                y = y * jax.lax.rsqrt(norm)
            else:                      # inverse GDN: y * sqrt(norm)
                y = y * jnp.sqrt(norm)
        o_ref[...] = y.astype(o_ref.dtype)


def fused_matmul(cols, w_mat, bias, gdn_params=None, inverse=False,
                 out_dtype=jnp.bfloat16):
    """y = cols @ w_mat + bias, optionally followed by GDN/IGDN, in one kernel.

    cols:(M,K)  w_mat:(K,N)  bias:(N,)  gamma:(N,N)  beta:(N,).
    bf16 MXU inputs, f32 accumulation in a VMEM scratch.
    """
    M, K = cols.shape
    _, N = w_mat.shape

    x = cols.astype(jnp.bfloat16)
    w = w_mat.astype(jnp.bfloat16)

    tile_m, M_pad = _choose_tile_m(M)
    tk, K_pad = _choose_tile_k(K)
    if M_pad != M:
        x = jnp.pad(x, ((0, M_pad - M), (0, 0)))
    if K_pad != K:
        # Zero-padding the reduction dim is exact (contributes 0 to the acc).
        x = jnp.pad(x, ((0, 0), (0, K_pad - K)))
        w = jnp.pad(w, ((0, K_pad - K), (0, 0)))

    mode = "none" if gdn_params is None else ("igdn" if inverse else "gdn")

    in_specs = [
        pl.BlockSpec((tile_m, tk), lambda i, k: (i, k)),
        pl.BlockSpec((tk, N), lambda i, k: (k, 0)),
        pl.BlockSpec((1, N), lambda i, k: (0, 0)),
    ]
    inputs = [x, w, bias.reshape(1, N).astype(jnp.float32)]
    if mode != "none":
        in_specs += [
            pl.BlockSpec((N, N), lambda i, k: (0, 0)),
            pl.BlockSpec((1, N), lambda i, k: (0, 0)),
        ]
        inputs += [
            gdn_params["gamma"].T.astype(jnp.float32),
            gdn_params["beta"].reshape(1, N).astype(jnp.float32),
        ]

    out = pl.pallas_call(
        functools.partial(_gemm_bias_gdn_kernel, mode=mode),
        out_shape=jax.ShapeDtypeStruct((M_pad, N), out_dtype),
        grid=(M_pad // tile_m, K_pad // tk),
        in_specs=in_specs,
        out_specs=pl.BlockSpec((tile_m, N), lambda i, k: (i, 0)),
        scratch_shapes=[pltpu.VMEM((tile_m, N), jnp.float32)],
        compiler_params=pltpu.CompilerParams(
            dimension_semantics=("parallel", "arbitrary"),
            vmem_limit_bytes=VMEM_LIMIT,
        ),
    )(*inputs)
    return out[:M] if M_pad != M else out


# ------------------------- im2col glue (indexing only) -------------------------
# TODO(synk): build the 5x5 patches per M-tile inside the kernel (shifted
# pl.ds loads over an NHWC block) to remove the 25x im2col HBM amplification.

def im2col(x, k, stride, pad_lo, pad_hi):
    """x: (N,H,W,C) -> (N*H_out*W_out, k*k*C). Pure padding/slicing, no compute."""
    n, H, W, C = x.shape
    xp = jnp.pad(x, ((0, 0), (pad_lo, pad_hi), (pad_lo, pad_hi), (0, 0)))
    Hp, Wp = H + pad_lo + pad_hi, W + pad_lo + pad_hi
    H_out = (Hp - k) // stride + 1
    W_out = (Wp - k) // stride + 1
    cols = []
    for kh in range(k):
        for kw in range(k):
            sl = xp[:, kh:kh + (H_out - 1) * stride + 1:stride,
                    kw:kw + (W_out - 1) * stride + 1:stride, :]
            cols.append(sl)
    patches = jnp.stack(cols, axis=3)  # (n, H_out, W_out, k*k, C)
    return patches.reshape(n * H_out * W_out, k * k * C), (n, H_out, W_out)


def dilate(x, stride):
    if stride == 1:
        return x
    n, H, W, C = x.shape
    out = jnp.zeros((n, (H - 1) * stride + 1, (W - 1) * stride + 1, C), x.dtype)
    return out.at[:, ::stride, ::stride, :].set(x)


def conv2d(x, weight, bias, stride, padding, gdn_params=None, inverse=False,
           out_dtype=jnp.bfloat16):
    """x NHWC; weight in PyTorch layout (C_out, C_in, kh, kw)."""
    C_out, C_in, kh, kw = weight.shape
    cols, (n, H_out, W_out) = im2col(x, kh, stride, padding, padding)
    w_mat = jnp.transpose(weight, (2, 3, 1, 0)).reshape(kh * kw * C_in, C_out)
    y = fused_matmul(cols, w_mat, bias, gdn_params, inverse, out_dtype)
    return y.reshape(n, H_out, W_out, C_out)


def conv_transpose2d(x, weight, bias, stride, padding, output_padding,
                     gdn_params=None, inverse=False, out_dtype=jnp.bfloat16):
    """x NHWC; weight in PyTorch layout (C_in, C_out, kh, kw)."""
    # TODO(synk): replace dilate()+im2col for the stride-2 deconv with a
    # subpixel (per-output-phase) decomposition to avoid 75% zero MXU work.
    C_in, C_out, kh, kw = weight.shape
    xd = dilate(x, stride)
    pad_lo = kh - 1 - padding
    pad_hi = kh - 1 - padding + output_padding
    cols, (n, H_out, W_out) = im2col(xd, kh, 1, pad_lo, pad_hi)
    # equivalent regular conv: spatially flipped kernel, in/out channels swapped
    w_eff = jnp.transpose(weight[:, :, ::-1, ::-1], (2, 3, 0, 1)).reshape(kh * kw * C_in, C_out)
    y = fused_matmul(cols, w_eff, bias, gdn_params, inverse, out_dtype)
    return y.reshape(n, H_out, W_out, C_out)


# ----------------------------- model -----------------------------

def init_params(key, c):
    ks = jax.random.split(key, 12)

    def conv_w(k, co, ci):
        return jax.random.normal(k, (co, ci, 5, 5), jnp.float32) / jnp.sqrt(ci * 25.0)

    def deconv_w(k, ci, co):
        return jax.random.normal(k, (ci, co, 5, 5), jnp.float32) / jnp.sqrt(ci * 25.0)

    def bias(k, co):
        return 0.01 * jax.random.normal(k, (co,), jnp.float32)

    def gdn_p(ch):
        # standard GDN init: beta ~ 1, gamma ~ 0.1 * I (kept strictly positive)
        return {"gamma": 0.1 * jnp.eye(ch, dtype=jnp.float32) + 1e-3,
                "beta": jnp.ones((ch,), jnp.float32)}

    return {
        "conv1": {"w": conv_w(ks[0], 2 * c, c), "b": bias(ks[1], 2 * c)},
        "gdn1": gdn_p(2 * c),
        "conv2": {"w": conv_w(ks[2], 4 * c, 2 * c), "b": bias(ks[3], 4 * c)},
        "gdn2": gdn_p(4 * c),
        "conv3": {"w": conv_w(ks[4], 8 * c, 4 * c), "b": bias(ks[5], 8 * c)},
        "deconv1": {"w": deconv_w(ks[6], 8 * c, 4 * c), "b": bias(ks[7], 4 * c)},
        "igdn1": gdn_p(4 * c),
        "deconv2": {"w": deconv_w(ks[8], 4 * c, 2 * c), "b": bias(ks[9], 2 * c)},
        "igdn2": gdn_p(2 * c),
        "deconv3": {"w": deconv_w(ks[10], 2 * c, c), "b": bias(ks[11], c)},
    }


def encode(params, x):
    # conv + GDN fused into one Pallas call per layer; intermediates kept bf16.
    x = conv2d(x, params["conv1"]["w"], params["conv1"]["b"], stride=2, padding=2,
               gdn_params=params["gdn1"], inverse=False, out_dtype=jnp.bfloat16)
    x = conv2d(x, params["conv2"]["w"], params["conv2"]["b"], stride=1, padding=2,
               gdn_params=params["gdn2"], inverse=False, out_dtype=jnp.bfloat16)
    x = conv2d(x, params["conv3"]["w"], params["conv3"]["b"], stride=1, padding=2,
               out_dtype=jnp.float32)
    return x


def decode(params, x):
    x = conv_transpose2d(x, params["deconv1"]["w"], params["deconv1"]["b"], 1, 2, 0,
                         gdn_params=params["igdn1"], inverse=True,
                         out_dtype=jnp.bfloat16)
    x = conv_transpose2d(x, params["deconv2"]["w"], params["deconv2"]["b"], 1, 2, 0,
                         gdn_params=params["igdn2"], inverse=True,
                         out_dtype=jnp.bfloat16)
    x = conv_transpose2d(x, params["deconv3"]["w"], params["deconv3"]["b"], 2, 2, 1,
                         out_dtype=jnp.float32)
    return x


def forward(params, x_nchw):
    """Matches SparseAutoencoder5.forward; inputs/outputs are NCHW like PyTorch."""
    x = jnp.transpose(x_nchw, (0, 2, 3, 1))  # NCHW -> NHWC
    z = encode(params, x)
    xhat = decode(params, z)
    return jnp.transpose(z, (0, 3, 1, 2)), jnp.transpose(xhat, (0, 3, 1, 2))


if __name__ == "__main__":
    input_channels = 8          # small config (module default is 64)
    batch, spatial = 2, 16

    key = jax.random.PRNGKey(0)
    pkey, xkey = jax.random.split(key)
    params = init_params(pkey, input_channels)
    x = jax.random.normal(xkey, (batch, input_channels, spatial, spatial), jnp.float32)

    z, xhat = jax.jit(forward)(params, x)
    jax.block_until_ready((z, xhat))

    assert z.shape == (batch, 8 * input_channels, spatial // 2, spatial // 2)
    assert xhat.shape == (batch, input_channels, spatial, spatial)
    print("KERNEL_OK")
</pallas_src>

<mosaic_0001>
module attributes {stable_mosaic.version = 11 : i64} {
  func.func @_gemm_bias_gdn_kernel(%arg0: i32, %arg1: i32, %arg2: memref<128x200xbf16, #tpu.memory_space<vmem>>, %arg3: memref<200x16xbf16, #tpu.memory_space<vmem>>, %arg4: memref<1x16xf32, #tpu.memory_space<vmem>>, %arg5: memref<16x16xf32, #tpu.memory_space<vmem>>, %arg6: memref<1x16xf32, #tpu.memory_space<vmem>>, %arg7: memref<128x16xbf16, #tpu.memory_space<vmem>>, %arg8: memref<128x16xf32, #tpu.memory_space<vmem>>) attributes {dimension_semantics = [#tpu.dimension_semantics<parallel>, #tpu.dimension_semantics<arbitrary>], iteration_bounds = array<i64: 1, 1>, scalar_prefetch = 0 : i64, scratch_operands = 1 : i64, tpu.core_type = #tpu.core_type<tc>, window_params = [{transform_indices = @transform_0, window_bounds = array<i64: 128, 200>}, {transform_indices = @transform_1, window_bounds = array<i64: 200, 16>}, {pipeline_mode = #tpu.pipeline_mode<synchronous>, transform_indices = @transform_2, window_bounds = array<i64: 1, 16>}, {pipeline_mode = #tpu.pipeline_mode<synchronous>, transform_indices = @transform_3, window_bounds = array<i64: 16, 16>}, {pipeline_mode = #tpu.pipeline_mode<synchronous>, transform_indices = @transform_4, window_bounds = array<i64: 1, 16>}, {transform_indices = @transform_5, window_bounds = array<i64: 128, 16>}]} {
    %c0_i32 = arith.constant 0 : i32
    %0 = arith.cmpi eq, %arg1, %c0_i32 : i32
    %1 = arith.extui %0 : i1 to i32
    %c0_i32_0 = arith.constant 0 : i32
    %2 = arith.cmpi ne, %1, %c0_i32_0 : i32
    scf.if %2 {
      %cst_10 = arith.constant 0.000000e+00 : f32
      %12 = vector.broadcast %cst_10 : f32 to vector<128x16xf32>
      %c0_11 = arith.constant 0 : index
      %c0_12 = arith.constant 0 : index
      %13 = vector.load %arg8[%c0_11, %c0_12] : memref<128x16xf32, #tpu.memory_space<vmem>>, vector<128x16xf32>
      tpu.vector_store %arg8[%c0_11, %c0_12], %12 {strides = array<i32>} : memref<128x16xf32, #tpu.memory_space<vmem>>, vector<128x16xf32>,
    } else {
    }
    %c0 = arith.constant 0 : index
    %c0_1 = arith.constant 0 : index
    %3 = vector.load %arg8[%c0, %c0_1] : memref<128x16xf32, #tpu.memory_space<vmem>>, vector<128x16xf32>
    %c0_2 = arith.constant 0 : index
    %c0_3 = arith.constant 0 : index
    %4 = vector.load %arg2[%c0_2, %c0_3] : memref<128x200xbf16, #tpu.memory_space<vmem>>, vector<128x200xbf16>
    %c0_4 = arith.constant 0 : index
    %c0_5 = arith.constant 0 : index
    %5 = vector.load %arg3[%c0_4, %c0_5] : memref<200x16xbf16, #tpu.memory_space<vmem>>, vector<200x16xbf16>
    %cst = arith.constant dense<0.000000e+00> : vector<128x16xf32>
    %6 = tpu.matmul %4, %5, %cst {dimension_numbers = #tpu.dot_dimension_numbers<[1], [0], [0], [1], [0, 0, 1, 1], [], []>} : vector<128x200xbf16>, vector<200x16xbf16>, vector<128x16xf32> -> vector<128x16xf32>
    %7 = arith.addf %3, %6 : vector<128x16xf32>
    %c0_6 = arith.constant 0 : index
    %c0_7 = arith.constant 0 : index
    %8 = vector.load %arg8[%c0_6, %c0_7] : memref<128x16xf32, #tpu.memory_space<vmem>>, vector<128x16xf32>
    tpu.vector_store %arg8[%c0_6, %c0_7], %7 {strides = array<i32>} : memref<128x16xf32, #tpu.memory_space<vmem>>, vector<128x16xf32>,
    %c0_i32_8 = arith.constant 0 : i32
    %9 = arith.cmpi eq, %arg1, %c0_i32_8 : i32
    %10 = arith.extui %9 : i1 to i32
    %c0_i32_9 = arith.constant 0 : i32
    %11 = arith.cmpi ne, %10, %c0_i32_9 : i32
    scf.if %11 {
      %c0_10 = arith.constant 0 : index
      %c0_11 = arith.constant 0 : index
      %12 = vector.load %arg8[%c0_10, %c0_11] : memref<128x16xf32, #tpu.memory_space<vmem>>, vector<128x16xf32>
      %c0_12 = arith.constant 0 : index
      %c0_13 = arith.constant 0 : index
      %13 = vector.load %arg4[%c0_12, %c0_13] : memref<1x16xf32, #tpu.memory_space<vmem>>, vector<1x16xf32>
      %14 = vector.broadcast %13 : vector<1x16xf32> to vector<128x16xf32>
      %15 = arith.addf %12, %14 : vector<128x16xf32>
      %16 = arith.mulf %15, %15 : vector<128x16xf32>
      %c0_14 = arith.constant 0 : index
      %c0_15 = arith.constant 0 : index
      %17 = vector.load %arg5[%c0_14, %c0_15] : memref<16x16xf32, #tpu.memory_space<vmem>>, vector<16x16xf32>
      %cst_16 = arith.constant dense<0.000000e+00> : vector<128x16xf32>
      %18 = tpu.matmul %16, %17, %cst_16 {dimension_numbers = #tpu.dot_dimension_numbers<[1], [0], [0], [1], [0, 0, 1, 1], [], []>} : vector<128x16xf32>, vector<16x16xf32>, vector<128x16xf32> -> vector<128x16xf32>
      %c0_17 = arith.constant 0 : index
      %c0_18 = arith.constant 0 : index
      %19 = vector.load %arg6[%c0_17, %c0_18] : memref<1x16xf32, #tpu.memory_space<vmem>>, vector<1x16xf32>
      %20 = vector.broadcast %19 : vector<1x16xf32> to vector<128x16xf32>
      %21 = arith.addf %18, %20 : vector<128x16xf32>
      %22 = math.rsqrt %21 : vector<128x16xf32>
      %23 = arith.mulf %15, %22 : vector<128x16xf32>
      %24 = arith.truncf %23 : vector<128x16xf32> to vector<128x16xbf16>
      %c0_19 = arith.constant 0 : index
      %c0_20 = arith.constant 0 : index
      %25 = vector.load %arg7[%c0_19, %c0_20] : memref<128x16xbf16, #tpu.memory_space<vmem>>, vector<128x16xbf16>
      tpu.vector_store %arg7[%c0_19, %c0_20], %24 {strides = array<i32>} : memref<128x16xbf16, #tpu.memory_space<vmem>>, vector<128x16xbf16>,
    } else {
    }
    return
  }
  func.func @transform_0(%arg0: i32, %arg1: i32) -> (i32, i32) {
    %c0_i32 = arith.constant 0 : i32
    return %arg0, %arg1 : i32, i32
  }
  func.func @transform_1(%arg0: i32, %arg1: i32) -> (i32, i32) {
    %c0_i32 = arith.constant 0 : i32
    %c0_i32_0 = arith.constant 0 : i32
    return %arg1, %c0_i32 : i32, i32
  }
  func.func @transform_2(%arg0: i32, %arg1: i32) -> (i32, i32) {
    %c0_i32 = arith.constant 0 : i32
    %c0_i32_0 = arith.constant 0 : i32
    %c0_i32_1 = arith.constant 0 : i32
    return %c0_i32, %c0_i32_0 : i32, i32
  }
  func.func @transform_3(%arg0: i32, %arg1: i32) -> (i32, i32) {
    %c0_i32 = arith.constant 0 : i32
    %c0_i32_0 = arith.constant 0 : i32
    %c0_i32_1 = arith.constant 0 : i32
    return %c0_i32, %c0_i32_0 : i32, i32
  }
  func.func @transform_4(%arg0: i32, %arg1: i32) -> (i32, i32) {
    %c0_i32 = arith.constant 0 : i32
    %c0_i32_0 = arith.constant 0 : i32
    %c0_i32_1 = arith.constant 0 : i32
    return %c0_i32, %c0_i32_0 : i32, i32
  }
  func.func @transform_5(%arg0: i32, %arg1: i32) -> (i32, i32) {
    %c0_i32 = arith.constant 0 : i32
    %c0_i32_0 = arith.constant 0 : i32
    return %arg0, %c0_i32 : i32, i32
  }
}

module attributes {stable_mosaic.version = 11 : i64} {
  func.func @_gemm_bias_gdn_kernel(%arg0: i32, %arg1: i32, %arg2: memref<128x400xbf16, #tpu.memory_space<vmem>>, %arg3: memref<400x32xbf16, #tpu.memory_space<vmem>>, %arg4: memref<1x32xf32, #tpu.memory_space<vmem>>, %arg5: memref<32x32xf32, #tpu.memory_space<vmem>>, %arg6: memref<1x32xf32, #tpu.memory_space<vmem>>, %arg7: memref<128x32xbf16, #tpu.memory_space<vmem>>, %arg8: memref<128x32xf32, #tpu.memory_space<vmem>>) attributes {dimension_semantics = [#tpu.dimension_semantics<parallel>, #tpu.dimension_semantics<arbitrary>], iteration_bounds = array<i64: 1, 1>, scalar_prefetch = 0 : i64, scratch_operands = 1 : i64, tpu.core_type = #tpu.core_type<tc>, window_params = [{transform_indices = @transform_0, window_bounds = array<i64: 128, 400>}, {transform_indices = @transform_1, window_bounds = array<i64: 400, 32>}, {pipeline_mode = #tpu.pipeline_mode<synchronous>, transform_indices = @transform_2, window_bounds = array<i64: 1, 32>}, {pipeline_mode = #tpu.pipeline_mode<synchronous>, transform_indices = @transform_3, window_bounds = array<i64: 32, 32>}, {pipeline_mode = #tpu.pipeline_mode<synchronous>, transform_indices = @transform_4, window_bounds = array<i64: 1, 32>}, {transform_indices = @transform_5, window_bounds = array<i64: 128, 32>}]} {
    %c0_i32 = arith.constant 0 : i32
    %0 = arith.cmpi eq, %arg1, %c0_i32 : i32
    %1 = arith.extui %0 : i1 to i32
    %c0_i32_0 = arith.constant 0 : i32
    %2 = arith.cmpi ne, %1, %c0_i32_0 : i32
    scf.if %2 {
      %cst_10 = arith.constant 0.000000e+00 : f32
      %12 = vector.broadcast %cst_10 : f32 to vector<128x32xf32>
      %c0_11 = arith.constant 0 : index
      %c0_12 = arith.constant 0 : index
      %13 = vector.load %arg8[%c0_11, %c0_12] : memref<128x32xf32, #tpu.memory_space<vmem>>, vector<128x32xf32>
      tpu.vector_store %arg8[%c0_11, %c0_12], %12 {strides = array<i32>} : memref<128x32xf32, #tpu.memory_space<vmem>>, vector<128x32xf32>,
    } else {
    }
    %c0 = arith.constant 0 : index
    %c0_1 = arith.constant 0 : index
    %3 = vector.load %arg8[%c0, %c0_1] : memref<128x32xf32, #tpu.memory_space<vmem>>, vector<128x32xf32>
    %c0_2 = arith.constant 0 : index
    %c0_3 = arith.constant 0 : index
    %4 = vector.load %arg2[%c0_2, %c0_3] : memref<128x400xbf16, #tpu.memory_space<vmem>>, vector<128x400xbf16>
    %c0_4 = arith.constant 0 : index
    %c0_5 = arith.constant 0 : index
    %5 = vector.load %arg3[%c0_4, %c0_5] : memref<400x32xbf16, #tpu.memory_space<vmem>>, vector<400x32xbf16>
    %cst = arith.constant dense<0.000000e+00> : vector<128x32xf32>
    %6 = tpu.matmul %4, %5, %cst {dimension_numbers = #tpu.dot_dimension_numbers<[1], [0], [0], [1], [0, 0, 1, 1], [], []>} : vector<128x400xbf16>, vector<400x32xbf16>, vector<128x32xf32> -> vector<128x32xf32>
    %7 = arith.addf %3, %6 : vector<128x32xf32>
    %c0_6 = arith.constant 0 : index
    %c0_7 = arith.constant 0 : index
    %8 = vector.load %arg8[%c0_6, %c0_7] : memref<128x32xf32, #tpu.memory_space<vmem>>, vector<128x32xf32>
    tpu.vector_store %arg8[%c0_6, %c0_7], %7 {strides = array<i32>} : memref<128x32xf32, #tpu.memory_space<vmem>>, vector<128x32xf32>,
    %c0_i32_8 = arith.constant 0 : i32
    %9 = arith.cmpi eq, %arg1, %c0_i32_8 : i32
    %10 = arith.extui %9 : i1 to i32
    %c0_i32_9 = arith.constant 0 : i32
    %11 = arith.cmpi ne, %10, %c0_i32_9 : i32
    scf.if %11 {
      %c0_10 = arith.constant 0 : index
      %c0_11 = arith.constant 0 : index
      %12 = vector.load %arg8[%c0_10, %c0_11] : memref<128x32xf32, #tpu.memory_space<vmem>>, vector<128x32xf32>
      %c0_12 = arith.constant 0 : index
      %c0_13 = arith.constant 0 : index
      %13 = vector.load %arg4[%c0_12, %c0_13] : memref<1x32xf32, #tpu.memory_space<vmem>>, vector<1x32xf32>
      %14 = vector.broadcast %13 : vector<1x32xf32> to vector<128x32xf32>
      %15 = arith.addf %12, %14 : vector<128x32xf32>
      %16 = arith.mulf %15, %15 : vector<128x32xf32>
      %c0_14 = arith.constant 0 : index
      %c0_15 = arith.constant 0 : index
      %17 = vector.load %arg5[%c0_14, %c0_15] : memref<32x32xf32, #tpu.memory_space<vmem>>, vector<32x32xf32>
      %cst_16 = arith.constant dense<0.000000e+00> : vector<128x32xf32>
      %18 = tpu.matmul %16, %17, %cst_16 {dimension_numbers = #tpu.dot_dimension_numbers<[1], [0], [0], [1], [0, 0, 1, 1], [], []>} : vector<128x32xf32>, vector<32x32xf32>, vector<128x32xf32> -> vector<128x32xf32>
      %c0_17 = arith.constant 0 : index
      %c0_18 = arith.constant 0 : index
      %19 = vector.load %arg6[%c0_17, %c0_18] : memref<1x32xf32, #tpu.memory_space<vmem>>, vector<1x32xf32>
      %20 = vector.broadcast %19 : vector<1x32xf32> to vector<128x32xf32>
      %21 = arith.addf %18, %20 : vector<128x32xf32>
      %22 = math.rsqrt %21 : vector<128x32xf32>
      %23 = arith.mulf %15, %22 : vector<128x32xf32>
      %24 = arith.truncf %23 : vector<128x32xf32> to vector<128x32xbf16>
      %c0_19 = arith.constant 0 : index
      %c0_20 = arith.constant 0 : index
      %25 = vector.load %arg7[%c0_19, %c0_20] : memref<128x32xbf16, #tpu.memory_space<vmem>>, vector<128x32xbf16>
      tpu.vector_store %arg7[%c0_19, %c0_20], %24 {strides = array<i32>} : memref<128x32xbf16, #tpu.memory_space<vmem>>, vector<128x32xbf16>,
    } else {
    }
    return
  }
  func.func @transform_0(%arg0: i32, %arg1: i32) -> (i32, i32) {
    %c0_i32 = arith.constant 0 : i32
    return %arg0, %arg1 : i32, i32
  }
  func.func @transform_1(%arg0: i32, %arg1: i32) -> (i32, i32) {
    %c0_i32 = arith.constant 0 : i32
    %c0_i32_0 = arith.constant 0 : i32
    return %arg1, %c0_i32 : i32, i32
  }
  func.func @transform_2(%arg0: i32, %arg1: i32) -> (i32, i32) {
    %c0_i32 = arith.constant 0 : i32
    %c0_i32_0 = arith.constant 0 : i32
    %c0_i32_1 = arith.constant 0 : i32
    return %c0_i32, %c0_i32_0 : i32, i32
  }
  func.func @transform_3(%arg0: i32, %arg1: i32) -> (i32, i32) {
    %c0_i32 = arith.constant 0 : i32
    %c0_i32_0 = arith.constant 0 : i32
    %c0_i32_1 = arith.constant 0 : i32
    return %c0_i32, %c0_i32_0 : i32, i32
  }
  func.func @transform_4(%arg0: i32, %arg1: i32) -> (i32, i32) {
    %c0_i32 = arith.constant 0 : i32
    %c0_i32_0 = arith.constant 0 : i32
    %c0_i32_1 = arith.constant 0 : i32
    return %c0_i32, %c0_i32_0 : i32, i32
  }
  func.func @transform_5(%arg0: i32, %arg1: i32) -> (i32, i32) {
    %c0_i32 = arith.constant 0 : i32
    %c0_i32_0 = arith.constant 0 : i32
    return %arg0, %c0_i32 : i32, i32
  }
}

module attributes {stable_mosaic.version = 11 : i64} {
  func.func @_gemm_bias_gdn_kernel(%arg0: i32, %arg1: i32, %arg2: memref<128x800xbf16, #tpu.memory_space<vmem>>, %arg3: memref<800x64xbf16, #tpu.memory_space<vmem>>, %arg4: memref<1x64xf32, #tpu.memory_space<vmem>>, %arg5: memref<128x64xf32, #tpu.memory_space<vmem>>, %arg6: memref<128x64xf32, #tpu.memory_space<vmem>>) attributes {dimension_semantics = [#tpu.dimension_semantics<parallel>, #tpu.dimension_semantics<arbitrary>], iteration_bounds = array<i64: 1, 1>, scalar_prefetch = 0 : i64, scratch_operands = 1 : i64, tpu.core_type = #tpu.core_type<tc>, window_params = [{transform_indices = @transform_0, window_bounds = array<i64: 128, 800>}, {transform_indices = @transform_1, window_bounds = array<i64: 800, 64>}, {pipeline_mode = #tpu.pipeline_mode<synchronous>, transform_indices = @transform_2, window_bounds = array<i64: 1, 64>}, {transform_indices = @transform_3, window_bounds = array<i64: 128, 64>}]} {
    %c0_i32 = arith.constant 0 : i32
    %0 = arith.cmpi eq, %arg1, %c0_i32 : i32
    %1 = arith.extui %0 : i1 to i32
    %c0_i32_0 = arith.constant 0 : i32
    %2 = arith.cmpi ne, %1, %c0_i32_0 : i32
    scf.if %2 {
      %cst_10 = arith.constant 0.000000e+00 : f32
      %12 = vector.broadcast %cst_10 : f32 to vector<128x64xf32>
      %c0_11 = arith.constant 0 : index
      %c0_12 = arith.constant 0 : index
      %13 = vector.load %arg6[%c0_11, %c0_12] : memref<128x64xf32, #tpu.memory_space<vmem>>, vector<128x64xf32>
      tpu.vector_store %arg6[%c0_11, %c0_12], %12 {strides = array<i32>} : memref<128x64xf32, #tpu.memory_space<vmem>>, vector<128x64xf32>,
    } else {
    }
    %c0 = arith.constant 0 : index
    %c0_1 = arith.constant 0 : index
    %3 = vector.load %arg6[%c0, %c0_1] : memref<128x64xf32, #tpu.memory_space<vmem>>, vector<128x64xf32>
    %c0_2 = arith.constant 0 : index
    %c0_3 = arith.constant 0 : index
    %4 = vector.load %arg2[%c0_2, %c0_3] : memref<128x800xbf16, #tpu.memory_space<vmem>>, vector<128x800xbf16>
    %c0_4 = arith.constant 0 : index
    %c0_5 = arith.constant 0 : index
    %5 = vector.load %arg3[%c0_4, %c0_5] : memref<800x64xbf16, #tpu.memory_space<vmem>>, vector<800x64xbf16>
    %cst = arith.constant dense<0.000000e+00> : vector<128x64xf32>
    %6 = tpu.matmul %4, %5, %cst {dimension_numbers = #tpu.dot_dimension_numbers<[1], [0], [0], [1], [0, 0, 1, 1], [], []>} : vector<128x800xbf16>, vector<800x64xbf16>, vector<128x64xf32> -> vector<128x64xf32>
    %7 = arith.addf %3, %6 : vector<128x64xf32>
    %c0_6 = arith.constant 0 : index
    %c0_7 = arith.constant 0 : index
    %8 = vector.load %arg6[%c0_6, %c0_7] : memref<128x64xf32, #tpu.memory_space<vmem>>, vector<128x64xf32>
    tpu.vector_store %arg6[%c0_6, %c0_7], %7 {strides = array<i32>} : memref<128x64xf32, #tpu.memory_space<vmem>>, vector<128x64xf32>,
    %c0_i32_8 = arith.constant 0 : i32
    %9 = arith.cmpi eq, %arg1, %c0_i32_8 : i32
    %10 = arith.extui %9 : i1 to i32
    %c0_i32_9 = arith.constant 0 : i32
    %11 = arith.cmpi ne, %10, %c0_i32_9 : i32
    scf.if %11 {
      %c0_10 = arith.constant 0 : index
      %c0_11 = arith.constant 0 : index
      %12 = vector.load %arg6[%c0_10, %c0_11] : memref<128x64xf32, #tpu.memory_space<vmem>>, vector<128x64xf32>
      %c0_12 = arith.constant 0 : index
      %c0_13 = arith.constant 0 : index
      %13 = vector.load %arg4[%c0_12, %c0_13] : memref<1x64xf32, #tpu.memory_space<vmem>>, vector<1x64xf32>
      %14 = vector.broadcast %13 : vector<1x64xf32> to vector<128x64xf32>
      %15 = arith.addf %12, %14 : vector<128x64xf32>
      %c0_14 = arith.constant 0 : index
      %c0_15 = arith.constant 0 : index
      %16 = vector.load %arg5[%c0_14, %c0_15] : memref<128x64xf32, #tpu.memory_space<vmem>>, vector<128x64xf32>
      tpu.vector_store %arg5[%c0_14, %c0_15], %15 {strides = array<i32>} : memref<128x64xf32, #tpu.memory_space<vmem>>, vector<128x64xf32>,
    } else {
    }
    return
  }
  func.func @transform_0(%arg0: i32, %arg1: i32) -> (i32, i32) {
    %c0_i32 = arith.constant 0 : i32
    return %arg0, %arg1 : i32, i32
  }
  func.func @transform_1(%arg0: i32, %arg1: i32) -> (i32, i32) {
    %c0_i32 = arith.constant 0 : i32
    %c0_i32_0 = arith.constant 0 : i32
    return %arg1, %c0_i32 : i32, i32
  }
  func.func @transform_2(%arg0: i32, %arg1: i32) -> (i32, i32) {
    %c0_i32 = arith.constant 0 : i32
    %c0_i32_0 = arith.constant 0 : i32
    %c0_i32_1 = arith.constant 0 : i32
    return %c0_i32, %c0_i32_0 : i32, i32
  }
  func.func @transform_3(%arg0: i32, %arg1: i32) -> (i32, i32) {
    %c0_i32 = arith.constant 0 : i32
    %c0_i32_0 = arith.constant 0 : i32
    return %arg0, %c0_i32 : i32, i32
  }
}

module attributes {stable_mosaic.version = 11 : i64} {
  func.func @_gemm_bias_gdn_kernel(%arg0: i32, %arg1: i32, %arg2: memref<128x1024xbf16, #tpu.memory_space<vmem>>, %arg3: memref<1024x32xbf16, #tpu.memory_space<vmem>>, %arg4: memref<1x32xf32, #tpu.memory_space<vmem>>, %arg5: memref<32x32xf32, #tpu.memory_space<vmem>>, %arg6: memref<1x32xf32, #tpu.memory_space<vmem>>, %arg7: memref<128x32xbf16, #tpu.memory_space<vmem>>, %arg8: memref<128x32xf32, #tpu.memory_space<vmem>>) attributes {dimension_semantics = [#tpu.dimension_semantics<parallel>, #tpu.dimension_semantics<arbitrary>], iteration_bounds = array<i64: 1, 2>, scalar_prefetch = 0 : i64, scratch_operands = 1 : i64, tpu.core_type = #tpu.core_type<tc>, window_params = [{transform_indices = @transform_0, window_bounds = array<i64: 128, 1024>}, {transform_indices = @transform_1, window_bounds = array<i64: 1024, 32>}, {pipeline_mode = #tpu.pipeline_mode<synchronous>, transform_indices = @transform_2, window_bounds = array<i64: 1, 32>}, {pipeline_mode = #tpu.pipeline_mode<synchronous>, transform_indices = @transform_3, window_bounds = array<i64: 32, 32>}, {pipeline_mode = #tpu.pipeline_mode<synchronous>, transform_indices = @transform_4, window_bounds = array<i64: 1, 32>}, {transform_indices = @transform_5, window_bounds = array<i64: 128, 32>}]} {
    %c0_i32 = arith.constant 0 : i32
    %0 = arith.cmpi eq, %arg1, %c0_i32 : i32
    %1 = arith.extui %0 : i1 to i32
    %c0_i32_0 = arith.constant 0 : i32
    %2 = arith.cmpi ne, %1, %c0_i32_0 : i32
    scf.if %2 {
      %cst_9 = arith.constant 0.000000e+00 : f32
      %12 = vector.broadcast %cst_9 : f32 to vector<128x32xf32>
      %c0_10 = arith.constant 0 : index
      %c0_11 = arith.constant 0 : index
      %13 = vector.load %arg8[%c0_10, %c0_11] : memref<128x32xf32, #tpu.memory_space<vmem>>, vector<128x32xf32>
      tpu.vector_store %arg8[%c0_10, %c0_11], %12 {strides = array<i32>} : memref<128x32xf32, #tpu.memory_space<vmem>>, vector<128x32xf32>,
    } else {
    }
    %c0 = arith.constant 0 : index
    %c0_1 = arith.constant 0 : index
    %3 = vector.load %arg8[%c0, %c0_1] : memref<128x32xf32, #tpu.memory_space<vmem>>, vector<128x32xf32>
    %c0_2 = arith.constant 0 : index
    %c0_3 = arith.constant 0 : index
    %4 = vector.load %arg2[%c0_2, %c0_3] : memref<128x1024xbf16, #tpu.memory_space<vmem>>, vector<128x1024xbf16>
    %c0_4 = arith.constant 0 : index
    %c0_5 = arith.constant 0 : index
    %5 = vector.load %arg3[%c0_4, %c0_5] : memref<1024x32xbf16, #tpu.memory_space<vmem>>, vector<1024x32xbf16>
    %cst = arith.constant dense<0.000000e+00> : vector<128x32xf32>
    %6 = tpu.matmul %4, %5, %cst {dimension_numbers = #tpu.dot_dimension_numbers<[1], [0], [0], [1], [0, 0, 1, 1], [], []>} : vector<128x1024xbf16>, vector<1024x32xbf16>, vector<128x32xf32> -> vector<128x32xf32>
    %7 = arith.addf %3, %6 : vector<128x32xf32>
    %c0_6 = arith.constant 0 : index
    %c0_7 = arith.constant 0 : index
    %8 = vector.load %arg8[%c0_6, %c0_7] : memref<128x32xf32, #tpu.memory_space<vmem>>, vector<128x32xf32>
    tpu.vector_store %arg8[%c0_6, %c0_7], %7 {strides = array<i32>} : memref<128x32xf32, #tpu.memory_space<vmem>>, vector<128x32xf32>,
    %c1_i32 = arith.constant 1 : i32
    %9 = arith.cmpi eq, %arg1, %c1_i32 : i32
    %10 = arith.extui %9 : i1 to i32
    %c0_i32_8 = arith.constant 0 : i32
    %11 = arith.cmpi ne, %10, %c0_i32_8 : i32
    scf.if %11 {
      %c0_9 = arith.constant 0 : index
      %c0_10 = arith.constant 0 : index
      %12 = vector.load %arg8[%c0_9, %c0_10] : memref<128x32xf32, #tpu.memory_space<vmem>>, vector<128x32xf32>
      %c0_11 = arith.constant 0 : index
      %c0_12 = arith.constant 0 : index
      %13 = vector.load %arg4[%c0_11, %c0_12] : memref<1x32xf32, #tpu.memory_space<vmem>>, vector<1x32xf32>
      %14 = vector.broadcast %13 : vector<1x32xf32> to vector<128x32xf32>
      %15 = arith.addf %12, %14 : vector<128x32xf32>
      %16 = arith.mulf %15, %15 : vector<128x32xf32>
      %c0_13 = arith.constant 0 : index
      %c0_14 = arith.constant 0 : index
      %17 = vector.load %arg5[%c0_13, %c0_14] : memref<32x32xf32, #tpu.memory_space<vmem>>, vector<32x32xf32>
      %cst_15 = arith.constant dense<0.000000e+00> : vector<128x32xf32>
      %18 = tpu.matmul %16, %17, %cst_15 {dimension_numbers = #tpu.dot_dimension_numbers<[1], [0], [0], [1], [0, 0, 1, 1], [], []>} : vector<128x32xf32>, vector<32x32xf32>, vector<128x32xf32> -> vector<128x32xf32>
      %c0_16 = arith.constant 0 : index
      %c0_17 = arith.constant 0 : index
      %19 = vector.load %arg6[%c0_16, %c0_17] : memref<1x32xf32, #tpu.memory_space<vmem>>, vector<1x32xf32>
      %20 = vector.broadcast %19 : vector<1x32xf32> to vector<128x32xf32>
      %21 = arith.addf %18, %20 : vector<128x32xf32>
      %22 = math.sqrt %21 : vector<128x32xf32>
      %23 = arith.mulf %15, %22 : vector<128x32xf32>
      %24 = arith.truncf %23 : vector<128x32xf32> to vector<128x32xbf16>
      %c0_18 = arith.constant 0 : index
      %c0_19 = arith.constant 0 : index
      %25 = vector.load %arg7[%c0_18, %c0_19] : memref<128x32xbf16, #tpu.memory_space<vmem>>, vector<128x32xbf16>
      tpu.vector_store %arg7[%c0_18, %c0_19], %24 {strides = array<i32>} : memref<128x32xbf16, #tpu.memory_space<vmem>>, vector<128x32xbf16>,
    } else {
    }
    return
  }
  func.func @transform_0(%arg0: i32, %arg1: i32) -> (i32, i32) {
    %c0_i32 = arith.constant 0 : i32
    return %arg0, %arg1 : i32, i32
  }
  func.func @transform_1(%arg0: i32, %arg1: i32) -> (i32, i32) {
    %c0_i32 = arith.constant 0 : i32
    %c0_i32_0 = arith.constant 0 : i32
    return %arg1, %c0_i32 : i32, i32
  }
  func.func @transform_2(%arg0: i32, %arg1: i32) -> (i32, i32) {
    %c0_i32 = arith.constant 0 : i32
    %c0_i32_0 = arith.constant 0 : i32
    %c0_i32_1 = arith.constant 0 : i32
    return %c0_i32, %c0_i32_0 : i32, i32
  }
  func.func @transform_3(%arg0: i32, %arg1: i32) -> (i32, i32) {
    %c0_i32 = arith.constant 0 : i32
    %c0_i32_0 = arith.constant 0 : i32
    %c0_i32_1 = arith.constant 0 : i32
    return %c0_i32, %c0_i32_0 : i32, i32
  }
  func.func @transform_4(%arg0: i32, %arg1: i32) -> (i32, i32) {
    %c0_i32 = arith.constant 0 : i32
    %c0_i32_0 = arith.constant 0 : i32
    %c0_i32_1 = arith.constant 0 : i32
    return %c0_i32, %c0_i32_0 : i32, i32
  }
  func.func @transform_5(%arg0: i32, %arg1: i32) -> (i32, i32) {
    %c0_i32 = arith.constant 0 : i32
    %c0_i32_0 = arith.constant 0 : i32
    return %arg0, %c0_i32 : i32, i32
  }
}

module attributes {stable_mosaic.version = 11 : i64} {
  func.func @_gemm_bias_gdn_kernel(%arg0: i32, %arg1: i32, %arg2: memref<128x800xbf16, #tpu.memory_space<vmem>>, %arg3: memref<800x16xbf16, #tpu.memory_space<vmem>>, %arg4: memref<1x16xf32, #tpu.memory_space<vmem>>, %arg5: memref<16x16xf32, #tpu.memory_space<vmem>>, %arg6: memref<1x16xf32, #tpu.memory_space<vmem>>, %arg7: memref<128x16xbf16, #tpu.memory_space<vmem>>, %arg8: memref<128x16xf32, #tpu.memory_space<vmem>>) attributes {dimension_semantics = [#tpu.dimension_semantics<parallel>, #tpu.dimension_semantics<arbitrary>], iteration_bounds = array<i64: 1, 1>, scalar_prefetch = 0 : i64, scratch_operands = 1 : i64, tpu.core_type = #tpu.core_type<tc>, window_params = [{transform_indices = @transform_0, window_bounds = array<i64: 128, 800>}, {transform_indices = @transform_1, window_bounds = array<i64: 800, 16>}, {pipeline_mode = #tpu.pipeline_mode<synchronous>, transform_indices = @transform_2, window_bounds = array<i64: 1, 16>}, {pipeline_mode = #tpu.pipeline_mode<synchronous>, transform_indices = @transform_3, window_bounds = array<i64: 16, 16>}, {pipeline_mode = #tpu.pipeline_mode<synchronous>, transform_indices = @transform_4, window_bounds = array<i64: 1, 16>}, {transform_indices = @transform_5, window_bounds = array<i64: 128, 16>}]} {
    %c0_i32 = arith.constant 0 : i32
    %0 = arith.cmpi eq, %arg1, %c0_i32 : i32
    %1 = arith.extui %0 : i1 to i32
    %c0_i32_0 = arith.constant 0 : i32
    %2 = arith.cmpi ne, %1, %c0_i32_0 : i32
    scf.if %2 {
      %cst_10 = arith.constant 0.000000e+00 : f32
      %12 = vector.broadcast %cst_10 : f32 to vector<128x16xf32>
      %c0_11 = arith.constant 0 : index
      %c0_12 = arith.constant 0 : index
      %13 = vector.load %arg8[%c0_11, %c0_12] : memref<128x16xf32, #tpu.memory_space<vmem>>, vector<128x16xf32>
      tpu.vector_store %arg8[%c0_11, %c0_12], %12 {strides = array<i32>} : memref<128x16xf32, #tpu.memory_space<vmem>>, vector<128x16xf32>,
    } else {
    }
    %c0 = arith.constant 0 : index
    %c0_1 = arith.constant 0 : index
    %3 = vector.load %arg8[%c0, %c0_1] : memref<128x16xf32, #tpu.memory_space<vmem>>, vector<128x16xf32>
    %c0_2 = arith.constant 0 : index
    %c0_3 = arith.constant 0 : index
    %4 = vector.load %arg2[%c0_2, %c0_3] : memref<128x800xbf16, #tpu.memory_space<vmem>>, vector<128x800xbf16>
    %c0_4 = arith.constant 0 : index
    %c0_5 = arith.constant 0 : index
    %5 = vector.load %arg3[%c0_4, %c0_5] : memref<800x16xbf16, #tpu.memory_space<vmem>>, vector<800x16xbf16>
    %cst = arith.constant dense<0.000000e+00> : vector<128x16xf32>
    %6 = tpu.matmul %4, %5, %cst {dimension_numbers = #tpu.dot_dimension_numbers<[1], [0], [0], [1], [0, 0, 1, 1], [], []>} : vector<128x800xbf16>, vector<800x16xbf16>, vector<128x16xf32> -> vector<128x16xf32>
    %7 = arith.addf %3, %6 : vector<128x16xf32>
    %c0_6 = arith.constant 0 : index
    %c0_7 = arith.constant 0 : index
    %8 = vector.load %arg8[%c0_6, %c0_7] : memref<128x16xf32, #tpu.memory_space<vmem>>, vector<128x16xf32>
    tpu.vector_store %arg8[%c0_6, %c0_7], %7 {strides = array<i32>} : memref<128x16xf32, #tpu.memory_space<vmem>>, vector<128x16xf32>,
    %c0_i32_8 = arith.constant 0 : i32
    %9 = arith.cmpi eq, %arg1, %c0_i32_8 : i32
    %10 = arith.extui %9 : i1 to i32
    %c0_i32_9 = arith.constant 0 : i32
    %11 = arith.cmpi ne, %10, %c0_i32_9 : i32
    scf.if %11 {
      %c0_10 = arith.constant 0 : index
      %c0_11 = arith.constant 0 : index
      %12 = vector.load %arg8[%c0_10, %c0_11] : memref<128x16xf32, #tpu.memory_space<vmem>>, vector<128x16xf32>
      %c0_12 = arith.constant 0 : index
      %c0_13 = arith.constant 0 : index
      %13 = vector.load %arg4[%c0_12, %c0_13] : memref<1x16xf32, #tpu.memory_space<vmem>>, vector<1x16xf32>
      %14 = vector.broadcast %13 : vector<1x16xf32> to vector<128x16xf32>
      %15 = arith.addf %12, %14 : vector<128x16xf32>
      %16 = arith.mulf %15, %15 : vector<128x16xf32>
      %c0_14 = arith.constant 0 : index
      %c0_15 = arith.constant 0 : index
      %17 = vector.load %arg5[%c0_14, %c0_15] : memref<16x16xf32, #tpu.memory_space<vmem>>, vector<16x16xf32>
      %cst_16 = arith.constant dense<0.000000e+00> : vector<128x16xf32>
      %18 = tpu.matmul %16, %17, %cst_16 {dimension_numbers = #tpu.dot_dimension_numbers<[1], [0], [0], [1], [0, 0, 1, 1], [], []>} : vector<128x16xf32>, vector<16x16xf32>, vector<128x16xf32> -> vector<128x16xf32>
      %c0_17 = arith.constant 0 : index
      %c0_18 = arith.constant 0 : index
      %19 = vector.load %arg6[%c0_17, %c0_18] : memref<1x16xf32, #tpu.memory_space<vmem>>, vector<1x16xf32>
      %20 = vector.broadcast %19 : vector<1x16xf32> to vector<128x16xf32>
      %21 = arith.addf %18, %20 : vector<128x16xf32>
      %22 = math.sqrt %21 : vector<128x16xf32>
      %23 = arith.mulf %15, %22 : vector<128x16xf32>
      %24 = arith.truncf %23 : vector<128x16xf32> to vector<128x16xbf16>
      %c0_19 = arith.constant 0 : index
      %c0_20 = arith.constant 0 : index
      %25 = vector.load %arg7[%c0_19, %c0_20] : memref<128x16xbf16, #tpu.memory_space<vmem>>, vector<128x16xbf16>
      tpu.vector_store %arg7[%c0_19, %c0_20], %24 {strides = array<i32>} : memref<128x16xbf16, #tpu.memory_space<vmem>>, vector<128x16xbf16>,
    } else {
    }
    return
  }
  func.func @transform_0(%arg0: i32, %arg1: i32) -> (i32, i32) {
    %c0_i32 = arith.constant 0 : i32
    return %arg0, %arg1 : i32, i32
  }
  func.func @transform_1(%arg0: i32, %arg1: i32) -> (i32, i32) {
    %c0_i32 = arith.constant 0 : i32
    %c0_i32_0 = arith.constant 0 : i32
    return %arg1, %c0_i32 : i32, i32
  }
  func.func @transform_2(%arg0: i32, %arg1: i32) -> (i32, i32) {
    %c0_i32 = arith.constant 0 : i32
    %c0_i32_0 = arith.constant 0 : i32
    %c0_i32_1 = arith.constant 0 : i32
    return %c0_i32, %c0_i32_0 : i32, i32
  }
  func.func @transform_3(%arg0: i32, %arg1: i32) -> (i32, i32) {
    %c0_i32 = arith.constant 0 : i32
    %c0_i32_0 = arith.constant 0 : i32
    %c0_i32_1 = arith.constant 0 : i32
    return %c0_i32, %c0_i32_0 : i32, i32
  }
  func.func @transform_4(%arg0: i32, %arg1: i32) -> (i32, i32) {
    %c0_i32 = arith.constant 0 : i32
    %c0_i32_0 = arith.constant 0 : i32
    %c0_i32_1 = arith.constant 0 : i32
    return %c0_i32, %c0_i32_0 : i32, i32
  }
  func.func @transform_5(%arg0: i32, %arg1: i32) -> (i32, i32) {
    %c0_i32 = arith.constant 0 : i32
    %c0_i32_0 = arith.constant 0 : i32
    return %arg0, %c0_i32 : i32, i32
  }
}

module attributes {stable_mosaic.version = 11 : i64} {
  func.func @_gemm_bias_gdn_kernel(%arg0: i32, %arg1: i32, %arg2: memref<256x400xbf16, #tpu.memory_space<vmem>>, %arg3: memref<400x8xbf16, #tpu.memory_space<vmem>>, %arg4: memref<1x8xf32, #tpu.memory_space<vmem>>, %arg5: memref<256x8xf32, #tpu.memory_space<vmem>>, %arg6: memref<256x8xf32, #tpu.memory_space<vmem>>) attributes {dimension_semantics = [#tpu.dimension_semantics<parallel>, #tpu.dimension_semantics<arbitrary>], iteration_bounds = array<i64: 2, 1>, scalar_prefetch = 0 : i64, scratch_operands = 1 : i64, tpu.core_type = #tpu.core_type<tc>, window_params = [{transform_indices = @transform_0, window_bounds = array<i64: 256, 400>}, {transform_indices = @transform_1, window_bounds = array<i64: 400, 8>}, {pipeline_mode = #tpu.pipeline_mode<synchronous>, transform_indices = @transform_2, window_bounds = array<i64: 1, 8>}, {transform_indices = @transform_3, window_bounds = array<i64: 256, 8>}]} {
    %c0_i32 = arith.constant 0 : i32
    %0 = arith.cmpi eq, %arg1, %c0_i32 : i32
    %1 = arith.extui %0 : i1 to i32
    %c0_i32_0 = arith.constant 0 : i32
    %2 = arith.cmpi ne, %1, %c0_i32_0 : i32
    scf.if %2 {
      %cst_10 = arith.constant 0.000000e+00 : f32
      %12 = vector.broadcast %cst_10 : f32 to vector<256x8xf32>
      %c0_11 = arith.constant 0 : index
      %c0_12 = arith.constant 0 : index
      %13 = vector.load %arg6[%c0_11, %c0_12] : memref<256x8xf32, #tpu.memory_space<vmem>>, vector<256x8xf32>
      tpu.vector_store %arg6[%c0_11, %c0_12], %12 {strides = array<i32>} : memref<256x8xf32, #tpu.memory_space<vmem>>, vector<256x8xf32>,
    } else {
    }
    %c0 = arith.constant 0 : index
    %c0_1 = arith.constant 0 : index
    %3 = vector.load %arg6[%c0, %c0_1] : memref<256x8xf32, #tpu.memory_space<vmem>>, vector<256x8xf32>
    %c0_2 = arith.constant 0 : index
    %c0_3 = arith.constant 0 : index
    %4 = vector.load %arg2[%c0_2, %c0_3] : memref<256x400xbf16, #tpu.memory_space<vmem>>, vector<256x400xbf16>
    %c0_4 = arith.constant 0 : index
    %c0_5 = arith.constant 0 : index
    %5 = vector.load %arg3[%c0_4, %c0_5] : memref<400x8xbf16, #tpu.memory_space<vmem>>, vector<400x8xbf16>
    %cst = arith.constant dense<0.000000e+00> : vector<256x8xf32>
    %6 = tpu.matmul %4, %5, %cst {dimension_numbers = #tpu.dot_dimension_numbers<[1], [0], [0], [1], [0, 0, 1, 1], [], []>} : vector<256x400xbf16>, vector<400x8xbf16>, vector<256x8xf32> -> vector<256x8xf32>
    %7 = arith.addf %3, %6 : vector<256x8xf32>
    %c0_6 = arith.constant 0 : index
    %c0_7 = arith.constant 0 : index
    %8 = vector.load %arg6[%c0_6, %c0_7] : memref<256x8xf32, #tpu.memory_space<vmem>>, vector<256x8xf32>
    tpu.vector_store %arg6[%c0_6, %c0_7], %7 {strides = array<i32>} : memref<256x8xf32, #tpu.memory_space<vmem>>, vector<256x8xf32>,
    %c0_i32_8 = arith.constant 0 : i32
    %9 = arith.cmpi eq, %arg1, %c0_i32_8 : i32
    %10 = arith.extui %9 : i1 to i32
    %c0_i32_9 = arith.constant 0 : i32
    %11 = arith.cmpi ne, %10, %c0_i32_9 : i32
    scf.if %11 {
      %c0_10 = arith.constant 0 : index
      %c0_11 = arith.constant 0 : index
      %12 = vector.load %arg6[%c0_10, %c0_11] : memref<256x8xf32, #tpu.memory_space<vmem>>, vector<256x8xf32>
      %c0_12 = arith.constant 0 : index
      %c0_13 = arith.constant 0 : index
      %13 = vector.load %arg4[%c0_12, %c0_13] : memref<1x8xf32, #tpu.memory_space<vmem>>, vector<1x8xf32>
      %14 = vector.broadcast %13 : vector<1x8xf32> to vector<256x8xf32>
      %15 = arith.addf %12, %14 : vector<256x8xf32>
      %c0_14 = arith.constant 0 : index
      %c0_15 = arith.constant 0 : index
      %16 = vector.load %arg5[%c0_14, %c0_15] : memref<256x8xf32, #tpu.memory_space<vmem>>, vector<256x8xf32>
      tpu.vector_store %arg5[%c0_14, %c0_15], %15 {strides = array<i32>} : memref<256x8xf32, #tpu.memory_space<vmem>>, vector<256x8xf32>,
    } else {
    }
    return
  }
  func.func @transform_0(%arg0: i32, %arg1: i32) -> (i32, i32) {
    %c0_i32 = arith.constant 0 : i32
    return %arg0, %arg1 : i32, i32
  }
  func.func @transform_1(%arg0: i32, %arg1: i32) -> (i32, i32) {
    %c0_i32 = arith.constant 0 : i32
    %c0_i32_0 = arith.constant 0 : i32
    return %arg1, %c0_i32 : i32, i32
  }
  func.func @transform_2(%arg0: i32, %arg1: i32) -> (i32, i32) {
    %c0_i32 = arith.constant 0 : i32
    %c0_i32_0 = arith.constant 0 : i32
    %c0_i32_1 = arith.constant 0 : i32
    return %c0_i32, %c0_i32_0 : i32, i32
  }
  func.func @transform_3(%arg0: i32, %arg1: i32) -> (i32, i32) {
    %c0_i32 = arith.constant 0 : i32
    %c0_i32_0 = arith.constant 0 : i32
    return %arg0, %c0_i32 : i32, i32
  }
}

</mosaic_0001>

<llo_original>
// kernel: forward.6
$region0: #{forward.6}
  #allocation0 [shape = 'u32[]', space=smem, size = 0x4, offset = 0x4, fixed_abs, tag = 'smem constant byte address 0x4 - core index']
  #allocation1 [shape = 'u32[144,128]{1,0:T(1,128)}', space=vmem, size = 0x12000, scoped, tag = 'internal scratch']
  #allocation2 [shape = 'f32[128,16]{1,0:T(8,128)}', space=vmem, size = 0x10000, scoped, tag = 'scratch operand']
  %s0 = inlined_call_operand.vmem [shape: bf16[128,200], index: 0, kind: input, shape index: {}]
  %s1 = inlined_call_operand.vmem [shape: bf16[200,16], index: 1, kind: input, shape index: {}]
  %s2 = inlined_call_operand.vmem [shape: f32[1,16], index: 2, kind: input, shape index: {}]
  %s3 = inlined_call_operand.vmem [shape: f32[16,16], index: 3, kind: input, shape index: {}]
  %s4 = inlined_call_operand.vmem [shape: f32[1,16], index: 4, kind: input, shape index: {}]
  %s5 = inlined_call_operand.vmem [shape: bf16[128,16], index: 5, kind: output, shape index: {}]
  %s6 = sld [smem:[#allocation0]]
  $region38: #{forward.6} parent=0
    _
  %s8 = ssub.s32 1, %s6
  %s9 = scalar_select 0, %s8, %s6
  // Predicated region
  $region2: #{forward.6} parent=0 // pred_check
    _
  $region3: #{forward.6} parent=0 // pred_check_branch
    %11 = sbr.rel (0) target = $region5
  $region4: #{forward.6} parent=0 // pred_region
    _
  $region5: #{forward.6} parent=0 // pred_fallthru
    _
  // Predicated region
  $region6: #{forward.6} parent=0 // pred_check
    _
  $region7: #{forward.6} parent=0 // pred_check_branch
    %13 = sbr.rel (0) target = $region9
  $region8: #{forward.6} parent=0 // pred_region
    _
  $region9: #{forward.6} parent=0 // pred_fallthru
    _
  // Predicated region
  $region10: #{forward.6} parent=0 // pred_check
    _
  $region11: #{forward.6} parent=0 // pred_check_branch
    %15 = sbr.rel (0) target = $region13
  $region12: #{forward.6} parent=0 // pred_region
    _
  $region13: #{forward.6} parent=0 // pred_fallthru
    _
  // Predicated region
  $region14: #{forward.6} parent=0 // pred_check
    _
  $region15: #{forward.6} parent=0 // pred_check_branch
    %17 = sbr.rel (0) target = $region17
  $region16: #{forward.6} parent=0 // pred_region
    _
  $region17: #{forward.6} parent=0 // pred_fallthru
    _
  // Predicated region
  $region18: #{forward.6} parent=0 // pred_check
    _
  $region19: #{forward.6} parent=0 // pred_check_branch
    %19 = sbr.rel (0) target = $region21
  $region20: #{forward.6} parent=0 // pred_region
    _
  $region21: #{forward.6} parent=0 // pred_fallthru
    _
  %p21 = scmp.eq.s32.totalorder 0, 0
  // Predicated region
  $region22: #{forward.6} parent=0 // pred_check
    %p22 = pneg %p21
  $region23: #{forward.6} parent=0 // pred_check_branch
    %24 = sbr.rel (%p22) target = $region25
  $region24: #{forward.6} parent=0 // pred_region
    %vm25 = vcmask 130048
    %26 = vst.msk [vmem:[#allocation2] sm:$0xff] %vm25, 0.0
    %27 = vst.msk [vmem:[#allocation2 + $0x8] sm:$0xff] %vm25, 0.0
    %28 = vst.msk [vmem:[#allocation2 + $0x10] sm:$0xff] %vm25, 0.0
    %29 = vst.msk [vmem:[#allocation2 + $0x18] sm:$0xff] %vm25, 0.0
    %30 = vst.msk [vmem:[#allocation2 + $0x20] sm:$0xff] %vm25, 0.0
    %31 = vst.msk [vmem:[#allocation2 + $0x28] sm:$0xff] %vm25, 0.0
    %32 = vst.msk [vmem:[#allocation2 + $0x30] sm:$0xff] %vm25, 0.0
    %33 = vst.msk [vmem:[#allocation2 + $0x38] sm:$0xff] %vm25, 0.0
    %34 = vst.msk [vmem:[#allocation2 + $0x40] sm:$0xff] %vm25, 0.0
    %35 = vst.msk [vmem:[#allocation2 + $0x48] sm:$0xff] %vm25, 0.0
    %36 = vst.msk [vmem:[#allocation2 + $0x50] sm:$0xff] %vm25, 0.0
    %37 = vst.msk [vmem:[#allocation2 + $0x58] sm:$0xff] %vm25, 0.0
    %38 = vst.msk [vmem:[#allocation2 + $0x60] sm:$0xff] %vm25, 0.0
    %39 = vst.msk [vmem:[#allocation2 + $0x68] sm:$0xff] %vm25, 0.0
    %40 = vst.msk [vmem:[#allocation2 + $0x70] sm:$0xff] %vm25, 0.0
    %41 = vst.msk [vmem:[#allocation2 + $0x78] sm:$0xff] %vm25, 0.0
  $region25: #{forward.6} parent=0 // pred_fallthru
    _
  %v42 = vld [vmem:[#allocation2] sm:$0xff]
  %v43 = vld [vmem:[#allocation2 + $0x8] sm:$0xff]
  %v44 = vld [vmem:[#allocation2 + $0x10] sm:$0xff]
  %v45 = vld [vmem:[#allocation2 + $0x18] sm:$0xff]
  %v46 = vld [vmem:[#allocation2 + $0x20] sm:$0xff]
  %v47 = vld [vmem:[#allocation2 + $0x28] sm:$0xff]
  %v48 = vld [vmem:[#allocation2 + $0x30] sm:$0xff]
  %v49 = vld [vmem:[#allocation2 + $0x38] sm:$0xff]
  %v50 = vld [vmem:[#allocation2 + $0x40] sm:$0xff]
  %v51 = vld [vmem:[#allocation2 + $0x48] sm:$0xff]
  %v52 = vld [vmem:[#allocation2 + $0x50] sm:$0xff]
  %v53 = vld [vmem:[#allocation2 + $0x58] sm:$0xff]
  %v54 = vld [vmem:[#allocation2 + $0x60] sm:$0xff]
  %v55 = vld [vmem:[#allocation2 + $0x68] sm:$0xff]
  %v56 = vld [vmem:[#allocation2 + $0x70] sm:$0xff]
  %v57 = vld [vmem:[#allocation2 + $0x78] sm:$0xff]
  %v58 = vld [vmem:[%s0] sm:$0xff]
  %v59 = vld [vmem:[%s0 + $0x8] sm:$0xff]
  %v60 = vld [vmem:[%s0 + $0x10] sm:$0xff]
  %v61 = vld [vmem:[%s0 + $0x18] sm:$0xff]
  %v62 = vld [vmem:[%s0 + $0x20] sm:$0xff]
  %v63 = vld [vmem:[%s0 + $0x28] sm:$0xff]
  %v64 = vld [vmem:[%s0 + $0x30] sm:$0xff]
  %v65 = vld [vmem:[%s0 + $0x38] sm:$0xff]
  %v66 = vld [vmem:[%s0 + $0x40] sm:$0xff]
  %v67 = vld [vmem:[%s0 + $0x48] sm:$0xff]
  %v68 = vld [vmem:[%s0 + $0x50] sm:$0xff]
  %v69 = vld [vmem:[%s0 + $0x58] sm:$0xff]
  %v70 = vld [vmem:[%s0 + $0x60] sm:$0xff]
  %v71 = vld [vmem:[%s0 + $0x68] sm:$0xff]
  %v72 = vld [vmem:[%s0 + $0x70] sm:$0xff]
  %v73 = vld [vmem:[%s0 + $0x78] sm:$0xff]
  %v74 = vld [vmem:[%s1] sm:$0xf]
  %v75 = vld [vmem:[%s1 + $0x4] sm:$0xf]
  %v76 = vld [vmem:[%s1 + $0x8] sm:$0xf]
  %v77 = vld [vmem:[%s1 + $0xc] sm:$0xf]
  %v78 = vld [vmem:[%s1 + $0x10] sm:$0xf]
  %v79 = vld [vmem:[%s1 + $0x14] sm:$0xf]
  %v80 = vld [vmem:[%s1 + $0x18] sm:$0xf]
  %v81 = vld [vmem:[%s1 + $0x1c] sm:$0xf]
  %v82 = vld [vmem:[%s1 + $0x20] sm:$0xf]
  %v83 = vld [vmem:[%s1 + $0x24] sm:$0xf]
  %v84 = vld [vmem:[%s1 + $0x28] sm:$0xf]
  %v85 = vld [vmem:[%s1 + $0x2c] sm:$0xf]
  %v86 = vld [vmem:[%s1 + $0x30] sm:$0xf]
  %v87 = vld [vmem:[%s1 + $0x34] sm:$0xf]
  %v88 = vld [vmem:[%s1 + $0x38] sm:$0xf]
  %v89 = vld [vmem:[%s1 + $0x3c] sm:$0xf]
  %v90 = vld [vmem:[%s1 + $0x40] sm:$0xf]
  %v91 = vld [vmem:[%s1 + $0x44] sm:$0xf]
  %v92 = vld [vmem:[%s1 + $0x48] sm:$0xf]
  %v93 = vld [vmem:[%s1 + $0x4c] sm:$0xf]
  %v94 = vld [vmem:[%s1 + $0x50] sm:$0xf]
  %v95 = vld [vmem:[%s1 + $0x54] sm:$0xf]
  %v96 = vld [vmem:[%s1 + $0x58] sm:$0xf]
  %v97 = vld [vmem:[%s1 + $0x5c] sm:$0xf]
  %v98 = vld [vmem:[%s1 + $0x60] sm:$0xf]
  %v115 = vunpack.c.l.b16 %v58
  %v116 = vunpack.c.h.b16 %v58
  %v117 = vunpack.c.l.b16 %v59
  %v118 = vunpack.c.h.b16 %v59
  %v119 = vunpack.c.l.b16 %v60
  %v120 = vunpack.c.h.b16 %v60
  %v121 = vunpack.c.l.b16 %v61
  %v122 = vunpack.c.h.b16 %v61
  %v123 = vunpack.c.l.b16 %v62
  %v124 = vunpack.c.h.b16 %v62
  %v125 = vunpack.c.l.b16 %v63
  %v126 = vunpack.c.h.b16 %v63
  %v127 = vunpack.c.l.b16 %v64
  %v128 = vunpack.c.h.b16 %v64
  %v129 = vunpack.c.l.b16 %v65
  %v130 = vunpack.c.h.b16 %v65
  %v131 = vunpack.c.l.b16 %v66
  %v132 = vunpack.c.h.b16 %v66
  %v133 = vunpack.c.l.b16 %v67
  %v134 = vunpack.c.h.b16 %v67
  %v135 = vunpack.c.l.b16 %v68
  %v136 = vunpack.c.h.b16 %v68
  %v137 = vunpack.c.l.b16 %v69
  %v138 = vunpack.c.h.b16 %v69
  %v139 = vunpack.c.l.b16 %v70
  %v140 = vunpack.c.h.b16 %v70
  %v141 = vunpack.c.l.b16 %v71
  %v142 = vunpack.c.h.b16 %v71
  %v143 = vunpack.c.l.b16 %v72
  %v144 = vunpack.c.h.b16 %v72
  %v145 = vunpack.c.l.b16 %v73
  %v146 = vunpack.c.h.b16 %v73
  %v147 = vpack.c.b16 %v117, %v115
  %v148 = vpack.c.b16 %v118, %v116
  %v149 = vpack.c.b16 %v121, %v119
  %v150 = vpack.c.b16 %v122, %v120
  %v151 = vpack.c.b16 %v125, %v123
  %v152 = vpack.c.b16 %v126, %v124
  %v153 = vpack.c.b16 %v129, %v127
  %v154 = vpack.c.b16 %v130, %v128
  %v155 = vpack.c.b16 %v133, %v131
  %v156 = vpack.c.b16 %v134, %v132
  %v157 = vpack.c.b16 %v137, %v135
  %v158 = vpack.c.b16 %v138, %v136
  %v159 = vpack.c.b16 %v141, %v139
  %v160 = vpack.c.b16 %v142, %v140
  %v161 = vpack.c.b16 %v145, %v143
  %v162 = vpack.c.b16 %v146, %v144
  %v196 = vunpack.c.l.b16 %v74
  %v197 = vunpack.c.l.b16 %v75
  %v198 = vunpack.c.l.b16 %v76
  %v199 = vunpack.c.l.b16 %v77
  %v200 = vunpack.c.l.b16 %v78
  %v201 = vunpack.c.l.b16 %v79
  %v202 = vunpack.c.l.b16 %v80
  %v203 = vunpack.c.l.b16 %v81
  %v204 = vunpack.c.l.b16 %v82
  %v205 = vunpack.c.l.b16 %v83
  %v206 = vunpack.c.l.b16 %v84
  %v207 = vunpack.c.l.b16 %v85
  %v208 = vunpack.c.l.b16 %v86
  %v209 = vunpack.c.l.b16 %v87
  %v210 = vunpack.c.l.b16 %v88
  %v211 = vunpack.c.l.b16 %v89
  %v212 = vunpack.c.l.b16 %v90
  %v213 = vunpack.c.l.b16 %v91
  %v214 = vunpack.c.l.b16 %v92
  %v215 = vunpack.c.l.b16 %v93
  %v216 = vunpack.c.l.b16 %v94
  %v217 = vunpack.c.l.b16 %v95
  %v218 = vunpack.c.l.b16 %v96
  %v219 = vunpack.c.l.b16 %v97
  %v220 = vunpack.c.l.b16 %v98
  %v221 = vpack.c.b16 %v197, %v196
  %v222 = vpack.c.b16 %v199, %v198
  %v223 = vpack.c.b16 %v201, %v200
  %v224 = vpack.c.b16 %v203, %v202
  %v225 = vpack.c.b16 %v205, %v204
  %v226 = vpack.c.b16 %v207, %v206
  %v227 = vpack.c.b16 %v209, %v208
  %v228 = vpack.c.b16 %v211, %v210
  %v229 = vpack.c.b16 %v213, %v212
  %v230 = vpack.c.b16 %v215, %v214
  %v231 = vpack.c.b16 %v217, %v216
  %v232 = vpack.c.b16 %v219, %v218
  %v233 = vpack.c.b16 %v220, %v220
  %vm246 = vcmask 588800
  %v248 = vsel %vm246, %v148, 0
  %v251 = vsel %vm246, %v150, 0
  %v254 = vsel %vm246, %v152, 0
  %v257 = vsel %vm246, %v154, 0
  %v260 = vsel %vm246, %v156, 0
  %v263 = vsel %vm246, %v158, 0
  %v266 = vsel %vm246, %v160, 0
  %v269 = vsel %vm246, %v162, 0
  %vm271 = vcmask 1043456
  %v273 = vsel %vm271, %v233, 0
  %275 = vmatprep.subr.bf16.mxu0 0
  %276 = vmatpush1.bf16.msra.mxu0 %v221
  %277 = vmatprep.subr.bf16.mxu0 0
  %278 = vmatpush1.bf16.msra.mxu0 %v222
  %279 = vmatprep.subr.bf16.mxu0 0
  %280 = vmatpush1.bf16.msra.mxu0 %v223
  %281 = vmatprep.subr.bf16.mxu0 0
  %282 = vmatpush1.bf16.msra.mxu0 %v224
  %283 = vmatprep.subr.bf16.mxu0 0
  %284 = vmatpush1.bf16.msra.mxu0 %v225
  %285 = vmatprep.subr.bf16.mxu0 0
  %286 = vmatpush1.bf16.msra.mxu0 %v226
  %287 = vmatprep.subr.bf16.mxu0 0
  %288 = vmatpush1.bf16.msra.mxu0 %v227
  %289 = vmatprep.subr.bf16.mxu0 0
  %290 = vmatpush1.bf16.msra.mxu0 %v228
  %291 = vmatprep.subr.bf16.mxu0 0
  %292 = vmatpush1.bf16.msra.mxu0 %v229
  %293 = vmatprep.subr.bf16.mxu0 0
  %294 = vmatpush1.bf16.msra.mxu0 %v230
  %295 = vmatprep.subr.bf16.mxu0 0
  %296 = vmatpush1.bf16.msra.mxu0 %v231
  %297 = vmatprep.subr.bf16.mxu0 0
  %298 = vmatpush1.bf16.msra.mxu0 %v232
  %299 = vmatprep.subr.bf16.mxu0 0
  %300 = vmatpush1.bf16.msra.mxu0 %v273
  %301 = vmatprep.subr.bf16.mxu0 0
  %302 = vmatpush1.bf16.msra.mxu0 0
  %303 = vmatprep.subr.bf16.mxu0 0
  %304 = vmatpush1.bf16.msra.mxu0 0
  %305 = vmatprep.subr.bf16.mxu0 0
  %306 = vmatpush1.bf16.msra.mxu0 0
  %307 = vmatprep.mubr.bf16.mxu0 %v248
  %308 = vmatmul.mubr.bf16.gmra.mrb[0].mxu0 %v147
  %v309 = vpop.f32.mrb[0].mxu0
  %v310 = vadd.f32 0.0, %v309
  %v311 = vpop.f32.mrb[0].mxu0
  %v312 = vpop.f32.mrb[0].mxu0
  %v313 = vadd.f32 0.0, %v312
  %v314 = vpop.f32.mrb[0].mxu0
  %315 = vmatprep.mubr.bf16.mxu0 %v251
  %316 = vmatmul.mubr.bf16.gmra.mrb[0].mxu0 %v149
  %v317 = vpop.f32.mrb[0].mxu0
  %v318 = vadd.f32 0.0, %v317
  %v319 = vpop.f32.mrb[0].mxu0
  %v320 = vpop.f32.mrb[0].mxu0
  %v321 = vadd.f32 0.0, %v320
  %v322 = vpop.f32.mrb[0].mxu0
  %323 = vmatprep.mubr.bf16.mxu0 %v254
  %324 = vmatmul.mubr.bf16.gmra.mrb[0].mxu0 %v151
  %v325 = vpop.f32.mrb[0].mxu0
  %v326 = vadd.f32 0.0, %v325
  %v327 = vpop.f32.mrb[0].mxu0
  %v328 = vpop.f32.mrb[0].mxu0
  %v329 = vadd.f32 0.0, %v328
  %v330 = vpop.f32.mrb[0].mxu0
  %331 = vmatprep.mubr.bf16.mxu0 %v257
  %332 = vmatmul.mubr.bf16.gmra.mrb[0].mxu0 %v153
  %v333 = vpop.f32.mrb[0].mxu0
  %v334 = vadd.f32 0.0, %v333
  %v335 = vpop.f32.mrb[0].mxu0
  %v336 = vpop.f32.mrb[0].mxu0
  %v337 = vadd.f32 0.0, %v336
  %v338 = vpop.f32.mrb[0].mxu0
  %339 = vmatprep.mubr.bf16.mxu0 %v260
  %340 = vmatmul.mubr.bf16.gmra.mrb[0].mxu0 %v155
  %v341 = vpop.f32.mrb[0].mxu0
  %v342 = vadd.f32 0.0, %v341
  %v343 = vpop.f32.mrb[0].mxu0
  %v344 = vpop.f32.mrb[0].mxu0
  %v345 = vadd.f32 0.0, %v344
  %v346 = vpop.f32.mrb[0].mxu0
  %347 = vmatprep.mubr.bf16.mxu0 %v263
  %348 = vmatmul.mubr.bf16.gmra.mrb[0].mxu0 %v157
  %v349 = vpop.f32.mrb[0].mxu0
  %v350 = vadd.f32 0.0, %v349
  %v351 = vpop.f32.mrb[0].mxu0
  %v352 = vpop.f32.mrb[0].mxu0
  %v353 = vadd.f32 0.0, %v352
  %v354 = vpop.f32.mrb[0].mxu0
  %355 = vmatprep.mubr.bf16.mxu0 %v266
  %356 = vmatmul.mubr.bf16.gmra.mrb[0].mxu0 %v159
  %v357 = vpop.f32.mrb[0].mxu0
  %v358 = vadd.f32 0.0, %v357
  %v359 = vpop.f32.mrb[0].mxu0
  %v360 = vpop.f32.mrb[0].mxu0
  %v361 = vadd.f32 0.0, %v360
  %v362 = vpop.f32.mrb[0].mxu0
  %363 = vmatprep.mubr.bf16.mxu0 %v269
  %364 = vmatmul.mubr.bf16.gmra.mrb[0].mxu0 %v161
  %v365 = vpop.f32.mrb[0].mxu0
  %v366 = vadd.f32 0.0, %v365
  %v367 = vpop.f32.mrb[0].mxu0
  %v368 = vpop.f32.mrb[0].mxu0
  %v369 = vadd.f32 0.0, %v368
  %v370 = vpop.f32.mrb[0].mxu0
  %371 = vdwg.mxu0
  %v372 = vadd.f32 %v42, %v310
  %v373 = vadd.f32 %v43, %v313
  %v374 = vadd.f32 %v44, %v318
  %v375 = vadd.f32 %v45, %v321
  %v376 = vadd.f32 %v46, %v326
  %v377 = vadd.f32 %v47, %v329
  %v378 = vadd.f32 %v48, %v334
  %v379 = vadd.f32 %v49, %v337
  %v380 = vadd.f32 %v50, %v342
  %v381 = vadd.f32 %v51, %v345
  %v382 = vadd.f32 %v52, %v350
  %v383 = vadd.f32 %v53, %v353
  %v384 = vadd.f32 %v54, %v358
  %v385 = vadd.f32 %v55, %v361
  %v386 = vadd.f32 %v56, %v366
  %v387 = vadd.f32 %v57, %v369
  %vm388 = vcmask 130048
  %389 = vst.msk [vmem:[#allocation2] sm:$0xff] %vm388, %v372
  %390 = vst.msk [vmem:[#allocation2 + $0x8] sm:$0xff] %vm388, %v373
  %391 = vst.msk [vmem:[#allocation2 + $0x10] sm:$0xff] %vm388, %v374
  %392 = vst.msk [vmem:[#allocation2 + $0x18] sm:$0xff] %vm388, %v375
  %393 = vst.msk [vmem:[#allocation2 + $0x20] sm:$0xff] %vm388, %v376
  %394 = vst.msk [vmem:[#allocation2 + $0x28] sm:$0xff] %vm388, %v377
  %395 = vst.msk [vmem:[#allocation2 + $0x30] sm:$0xff] %vm388, %v378
  %396 = vst.msk [vmem:[#allocation2 + $0x38] sm:$0xff] %vm388, %v379
  %397 = vst.msk [vmem:[#allocation2 + $0x40] sm:$0xff] %vm388, %v380
  %398 = vst.msk [vmem:[#allocation2 + $0x48] sm:$0xff] %vm388, %v381
  %399 = vst.msk [vmem:[#allocation2 + $0x50] sm:$0xff] %vm388, %v382
  %400 = vst.msk [vmem:[#allocation2 + $0x58] sm:$0xff] %vm388, %v383
  %401 = vst.msk [vmem:[#allocation2 + $0x60] sm:$0xff] %vm388, %v384
  %402 = vst.msk [vmem:[#allocation2 + $0x68] sm:$0xff] %vm388, %v385
  %403 = vst.msk [vmem:[#allocation2 + $0x70] sm:$0xff] %vm388, %v386
  %404 = vst.msk [vmem:[#allocation2 + $0x78] sm:$0xff] %vm388, %v387
  // Predicated region
  $region26: #{forward.6} parent=0 // pred_check
    %p405 = pneg %p21
  $region27: #{forward.6} parent=0 // pred_check_branch
    %407 = sbr.rel (%p405) target = $region29
  $region28: #{forward.6} parent=0 // pred_region
    %v408 = vld [vmem:[#allocation2] sm:$0xff]
    %v409 = vld [vmem:[#allocation2 + $0x8] sm:$0xff]
    %v410 = vld [vmem:[#allocation2 + $0x10] sm:$0xff]
    %v411 = vld [vmem:[#allocation2 + $0x18] sm:$0xff]
    %v412 = vld [vmem:[#allocation2 + $0x20] sm:$0xff]
    %v413 = vld [vmem:[#allocation2 + $0x28] sm:$0xff]
    %v414 = vld [vmem:[#allocation2 + $0x30] sm:$0xff]
    %v415 = vld [vmem:[#allocation2 + $0x38] sm:$0xff]
    %v416 = vld [vmem:[#allocation2 + $0x40] sm:$0xff]
    %v417 = vld [vmem:[#allocation2 + $0x48] sm:$0xff]
    %v418 = vld [vmem:[#allocation2 + $0x50] sm:$0xff]
    %v419 = vld [vmem:[#allocation2 + $0x58] sm:$0xff]
    %v420 = vld [vmem:[#allocation2 + $0x60] sm:$0xff]
    %v421 = vld [vmem:[#allocation2 + $0x68] sm:$0xff]
    %v422 = vld [vmem:[#allocation2 + $0x70] sm:$0xff]
    %v423 = vld [vmem:[#allocation2 + $0x78] sm:$0xff]
    %v424 = vld [vmem:[%s2] sm:$0x1]
    %v426 = vlaneseq
    %v427 = vshrl.u32 %v426, 7
    %v428 = vsub.s32 0, %v427
    %v429 = vrot.slane %v424, %v428
    %v431 = vadd.f32 %v408, %v429
    %v432 = vadd.f32 %v409, %v429
    %v433 = vadd.f32 %v410, %v429
    %v434 = vadd.f32 %v411, %v429
    %v435 = vadd.f32 %v412, %v429
    %v436 = vadd.f32 %v413, %v429
    %v437 = vadd.f32 %v414, %v429
    %v438 = vadd.f32 %v415, %v429
    %v439 = vadd.f32 %v416, %v429
    %v440 = vadd.f32 %v417, %v429
    %v441 = vadd.f32 %v418, %v429
    %v442 = vadd.f32 %v419, %v429
    %v443 = vadd.f32 %v420, %v429
    %v444 = vadd.f32 %v421, %v429
    %v445 = vadd.f32 %v422, %v429
    %v446 = vadd.f32 %v423, %v429
    %v447 = vmul.f32 %v431, %v431
    %v448 = vmul.f32 %v432, %v432
    %v449 = vmul.f32 %v433, %v433
    %v450 = vmul.f32 %v434, %v434
    %v451 = vmul.f32 %v435, %v435
    %v452 = vmul.f32 %v436, %v436
    %v453 = vmul.f32 %v437, %v437
    %v454 = vmul.f32 %v438, %v438
    %v455 = vmul.f32 %v439, %v439
    %v456 = vmul.f32 %v440, %v440
    %v457 = vmul.f32 %v441, %v441
    %v458 = vmul.f32 %v442, %v442
    %v459 = vmul.f32 %v443, %v443
    %v460 = vmul.f32 %v444, %v444
    %v461 = vmul.f32 %v445, %v445
    %v462 = vmul.f32 %v446, %v446
    %v463 = vld [vmem:[%s3] sm:$0xff]
    %v464 = vld [vmem:[%s3 + $0x8] sm:$0xff]
    %v465 = vld [vmem:[%s4] sm:$0x1]
    %v467 = vlaneseq
    %v468 = vshrl.u32 %v467, 7
    %v469 = vsub.s32 0, %v468
    %v470 = vrot.slane %v465, %v469
    %v473 = vsel %vm388, %v447, 0
    %v476 = vsel %vm388, %v448, 0
    %v479 = vsel %vm388, %v449, 0
    %v482 = vsel %vm388, %v450, 0
    %v485 = vsel %vm388, %v451, 0
    %v488 = vsel %vm388, %v452, 0
    %v491 = vsel %vm388, %v453, 0
    %v494 = vsel %vm388, %v454, 0
    %v497 = vsel %vm388, %v455, 0
    %v500 = vsel %vm388, %v456, 0
    %v503 = vsel %vm388, %v457, 0
    %v506 = vsel %vm388, %v458, 0
    %v509 = vsel %vm388, %v459, 0
    %v512 = vsel %vm388, %v460, 0
    %v515 = vsel %vm388, %v461, 0
    %v518 = vsel %vm388, %v462, 0
    %520 = vmatprep.subr.mxu0 0.0
    %521 = vmatpush1.msra.mxu0 %v463
    %522 = vmatprep.subr.mxu0 0.0
    %523 = vmatpush1.msra.mxu0 %v464
    %524 = vmatprep.subr.mxu0 0.0
    %525 = vmatpush1.msra.mxu0 0.0
    %526 = vmatprep.subr.mxu0 0.0
    %527 = vmatpush1.msra.mxu0 0.0
    %528 = vmatprep.subr.mxu0 0.0
    %529 = vmatpush1.msra.mxu0 0.0
    %530 = vmatprep.subr.mxu0 0.0
    %531 = vmatpush1.msra.mxu0 0.0
    %532 = vmatprep.subr.mxu0 0.0
    %533 = vmatpush1.msra.mxu0 0.0
    %534 = vmatprep.subr.mxu0 0.0
    %535 = vmatpush1.msra.mxu0 0.0
    %536 = vmatprep.subr.mxu0 0.0
    %537 = vmatpush1.msra.mxu0 0.0
    %538 = vmatprep.subr.mxu0 0.0
    %539 = vmatpush1.msra.mxu0 0.0
    %540 = vmatprep.subr.mxu0 0.0
    %541 = vmatpush1.msra.mxu0 0.0
    %542 = vmatprep.subr.mxu0 0.0
    %543 = vmatpush1.msra.mxu0 0.0
    %544 = vmatprep.subr.mxu0 0.0
    %545 = vmatpush1.msra.mxu0 0.0
    %546 = vmatprep.subr.mxu0 0.0
    %547 = vmatpush1.msra.mxu0 0.0
    %548 = vmatprep.subr.mxu0 0.0
    %549 = vmatpush1.msra.mxu0 0.0
    %550 = vmatprep.subr.mxu0 0.0
    %551 = vmatpush1.msra.mxu0 0.0
    %552 = vmatprep.subr.mxu0 0.0
    %553 = vmatpush1.msra.mxu0 0.0
    %554 = vmatprep.subr.mxu0 0.0
    %555 = vmatpush1.msra.mxu0 0.0
    %556 = vmatprep.subr.mxu0 0.0
    %557 = vmatpush1.msra.mxu0 0.0
    %558 = vmatprep.subr.mxu0 0.0
    %559 = vmatpush1.msra.mxu0 0.0
    %560 = vmatprep.subr.mxu0 0.0
    %561 = vmatpush1.msra.mxu0 0.0
    %562 = vmatprep.subr.mxu0 0.0
    %563 = vmatpush1.msra.mxu0 0.0
    %564 = vmatprep.subr.mxu0 0.0
    %565 = vmatpush1.msra.mxu0 0.0
    %566 = vmatprep.subr.mxu0 0.0
    %567 = vmatpush1.msra.mxu0 0.0
    %568 = vmatprep.subr.mxu0 0.0
    %569 = vmatpush1.msra.mxu0 0.0
    %570 = vmatprep.subr.mxu0 0.0
    %571 = vmatpush1.msra.mxu0 0.0
    %572 = vmatprep.subr.mxu0 0.0
    %573 = vmatpush1.msra.mxu0 0.0
    %574 = vmatprep.subr.mxu0 0.0
    %575 = vmatpush1.msra.mxu0 0.0
    %576 = vmatprep.subr.mxu0 0.0
    %577 = vmatpush1.msra.mxu0 0.0
    %578 = vmatprep.subr.mxu0 0.0
    %579 = vmatpush1.msra.mxu0 0.0
    %580 = vmatprep.subr.mxu0 0.0
    %581 = vmatpush1.msra.mxu0 0.0
    %582 = vmatprep.subr.mxu0 0.0
    %583 = vmatpush1.msra.mxu0 0.0
    %584 = vmatprep.mubr.f32.mxu0 0.0
    %585 = vmatmul.mubr.f32.gmra.mrb[0].mxu0 %v473
    %v586 = vpop.f32.mrb[0].mxu0
    %v587 = vadd.f32 %v470, %v586
    %v588 = vpop.f32.mrb[0].mxu0
    %589 = vmatprep.mubr.f32.mxu0 0.0
    %590 = vmatmul.mubr.f32.gmra.mrb[0].mxu0 %v476
    %v591 = vpop.f32.mrb[0].mxu0
    %v592 = vadd.f32 %v470, %v591
    %v593 = vpop.f32.mrb[0].mxu0
    %594 = vmatprep.mubr.f32.mxu0 0.0
    %595 = vmatmul.mubr.f32.gmra.mrb[0].mxu0 %v479
    %v596 = vpop.f32.mrb[0].mxu0
    %v597 = vadd.f32 %v470, %v596
    %v598 = vpop.f32.mrb[0].mxu0
    %599 = vmatprep.mubr.f32.mxu0 0.0
    %600 = vmatmul.mubr.f32.gmra.mrb[0].mxu0 %v482
    %v601 = vpop.f32.mrb[0].mxu0
    %v602 = vadd.f32 %v470, %v601
    %v603 = vpop.f32.mrb[0].mxu0
    %604 = vmatprep.mubr.f32.mxu0 0.0
    %605 = vmatmul.mubr.f32.gmra.mrb[0].mxu0 %v485
    %v606 = vpop.f32.mrb[0].mxu0
    %v607 = vadd.f32 %v470, %v606
    %v608 = vpop.f32.mrb[0].mxu0
    %609 = vmatprep.mubr.f32.mxu0 0.0
    %610 = vmatmul.mubr.f32.gmra.mrb[0].mxu0 %v488
    %v611 = vpop.f32.mrb[0].mxu0
    %v612 = vadd.f32 %v470, %v611
    %v613 = vpop.f32.mrb[0].mxu0
    %614 = vmatprep.mubr.f32.mxu0 0.0
    %615 = vmatmul.mubr.f32.gmra.mrb[0].mxu0 %v491
    %v616 = vpop.f32.mrb[0].mxu0
    %v617 = vadd.f32 %v470, %v616
    %v618 = vpop.f32.mrb[0].mxu0
    %619 = vmatprep.mubr.f32.mxu0 0.0
    %620 = vmatmul.mubr.f32.gmra.mrb[0].mxu0 %v494
    %v621 = vpop.f32.mrb[0].mxu0
    %v622 = vadd.f32 %v470, %v621
    %v623 = vpop.f32.mrb[0].mxu0
    %624 = vmatprep.mubr.f32.mxu0 0.0
    %625 = vmatmul.mubr.f32.gmra.mrb[0].mxu0 %v497
    %v626 = vpop.f32.mrb[0].mxu0
    %v627 = vadd.f32 %v470, %v626
    %v628 = vpop.f32.mrb[0].mxu0
    %629 = vmatprep.mubr.f32.mxu0 0.0
    %630 = vmatmul.mubr.f32.gmra.mrb[0].mxu0 %v500
    %v631 = vpop.f32.mrb[0].mxu0
    %v632 = vadd.f32 %v470, %v631
    %v633 = vpop.f32.mrb[0].mxu0
    %634 = vmatprep.mubr.f32.mxu0 0.0
    %635 = vmatmul.mubr.f32.gmra.mrb[0].mxu0 %v503
    %v636 = vpop.f32.mrb[0].mxu0
    %v637 = vadd.f32 %v470, %v636
    %v638 = vpop.f32.mrb[0].mxu0
    %639 = vmatprep.mubr.f32.mxu0 0.0
    %640 = vmatmul.mubr.f32.gmra.mrb[0].mxu0 %v506
    %v641 = vpop.f32.mrb[0].mxu0
    %v642 = vadd.f32 %v470, %v641
    %v643 = vpop.f32.mrb[0].mxu0
    %644 = vmatprep.mubr.f32.mxu0 0.0
    %645 = vmatmul.mubr.f32.gmra.mrb[0].mxu0 %v509
    %v646 = vpop.f32.mrb[0].mxu0
    %v647 = vadd.f32 %v470, %v646
    %v648 = vpop.f32.mrb[0].mxu0
    %649 = vmatprep.mubr.f32.mxu0 0.0
    %650 = vmatmul.mubr.f32.gmra.mrb[0].mxu0 %v512
    %v651 = vpop.f32.mrb[0].mxu0
    %v652 = vadd.f32 %v470, %v651
    %v653 = vpop.f32.mrb[0].mxu0
    %654 = vmatprep.mubr.f32.mxu0 0.0
    %655 = vmatmul.mubr.f32.gmra.mrb[0].mxu0 %v515
    %v656 = vpop.f32.mrb[0].mxu0
    %v657 = vadd.f32 %v470, %v656
    %v658 = vpop.f32.mrb[0].mxu0
    %659 = vmatprep.mubr.f32.mxu0 0.0
    %660 = vmatmul.mubr.f32.gmra.mrb[0].mxu0 %v518
    %v661 = vpop.f32.mrb[0].mxu0
    %v662 = vadd.f32 %v470, %v661
    %v663 = vpop.f32.mrb[0].mxu0
    %664 = vdwg.mxu0
    %v665 = vrsqrt.pop %v587
    %v666 = vrsqrt.pop %v592
    %v667 = vrsqrt.pop %v597
    %v668 = vrsqrt.pop %v602
    %v669 = vrsqrt.pop %v607
    %v670 = vrsqrt.pop %v612
    %v671 = vrsqrt.pop %v617
    %v672 = vrsqrt.pop %v622
    %v673 = vrsqrt.pop %v627
    %v674 = vrsqrt.pop %v632
    %v675 = vrsqrt.pop %v637
    %v676 = vrsqrt.pop %v642
    %v677 = vrsqrt.pop %v647
    %v678 = vrsqrt.pop %v652
    %v679 = vrsqrt.pop %v657
    %v680 = vrsqrt.pop %v662
    %v681 = vmul.f32 %v431, %v665
    %v682 = vmul.f32 %v432, %v666
    %v683 = vmul.f32 %v433, %v667
    %v684 = vmul.f32 %v434, %v668
    %v685 = vmul.f32 %v435, %v669
    %v686 = vmul.f32 %v436, %v670
    %v687 = vmul.f32 %v437, %v671
    %v688 = vmul.f32 %v438, %v672
    %v689 = vmul.f32 %v439, %v673
    %v690 = vmul.f32 %v440, %v674
    %v691 = vmul.f32 %v441, %v675
    %v692 = vmul.f32 %v442, %v676
    %v693 = vmul.f32 %v443, %v677
    %v694 = vmul.f32 %v444, %v678
    %v695 = vmul.f32 %v445, %v679
    %v696 = vmul.f32 %v446, %v680
    %v697 = vpack.c.bf16 %v682, %v681
    %v698 = vpack.c.bf16 %v684, %v683
    %v699 = vpack.c.bf16 %v686, %v685
    %v700 = vpack.c.bf16 %v688, %v687
    %v701 = vpack.c.bf16 %v690, %v689
    %v702 = vpack.c.bf16 %v692, %v691
    %v703 = vpack.c.bf16 %v694, %v693
    %v704 = vpack.c.bf16 %v696, %v695
    %v713 = vunpack.c.l.b16 %v697
    %v714 = vunpack.c.h.b16 %v697
    %v715 = vunpack.c.l.b16 %v698
    %v716 = vunpack.c.h.b16 %v698
    %v717 = vunpack.c.l.b16 %v699
    %v718 = vunpack.c.h.b16 %v699
    %v719 = vunpack.c.l.b16 %v700
    %v720 = vunpack.c.h.b16 %v700
    %v721 = vunpack.c.l.b16 %v701
    %v722 = vunpack.c.h.b16 %v701
    %v723 = vunpack.c.l.b16 %v702
    %v724 = vunpack.c.h.b16 %v702
    %v725 = vunpack.c.l.b16 %v703
    %v726 = vunpack.c.h.b16 %v703
    %v727 = vunpack.c.l.b16 %v704
    %v728 = vunpack.c.h.b16 %v704
    %v729 = vpack.c.b16 %v713, %v713
    %v730 = vpack.c.b16 %v714, %v714
    %v731 = vpack.c.b16 %v715, %v715
    %v732 = vpack.c.b16 %v716, %v716
    %v733 = vpack.c.b16 %v717, %v717
    %v734 = vpack.c.b16 %v718, %v718
    %v735 = vpack.c.b16 %v719, %v719
    %v736 = vpack.c.b16 %v720, %v720
    %v737 = vpack.c.b16 %v721, %v721
    %v738 = vpack.c.b16 %v722, %v722
    %v739 = vpack.c.b16 %v723, %v723
    %v740 = vpack.c.b16 %v724, %v724
    %v741 = vpack.c.b16 %v725, %v725
    %v742 = vpack.c.b16 %v726, %v726
    %v743 = vpack.c.b16 %v727, %v727
    %v744 = vpack.c.b16 %v728, %v728
    %vm761 = vcmask 125952
    %762 = vst.msk [vmem:[%s5] sm:$0xf] %vm761, %v729
    %763 = vst.msk [vmem:[%s5 + $0x4] sm:$0xf] %vm761, %v730
    %764 = vst.msk [vmem:[%s5 + $0x8] sm:$0xf] %vm761, %v731
    %765 = vst.msk [vmem:[%s5 + $0xc] sm:$0xf] %vm761, %v732
    %766 = vst.msk [vmem:[%s5 + $0x10] sm:$0xf] %vm761, %v733
    %767 = vst.msk [vmem:[%s5 + $0x14] sm:$0xf] %vm761, %v734
    %768 = vst.msk [vmem:[%s5 + $0x18] sm:$0xf] %vm761, %v735
    %769 = vst.msk [vmem:[%s5 + $0x1c] sm:$0xf] %vm761, %v736
    %770 = vst.msk [vmem:[%s5 + $0x20] sm:$0xf] %vm761, %v737
    %771 = vst.msk [vmem:[%s5 + $0x24] sm:$0xf] %vm761, %v738
    %772 = vst.msk [vmem:[%s5 + $0x28] sm:$0xf] %vm761, %v739
    %773 = vst.msk [vmem:[%s5 + $0x2c] sm:$0xf] %vm761, %v740
    %774 = vst.msk [vmem:[%s5 + $0x30] sm:$0xf] %vm761, %v741
    %775 = vst.msk [vmem:[%s5 + $0x34] sm:$0xf] %vm761, %v742
    %776 = vst.msk [vmem:[%s5 + $0x38] sm:$0xf] %vm761, %v743
    %777 = vst.msk [vmem:[%s5 + $0x3c] sm:$0xf] %vm761, %v744
  $region29: #{forward.6} parent=0 // pred_fallthru
    _
  // Predicated region
  $region30: #{forward.6} parent=0 // pred_check
    _
  $region31: #{forward.6} parent=0 // pred_check_branch
    %779 = sbr.rel (0) target = $region33
  $region32: #{forward.6} parent=0 // pred_region
    _
  $region33: #{forward.6} parent=0 // pred_fallthru
    _
  // Predicated region
  $region34: #{forward.6} parent=0 // pred_check
    _
  $region35: #{forward.6} parent=0 // pred_check_branch
    %781 = sbr.rel (0) target = $region37
  $region36: #{forward.6} parent=0 // pred_region
    _
  $region37: #{forward.6} parent=0 // pred_fallthru
    _

// kernel: forward.7
$region0: #{forward.7}
  #allocation0 [shape = 'u32[]', space=smem, size = 0x4, offset = 0x4, fixed_abs, tag = 'smem constant byte address 0x4 - core index']
  #allocation1 [shape = 'u32[144,128]{1,0:T(1,128)}', space=vmem, size = 0x12000, scoped, tag = 'internal scratch']
  #allocation2 [shape = 'f32[128,32]{1,0:T(8,128)}', space=vmem, size = 0x10000, scoped, tag = 'scratch operand']
  %s0 = inlined_call_operand.vmem [shape: bf16[128,400], index: 0, kind: input, shape index: {}]
  %s1 = inlined_call_operand.vmem [shape: bf16[400,32], index: 1, kind: input, shape index: {}]
  %s2 = inlined_call_operand.vmem [shape: f32[1,32], index: 2, kind: input, shape index: {}]
  %s3 = inlined_call_operand.vmem [shape: f32[32,32], index: 3, kind: input, shape index: {}]
  %s4 = inlined_call_operand.vmem [shape: f32[1,32], index: 4, kind: input, shape index: {}]
  %s5 = inlined_call_operand.vmem [shape: bf16[128,32], index: 5, kind: output, shape index: {}]
  %s6 = sld [smem:[#allocation0]]
  $region38: #{forward.7} parent=0
    _
  %s8 = ssub.s32 1, %s6
  %s9 = scalar_select 0, %s8, %s6
  // Predicated region
  $region2: #{forward.7} parent=0 // pred_check
    _
  $region3: #{forward.7} parent=0 // pred_check_branch
    %11 = sbr.rel (0) target = $region5
  $region4: #{forward.7} parent=0 // pred_region
    _
  $region5: #{forward.7} parent=0 // pred_fallthru
    _
  // Predicated region
  $region6: #{forward.7} parent=0 // pred_check
    _
  $region7: #{forward.7} parent=0 // pred_check_branch
    %13 = sbr.rel (0) target = $region9
  $region8: #{forward.7} parent=0 // pred_region
    _
  $region9: #{forward.7} parent=0 // pred_fallthru
    _
  // Predicated region
  $region10: #{forward.7} parent=0 // pred_check
    _
  $region11: #{forward.7} parent=0 // pred_check_branch
    %15 = sbr.rel (0) target = $region13
  $region12: #{forward.7} parent=0 // pred_region
    _
  $region13: #{forward.7} parent=0 // pred_fallthru
    _
  // Predicated region
  $region14: #{forward.7} parent=0 // pred_check
    _
  $region15: #{forward.7} parent=0 // pred_check_branch
    %17 = sbr.rel (0) target = $region17
  $region16: #{forward.7} parent=0 // pred_region
    _
  $region17: #{forward.7} parent=0 // pred_fallthru
    _
  // Predicated region
  $region18: #{forward.7} parent=0 // pred_check
    _
  $region19: #{forward.7} parent=0 // pred_check_branch
    %19 = sbr.rel (0) target = $region21
  $region20: #{forward.7} parent=0 // pred_region
    _
  $region21: #{forward.7} parent=0 // pred_fallthru
    _
  %p21 = scmp.eq.s32.totalorder 0, 0
  // Predicated region
  $region22: #{forward.7} parent=0 // pred_check
    %p22 = pneg %p21
  $region23: #{forward.7} parent=0 // pred_check_branch
    %24 = sbr.rel (%p22) target = $region25
  $region24: #{forward.7} parent=0 // pred_region
    %vm25 = vcmask 261120
    %26 = vst.msk [vmem:[#allocation2] sm:$0xff] %vm25, 0.0
    %27 = vst.msk [vmem:[#allocation2 + $0x8] sm:$0xff] %vm25, 0.0
    %28 = vst.msk [vmem:[#allocation2 + $0x10] sm:$0xff] %vm25, 0.0
    %29 = vst.msk [vmem:[#allocation2 + $0x18] sm:$0xff] %vm25, 0.0
    %30 = vst.msk [vmem:[#allocation2 + $0x20] sm:$0xff] %vm25, 0.0
    %31 = vst.msk [vmem:[#allocation2 + $0x28] sm:$0xff] %vm25, 0.0
    %32 = vst.msk [vmem:[#allocation2 + $0x30] sm:$0xff] %vm25, 0.0
    %33 = vst.msk [vmem:[#allocation2 + $0x38] sm:$0xff] %vm25, 0.0
    %34 = vst.msk [vmem:[#allocation2 + $0x40] sm:$0xff] %vm25, 0.0
    %35 = vst.msk [vmem:[#allocation2 + $0x48] sm:$0xff] %vm25, 0.0
    %36 = vst.msk [vmem:[#allocation2 + $0x50] sm:$0xff] %vm25, 0.0
    %37 = vst.msk [vmem:[#allocation2 + $0x58] sm:$0xff] %vm25, 0.0
    %38 = vst.msk [vmem:[#allocation2 + $0x60] sm:$0xff] %vm25, 0.0
    %39 = vst.msk [vmem:[#allocation2 + $0x68] sm:$0xff] %vm25, 0.0
    %40 = vst.msk [vmem:[#allocation2 + $0x70] sm:$0xff] %vm25, 0.0
    %41 = vst.msk [vmem:[#allocation2 + $0x78] sm:$0xff] %vm25, 0.0
  $region25: #{forward.7} parent=0 // pred_fallthru
    _
  %v42 = vld [vmem:[#allocation2] sm:$0xff]
  %v43 = vld [vmem:[#allocation2 + $0x8] sm:$0xff]
  %v44 = vld [vmem:[#allocation2 + $0x10] sm:$0xff]
  %v45 = vld [vmem:[#allocation2 + $0x18] sm:$0xff]
  %v46 = vld [vmem:[#allocation2 + $0x20] sm:$0xff]
  %v47 = vld [vmem:[#allocation2 + $0x28] sm:$0xff]
  %v48 = vld [vmem:[#allocation2 + $0x30] sm:$0xff]
  %v49 = vld [vmem:[#allocation2 + $0x38] sm:$0xff]
  %v50 = vld [vmem:[#allocation2 + $0x40] sm:$0xff]
  %v51 = vld [vmem:[#allocation2 + $0x48] sm:$0xff]
  %v52 = vld [vmem:[#allocation2 + $0x50] sm:$0xff]
  %v53 = vld [vmem:[#allocation2 + $0x58] sm:$0xff]
  %v54 = vld [vmem:[#allocation2 + $0x60] sm:$0xff]
  %v55 = vld [vmem:[#allocation2 + $0x68] sm:$0xff]
  %v56 = vld [vmem:[#allocation2 + $0x70] sm:$0xff]
  %v57 = vld [vmem:[#allocation2 + $0x78] sm:$0xff]
  %v58 = vld [vmem:[%s0] sm:$0xff]
  %v59 = vld [vmem:[%s0 + $0x8] sm:$0xff]
  %v60 = vld [vmem:[%s0 + $0x10] sm:$0xff]
  %v61 = vld [vmem:[%s0 + $0x18] sm:$0xff]
  %v62 = vld [vmem:[%s0 + $0x20] sm:$0xff]
  %v63 = vld [vmem:[%s0 + $0x28] sm:$0xff]
  %v64 = vld [vmem:[%s0 + $0x30] sm:$0xff]
  %v65 = vld [vmem:[%s0 + $0x38] sm:$0xff]
  %v66 = vld [vmem:[%s0 + $0x40] sm:$0xff]
  %v67 = vld [vmem:[%s0 + $0x48] sm:$0xff]
  %v68 = vld [vmem:[%s0 + $0x50] sm:$0xff]
  %v69 = vld [vmem:[%s0 + $0x58] sm:$0xff]
  %v70 = vld [vmem:[%s0 + $0x60] sm:$0xff]
  %v71 = vld [vmem:[%s0 + $0x68] sm:$0xff]
  %v72 = vld [vmem:[%s0 + $0x70] sm:$0xff]
  %v73 = vld [vmem:[%s0 + $0x78] sm:$0xff]
  %v74 = vld [vmem:[%s0 + $0x80] sm:$0xff]
  %v75 = vld [vmem:[%s0 + $0x88] sm:$0xff]
  %v76 = vld [vmem:[%s0 + $0x90] sm:$0xff]
  %v77 = vld [vmem:[%s0 + $0x98] sm:$0xff]
  %v78 = vld [vmem:[%s0 + $0xa0] sm:$0xff]
  %v79 = vld [vmem:[%s0 + $0xa8] sm:$0xff]
  %v80 = vld [vmem:[%s0 + $0xb0] sm:$0xff]
  %v81 = vld [vmem:[%s0 + $0xb8] sm:$0xff]
  %v82 = vld [vmem:[%s0 + $0xc0] sm:$0xff]
  %v83 = vld [vmem:[%s0 + $0xc8] sm:$0xff]
  %v84 = vld [vmem:[%s0 + $0xd0] sm:$0xff]
  %v85 = vld [vmem:[%s0 + $0xd8] sm:$0xff]
  %v86 = vld [vmem:[%s0 + $0xe0] sm:$0xff]
  %v87 = vld [vmem:[%s0 + $0xe8] sm:$0xff]
  %v88 = vld [vmem:[%s0 + $0xf0] sm:$0xff]
  %v89 = vld [vmem:[%s0 + $0xf8] sm:$0xff]
  %v90 = vld [vmem:[%s1] sm:$0xf]
  %v91 = vld [vmem:[%s1 + $0x4] sm:$0xf]
  %v92 = vld [vmem:[%s1 + $0x8] sm:$0xf]
  %v93 = vld [vmem:[%s1 + $0xc] sm:$0xf]
  %v94 = vld [vmem:[%s1 + $0x10] sm:$0xf]
  %v95 = vld [vmem:[%s1 + $0x14] sm:$0xf]
  %v96 = vld [vmem:[%s1 + $0x18] sm:$0xf]
  %v97 = vld [vmem:[%s1 + $0x1c] sm:$0xf]
  %v98 = vld [vmem:[%s1 + $0x20] sm:$0xf]
  %v99 = vld [vmem:[%s1 + $0x24] sm:$0xf]
  %v100 = vld [vmem:[%s1 + $0x28] sm:$0xf]
  %v101 = vld [vmem:[%s1 + $0x2c] sm:$0xf]
  %v102 = vld [vmem:[%s1 + $0x30] sm:$0xf]
  %v103 = vld [vmem:[%s1 + $0x34] sm:$0xf]
  %v104 = vld [vmem:[%s1 + $0x38] sm:$0xf]
  %v105 = vld [vmem:[%s1 + $0x3c] sm:$0xf]
  %v106 = vld [vmem:[%s1 + $0x40] sm:$0xf]
  %v107 = vld [vmem:[%s1 + $0x44] sm:$0xf]
  %v108 = vld [vmem:[%s1 + $0x48] sm:$0xf]
  %v109 = vld [vmem:[%s1 + $0x4c] sm:$0xf]
  %v110 = vld [vmem:[%s1 + $0x50] sm:$0xf]
  %v111 = vld [vmem:[%s1 + $0x54] sm:$0xf]
  %v112 = vld [vmem:[%s1 + $0x58] sm:$0xf]
  %v113 = vld [vmem:[%s1 + $0x5c] sm:$0xf]
  %v114 = vld [vmem:[%s1 + $0x60] sm:$0xf]
  %v115 = vld [vmem:[%s1 + $0x64] sm:$0xf]
  %v116 = vld [vmem:[%s1 + $0x68] sm:$0xf]
  %v117 = vld [vmem:[%s1 + $0x6c] sm:$0xf]
  %v118 = vld [vmem:[%s1 + $0x70] sm:$0xf]
  %v119 = vld [vmem:[%s1 + $0x74] sm:$0xf]
  %v120 = vld [vmem:[%s1 + $0x78] sm:$0xf]
  %v121 = vld [vmem:[%s1 + $0x7c] sm:$0xf]
  %v122 = vld [vmem:[%s1 + $0x80] sm:$0xf]
  %v123 = vld [vmem:[%s1 + $0x84] sm:$0xf]
  %v124 = vld [vmem:[%s1 + $0x88] sm:$0xf]
  %v125 = vld [vmem:[%s1 + $0x8c] sm:$0xf]
  %v126 = vld [vmem:[%s1 + $0x90] sm:$0xf]
  %v127 = vld [vmem:[%s1 + $0x94] sm:$0xf]
  %v128 = vld [vmem:[%s1 + $0x98] sm:$0xf]
  %v129 = vld [vmem:[%s1 + $0x9c] sm:$0xf]
  %v130 = vld [vmem:[%s1 + $0xa0] sm:$0xf]
  %v131 = vld [vmem:[%s1 + $0xa4] sm:$0xf]
  %v132 = vld [vmem:[%s1 + $0xa8] sm:$0xf]
  %v133 = vld [vmem:[%s1 + $0xac] sm:$0xf]
  %v134 = vld [vmem:[%s1 + $0xb0] sm:$0xf]
  %v135 = vld [vmem:[%s1 + $0xb4] sm:$0xf]
  %v136 = vld [vmem:[%s1 + $0xb8] sm:$0xf]
  %v137 = vld [vmem:[%s1 + $0xbc] sm:$0xf]
  %v138 = vld [vmem:[%s1 + $0xc0] sm:$0xf]
  %v139 = vld [vmem:[%s1 + $0xc4] sm:$0xf]
  %v172 = vunpack.c.l.b16 %v58
  %v173 = vunpack.c.h.b16 %v58
  %v174 = vunpack.c.l.b16 %v59
  %v175 = vunpack.c.h.b16 %v59
  %v176 = vunpack.c.l.b16 %v60
  %v177 = vunpack.c.h.b16 %v60
  %v178 = vunpack.c.l.b16 %v61
  %v179 = vunpack.c.h.b16 %v61
  %v180 = vunpack.c.l.b16 %v62
  %v181 = vunpack.c.h.b16 %v62
  %v182 = vunpack.c.l.b16 %v63
  %v183 = vunpack.c.h.b16 %v63
  %v184 = vunpack.c.l.b16 %v64
  %v185 = vunpack.c.h.b16 %v64
  %v186 = vunpack.c.l.b16 %v65
  %v187 = vunpack.c.h.b16 %v65
  %v188 = vunpack.c.l.b16 %v66
  %v189 = vunpack.c.h.b16 %v66
  %v190 = vunpack.c.l.b16 %v67
  %v191 = vunpack.c.h.b16 %v67
  %v192 = vunpack.c.l.b16 %v68
  %v193 = vunpack.c.h.b16 %v68
  %v194 = vunpack.c.l.b16 %v69
  %v195 = vunpack.c.h.b16 %v69
  %v196 = vunpack.c.l.b16 %v70
  %v197 = vunpack.c.h.b16 %v70
  %v198 = vunpack.c.l.b16 %v71
  %v199 = vunpack.c.h.b16 %v71
  %v200 = vunpack.c.l.b16 %v72
  %v201 = vunpack.c.h.b16 %v72
  %v202 = vunpack.c.l.b16 %v73
  %v203 = vunpack.c.h.b16 %v73
  %v204 = vunpack.c.l.b16 %v74
  %v205 = vunpack.c.h.b16 %v74
  %v206 = vunpack.c.l.b16 %v75
  %v207 = vunpack.c.h.b16 %v75
  %v208 = vunpack.c.l.b16 %v76
  %v209 = vunpack.c.h.b16 %v76
  %v210 = vunpack.c.l.b16 %v77
  %v211 = vunpack.c.h.b16 %v77
  %v212 = vunpack.c.l.b16 %v78
  %v213 = vunpack.c.h.b16 %v78
  %v214 = vunpack.c.l.b16 %v79
  %v215 = vunpack.c.h.b16 %v79
  %v216 = vunpack.c.l.b16 %v80
  %v217 = vunpack.c.h.b16 %v80
  %v218 = vunpack.c.l.b16 %v81
  %v219 = vunpack.c.h.b16 %v81
  %v220 = vunpack.c.l.b16 %v82
  %v221 = vunpack.c.h.b16 %v82
  %v222 = vunpack.c.l.b16 %v83
  %v223 = vunpack.c.h.b16 %v83
  %v224 = vunpack.c.l.b16 %v84
  %v225 = vunpack.c.h.b16 %v84
  %v226 = vunpack.c.l.b16 %v85
  %v227 = vunpack.c.h.b16 %v85
  %v228 = vunpack.c.l.b16 %v86
  %v229 = vunpack.c.h.b16 %v86
  %v230 = vunpack.c.l.b16 %v87
  %v231 = vunpack.c.h.b16 %v87
  %v232 = vunpack.c.l.b16 %v88
  %v233 = vunpack.c.h.b16 %v88
  %v234 = vunpack.c.l.b16 %v89
  %v235 = vunpack.c.h.b16 %v89
  %v236 = vpack.c.b16 %v176, %v172
  %v237 = vpack.c.b16 %v177, %v173
  %v238 = vpack.c.b16 %v178, %v174
  %v239 = vpack.c.b16 %v179, %v175
  %v240 = vpack.c.b16 %v184, %v180
  %v241 = vpack.c.b16 %v185, %v181
  %v242 = vpack.c.b16 %v186, %v182
  %v243 = vpack.c.b16 %v187, %v183
  %v244 = vpack.c.b16 %v192, %v188
  %v245 = vpack.c.b16 %v193, %v189
  %v246 = vpack.c.b16 %v194, %v190
  %v247 = vpack.c.b16 %v195, %v191
  %v248 = vpack.c.b16 %v200, %v196
  %v249 = vpack.c.b16 %v201, %v197
  %v250 = vpack.c.b16 %v202, %v198
  %v251 = vpack.c.b16 %v203, %v199
  %v252 = vpack.c.b16 %v208, %v204
  %v253 = vpack.c.b16 %v209, %v205
  %v254 = vpack.c.b16 %v210, %v206
  %v255 = vpack.c.b16 %v211, %v207
  %v256 = vpack.c.b16 %v216, %v212
  %v257 = vpack.c.b16 %v217, %v213
  %v258 = vpack.c.b16 %v218, %v214
  %v259 = vpack.c.b16 %v219, %v215
  %v260 = vpack.c.b16 %v224, %v220
  %v261 = vpack.c.b16 %v225, %v221
  %v262 = vpack.c.b16 %v226, %v222
  %v263 = vpack.c.b16 %v227, %v223
  %v264 = vpack.c.b16 %v232, %v228
  %v265 = vpack.c.b16 %v233, %v229
  %v266 = vpack.c.b16 %v234, %v230
  %v267 = vpack.c.b16 %v235, %v231
  %v342 = vunpack.c.l.b16 %v90
  %v343 = vunpack.c.l.b16 %v91
  %v344 = vunpack.c.l.b16 %v92
  %v345 = vunpack.c.l.b16 %v93
  %v346 = vunpack.c.l.b16 %v94
  %v347 = vunpack.c.l.b16 %v95
  %v348 = vunpack.c.l.b16 %v96
  %v349 = vunpack.c.l.b16 %v97
  %v350 = vunpack.c.l.b16 %v98
  %v351 = vunpack.c.l.b16 %v99
  %v352 = vunpack.c.l.b16 %v100
  %v353 = vunpack.c.l.b16 %v101
  %v354 = vunpack.c.l.b16 %v102
  %v355 = vunpack.c.l.b16 %v103
  %v356 = vunpack.c.l.b16 %v104
  %v357 = vunpack.c.l.b16 %v105
  %v358 = vunpack.c.l.b16 %v106
  %v359 = vunpack.c.l.b16 %v107
  %v360 = vunpack.c.l.b16 %v108
  %v361 = vunpack.c.l.b16 %v109
  %v362 = vunpack.c.l.b16 %v110
  %v363 = vunpack.c.l.b16 %v111
  %v364 = vunpack.c.l.b16 %v112
  %v365 = vunpack.c.l.b16 %v113
  %v366 = vunpack.c.l.b16 %v114
  %v367 = vunpack.c.l.b16 %v115
  %v368 = vunpack.c.l.b16 %v116
  %v369 = vunpack.c.l.b16 %v117
  %v370 = vunpack.c.l.b16 %v118
  %v371 = vunpack.c.l.b16 %v119
  %v372 = vunpack.c.l.b16 %v120
  %v373 = vunpack.c.l.b16 %v121
  %v374 = vunpack.c.l.b16 %v122
  %v375 = vunpack.c.l.b16 %v123
  %v376 = vunpack.c.l.b16 %v124
  %v377 = vunpack.c.l.b16 %v125
  %v378 = vunpack.c.l.b16 %v126
  %v379 = vunpack.c.l.b16 %v127
  %v380 = vunpack.c.l.b16 %v128
  %v381 = vunpack.c.l.b16 %v129
  %v382 = vunpack.c.l.b16 %v130
  %v383 = vunpack.c.l.b16 %v131
  %v384 = vunpack.c.l.b16 %v132
  %v385 = vunpack.c.l.b16 %v133
  %v386 = vunpack.c.l.b16 %v134
  %v387 = vunpack.c.l.b16 %v135
  %v388 = vunpack.c.l.b16 %v136
  %v389 = vunpack.c.l.b16 %v137
  %v390 = vunpack.c.l.b16 %v138
  %v391 = vunpack.c.l.b16 %v139
  %v392 = vpack.c.b16 %v343, %v342
  %v393 = vpack.c.b16 %v345, %v344
  %v394 = vpack.c.b16 %v347, %v346
  %v395 = vpack.c.b16 %v349, %v348
  %v396 = vpack.c.b16 %v351, %v350
  %v397 = vpack.c.b16 %v353, %v352
  %v398 = vpack.c.b16 %v355, %v354
  %v399 = vpack.c.b16 %v357, %v356
  %v400 = vpack.c.b16 %v359, %v358
  %v401 = vpack.c.b16 %v361, %v360
  %v402 = vpack.c.b16 %v363, %v362
  %v403 = vpack.c.b16 %v365, %v364
  %v404 = vpack.c.b16 %v367, %v366
  %v405 = vpack.c.b16 %v369, %v368
  %v406 = vpack.c.b16 %v371, %v370
  %v407 = vpack.c.b16 %v373, %v372
  %v408 = vpack.c.b16 %v375, %v374
  %v409 = vpack.c.b16 %v377, %v376
  %v410 = vpack.c.b16 %v379, %v378
  %v411 = vpack.c.b16 %v381, %v380
  %v412 = vpack.c.b16 %v383, %v382
  %v413 = vpack.c.b16 %v385, %v384
  %v414 = vpack.c.b16 %v387, %v386
  %v415 = vpack.c.b16 %v389, %v388
  %v416 = vpack.c.b16 %v391, %v390
  %vm442 = vcmask 130048
  %v444 = vsel %vm442, %v239, 0
  %v447 = vsel %vm442, %v243, 0
  %v450 = vsel %vm442, %v247, 0
  %v453 = vsel %vm442, %v251, 0
  %v456 = vsel %vm442, %v255, 0
  %v459 = vsel %vm442, %v259, 0
  %v462 = vsel %vm442, %v263, 0
  %v465 = vsel %vm442, %v267, 0
  %467 = vmatprep.subr.bf16.mxu0 0
  %468 = vmatpush1.bf16.msra.mxu0 %v392
  %469 = vmatprep.subr.bf16.mxu0 0
  %470 = vmatpush1.bf16.msra.mxu0 %v393
  %471 = vmatprep.subr.bf16.mxu0 0
  %472 = vmatpush1.bf16.msra.mxu0 %v394
  %473 = vmatprep.subr.bf16.mxu0 0
  %474 = vmatpush1.bf16.msra.mxu0 %v395
  %475 = vmatprep.subr.bf16.mxu0 0
  %476 = vmatpush1.bf16.msra.mxu0 %v396
  %477 = vmatprep.subr.bf16.mxu0 0
  %478 = vmatpush1.bf16.msra.mxu0 %v397
  %479 = vmatprep.subr.bf16.mxu0 0
  %480 = vmatpush1.bf16.msra.mxu0 %v398
  %481 = vmatprep.subr.bf16.mxu0 0
  %482 = vmatpush1.bf16.msra.mxu0 %v399
  %483 = vmatprep.subr.bf16.mxu0 0
  %484 = vmatpush1.bf16.msra.mxu0 %v400
  %485 = vmatprep.subr.bf16.mxu0 0
  %486 = vmatpush1.bf16.msra.mxu0 %v401
  %487 = vmatprep.subr.bf16.mxu0 0
  %488 = vmatpush1.bf16.msra.mxu0 %v402
  %489 = vmatprep.subr.bf16.mxu0 0
  %490 = vmatpush1.bf16.msra.mxu0 %v403
  %491 = vmatprep.subr.bf16.mxu0 0
  %492 = vmatpush1.bf16.msra.mxu0 %v404
  %493 = vmatprep.subr.bf16.mxu0 0
  %494 = vmatpush1.bf16.msra.mxu0 %v405
  %495 = vmatprep.subr.bf16.mxu0 0
  %496 = vmatpush1.bf16.msra.mxu0 %v406
  %497 = vmatprep.subr.bf16.mxu0 0
  %498 = vmatpush1.bf16.msra.mxu0 %v407
  %499 = vmatprep.mubr.bf16.mxu0 %v237
  %500 = vmatmul.mubr.bf16.gmra.mrb[0].mxu0 %v236
  %v501 = vpop.f32.mrb[0].mxu0
  %v502 = vadd.f32 0.0, %v501
  %v503 = vpop.f32.mrb[0].mxu0
  %v504 = vpop.f32.mrb[0].mxu0
  %v505 = vadd.f32 0.0, %v504
  %v506 = vpop.f32.mrb[0].mxu0
  %507 = vmatprep.mubr.bf16.mxu0 %v241
  %508 = vmatmul.mubr.bf16.gmra.mrb[0].mxu0 %v240
  %v509 = vpop.f32.mrb[0].mxu0
  %v510 = vadd.f32 0.0, %v509
  %v511 = vpop.f32.mrb[0].mxu0
  %v512 = vpop.f32.mrb[0].mxu0
  %v513 = vadd.f32 0.0, %v512
  %v514 = vpop.f32.mrb[0].mxu0
  %515 = vmatprep.mubr.bf16.mxu0 %v245
  %516 = vmatmul.mubr.bf16.gmra.mrb[0].mxu0 %v244
  %v517 = vpop.f32.mrb[0].mxu0
  %v518 = vadd.f32 0.0, %v517
  %v519 = vpop.f32.mrb[0].mxu0
  %v520 = vpop.f32.mrb[0].mxu0
  %v521 = vadd.f32 0.0, %v520
  %v522 = vpop.f32.mrb[0].mxu0
  %523 = vmatprep.mubr.bf16.mxu0 %v249
  %524 = vmatmul.mubr.bf16.gmra.mrb[0].mxu0 %v248
  %v525 = vpop.f32.mrb[0].mxu0
  %v526 = vadd.f32 0.0, %v525
  %v527 = vpop.f32.mrb[0].mxu0
  %v528 = vpop.f32.mrb[0].mxu0
  %v529 = vadd.f32 0.0, %v528
  %v530 = vpop.f32.mrb[0].mxu0
  %531 = vmatprep.mubr.bf16.mxu0 %v253
  %532 = vmatmul.mubr.bf16.gmra.mrb[0].mxu0 %v252
  %v533 = vpop.f32.mrb[0].mxu0
  %v534 = vadd.f32 0.0, %v533
  %v535 = vpop.f32.mrb[0].mxu0
  %v536 = vpop.f32.mrb[0].mxu0
  %v537 = vadd.f32 0.0, %v536
  %v538 = vpop.f32.mrb[0].mxu0
  %539 = vmatprep.mubr.bf16.mxu0 %v257
  %540 = vmatmul.mubr.bf16.gmra.mrb[0].mxu0 %v256
  %v541 = vpop.f32.mrb[0].mxu0
  %v542 = vadd.f32 0.0, %v541
  %v543 = vpop.f32.mrb[0].mxu0
  %v544 = vpop.f32.mrb[0].mxu0
  %v545 = vadd.f32 0.0, %v544
  %v546 = vpop.f32.mrb[0].mxu0
  %547 = vmatprep.mubr.bf16.mxu0 %v261
  %548 = vmatmul.mubr.bf16.gmra.mrb[0].mxu0 %v260
  %v549 = vpop.f32.mrb[0].mxu0
  %v550 = vadd.f32 0.0, %v549
  %v551 = vpop.f32.mrb[0].mxu0
  %v552 = vpop.f32.mrb[0].mxu0
  %v553 = vadd.f32 0.0, %v552
  %v554 = vpop.f32.mrb[0].mxu0
  %555 = vmatprep.mubr.bf16.mxu0 %v265
  %556 = vmatmul.mubr.bf16.gmra.mrb[0].mxu0 %v264
  %v557 = vpop.f32.mrb[0].mxu0
  %v558 = vadd.f32 0.0, %v557
  %v559 = vpop.f32.mrb[0].mxu0
  %v560 = vpop.f32.mrb[0].mxu0
  %v561 = vadd.f32 0.0, %v560
  %v562 = vpop.f32.mrb[0].mxu0
  %563 = vdwg.mxu0
  %564 = vmatprep.subr.bf16.mxu0 0
  %565 = vmatpush1.bf16.msra.mxu0 %v408
  %566 = vmatprep.subr.bf16.mxu0 0
  %567 = vmatpush1.bf16.msra.mxu0 %v409
  %568 = vmatprep.subr.bf16.mxu0 0
  %569 = vmatpush1.bf16.msra.mxu0 %v410
  %570 = vmatprep.subr.bf16.mxu0 0
  %571 = vmatpush1.bf16.msra.mxu0 %v411
  %572 = vmatprep.subr.bf16.mxu0 0
  %573 = vmatpush1.bf16.msra.mxu0 %v412
  %574 = vmatprep.subr.bf16.mxu0 0
  %575 = vmatpush1.bf16.msra.mxu0 %v413
  %576 = vmatprep.subr.bf16.mxu0 0
  %577 = vmatpush1.bf16.msra.mxu0 %v414
  %578 = vmatprep.subr.bf16.mxu0 0
  %579 = vmatpush1.bf16.msra.mxu0 %v415
  %580 = vmatprep.subr.bf16.mxu0 0
  %581 = vmatpush1.bf16.msra.mxu0 %v416
  %582 = vmatprep.subr.bf16.mxu0 0
  %583 = vmatpush1.bf16.msra.mxu0 0
  %584 = vmatprep.subr.bf16.mxu0 0
  %585 = vmatpush1.bf16.msra.mxu0 0
  %586 = vmatprep.subr.bf16.mxu0 0
  %587 = vmatpush1.bf16.msra.mxu0 0
  %588 = vmatprep.subr.bf16.mxu0 0
  %589 = vmatpush1.bf16.msra.mxu0 0
  %590 = vmatprep.subr.bf16.mxu0 0
  %591 = vmatpush1.bf16.msra.mxu0 0
  %592 = vmatprep.subr.bf16.mxu0 0
  %593 = vmatpush1.bf16.msra.mxu0 0
  %594 = vmatprep.subr.bf16.mxu0 0
  %595 = vmatpush1.bf16.msra.mxu0 0
  %596 = vmatprep.mubr.bf16.mxu0 %v444
  %597 = vmatmul.mubr.bf16.gmra.mrb[0].mxu0 %v238
  %v598 = vpop.f32.mrb[0].mxu0
  %v599 = vadd.f32 %v502, %v598
  %v600 = vpop.f32.mrb[0].mxu0
  %v601 = vpop.f32.mrb[0].mxu0
  %v602 = vadd.f32 %v505, %v601
  %v603 = vpop.f32.mrb[0].mxu0
  %604 = vmatprep.mubr.bf16.mxu0 %v447
  %605 = vmatmul.mubr.bf16.gmra.mrb[0].mxu0 %v242
  %v606 = vpop.f32.mrb[0].mxu0
  %v607 = vadd.f32 %v510, %v606
  %v608 = vpop.f32.mrb[0].mxu0
  %v609 = vpop.f32.mrb[0].mxu0
  %v610 = vadd.f32 %v513, %v609
  %v611 = vpop.f32.mrb[0].mxu0
  %612 = vmatprep.mubr.bf16.mxu0 %v450
  %613 = vmatmul.mubr.bf16.gmra.mrb[0].mxu0 %v246
  %v614 = vpop.f32.mrb[0].mxu0
  %v615 = vadd.f32 %v518, %v614
  %v616 = vpop.f32.mrb[0].mxu0
  %v617 = vpop.f32.mrb[0].mxu0
  %v618 = vadd.f32 %v521, %v617
  %v619 = vpop.f32.mrb[0].mxu0
  %620 = vmatprep.mubr.bf16.mxu0 %v453
  %621 = vmatmul.mubr.bf16.gmra.mrb[0].mxu0 %v250
  %v622 = vpop.f32.mrb[0].mxu0
  %v623 = vadd.f32 %v526, %v622
  %v624 = vpop.f32.mrb[0].mxu0
  %v625 = vpop.f32.mrb[0].mxu0
  %v626 = vadd.f32 %v529, %v625
  %v627 = vpop.f32.mrb[0].mxu0
  %628 = vmatprep.mubr.bf16.mxu0 %v456
  %629 = vmatmul.mubr.bf16.gmra.mrb[0].mxu0 %v254
  %v630 = vpop.f32.mrb[0].mxu0
  %v631 = vadd.f32 %v534, %v630
  %v632 = vpop.f32.mrb[0].mxu0
  %v633 = vpop.f32.mrb[0].mxu0
  %v634 = vadd.f32 %v537, %v633
  %v635 = vpop.f32.mrb[0].mxu0
  %636 = vmatprep.mubr.bf16.mxu0 %v459
  %637 = vmatmul.mubr.bf16.gmra.mrb[0].mxu0 %v258
  %v638 = vpop.f32.mrb[0].mxu0
  %v639 = vadd.f32 %v542, %v638
  %v640 = vpop.f32.mrb[0].mxu0
  %v641 = vpop.f32.mrb[0].mxu0
  %v642 = vadd.f32 %v545, %v641
  %v643 = vpop.f32.mrb[0].mxu0
  %644 = vmatprep.mubr.bf16.mxu0 %v462
  %645 = vmatmul.mubr.bf16.gmra.mrb[0].mxu0 %v262
  %v646 = vpop.f32.mrb[0].mxu0
  %v647 = vadd.f32 %v550, %v646
  %v648 = vpop.f32.mrb[0].mxu0
  %v649 = vpop.f32.mrb[0].mxu0
  %v650 = vadd.f32 %v553, %v649
  %v651 = vpop.f32.mrb[0].mxu0
  %652 = vmatprep.mubr.bf16.mxu0 %v465
  %653 = vmatmul.mubr.bf16.gmra.mrb[0].mxu0 %v266
  %v654 = vpop.f32.mrb[0].mxu0
  %v655 = vadd.f32 %v558, %v654
  %v656 = vpop.f32.mrb[0].mxu0
  %v657 = vpop.f32.mrb[0].mxu0
  %v658 = vadd.f32 %v561, %v657
  %v659 = vpop.f32.mrb[0].mxu0
  %660 = vdwg.mxu0
  %v661 = vadd.f32 %v42, %v599
  %v662 = vadd.f32 %v43, %v602
  %v663 = vadd.f32 %v44, %v607
  %v664 = vadd.f32 %v45, %v610
  %v665 = vadd.f32 %v46, %v615
  %v666 = vadd.f32 %v47, %v618
  %v667 = vadd.f32 %v48, %v623
  %v668 = vadd.f32 %v49, %v626
  %v669 = vadd.f32 %v50, %v631
  %v670 = vadd.f32 %v51, %v634
  %v671 = vadd.f32 %v52, %v639
  %v672 = vadd.f32 %v53, %v642
  %v673 = vadd.f32 %v54, %v647
  %v674 = vadd.f32 %v55, %v650
  %v675 = vadd.f32 %v56, %v655
  %v676 = vadd.f32 %v57, %v658
  %vm677 = vcmask 261120
  %678 = vst.msk [vmem:[#allocation2] sm:$0xff] %vm677, %v661
  %679 = vst.msk [vmem:[#allocation2 + $0x8] sm:$0xff] %vm677, %v662
  %680 = vst.msk [vmem:[#allocation2 + $0x10] sm:$0xff] %vm677, %v663
  %681 = vst.msk [vmem:[#allocation2 + $0x18] sm:$0xff] %vm677, %v664
  %682 = vst.msk [vmem:[#allocation2 + $0x20] sm:$0xff] %vm677, %v665
  %683 = vst.msk [vmem:[#allocation2 + $0x28] sm:$0xff] %vm677, %v666
  %684 = vst.msk [vmem:[#allocation2 + $0x30] sm:$0xff] %vm677, %v667
  %685 = vst.msk [vmem:[#allocation2 + $0x38] sm:$0xff] %vm677, %v668
  %686 = vst.msk [vmem:[#allocation2 + $0x40] sm:$0xff] %vm677, %v669
  %687 = vst.msk [vmem:[#allocation2 + $0x48] sm:$0xff] %vm677, %v670
  %688 = vst.msk [vmem:[#allocation2 + $0x50] sm:$0xff] %vm677, %v671
  %689 = vst.msk [vmem:[#allocation2 + $0x58] sm:$0xff] %vm677, %v672
  %690 = vst.msk [vmem:[#allocation2 + $0x60] sm:$0xff] %vm677, %v673
  %691 = vst.msk [vmem:[#allocation2 + $0x68] sm:$0xff] %vm677, %v674
  %692 = vst.msk [vmem:[#allocation2 + $0x70] sm:$0xff] %vm677, %v675
  %693 = vst.msk [vmem:[#allocation2 + $0x78] sm:$0xff] %vm677, %v676
  // Predicated region
  $region26: #{forward.7} parent=0 // pred_check
    %p694 = pneg %p21
  $region27: #{forward.7} parent=0 // pred_check_branch
    %696 = sbr.rel (%p694) target = $region29
  $region28: #{forward.7} parent=0 // pred_region
    %v697 = vld [vmem:[#allocation2] sm:$0xff]
    %v698 = vld [vmem:[#allocation2 + $0x8] sm:$0xff]
    %v699 = vld [vmem:[#allocation2 + $0x10] sm:$0xff]
    %v700 = vld [vmem:[#allocation2 + $0x18] sm:$0xff]
    %v701 = vld [vmem:[#allocation2 + $0x20] sm:$0xff]
    %v702 = vld [vmem:[#allocation2 + $0x28] sm:$0xff]
    %v703 = vld [vmem:[#allocation2 + $0x30] sm:$0xff]
    %v704 = vld [vmem:[#allocation2 + $0x38] sm:$0xff]
    %v705 = vld [vmem:[#allocation2 + $0x40] sm:$0xff]
    %v706 = vld [vmem:[#allocation2 + $0x48] sm:$0xff]
    %v707 = vld [vmem:[#allocation2 + $0x50] sm:$0xff]
    %v708 = vld [vmem:[#allocation2 + $0x58] sm:$0xff]
    %v709 = vld [vmem:[#allocation2 + $0x60] sm:$0xff]
    %v710 = vld [vmem:[#allocation2 + $0x68] sm:$0xff]
    %v711 = vld [vmem:[#allocation2 + $0x70] sm:$0xff]
    %v712 = vld [vmem:[#allocation2 + $0x78] sm:$0xff]
    %v713 = vld [vmem:[%s2] sm:$0x1]
    %v715 = vlaneseq
    %v716 = vshrl.u32 %v715, 7
    %v717 = vsub.s32 0, %v716
    %v718 = vrot.slane %v713, %v717
    %v720 = vadd.f32 %v697, %v718
    %v721 = vadd.f32 %v698, %v718
    %v722 = vadd.f32 %v699, %v718
    %v723 = vadd.f32 %v700, %v718
    %v724 = vadd.f32 %v701, %v718
    %v725 = vadd.f32 %v702, %v718
    %v726 = vadd.f32 %v703, %v718
    %v727 = vadd.f32 %v704, %v718
    %v728 = vadd.f32 %v705, %v718
    %v729 = vadd.f32 %v706, %v718
    %v730 = vadd.f32 %v707, %v718
    %v731 = vadd.f32 %v708, %v718
    %v732 = vadd.f32 %v709, %v718
    %v733 = vadd.f32 %v710, %v718
    %v734 = vadd.f32 %v711, %v718
    %v735 = vadd.f32 %v712, %v718
    %v736 = vmul.f32 %v720, %v720
    %v737 = vmul.f32 %v721, %v721
    %v738 = vmul.f32 %v722, %v722
    %v739 = vmul.f32 %v723, %v723
    %v740 = vmul.f32 %v724, %v724
    %v741 = vmul.f32 %v725, %v725
    %v742 = vmul.f32 %v726, %v726
    %v743 = vmul.f32 %v727, %v727
    %v744 = vmul.f32 %v728, %v728
    %v745 = vmul.f32 %v729, %v729
    %v746 = vmul.f32 %v730, %v730
    %v747 = vmul.f32 %v731, %v731
    %v748 = vmul.f32 %v732, %v732
    %v749 = vmul.f32 %v733, %v733
    %v750 = vmul.f32 %v734, %v734
    %v751 = vmul.f32 %v735, %v735
    %v752 = vld [vmem:[%s3] sm:$0xff]
    %v753 = vld [vmem:[%s3 + $0x8] sm:$0xff]
    %v754 = vld [vmem:[%s3 + $0x10] sm:$0xff]
    %v755 = vld [vmem:[%s3 + $0x18] sm:$0xff]
    %v756 = vld [vmem:[%s4] sm:$0x1]
    %v758 = vlaneseq
    %v759 = vshrl.u32 %v758, 7
    %v760 = vsub.s32 0, %v759
    %v761 = vrot.slane %v756, %v760
    %v764 = vsel %vm677, %v736, 0
    %v767 = vsel %vm677, %v737, 0
    %v770 = vsel %vm677, %v738, 0
    %v773 = vsel %vm677, %v739, 0
    %v776 = vsel %vm677, %v740, 0
    %v779 = vsel %vm677, %v741, 0
    %v782 = vsel %vm677, %v742, 0
    %v785 = vsel %vm677, %v743, 0
    %v788 = vsel %vm677, %v744, 0
    %v791 = vsel %vm677, %v745, 0
    %v794 = vsel %vm677, %v746, 0
    %v797 = vsel %vm677, %v747, 0
    %v800 = vsel %vm677, %v748, 0
    %v803 = vsel %vm677, %v749, 0
    %v806 = vsel %vm677, %v750, 0
    %v809 = vsel %vm677, %v751, 0
    %811 = vmatprep.subr.mxu0 0.0
    %812 = vmatpush1.msra.mxu0 %v752
    %813 = vmatprep.subr.mxu0 0.0
    %814 = vmatpush1.msra.mxu0 %v753
    %815 = vmatprep.subr.mxu0 0.0
    %816 = vmatpush1.msra.mxu0 %v754
    %817 = vmatprep.subr.mxu0 0.0
    %818 = vmatpush1.msra.mxu0 %v755
    %819 = vmatprep.subr.mxu0 0.0
    %820 = vmatpush1.msra.mxu0 0.0
    %821 = vmatprep.subr.mxu0 0.0
    %822 = vmatpush1.msra.mxu0 0.0
    %823 = vmatprep.subr.mxu0 0.0
    %824 = vmatpush1.msra.mxu0 0.0
    %825 = vmatprep.subr.mxu0 0.0
    %826 = vmatpush1.msra.mxu0 0.0
    %827 = vmatprep.subr.mxu0 0.0
    %828 = vmatpush1.msra.mxu0 0.0
    %829 = vmatprep.subr.mxu0 0.0
    %830 = vmatpush1.msra.mxu0 0.0
    %831 = vmatprep.subr.mxu0 0.0
    %832 = vmatpush1.msra.mxu0 0.0
    %833 = vmatprep.subr.mxu0 0.0
    %834 = vmatpush1.msra.mxu0 0.0
    %835 = vmatprep.subr.mxu0 0.0
    %836 = vmatpush1.msra.mxu0 0.0
    %837 = vmatprep.subr.mxu0 0.0
    %838 = vmatpush1.msra.mxu0 0.0
    %839 = vmatprep.subr.mxu0 0.0
    %840 = vmatpush1.msra.mxu0 0.0
    %841 = vmatprep.subr.mxu0 0.0
    %842 = vmatpush1.msra.mxu0 0.0
    %843 = vmatprep.subr.mxu0 0.0
    %844 = vmatpush1.msra.mxu0 0.0
    %845 = vmatprep.subr.mxu0 0.0
    %846 = vmatpush1.msra.mxu0 0.0
    %847 = vmatprep.subr.mxu0 0.0
    %848 = vmatpush1.msra.mxu0 0.0
    %849 = vmatprep.subr.mxu0 0.0
    %850 = vmatpush1.msra.mxu0 0.0
    %851 = vmatprep.subr.mxu0 0.0
    %852 = vmatpush1.msra.mxu0 0.0
    %853 = vmatprep.subr.mxu0 0.0
    %854 = vmatpush1.msra.mxu0 0.0
    %855 = vmatprep.subr.mxu0 0.0
    %856 = vmatpush1.msra.mxu0 0.0
    %857 = vmatprep.subr.mxu0 0.0
    %858 = vmatpush1.msra.mxu0 0.0
    %859 = vmatprep.subr.mxu0 0.0
    %860 = vmatpush1.msra.mxu0 0.0
    %861 = vmatprep.subr.mxu0 0.0
    %862 = vmatpush1.msra.mxu0 0.0
    %863 = vmatprep.subr.mxu0 0.0
    %864 = vmatpush1.msra.mxu0 0.0
    %865 = vmatprep.subr.mxu0 0.0
    %866 = vmatpush1.msra.mxu0 0.0
    %867 = vmatprep.subr.mxu0 0.0
    %868 = vmatpush1.msra.mxu0 0.0
    %869 = vmatprep.subr.mxu0 0.0
    %870 = vmatpush1.msra.mxu0 0.0
    %871 = vmatprep.subr.mxu0 0.0
    %872 = vmatpush1.msra.mxu0 0.0
    %873 = vmatprep.subr.mxu0 0.0
    %874 = vmatpush1.msra.mxu0 0.0
    %875 = vmatprep.mubr.f32.mxu0 0.0
    %876 = vmatmul.mubr.f32.gmra.mrb[0].mxu0 %v764
    %v877 = vpop.f32.mrb[0].mxu0
    %v878 = vadd.f32 %v761, %v877
    %v879 = vpop.f32.mrb[0].mxu0
    %880 = vmatprep.mubr.f32.mxu0 0.0
    %881 = vmatmul.mubr.f32.gmra.mrb[0].mxu0 %v767
    %v882 = vpop.f32.mrb[0].mxu0
    %v883 = vadd.f32 %v761, %v882
    %v884 = vpop.f32.mrb[0].mxu0
    %885 = vmatprep.mubr.f32.mxu0 0.0
    %886 = vmatmul.mubr.f32.gmra.mrb[0].mxu0 %v770
    %v887 = vpop.f32.mrb[0].mxu0
    %v888 = vadd.f32 %v761, %v887
    %v889 = vpop.f32.mrb[0].mxu0
    %890 = vmatprep.mubr.f32.mxu0 0.0
    %891 = vmatmul.mubr.f32.gmra.mrb[0].mxu0 %v773
    %v892 = vpop.f32.mrb[0].mxu0
    %v893 = vadd.f32 %v761, %v892
    %v894 = vpop.f32.mrb[0].mxu0
    %895 = vmatprep.mubr.f32.mxu0 0.0
    %896 = vmatmul.mubr.f32.gmra.mrb[0].mxu0 %v776
    %v897 = vpop.f32.mrb[0].mxu0
    %v898 = vadd.f32 %v761, %v897
    %v899 = vpop.f32.mrb[0].mxu0
    %900 = vmatprep.mubr.f32.mxu0 0.0
    %901 = vmatmul.mubr.f32.gmra.mrb[0].mxu0 %v779
    %v902 = vpop.f32.mrb[0].mxu0
    %v903 = vadd.f32 %v761, %v902
    %v904 = vpop.f32.mrb[0].mxu0
    %905 = vmatprep.mubr.f32.mxu0 0.0
    %906 = vmatmul.mubr.f32.gmra.mrb[0].mxu0 %v782
    %v907 = vpop.f32.mrb[0].mxu0
    %v908 = vadd.f32 %v761, %v907
    %v909 = vpop.f32.mrb[0].mxu0
    %910 = vmatprep.mubr.f32.mxu0 0.0
    %911 = vmatmul.mubr.f32.gmra.mrb[0].mxu0 %v785
    %v912 = vpop.f32.mrb[0].mxu0
    %v913 = vadd.f32 %v761, %v912
    %v914 = vpop.f32.mrb[0].mxu0
    %915 = vmatprep.mubr.f32.mxu0 0.0
    %916 = vmatmul.mubr.f32.gmra.mrb[0].mxu0 %v788
    %v917 = vpop.f32.mrb[0].mxu0
    %v918 = vadd.f32 %v761, %v917
    %v919 = vpop.f32.mrb[0].mxu0
    %920 = vmatprep.mubr.f32.mxu0 0.0
    %921 = vmatmul.mubr.f32.gmra.mrb[0].mxu0 %v791
    %v922 = vpop.f32.mrb[0].mxu0
    %v923 = vadd.f32 %v761, %v922
    %v924 = vpop.f32.mrb[0].mxu0
    %925 = vmatprep.mubr.f32.mxu0 0.0
    %926 = vmatmul.mubr.f32.gmra.mrb[0].mxu0 %v794
    %v927 = vpop.f32.mrb[0].mxu0
    %v928 = vadd.f32 %v761, %v927
    %v929 = vpop.f32.mrb[0].mxu0
    %930 = vmatprep.mubr.f32.mxu0 0.0
    %931 = vmatmul.mubr.f32.gmra.mrb[0].mxu0 %v797
    %v932 = vpop.f32.mrb[0].mxu0
    %v933 = vadd.f32 %v761, %v932
    %v934 = vpop.f32.mrb[0].mxu0
    %935 = vmatprep.mubr.f32.mxu0 0.0
    %936 = vmatmul.mubr.f32.gmra.mrb[0].mxu0 %v800
    %v937 = vpop.f32.mrb[0].mxu0
    %v938 = vadd.f32 %v761, %v937
    %v939 = vpop.f32.mrb[0].mxu0
    %940 = vmatprep.mubr.f32.mxu0 0.0
    %941 = vmatmul.mubr.f32.gmra.mrb[0].mxu0 %v803
    %v942 = vpop.f32.mrb[0].mxu0
    %v943 = vadd.f32 %v761, %v942
    %v944 = vpop.f32.mrb[0].mxu0
    %945 = vmatprep.mubr.f32.mxu0 0.0
    %946 = vmatmul.mubr.f32.gmra.mrb[0].mxu0 %v806
    %v947 = vpop.f32.mrb[0].mxu0
    %v948 = vadd.f32 %v761, %v947
    %v949 = vpop.f32.mrb[0].mxu0
    %950 = vmatprep.mubr.f32.mxu0 0.0
    %951 = vmatmul.mubr.f32.gmra.mrb[0].mxu0 %v809
    %v952 = vpop.f32.mrb[0].mxu0
    %v953 = vadd.f32 %v761, %v952
    %v954 = vpop.f32.mrb[0].mxu0
    %955 = vdwg.mxu0
    %v956 = vrsqrt.pop %v878
    %v957 = vrsqrt.pop %v883
    %v958 = vrsqrt.pop %v888
    %v959 = vrsqrt.pop %v893
    %v960 = vrsqrt.pop %v898
    %v961 = vrsqrt.pop %v903
    %v962 = vrsqrt.pop %v908
    %v963 = vrsqrt.pop %v913
    %v964 = vrsqrt.pop %v918
    %v965 = vrsqrt.pop %v923
    %v966 = vrsqrt.pop %v928
    %v967 = vrsqrt.pop %v933
    %v968 = vrsqrt.pop %v938
    %v969 = vrsqrt.pop %v943
    %v970 = vrsqrt.pop %v948
    %v971 = vrsqrt.pop %v953
    %v972 = vmul.f32 %v720, %v956
    %v973 = vmul.f32 %v721, %v957
    %v974 = vmul.f32 %v722, %v958
    %v975 = vmul.f32 %v723, %v959
    %v976 = vmul.f32 %v724, %v960
    %v977 = vmul.f32 %v725, %v961
    %v978 = vmul.f32 %v726, %v962
    %v979 = vmul.f32 %v727, %v963
    %v980 = vmul.f32 %v728, %v964
    %v981 = vmul.f32 %v729, %v965
    %v982 = vmul.f32 %v730, %v966
    %v983 = vmul.f32 %v731, %v967
    %v984 = vmul.f32 %v732, %v968
    %v985 = vmul.f32 %v733, %v969
    %v986 = vmul.f32 %v734, %v970
    %v987 = vmul.f32 %v735, %v971
    %v988 = vpack.c.bf16 %v973, %v972
    %v989 = vpack.c.bf16 %v975, %v974
    %v990 = vpack.c.bf16 %v977, %v976
    %v991 = vpack.c.bf16 %v979, %v978
    %v992 = vpack.c.bf16 %v981, %v980
    %v993 = vpack.c.bf16 %v983, %v982
    %v994 = vpack.c.bf16 %v985, %v984
    %v995 = vpack.c.bf16 %v987, %v986
    %v1004 = vunpack.c.l.b16 %v988
    %v1005 = vunpack.c.h.b16 %v988
    %v1006 = vunpack.c.l.b16 %v989
    %v1007 = vunpack.c.h.b16 %v989
    %v1008 = vunpack.c.l.b16 %v990
    %v1009 = vunpack.c.h.b16 %v990
    %v1010 = vunpack.c.l.b16 %v991
    %v1011 = vunpack.c.h.b16 %v991
    %v1012 = vunpack.c.l.b16 %v992
    %v1013 = vunpack.c.h.b16 %v992
    %v1014 = vunpack.c.l.b16 %v993
    %v1015 = vunpack.c.h.b16 %v993
    %v1016 = vunpack.c.l.b16 %v994
    %v1017 = vunpack.c.h.b16 %v994
    %v1018 = vunpack.c.l.b16 %v995
    %v1019 = vunpack.c.h.b16 %v995
    %v1020 = vpack.c.b16 %v1004, %v1004
    %v1021 = vpack.c.b16 %v1005, %v1005
    %v1022 = vpack.c.b16 %v1006, %v1006
    %v1023 = vpack.c.b16 %v1007, %v1007
    %v1024 = vpack.c.b16 %v1008, %v1008
    %v1025 = vpack.c.b16 %v1009, %v1009
    %v1026 = vpack.c.b16 %v1010, %v1010
    %v1027 = vpack.c.b16 %v1011, %v1011
    %v1028 = vpack.c.b16 %v1012, %v1012
    %v1029 = vpack.c.b16 %v1013, %v1013
    %v1030 = vpack.c.b16 %v1014, %v1014
    %v1031 = vpack.c.b16 %v1015, %v1015
    %v1032 = vpack.c.b16 %v1016, %v1016
    %v1033 = vpack.c.b16 %v1017, %v1017
    %v1034 = vpack.c.b16 %v1018, %v1018
    %v1035 = vpack.c.b16 %v1019, %v1019
    %vm1052 = vcmask 257024
    %1053 = vst.msk [vmem:[%s5] sm:$0xf] %vm1052, %v1020
    %1054 = vst.msk [vmem:[%s5 + $0x4] sm:$0xf] %vm1052, %v1021
    %1055 = vst.msk [vmem:[%s5 + $0x8] sm:$0xf] %vm1052, %v1022
    %1056 = vst.msk [vmem:[%s5 + $0xc] sm:$0xf] %vm1052, %v1023
    %1057 = vst.msk [vmem:[%s5 + $0x10] sm:$0xf] %vm1052, %v1024
    %1058 = vst.msk [vmem:[%s5 + $0x14] sm:$0xf] %vm1052, %v1025
    %1059 = vst.msk [vmem:[%s5 + $0x18] sm:$0xf] %vm1052, %v1026
    %1060 = vst.msk [vmem:[%s5 + $0x1c] sm:$0xf] %vm1052, %v1027
    %1061 = vst.msk [vmem:[%s5 + $0x20] sm:$0xf] %vm1052, %v1028
    %1062 = vst.msk [vmem:[%s5 + $0x24] sm:$0xf] %vm1052, %v1029
    %1063 = vst.msk [vmem:[%s5 + $0x28] sm:$0xf] %vm1052, %v1030
    %1064 = vst.msk [vmem:[%s5 + $0x2c] sm:$0xf] %vm1052, %v1031
    %1065 = vst.msk [vmem:[%s5 + $0x30] sm:$0xf] %vm1052, %v1032
    %1066 = vst.msk [vmem:[%s5 + $0x34] sm:$0xf] %vm1052, %v1033
    %1067 = vst.msk [vmem:[%s5 + $0x38] sm:$0xf] %vm1052, %v1034
    %1068 = vst.msk [vmem:[%s5 + $0x3c] sm:$0xf] %vm1052, %v1035
  $region29: #{forward.7} parent=0 // pred_fallthru
    _
  // Predicated region
  $region30: #{forward.7} parent=0 // pred_check
    _
  $region31: #{forward.7} parent=0 // pred_check_branch
    %1070 = sbr.rel (0) target = $region33
  $region32: #{forward.7} parent=0 // pred_region
    _
  $region33: #{forward.7} parent=0 // pred_fallthru
    _
  // Predicated region
  $region34: #{forward.7} parent=0 // pred_check
    _
  $region35: #{forward.7} parent=0 // pred_check_branch
    %1072 = sbr.rel (0) target = $region37
  $region36: #{forward.7} parent=0 // pred_region
    _
  $region37: #{forward.7} parent=0 // pred_fallthru
    _

// kernel: forward.8
$region0: #{forward.8}
  #allocation0 [shape = 'u32[]', space=smem, size = 0x4, offset = 0x4, fixed_abs, tag = 'smem constant byte address 0x4 - core index']
  #allocation1 [shape = 'u32[144,128]{1,0:T(1,128)}', space=vmem, size = 0x12000, scoped, tag = 'internal scratch']
  #allocation2 [shape = 'f32[128,64]{1,0:T(8,128)}', space=vmem, size = 0x10000, scoped, tag = 'scratch operand']
  %s0 = inlined_call_operand.vmem [shape: bf16[128,800], index: 0, kind: input, shape index: {}]
  %s1 = inlined_call_operand.vmem [shape: bf16[800,64], index: 1, kind: input, shape index: {}]
  %s2 = inlined_call_operand.vmem [shape: f32[1,64], index: 2, kind: input, shape index: {}]
  %s3 = inlined_call_operand.vmem [shape: f32[128,64], index: 3, kind: output, shape index: {}]
  %s4 = sld [smem:[#allocation0]]
  $region30: #{forward.8} parent=0
    _
  %s6 = ssub.s32 1, %s4
  %s7 = scalar_select 0, %s6, %s4
  // Predicated region
  $region2: #{forward.8} parent=0 // pred_check
    _
  $region3: #{forward.8} parent=0 // pred_check_branch
    %9 = sbr.rel (0) target = $region5
  $region4: #{forward.8} parent=0 // pred_region
    _
  $region5: #{forward.8} parent=0 // pred_fallthru
    _
  // Predicated region
  $region6: #{forward.8} parent=0 // pred_check
    _
  $region7: #{forward.8} parent=0 // pred_check_branch
    %11 = sbr.rel (0) target = $region9
  $region8: #{forward.8} parent=0 // pred_region
    _
  $region9: #{forward.8} parent=0 // pred_fallthru
    _
  // Predicated region
  $region10: #{forward.8} parent=0 // pred_check
    _
  $region11: #{forward.8} parent=0 // pred_check_branch
    %13 = sbr.rel (0) target = $region13
  $region12: #{forward.8} parent=0 // pred_region
    _
  $region13: #{forward.8} parent=0 // pred_fallthru
    _
  %p15 = scmp.eq.s32.totalorder 0, 0
  // Predicated region
  $region14: #{forward.8} parent=0 // pred_check
    %p16 = pneg %p15
  $region15: #{forward.8} parent=0 // pred_check_branch
    %18 = sbr.rel (%p16) target = $region17
  $region16: #{forward.8} parent=0 // pred_region
    %vm19 = vcmask 523264
    %20 = vst.msk [vmem:[#allocation2] sm:$0xff] %vm19, 0.0
    %21 = vst.msk [vmem:[#allocation2 + $0x8] sm:$0xff] %vm19, 0.0
    %22 = vst.msk [vmem:[#allocation2 + $0x10] sm:$0xff] %vm19, 0.0
    %23 = vst.msk [vmem:[#allocation2 + $0x18] sm:$0xff] %vm19, 0.0
    %24 = vst.msk [vmem:[#allocation2 + $0x20] sm:$0xff] %vm19, 0.0
    %25 = vst.msk [vmem:[#allocation2 + $0x28] sm:$0xff] %vm19, 0.0
    %26 = vst.msk [vmem:[#allocation2 + $0x30] sm:$0xff] %vm19, 0.0
    %27 = vst.msk [vmem:[#allocation2 + $0x38] sm:$0xff] %vm19, 0.0
    %28 = vst.msk [vmem:[#allocation2 + $0x40] sm:$0xff] %vm19, 0.0
    %29 = vst.msk [vmem:[#allocation2 + $0x48] sm:$0xff] %vm19, 0.0
    %30 = vst.msk [vmem:[#allocation2 + $0x50] sm:$0xff] %vm19, 0.0
    %31 = vst.msk [vmem:[#allocation2 + $0x58] sm:$0xff] %vm19, 0.0
    %32 = vst.msk [vmem:[#allocation2 + $0x60] sm:$0xff] %vm19, 0.0
    %33 = vst.msk [vmem:[#allocation2 + $0x68] sm:$0xff] %vm19, 0.0
    %34 = vst.msk [vmem:[#allocation2 + $0x70] sm:$0xff] %vm19, 0.0
    %35 = vst.msk [vmem:[#allocation2 + $0x78] sm:$0xff] %vm19, 0.0
  $region17: #{forward.8} parent=0 // pred_fallthru
    _
  %v36 = vld [vmem:[#allocation2] sm:$0xff]
  %v37 = vld [vmem:[#allocation2 + $0x8] sm:$0xff]
  %v38 = vld [vmem:[#allocation2 + $0x10] sm:$0xff]
  %v39 = vld [vmem:[#allocation2 + $0x18] sm:$0xff]
  %v40 = vld [vmem:[#allocation2 + $0x20] sm:$0xff]
  %v41 = vld [vmem:[#allocation2 + $0x28] sm:$0xff]
  %v42 = vld [vmem:[#allocation2 + $0x30] sm:$0xff]
  %v43 = vld [vmem:[#allocation2 + $0x38] sm:$0xff]
  %v44 = vld [vmem:[#allocation2 + $0x40] sm:$0xff]
  %v45 = vld [vmem:[#allocation2 + $0x48] sm:$0xff]
  %v46 = vld [vmem:[#allocation2 + $0x50] sm:$0xff]
  %v47 = vld [vmem:[#allocation2 + $0x58] sm:$0xff]
  %v48 = vld [vmem:[#allocation2 + $0x60] sm:$0xff]
  %v49 = vld [vmem:[#allocation2 + $0x68] sm:$0xff]
  %v50 = vld [vmem:[#allocation2 + $0x70] sm:$0xff]
  %v51 = vld [vmem:[#allocation2 + $0x78] sm:$0xff]
  %v52 = vld [vmem:[%s0] sm:$0xff]
  %v53 = vld [vmem:[%s0 + $0x8] sm:$0xff]
  %v54 = vld [vmem:[%s0 + $0x10] sm:$0xff]
  %v55 = vld [vmem:[%s0 + $0x18] sm:$0xf]
  %v56 = vld [vmem:[%s0 + $0x1c] sm:$0xff]
  %v57 = vld [vmem:[%s0 + $0x24] sm:$0xff]
  %v58 = vld [vmem:[%s0 + $0x2c] sm:$0xff]
  %v59 = vld [vmem:[%s0 + $0x34] sm:$0xf]
  %v60 = vld [vmem:[%s0 + $0x38] sm:$0xff]
  %v61 = vld [vmem:[%s0 + $0x40] sm:$0xff]
  %v62 = vld [vmem:[%s0 + $0x48] sm:$0xff]
  %v63 = vld [vmem:[%s0 + $0x50] sm:$0xf]
  %v64 = vld [vmem:[%s0 + $0x54] sm:$0xff]
  %v65 = vld [vmem:[%s0 + $0x5c] sm:$0xff]
  %v66 = vld [vmem:[%s0 + $0x64] sm:$0xff]
  %v67 = vld [vmem:[%s0 + $0x6c] sm:$0xf]
  %v68 = vld [vmem:[%s0 + $0x70] sm:$0xff]
  %v69 = vld [vmem:[%s0 + $0x78] sm:$0xff]
  %v70 = vld [vmem:[%s0 + $0x80] sm:$0xff]
  %v71 = vld [vmem:[%s0 + $0x88] sm:$0xf]
  %v72 = vld [vmem:[%s0 + $0x8c] sm:$0xff]
  %v73 = vld [vmem:[%s0 + $0x94] sm:$0xff]
  %v74 = vld [vmem:[%s0 + $0x9c] sm:$0xff]
  %v75 = vld [vmem:[%s0 + $0xa4] sm:$0xf]
  %v76 = vld [vmem:[%s0 + $0xa8] sm:$0xff]
  %v77 = vld [vmem:[%s0 + $0xb0] sm:$0xff]
  %v78 = vld [vmem:[%s0 + $0xb8] sm:$0xff]
  %v79 = vld [vmem:[%s0 + $0xc0] sm:$0xf]
  %v80 = vld [vmem:[%s0 + $0xc4] sm:$0xff]
  %v81 = vld [vmem:[%s0 + $0xcc] sm:$0xff]
  %v82 = vld [vmem:[%s0 + $0xd4] sm:$0xff]
  %v83 = vld [vmem:[%s0 + $0xdc] sm:$0xf]
  %v84 = vld [vmem:[%s0 + $0xe0] sm:$0xff]
  %v85 = vld [vmem:[%s0 + $0xe8] sm:$0xff]
  %v86 = vld [vmem:[%s0 + $0xf0] sm:$0xff]
  %v87 = vld [vmem:[%s0 + $0xf8] sm:$0xf]
  %v88 = vld [vmem:[%s0 + $0xfc] sm:$0xff]
  %v89 = vld [vmem:[%s0 + $0x104] sm:$0xff]
  %v90 = vld [vmem:[%s0 + $0x10c] sm:$0xff]
  %v91 = vld [vmem:[%s0 + $0x114] sm:$0xf]
  %v92 = vld [vmem:[%s0 + $0x118] sm:$0xff]
  %v93 = vld [vmem:[%s0 + $0x120] sm:$0xff]
  %v94 = vld [vmem:[%s0 + $0x128] sm:$0xff]
  %v95 = vld [vmem:[%s0 + $0x130] sm:$0xf]
  %v96 = vld [vmem:[%s0 + $0x134] sm:$0xff]
  %v97 = vld [vmem:[%s0 + $0x13c] sm:$0xff]
  %v98 = vld [vmem:[%s0 + $0x144] sm:$0xff]
  %v99 = vld [vmem:[%s0 + $0x14c] sm:$0xf]
  %v100 = vld [vmem:[%s0 + $0x150] sm:$0xff]
  %v101 = vld [vmem:[%s0 + $0x158] sm:$0xff]
  %v102 = vld [vmem:[%s0 + $0x160] sm:$0xff]
  %v103 = vld [vmem:[%s0 + $0x168] sm:$0xf]
  %v104 = vld [vmem:[%s0 + $0x16c] sm:$0xff]
  %v105 = vld [vmem:[%s0 + $0x174] sm:$0xff]
  %v106 = vld [vmem:[%s0 + $0x17c] sm:$0xff]
  %v107 = vld [vmem:[%s0 + $0x184] sm:$0xf]
  %v108 = vld [vmem:[%s0 + $0x188] sm:$0xff]
  %v109 = vld [vmem:[%s0 + $0x190] sm:$0xff]
  %v110 = vld [vmem:[%s0 + $0x198] sm:$0xff]
  %v111 = vld [vmem:[%s0 + $0x1a0] sm:$0xf]
  %v112 = vld [vmem:[%s0 + $0x1a4] sm:$0xff]
  %v113 = vld [vmem:[%s0 + $0x1ac] sm:$0xff]
  %v114 = vld [vmem:[%s0 + $0x1b4] sm:$0xff]
  %v115 = vld [vmem:[%s0 + $0x1bc] sm:$0xf]
  %v116 = vld [vmem:[%s1] sm:$0xf]
  %v117 = vld [vmem:[%s1 + $0x4] sm:$0xf]
  %v118 = vld [vmem:[%s1 + $0x8] sm:$0xf]
  %v119 = vld [vmem:[%s1 + $0xc] sm:$0xf]
  %v120 = vld [vmem:[%s1 + $0x10] sm:$0xf]
  %v121 = vld [vmem:[%s1 + $0x14] sm:$0xf]
  %v122 = vld [vmem:[%s1 + $0x18] sm:$0xf]
  %v123 = vld [vmem:[%s1 + $0x1c] sm:$0xf]
  %v124 = vld [vmem:[%s1 + $0x20] sm:$0xf]
  %v125 = vld [vmem:[%s1 + $0x24] sm:$0xf]
  %v126 = vld [vmem:[%s1 + $0x28] sm:$0xf]
  %v127 = vld [vmem:[%s1 + $0x2c] sm:$0xf]
  %v128 = vld [vmem:[%s1 + $0x30] sm:$0xf]
  %v129 = vld [vmem:[%s1 + $0x34] sm:$0xf]
  %v130 = vld [vmem:[%s1 + $0x38] sm:$0xf]
  %v131 = vld [vmem:[%s1 + $0x3c] sm:$0xf]
  %v132 = vld [vmem:[%s1 + $0x40] sm:$0xf]
  %v133 = vld [vmem:[%s1 + $0x44] sm:$0xf]
  %v134 = vld [vmem:[%s1 + $0x48] sm:$0xf]
  %v135 = vld [vmem:[%s1 + $0x4c] sm:$0xf]
  %v136 = vld [vmem:[%s1 + $0x50] sm:$0xf]
  %v137 = vld [vmem:[%s1 + $0x54] sm:$0xf]
  %v138 = vld [vmem:[%s1 + $0x58] sm:$0xf]
  %v139 = vld [vmem:[%s1 + $0x5c] sm:$0xf]
  %v140 = vld [vmem:[%s1 + $0x60] sm:$0xf]
  %v141 = vld [vmem:[%s1 + $0x64] sm:$0xf]
  %v142 = vld [vmem:[%s1 + $0x68] sm:$0xf]
  %v143 = vld [vmem:[%s1 + $0x6c] sm:$0xf]
  %v144 = vld [vmem:[%s1 + $0x70] sm:$0xf]
  %v145 = vld [vmem:[%s1 + $0x74] sm:$0xf]
  %v146 = vld [vmem:[%s1 + $0x78] sm:$0xf]
  %v147 = vld [vmem:[%s1 + $0x7c] sm:$0xf]
  %v148 = vld [vmem:[%s1 + $0x80] sm:$0xf]
  %v149 = vld [vmem:[%s1 + $0x84] sm:$0xf]
  %v150 = vld [vmem:[%s1 + $0x88] sm:$0xf]
  %v151 = vld [vmem:[%s1 + $0x8c] sm:$0xf]
  %v152 = vld [vmem:[%s1 + $0x90] sm:$0xf]
  %v153 = vld [vmem:[%s1 + $0x94] sm:$0xf]
  %v154 = vld [vmem:[%s1 + $0x98] sm:$0xf]
  %v155 = vld [vmem:[%s1 + $0x9c] sm:$0xf]
  %v156 = vld [vmem:[%s1 + $0xa0] sm:$0xf]
  %v157 = vld [vmem:[%s1 + $0xa4] sm:$0xf]
  %v158 = vld [vmem:[%s1 + $0xa8] sm:$0xf]
  %v159 = vld [vmem:[%s1 + $0xac] sm:$0xf]
  %v160 = vld [vmem:[%s1 + $0xb0] sm:$0xf]
  %v161 = vld [vmem:[%s1 + $0xb4] sm:$0xf]
  %v162 = vld [vmem:[%s1 + $0xb8] sm:$0xf]
  %v163 = vld [vmem:[%s1 + $0xbc] sm:$0xf]
  %v164 = vld [vmem:[%s1 + $0xc0] sm:$0xf]
  %v165 = vld [vmem:[%s1 + $0xc4] sm:$0xf]
  %v166 = vld [vmem:[%s1 + $0xc8] sm:$0xf]
  %v167 = vld [vmem:[%s1 + $0xcc] sm:$0xf]
  %v168 = vld [vmem:[%s1 + $0xd0] sm:$0xf]
  %v169 = vld [vmem:[%s1 + $0xd4] sm:$0xf]
  %v170 = vld [vmem:[%s1 + $0xd8] sm:$0xf]
  %v171 = vld [vmem:[%s1 + $0xdc] sm:$0xf]
  %v172 = vld [vmem:[%s1 + $0xe0] sm:$0xf]
  %v173 = vld [vmem:[%s1 + $0xe4] sm:$0xf]
  %v174 = vld [vmem:[%s1 + $0xe8] sm:$0xf]
  %v175 = vld [vmem:[%s1 + $0xec] sm:$0xf]
  %v176 = vld [vmem:[%s1 + $0xf0] sm:$0xf]
  %v177 = vld [vmem:[%s1 + $0xf4] sm:$0xf]
  %v178 = vld [vmem:[%s1 + $0xf8] sm:$0xf]
  %v179 = vld [vmem:[%s1 + $0xfc] sm:$0xf]
  %v180 = vld [vmem:[%s1 + $0x100] sm:$0xf]
  %v181 = vld [vmem:[%s1 + $0x104] sm:$0xf]
  %v182 = vld [vmem:[%s1 + $0x108] sm:$0xf]
  %v183 = vld [vmem:[%s1 + $0x10c] sm:$0xf]
  %v184 = vld [vmem:[%s1 + $0x110] sm:$0xf]
  %v185 = vld [vmem:[%s1 + $0x114] sm:$0xf]
  %v186 = vld [vmem:[%s1 + $0x118] sm:$0xf]
  %v187 = vld [vmem:[%s1 + $0x11c] sm:$0xf]
  %v188 = vld [vmem:[%s1 + $0x120] sm:$0xf]
  %v189 = vld [vmem:[%s1 + $0x124] sm:$0xf]
  %v190 = vld [vmem:[%s1 + $0x128] sm:$0xf]
  %v191 = vld [vmem:[%s1 + $0x12c] sm:$0xf]
  %v192 = vld [vmem:[%s1 + $0x130] sm:$0xf]
  %v193 = vld [vmem:[%s1 + $0x134] sm:$0xf]
  %v194 = vld [vmem:[%s1 + $0x138] sm:$0xf]
  %v195 = vld [vmem:[%s1 + $0x13c] sm:$0xf]
  %v196 = vld [vmem:[%s1 + $0x140] sm:$0xf]
  %v197 = vld [vmem:[%s1 + $0x144] sm:$0xf]
  %v198 = vld [vmem:[%s1 + $0x148] sm:$0xf]
  %v199 = vld [vmem:[%s1 + $0x14c] sm:$0xf]
  %v200 = vld [vmem:[%s1 + $0x150] sm:$0xf]
  %v201 = vld [vmem:[%s1 + $0x154] sm:$0xf]
  %v202 = vld [vmem:[%s1 + $0x158] sm:$0xf]
  %v203 = vld [vmem:[%s1 + $0x15c] sm:$0xf]
  %v204 = vld [vmem:[%s1 + $0x160] sm:$0xf]
  %v205 = vld [vmem:[%s1 + $0x164] sm:$0xf]
  %v206 = vld [vmem:[%s1 + $0x168] sm:$0xf]
  %v207 = vld [vmem:[%s1 + $0x16c] sm:$0xf]
  %v208 = vld [vmem:[%s1 + $0x170] sm:$0xf]
  %v209 = vld [vmem:[%s1 + $0x174] sm:$0xf]
  %v210 = vld [vmem:[%s1 + $0x178] sm:$0xf]
  %v211 = vld [vmem:[%s1 + $0x17c] sm:$0xf]
  %v212 = vld [vmem:[%s1 + $0x180] sm:$0xf]
  %v213 = vld [vmem:[%s1 + $0x184] sm:$0xf]
  %v214 = vld [vmem:[%s1 + $0x188] sm:$0xf]
  %v215 = vld [vmem:[%s1 + $0x18c] sm:$0xf]
  %v280 = vunpack.c.l.b16 %v52
  %v281 = vunpack.c.h.b16 %v52
  %v282 = vunpack.c.l.b16 %v53
  %v283 = vunpack.c.h.b16 %v53
  %v284 = vunpack.c.l.b16 %v54
  %v285 = vunpack.c.h.b16 %v54
  %v286 = vunpack.c.l.b16 %v55
  %v287 = vunpack.c.l.b16 %v56
  %v288 = vunpack.c.h.b16 %v56
  %v289 = vunpack.c.l.b16 %v57
  %v290 = vunpack.c.h.b16 %v57
  %v291 = vunpack.c.l.b16 %v58
  %v292 = vunpack.c.h.b16 %v58
  %v293 = vunpack.c.l.b16 %v59
  %v294 = vunpack.c.l.b16 %v60
  %v295 = vunpack.c.h.b16 %v60
  %v296 = vunpack.c.l.b16 %v61
  %v297 = vunpack.c.h.b16 %v61
  %v298 = vunpack.c.l.b16 %v62
  %v299 = vunpack.c.h.b16 %v62
  %v300 = vunpack.c.l.b16 %v63
  %v301 = vunpack.c.l.b16 %v64
  %v302 = vunpack.c.h.b16 %v64
  %v303 = vunpack.c.l.b16 %v65
  %v304 = vunpack.c.h.b16 %v65
  %v305 = vunpack.c.l.b16 %v66
  %v306 = vunpack.c.h.b16 %v66
  %v307 = vunpack.c.l.b16 %v67
  %v308 = vunpack.c.l.b16 %v68
  %v309 = vunpack.c.h.b16 %v68
  %v310 = vunpack.c.l.b16 %v69
  %v311 = vunpack.c.h.b16 %v69
  %v312 = vunpack.c.l.b16 %v70
  %v313 = vunpack.c.h.b16 %v70
  %v314 = vunpack.c.l.b16 %v71
  %v315 = vunpack.c.l.b16 %v72
  %v316 = vunpack.c.h.b16 %v72
  %v317 = vunpack.c.l.b16 %v73
  %v318 = vunpack.c.h.b16 %v73
  %v319 = vunpack.c.l.b16 %v74
  %v320 = vunpack.c.h.b16 %v74
  %v321 = vunpack.c.l.b16 %v75
  %v322 = vunpack.c.l.b16 %v76
  %v323 = vunpack.c.h.b16 %v76
  %v324 = vunpack.c.l.b16 %v77
  %v325 = vunpack.c.h.b16 %v77
  %v326 = vunpack.c.l.b16 %v78
  %v327 = vunpack.c.h.b16 %v78
  %v328 = vunpack.c.l.b16 %v79
  %v329 = vunpack.c.l.b16 %v80
  %v330 = vunpack.c.h.b16 %v80
  %v331 = vunpack.c.l.b16 %v81
  %v332 = vunpack.c.h.b16 %v81
  %v333 = vunpack.c.l.b16 %v82
  %v334 = vunpack.c.h.b16 %v82
  %v335 = vunpack.c.l.b16 %v83
  %v336 = vunpack.c.l.b16 %v84
  %v337 = vunpack.c.h.b16 %v84
  %v338 = vunpack.c.l.b16 %v85
  %v339 = vunpack.c.h.b16 %v85
  %v340 = vunpack.c.l.b16 %v86
  %v341 = vunpack.c.h.b16 %v86
  %v342 = vunpack.c.l.b16 %v87
  %v343 = vunpack.c.l.b16 %v88
  %v344 = vunpack.c.h.b16 %v88
  %v345 = vunpack.c.l.b16 %v89
  %v346 = vunpack.c.h.b16 %v89
  %v347 = vunpack.c.l.b16 %v90
  %v348 = vunpack.c.h.b16 %v90
  %v349 = vunpack.c.l.b16 %v91
  %v350 = vunpack.c.l.b16 %v92
  %v351 = vunpack.c.h.b16 %v92
  %v352 = vunpack.c.l.b16 %v93
  %v353 = vunpack.c.h.b16 %v93
  %v354 = vunpack.c.l.b16 %v94
  %v355 = vunpack.c.h.b16 %v94
  %v356 = vunpack.c.l.b16 %v95
  %v357 = vunpack.c.l.b16 %v96
  %v358 = vunpack.c.h.b16 %v96
  %v359 = vunpack.c.l.b16 %v97
  %v360 = vunpack.c.h.b16 %v97
  %v361 = vunpack.c.l.b16 %v98
  %v362 = vunpack.c.h.b16 %v98
  %v363 = vunpack.c.l.b16 %v99
  %v364 = vunpack.c.l.b16 %v100
  %v365 = vunpack.c.h.b16 %v100
  %v366 = vunpack.c.l.b16 %v101
  %v367 = vunpack.c.h.b16 %v101
  %v368 = vunpack.c.l.b16 %v102
  %v369 = vunpack.c.h.b16 %v102
  %v370 = vunpack.c.l.b16 %v103
  %v371 = vunpack.c.l.b16 %v104
  %v372 = vunpack.c.h.b16 %v104
  %v373 = vunpack.c.l.b16 %v105
  %v374 = vunpack.c.h.b16 %v105
  %v375 = vunpack.c.l.b16 %v106
  %v376 = vunpack.c.h.b16 %v106
  %v377 = vunpack.c.l.b16 %v107
  %v378 = vunpack.c.l.b16 %v108
  %v379 = vunpack.c.h.b16 %v108
  %v380 = vunpack.c.l.b16 %v109
  %v381 = vunpack.c.h.b16 %v109
  %v382 = vunpack.c.l.b16 %v110
  %v383 = vunpack.c.h.b16 %v110
  %v384 = vunpack.c.l.b16 %v111
  %v385 = vunpack.c.l.b16 %v112
  %v386 = vunpack.c.h.b16 %v112
  %v387 = vunpack.c.l.b16 %v113
  %v388 = vunpack.c.h.b16 %v113
  %v389 = vunpack.c.l.b16 %v114
  %v390 = vunpack.c.h.b16 %v114
  %v391 = vunpack.c.l.b16 %v115
  %v392 = vpack.c.b16 %v287, %v280
  %v393 = vpack.c.b16 %v288, %v281
  %v394 = vpack.c.b16 %v289, %v282
  %v395 = vpack.c.b16 %v290, %v283
  %v396 = vpack.c.b16 %v291, %v284
  %v397 = vpack.c.b16 %v292, %v285
  %v398 = vpack.c.b16 %v293, %v286
  %v399 = vpack.c.b16 %v301, %v294
  %v400 = vpack.c.b16 %v302, %v295
  %v401 = vpack.c.b16 %v303, %v296
  %v402 = vpack.c.b16 %v304, %v297
  %v403 = vpack.c.b16 %v305, %v298
  %v404 = vpack.c.b16 %v306, %v299
  %v405 = vpack.c.b16 %v307, %v300
  %v406 = vpack.c.b16 %v315, %v308
  %v407 = vpack.c.b16 %v316, %v309
  %v408 = vpack.c.b16 %v317, %v310
  %v409 = vpack.c.b16 %v318, %v311
  %v410 = vpack.c.b16 %v319, %v312
  %v411 = vpack.c.b16 %v320, %v313
  %v412 = vpack.c.b16 %v321, %v314
  %v413 = vpack.c.b16 %v329, %v322
  %v414 = vpack.c.b16 %v330, %v323
  %v415 = vpack.c.b16 %v331, %v324
  %v416 = vpack.c.b16 %v332, %v325
  %v417 = vpack.c.b16 %v333, %v326
  %v418 = vpack.c.b16 %v334, %v327
  %v419 = vpack.c.b16 %v335, %v328
  %v420 = vpack.c.b16 %v343, %v336
  %v421 = vpack.c.b16 %v344, %v337
  %v422 = vpack.c.b16 %v345, %v338
  %v423 = vpack.c.b16 %v346, %v339
  %v424 = vpack.c.b16 %v347, %v340
  %v425 = vpack.c.b16 %v348, %v341
  %v426 = vpack.c.b16 %v349, %v342
  %v427 = vpack.c.b16 %v357, %v350
  %v428 = vpack.c.b16 %v358, %v351
  %v429 = vpack.c.b16 %v359, %v352
  %v430 = vpack.c.b16 %v360, %v353
  %v431 = vpack.c.b16 %v361, %v354
  %v432 = vpack.c.b16 %v362, %v355
  %v433 = vpack.c.b16 %v363, %v356
  %v434 = vpack.c.b16 %v371, %v364
  %v435 = vpack.c.b16 %v372, %v365
  %v436 = vpack.c.b16 %v373, %v366
  %v437 = vpack.c.b16 %v374, %v367
  %v438 = vpack.c.b16 %v375, %v368
  %v439 = vpack.c.b16 %v376, %v369
  %v440 = vpack.c.b16 %v377, %v370
  %v441 = vpack.c.b16 %v385, %v378
  %v442 = vpack.c.b16 %v386, %v379
  %v443 = vpack.c.b16 %v387, %v380
  %v444 = vpack.c.b16 %v388, %v381
  %v445 = vpack.c.b16 %v389, %v382
  %v446 = vpack.c.b16 %v390, %v383
  %v447 = vpack.c.b16 %v391, %v384
  %v596 = vunpack.c.l.b16 %v116
  %v597 = vunpack.c.l.b16 %v117
  %v598 = vunpack.c.l.b16 %v118
  %v599 = vunpack.c.l.b16 %v119
  %v600 = vunpack.c.l.b16 %v120
  %v601 = vunpack.c.l.b16 %v121
  %v602 = vunpack.c.l.b16 %v122
  %v603 = vunpack.c.l.b16 %v123
  %v604 = vunpack.c.l.b16 %v124
  %v605 = vunpack.c.l.b16 %v125
  %v606 = vunpack.c.l.b16 %v126
  %v607 = vunpack.c.l.b16 %v127
  %v608 = vunpack.c.l.b16 %v128
  %v609 = vunpack.c.l.b16 %v129
  %v610 = vunpack.c.l.b16 %v130
  %v611 = vunpack.c.l.b16 %v131
  %v612 = vunpack.c.l.b16 %v132
  %v613 = vunpack.c.l.b16 %v133
  %v614 = vunpack.c.l.b16 %v134
  %v615 = vunpack.c.l.b16 %v135
  %v616 = vunpack.c.l.b16 %v136
  %v617 = vunpack.c.l.b16 %v137
  %v618 = vunpack.c.l.b16 %v138
  %v619 = vunpack.c.l.b16 %v139
  %v620 = vunpack.c.l.b16 %v140
  %v621 = vunpack.c.l.b16 %v141
  %v622 = vunpack.c.l.b16 %v142
  %v623 = vunpack.c.l.b16 %v143
  %v624 = vunpack.c.l.b16 %v144
  %v625 = vunpack.c.l.b16 %v145
  %v626 = vunpack.c.l.b16 %v146
  %v627 = vunpack.c.l.b16 %v147
  %v628 = vunpack.c.l.b16 %v148
  %v629 = vunpack.c.l.b16 %v149
  %v630 = vunpack.c.l.b16 %v150
  %v631 = vunpack.c.l.b16 %v151
  %v632 = vunpack.c.l.b16 %v152
  %v633 = vunpack.c.l.b16 %v153
  %v634 = vunpack.c.l.b16 %v154
  %v635 = vunpack.c.l.b16 %v155
  %v636 = vunpack.c.l.b16 %v156
  %v637 = vunpack.c.l.b16 %v157
  %v638 = vunpack.c.l.b16 %v158
  %v639 = vunpack.c.l.b16 %v159
  %v640 = vunpack.c.l.b16 %v160
  %v641 = vunpack.c.l.b16 %v161
  %v642 = vunpack.c.l.b16 %v162
  %v643 = vunpack.c.l.b16 %v163
  %v644 = vunpack.c.l.b16 %v164
  %v645 = vunpack.c.l.b16 %v165
  %v646 = vunpack.c.l.b16 %v166
  %v647 = vunpack.c.l.b16 %v167
  %v648 = vunpack.c.l.b16 %v168
  %v649 = vunpack.c.l.b16 %v169
  %v650 = vunpack.c.l.b16 %v170
  %v651 = vunpack.c.l.b16 %v171
  %v652 = vunpack.c.l.b16 %v172
  %v653 = vunpack.c.l.b16 %v173
  %v654 = vunpack.c.l.b16 %v174
  %v655 = vunpack.c.l.b16 %v175
  %v656 = vunpack.c.l.b16 %v176
  %v657 = vunpack.c.l.b16 %v177
  %v658 = vunpack.c.l.b16 %v178
  %v659 = vunpack.c.l.b16 %v179
  %v660 = vunpack.c.l.b16 %v180
  %v661 = vunpack.c.l.b16 %v181
  %v662 = vunpack.c.l.b16 %v182
  %v663 = vunpack.c.l.b16 %v183
  %v664 = vunpack.c.l.b16 %v184
  %v665 = vunpack.c.l.b16 %v185
  %v666 = vunpack.c.l.b16 %v186
  %v667 = vunpack.c.l.b16 %v187
  %v668 = vunpack.c.l.b16 %v188
  %v669 = vunpack.c.l.b16 %v189
  %v670 = vunpack.c.l.b16 %v190
  %v671 = vunpack.c.l.b16 %v191
  %v672 = vunpack.c.l.b16 %v192
  %v673 = vunpack.c.l.b16 %v193
  %v674 = vunpack.c.l.b16 %v194
  %v675 = vunpack.c.l.b16 %v195
  %v676 = vunpack.c.l.b16 %v196
  %v677 = vunpack.c.l.b16 %v197
  %v678 = vunpack.c.l.b16 %v198
  %v679 = vunpack.c.l.b16 %v199
  %v680 = vunpack.c.l.b16 %v200
  %v681 = vunpack.c.l.b16 %v201
  %v682 = vunpack.c.l.b16 %v202
  %v683 = vunpack.c.l.b16 %v203
  %v684 = vunpack.c.l.b16 %v204
  %v685 = vunpack.c.l.b16 %v205
  %v686 = vunpack.c.l.b16 %v206
  %v687 = vunpack.c.l.b16 %v207
  %v688 = vunpack.c.l.b16 %v208
  %v689 = vunpack.c.l.b16 %v209
  %v690 = vunpack.c.l.b16 %v210
  %v691 = vunpack.c.l.b16 %v211
  %v692 = vunpack.c.l.b16 %v212
  %v693 = vunpack.c.l.b16 %v213
  %v694 = vunpack.c.l.b16 %v214
  %v695 = vunpack.c.l.b16 %v215
  %v696 = vpack.c.b16 %v597, %v596
  %v697 = vpack.c.b16 %v599, %v598
  %v698 = vpack.c.b16 %v601, %v600
  %v699 = vpack.c.b16 %v603, %v602
  %v700 = vpack.c.b16 %v605, %v604
  %v701 = vpack.c.b16 %v607, %v606
  %v702 = vpack.c.b16 %v609, %v608
  %v703 = vpack.c.b16 %v611, %v610
  %v704 = vpack.c.b16 %v613, %v612
  %v705 = vpack.c.b16 %v615, %v614
  %v706 = vpack.c.b16 %v617, %v616
  %v707 = vpack.c.b16 %v619, %v618
  %v708 = vpack.c.b16 %v621, %v620
  %v709 = vpack.c.b16 %v623, %v622
  %v710 = vpack.c.b16 %v625, %v624
  %v711 = vpack.c.b16 %v627, %v626
  %v712 = vpack.c.b16 %v629, %v628
  %v713 = vpack.c.b16 %v631, %v630
  %v714 = vpack.c.b16 %v633, %v632
  %v715 = vpack.c.b16 %v635, %v634
  %v716 = vpack.c.b16 %v637, %v636
  %v717 = vpack.c.b16 %v639, %v638
  %v718 = vpack.c.b16 %v641, %v640
  %v719 = vpack.c.b16 %v643, %v642
  %v720 = vpack.c.b16 %v645, %v644
  %v721 = vpack.c.b16 %v647, %v646
  %v722 = vpack.c.b16 %v649, %v648
  %v723 = vpack.c.b16 %v651, %v650
  %v724 = vpack.c.b16 %v653, %v652
  %v725 = vpack.c.b16 %v655, %v654
  %v726 = vpack.c.b16 %v657, %v656
  %v727 = vpack.c.b16 %v659, %v658
  %v728 = vpack.c.b16 %v661, %v660
  %v729 = vpack.c.b16 %v663, %v662
  %v730 = vpack.c.b16 %v665, %v664
  %v731 = vpack.c.b16 %v667, %v666
  %v732 = vpack.c.b16 %v669, %v668
  %v733 = vpack.c.b16 %v671, %v670
  %v734 = vpack.c.b16 %v673, %v672
  %v735 = vpack.c.b16 %v675, %v674
  %v736 = vpack.c.b16 %v677, %v676
  %v737 = vpack.c.b16 %v679, %v678
  %v738 = vpack.c.b16 %v681, %v680
  %v739 = vpack.c.b16 %v683, %v682
  %v740 = vpack.c.b16 %v685, %v684
  %v741 = vpack.c.b16 %v687, %v686
  %v742 = vpack.c.b16 %v689, %v688
  %v743 = vpack.c.b16 %v691, %v690
  %v744 = vpack.c.b16 %v693, %v692
  %v745 = vpack.c.b16 %v695, %v694
  %vm796 = vcmask 261120
  %v798 = vsel %vm796, %v398, 0
  %v801 = vsel %vm796, %v405, 0
  %v804 = vsel %vm796, %v412, 0
  %v807 = vsel %vm796, %v419, 0
  %v810 = vsel %vm796, %v426, 0
  %v813 = vsel %vm796, %v433, 0
  %v816 = vsel %vm796, %v440, 0
  %v819 = vsel %vm796, %v447, 0
  %821 = vmatprep.subr.bf16.mxu0 0
  %822 = vmatpush1.bf16.msra.mxu0 %v696
  %823 = vmatprep.subr.bf16.mxu0 0
  %824 = vmatpush1.bf16.msra.mxu0 %v697
  %825 = vmatprep.subr.bf16.mxu0 0
  %826 = vmatpush1.bf16.msra.mxu0 %v698
  %827 = vmatprep.subr.bf16.mxu0 0
  %828 = vmatpush1.bf16.msra.mxu0 %v699
  %829 = vmatprep.subr.bf16.mxu0 0
  %830 = vmatpush1.bf16.msra.mxu0 %v700
  %831 = vmatprep.subr.bf16.mxu0 0
  %832 = vmatpush1.bf16.msra.mxu0 %v701
  %833 = vmatprep.subr.bf16.mxu0 0
  %834 = vmatpush1.bf16.msra.mxu0 %v702
  %835 = vmatprep.subr.bf16.mxu0 0
  %836 = vmatpush1.bf16.msra.mxu0 %v703
  %837 = vmatprep.subr.bf16.mxu0 0
  %838 = vmatpush1.bf16.msra.mxu0 %v704
  %839 = vmatprep.subr.bf16.mxu0 0
  %840 = vmatpush1.bf16.msra.mxu0 %v705
  %841 = vmatprep.subr.bf16.mxu0 0
  %842 = vmatpush1.bf16.msra.mxu0 %v706
  %843 = vmatprep.subr.bf16.mxu0 0
  %844 = vmatpush1.bf16.msra.mxu0 %v707
  %845 = vmatprep.subr.bf16.mxu0 0
  %846 = vmatpush1.bf16.msra.mxu0 %v708
  %847 = vmatprep.subr.bf16.mxu0 0
  %848 = vmatpush1.bf16.msra.mxu0 %v709
  %849 = vmatprep.subr.bf16.mxu0 0
  %850 = vmatpush1.bf16.msra.mxu0 %v710
  %851 = vmatprep.subr.bf16.mxu0 0
  %852 = vmatpush1.bf16.msra.mxu0 %v711
  %853 = vmatprep.mubr.bf16.mxu0 %v393
  %854 = vmatmul.mubr.bf16.gmra.mrb[0].mxu0 %v392
  %v855 = vpop.f32.mrb[0].mxu0
  %v856 = vadd.f32 0.0, %v855
  %v857 = vpop.f32.mrb[0].mxu0
  %v858 = vpop.f32.mrb[0].mxu0
  %v859 = vadd.f32 0.0, %v858
  %v860 = vpop.f32.mrb[0].mxu0
  %861 = vmatprep.mubr.bf16.mxu0 %v400
  %862 = vmatmul.mubr.bf16.gmra.mrb[0].mxu0 %v399
  %v863 = vpop.f32.mrb[0].mxu0
  %v864 = vadd.f32 0.0, %v863
  %v865 = vpop.f32.mrb[0].mxu0
  %v866 = vpop.f32.mrb[0].mxu0
  %v867 = vadd.f32 0.0, %v866
  %v868 = vpop.f32.mrb[0].mxu0
  %869 = vmatprep.mubr.bf16.mxu0 %v407
  %870 = vmatmul.mubr.bf16.gmra.mrb[0].mxu0 %v406
  %v871 = vpop.f32.mrb[0].mxu0
  %v872 = vadd.f32 0.0, %v871
  %v873 = vpop.f32.mrb[0].mxu0
  %v874 = vpop.f32.mrb[0].mxu0
  %v875 = vadd.f32 0.0, %v874
  %v876 = vpop.f32.mrb[0].mxu0
  %877 = vmatprep.mubr.bf16.mxu0 %v414
  %878 = vmatmul.mubr.bf16.gmra.mrb[0].mxu0 %v413
  %v879 = vpop.f32.mrb[0].mxu0
  %v880 = vadd.f32 0.0, %v879
  %v881 = vpop.f32.mrb[0].mxu0
  %v882 = vpop.f32.mrb[0].mxu0
  %v883 = vadd.f32 0.0, %v882
  %v884 = vpop.f32.mrb[0].mxu0
  %885 = vmatprep.mubr.bf16.mxu0 %v421
  %886 = vmatmul.mubr.bf16.gmra.mrb[0].mxu0 %v420
  %v887 = vpop.f32.mrb[0].mxu0
  %v888 = vadd.f32 0.0, %v887
  %v889 = vpop.f32.mrb[0].mxu0
  %v890 = vpop.f32.mrb[0].mxu0
  %v891 = vadd.f32 0.0, %v890
  %v892 = vpop.f32.mrb[0].mxu0
  %893 = vmatprep.mubr.bf16.mxu0 %v428
  %894 = vmatmul.mubr.bf16.gmra.mrb[0].mxu0 %v427
  %v895 = vpop.f32.mrb[0].mxu0
  %v896 = vadd.f32 0.0, %v895
  %v897 = vpop.f32.mrb[0].mxu0
  %v898 = vpop.f32.mrb[0].mxu0
  %v899 = vadd.f32 0.0, %v898
  %v900 = vpop.f32.mrb[0].mxu0
  %901 = vmatprep.mubr.bf16.mxu0 %v435
  %902 = vmatmul.mubr.bf16.gmra.mrb[0].mxu0 %v434
  %v903 = vpop.f32.mrb[0].mxu0
  %v904 = vadd.f32 0.0, %v903
  %v905 = vpop.f32.mrb[0].mxu0
  %v906 = vpop.f32.mrb[0].mxu0
  %v907 = vadd.f32 0.0, %v906
  %v908 = vpop.f32.mrb[0].mxu0
  %909 = vmatprep.mubr.bf16.mxu0 %v442
  %910 = vmatmul.mubr.bf16.gmra.mrb[0].mxu0 %v441
  %v911 = vpop.f32.mrb[0].mxu0
  %v912 = vadd.f32 0.0, %v911
  %v913 = vpop.f32.mrb[0].mxu0
  %v914 = vpop.f32.mrb[0].mxu0
  %v915 = vadd.f32 0.0, %v914
  %v916 = vpop.f32.mrb[0].mxu0
  %917 = vdwg.mxu0
  %918 = vmatprep.subr.bf16.mxu0 0
  %919 = vmatpush1.bf16.msra.mxu0 %v712
  %920 = vmatprep.subr.bf16.mxu0 0
  %921 = vmatpush1.bf16.msra.mxu0 %v713
  %922 = vmatprep.subr.bf16.mxu0 0
  %923 = vmatpush1.bf16.msra.mxu0 %v714
  %924 = vmatprep.subr.bf16.mxu0 0
  %925 = vmatpush1.bf16.msra.mxu0 %v715
  %926 = vmatprep.subr.bf16.mxu0 0
  %927 = vmatpush1.bf16.msra.mxu0 %v716
  %928 = vmatprep.subr.bf16.mxu0 0
  %929 = vmatpush1.bf16.msra.mxu0 %v717
  %930 = vmatprep.subr.bf16.mxu0 0
  %931 = vmatpush1.bf16.msra.mxu0 %v718
  %932 = vmatprep.subr.bf16.mxu0 0
  %933 = vmatpush1.bf16.msra.mxu0 %v719
  %934 = vmatprep.subr.bf16.mxu0 0
  %935 = vmatpush1.bf16.msra.mxu0 %v720
  %936 = vmatprep.subr.bf16.mxu0 0
  %937 = vmatpush1.bf16.msra.mxu0 %v721
  %938 = vmatprep.subr.bf16.mxu0 0
  %939 = vmatpush1.bf16.msra.mxu0 %v722
  %940 = vmatprep.subr.bf16.mxu0 0
  %941 = vmatpush1.bf16.msra.mxu0 %v723
  %942 = vmatprep.subr.bf16.mxu0 0
  %943 = vmatpush1.bf16.msra.mxu0 %v724
  %944 = vmatprep.subr.bf16.mxu0 0
  %945 = vmatpush1.bf16.msra.mxu0 %v725
  %946 = vmatprep.subr.bf16.mxu0 0
  %947 = vmatpush1.bf16.msra.mxu0 %v726
  %948 = vmatprep.subr.bf16.mxu0 0
  %949 = vmatpush1.bf16.msra.mxu0 %v727
  %950 = vmatprep.mubr.bf16.mxu0 %v395
  %951 = vmatmul.mubr.bf16.gmra.mrb[0].mxu0 %v394
  %v952 = vpop.f32.mrb[0].mxu0
  %v953 = vadd.f32 %v856, %v952
  %v954 = vpop.f32.mrb[0].mxu0
  %v955 = vpop.f32.mrb[0].mxu0
  %v956 = vadd.f32 %v859, %v955
  %v957 = vpop.f32.mrb[0].mxu0
  %958 = vmatprep.mubr.bf16.mxu0 %v402
  %959 = vmatmul.mubr.bf16.gmra.mrb[0].mxu0 %v401
  %v960 = vpop.f32.mrb[0].mxu0
  %v961 = vadd.f32 %v864, %v960
  %v962 = vpop.f32.mrb[0].mxu0
  %v963 = vpop.f32.mrb[0].mxu0
  %v964 = vadd.f32 %v867, %v963
  %v965 = vpop.f32.mrb[0].mxu0
  %966 = vmatprep.mubr.bf16.mxu0 %v409
  %967 = vmatmul.mubr.bf16.gmra.mrb[0].mxu0 %v408
  %v968 = vpop.f32.mrb[0].mxu0
  %v969 = vadd.f32 %v872, %v968
  %v970 = vpop.f32.mrb[0].mxu0
  %v971 = vpop.f32.mrb[0].mxu0
  %v972 = vadd.f32 %v875, %v971
  %v973 = vpop.f32.mrb[0].mxu0
  %974 = vmatprep.mubr.bf16.mxu0 %v416
  %975 = vmatmul.mubr.bf16.gmra.mrb[0].mxu0 %v415
  %v976 = vpop.f32.mrb[0].mxu0
  %v977 = vadd.f32 %v880, %v976
  %v978 = vpop.f32.mrb[0].mxu0
  %v979 = vpop.f32.mrb[0].mxu0
  %v980 = vadd.f32 %v883, %v979
  %v981 = vpop.f32.mrb[0].mxu0
  %982 = vmatprep.mubr.bf16.mxu0 %v423
  %983 = vmatmul.mubr.bf16.gmra.mrb[0].mxu0 %v422
  %v984 = vpop.f32.mrb[0].mxu0
  %v985 = vadd.f32 %v888, %v984
  %v986 = vpop.f32.mrb[0].mxu0
  %v987 = vpop.f32.mrb[0].mxu0
  %v988 = vadd.f32 %v891, %v987
  %v989 = vpop.f32.mrb[0].mxu0
  %990 = vmatprep.mubr.bf16.mxu0 %v430
  %991 = vmatmul.mubr.bf16.gmra.mrb[0].mxu0 %v429
  %v992 = vpop.f32.mrb[0].mxu0
  %v993 = vadd.f32 %v896, %v992
  %v994 = vpop.f32.mrb[0].mxu0
  %v995 = vpop.f32.mrb[0].mxu0
  %v996 = vadd.f32 %v899, %v995
  %v997 = vpop.f32.mrb[0].mxu0
  %998 = vmatprep.mubr.bf16.mxu0 %v437
  %999 = vmatmul.mubr.bf16.gmra.mrb[0].mxu0 %v436
  %v1000 = vpop.f32.mrb[0].mxu0
  %v1001 = vadd.f32 %v904, %v1000
  %v1002 = vpop.f32.mrb[0].mxu0
  %v1003 = vpop.f32.mrb[0].mxu0
  %v1004 = vadd.f32 %v907, %v1003
  %v1005 = vpop.f32.mrb[0].mxu0
  %1006 = vmatprep.mubr.bf16.mxu0 %v444
  %1007 = vmatmul.mubr.bf16.gmra.mrb[0].mxu0 %v443
  %v1008 = vpop.f32.mrb[0].mxu0
  %v1009 = vadd.f32 %v912, %v1008
  %v1010 = vpop.f32.mrb[0].mxu0
  %v1011 = vpop.f32.mrb[0].mxu0
  %v1012 = vadd.f32 %v915, %v1011
  %v1013 = vpop.f32.mrb[0].mxu0
  %1014 = vdwg.mxu0
  %1015 = vmatprep.subr.bf16.mxu0 0
  %1016 = vmatpush1.bf16.msra.mxu0 %v728
  %1017 = vmatprep.subr.bf16.mxu0 0
  %1018 = vmatpush1.bf16.msra.mxu0 %v729
  %1019 = vmatprep.subr.bf16.mxu0 0
  %1020 = vmatpush1.bf16.msra.mxu0 %v730
  %1021 = vmatprep.subr.bf16.mxu0 0
  %1022 = vmatpush1.bf16.msra.mxu0 %v731
  %1023 = vmatprep.subr.bf16.mxu0 0
  %1024 = vmatpush1.bf16.msra.mxu0 %v732
  %1025 = vmatprep.subr.bf16.mxu0 0
  %1026 = vmatpush1.bf16.msra.mxu0 %v733
  %1027 = vmatprep.subr.bf16.mxu0 0
  %1028 = vmatpush1.bf16.msra.mxu0 %v734
  %1029 = vmatprep.subr.bf16.mxu0 0
  %1030 = vmatpush1.bf16.msra.mxu0 %v735
  %1031 = vmatprep.subr.bf16.mxu0 0
  %1032 = vmatpush1.bf16.msra.mxu0 %v736
  %1033 = vmatprep.subr.bf16.mxu0 0
  %1034 = vmatpush1.bf16.msra.mxu0 %v737
  %1035 = vmatprep.subr.bf16.mxu0 0
  %1036 = vmatpush1.bf16.msra.mxu0 %v738
  %1037 = vmatprep.subr.bf16.mxu0 0
  %1038 = vmatpush1.bf16.msra.mxu0 %v739
  %1039 = vmatprep.subr.bf16.mxu0 0
  %1040 = vmatpush1.bf16.msra.mxu0 %v740
  %1041 = vmatprep.subr.bf16.mxu0 0
  %1042 = vmatpush1.bf16.msra.mxu0 %v741
  %1043 = vmatprep.subr.bf16.mxu0 0
  %1044 = vmatpush1.bf16.msra.mxu0 %v742
  %1045 = vmatprep.subr.bf16.mxu0 0
  %1046 = vmatpush1.bf16.msra.mxu0 %v743
  %1047 = vmatprep.mubr.bf16.mxu0 %v397
  %1048 = vmatmul.mubr.bf16.gmra.mrb[0].mxu0 %v396
  %v1049 = vpop.f32.mrb[0].mxu0
  %v1050 = vadd.f32 %v953, %v1049
  %v1051 = vpop.f32.mrb[0].mxu0
  %v1052 = vpop.f32.mrb[0].mxu0
  %v1053 = vadd.f32 %v956, %v1052
  %v1054 = vpop.f32.mrb[0].mxu0
  %1055 = vmatprep.mubr.bf16.mxu0 %v404
  %1056 = vmatmul.mubr.bf16.gmra.mrb[0].mxu0 %v403
  %v1057 = vpop.f32.mrb[0].mxu0
  %v1058 = vadd.f32 %v961, %v1057
  %v1059 = vpop.f32.mrb[0].mxu0
  %v1060 = vpop.f32.mrb[0].mxu0
  %v1061 = vadd.f32 %v964, %v1060
  %v1062 = vpop.f32.mrb[0].mxu0
  %1063 = vmatprep.mubr.bf16.mxu0 %v411
  %1064 = vmatmul.mubr.bf16.gmra.mrb[0].mxu0 %v410
  %v1065 = vpop.f32.mrb[0].mxu0
  %v1066 = vadd.f32 %v969, %v1065
  %v1067 = vpop.f32.mrb[0].mxu0
  %v1068 = vpop.f32.mrb[0].mxu0
  %v1069 = vadd.f32 %v972, %v1068
  %v1070 = vpop.f32.mrb[0].mxu0
  %1071 = vmatprep.mubr.bf16.mxu0 %v418
  %1072 = vmatmul.mubr.bf16.gmra.mrb[0].mxu0 %v417
  %v1073 = vpop.f32.mrb[0].mxu0
  %v1074 = vadd.f32 %v977, %v1073
  %v1075 = vpop.f32.mrb[0].mxu0
  %v1076 = vpop.f32.mrb[0].mxu0
  %v1077 = vadd.f32 %v980, %v1076
  %v1078 = vpop.f32.mrb[0].mxu0
  %1079 = vmatprep.mubr.bf16.mxu0 %v425
  %1080 = vmatmul.mubr.bf16.gmra.mrb[0].mxu0 %v424
  %v1081 = vpop.f32.mrb[0].mxu0
  %v1082 = vadd.f32 %v985, %v1081
  %v1083 = vpop.f32.mrb[0].mxu0
  %v1084 = vpop.f32.mrb[0].mxu0
  %v1085 = vadd.f32 %v988, %v1084
  %v1086 = vpop.f32.mrb[0].mxu0
  %1087 = vmatprep.mubr.bf16.mxu0 %v432
  %1088 = vmatmul.mubr.bf16.gmra.mrb[0].mxu0 %v431
  %v1089 = vpop.f32.mrb[0].mxu0
  %v1090 = vadd.f32 %v993, %v1089
  %v1091 = vpop.f32.mrb[0].mxu0
  %v1092 = vpop.f32.mrb[0].mxu0
  %v1093 = vadd.f32 %v996, %v1092
  %v1094 = vpop.f32.mrb[0].mxu0
  %1095 = vmatprep.mubr.bf16.mxu0 %v439
  %1096 = vmatmul.mubr.bf16.gmra.mrb[0].mxu0 %v438
  %v1097 = vpop.f32.mrb[0].mxu0
  %v1098 = vadd.f32 %v1001, %v1097
  %v1099 = vpop.f32.mrb[0].mxu0
  %v1100 = vpop.f32.mrb[0].mxu0
  %v1101 = vadd.f32 %v1004, %v1100
  %v1102 = vpop.f32.mrb[0].mxu0
  %1103 = vmatprep.mubr.bf16.mxu0 %v446
  %1104 = vmatmul.mubr.bf16.gmra.mrb[0].mxu0 %v445
  %v1105 = vpop.f32.mrb[0].mxu0
  %v1106 = vadd.f32 %v1009, %v1105
  %v1107 = vpop.f32.mrb[0].mxu0
  %v1108 = vpop.f32.mrb[0].mxu0
  %v1109 = vadd.f32 %v1012, %v1108
  %v1110 = vpop.f32.mrb[0].mxu0
  %1111 = vdwg.mxu0
  %1112 = vmatprep.subr.bf16.mxu0 0
  %1113 = vmatpush1.bf16.msra.mxu0 %v744
  %1114 = vmatprep.subr.bf16.mxu0 0
  %1115 = vmatpush1.bf16.msra.mxu0 %v745
  %1116 = vmatprep.subr.bf16.mxu0 0
  %1117 = vmatpush1.bf16.msra.mxu0 0
  %1118 = vmatprep.subr.bf16.mxu0 0
  %1119 = vmatpush1.bf16.msra.mxu0 0
  %1120 = vmatprep.subr.bf16.mxu0 0
  %1121 = vmatpush1.bf16.msra.mxu0 0
  %1122 = vmatprep.subr.bf16.mxu0 0
  %1123 = vmatpush1.bf16.msra.mxu0 0
  %1124 = vmatprep.subr.bf16.mxu0 0
  %1125 = vmatpush1.bf16.msra.mxu0 0
  %1126 = vmatprep.subr.bf16.mxu0 0
  %1127 = vmatpush1.bf16.msra.mxu0 0
  %1128 = vmatprep.subr.bf16.mxu0 0
  %1129 = vmatpush1.bf16.msra.mxu0 0
  %1130 = vmatprep.subr.bf16.mxu0 0
  %1131 = vmatpush1.bf16.msra.mxu0 0
  %1132 = vmatprep.subr.bf16.mxu0 0
  %1133 = vmatpush1.bf16.msra.mxu0 0
  %1134 = vmatprep.subr.bf16.mxu0 0
  %1135 = vmatpush1.bf16.msra.mxu0 0
  %1136 = vmatprep.subr.bf16.mxu0 0
  %1137 = vmatpush1.bf16.msra.mxu0 0
  %1138 = vmatprep.subr.bf16.mxu0 0
  %1139 = vmatpush1.bf16.msra.mxu0 0
  %1140 = vmatprep.subr.bf16.mxu0 0
  %1141 = vmatpush1.bf16.msra.mxu0 0
  %1142 = vmatprep.subr.bf16.mxu0 0
  %1143 = vmatpush1.bf16.msra.mxu0 0
  %1144 = vmatprep.mubr.bf16.mxu0 0
  %1145 = vmatmul.mubr.bf16.gmra.mrb[0].mxu0 %v798
  %v1146 = vpop.f32.mrb[0].mxu0
  %v1147 = vadd.f32 %v1050, %v1146
  %v1148 = vpop.f32.mrb[0].mxu0
  %v1149 = vpop.f32.mrb[0].mxu0
  %v1150 = vadd.f32 %v1053, %v1149
  %v1151 = vpop.f32.mrb[0].mxu0
  %1152 = vmatprep.mubr.bf16.mxu0 0
  %1153 = vmatmul.mubr.bf16.gmra.mrb[0].mxu0 %v801
  %v1154 = vpop.f32.mrb[0].mxu0
  %v1155 = vadd.f32 %v1058, %v1154
  %v1156 = vpop.f32.mrb[0].mxu0
  %v1157 = vpop.f32.mrb[0].mxu0
  %v1158 = vadd.f32 %v1061, %v1157
  %v1159 = vpop.f32.mrb[0].mxu0
  %1160 = vmatprep.mubr.bf16.mxu0 0
  %1161 = vmatmul.mubr.bf16.gmra.mrb[0].mxu0 %v804
  %v1162 = vpop.f32.mrb[0].mxu0
  %v1163 = vadd.f32 %v1066, %v1162
  %v1164 = vpop.f32.mrb[0].mxu0
  %v1165 = vpop.f32.mrb[0].mxu0
  %v1166 = vadd.f32 %v1069, %v1165
  %v1167 = vpop.f32.mrb[0].mxu0
  %1168 = vmatprep.mubr.bf16.mxu0 0
  %1169 = vmatmul.mubr.bf16.gmra.mrb[0].mxu0 %v807
  %v1170 = vpop.f32.mrb[0].mxu0
  %v1171 = vadd.f32 %v1074, %v1170
  %v1172 = vpop.f32.mrb[0].mxu0
  %v1173 = vpop.f32.mrb[0].mxu0
  %v1174 = vadd.f32 %v1077, %v1173
  %v1175 = vpop.f32.mrb[0].mxu0
  %1176 = vmatprep.mubr.bf16.mxu0 0
  %1177 = vmatmul.mubr.bf16.gmra.mrb[0].mxu0 %v810
  %v1178 = vpop.f32.mrb[0].mxu0
  %v1179 = vadd.f32 %v1082, %v1178
  %v1180 = vpop.f32.mrb[0].mxu0
  %v1181 = vpop.f32.mrb[0].mxu0
  %v1182 = vadd.f32 %v1085, %v1181
  %v1183 = vpop.f32.mrb[0].mxu0
  %1184 = vmatprep.mubr.bf16.mxu0 0
  %1185 = vmatmul.mubr.bf16.gmra.mrb[0].mxu0 %v813
  %v1186 = vpop.f32.mrb[0].mxu0
  %v1187 = vadd.f32 %v1090, %v1186
  %v1188 = vpop.f32.mrb[0].mxu0
  %v1189 = vpop.f32.mrb[0].mxu0
  %v1190 = vadd.f32 %v1093, %v1189
  %v1191 = vpop.f32.mrb[0].mxu0
  %1192 = vmatprep.mubr.bf16.mxu0 0
  %1193 = vmatmul.mubr.bf16.gmra.mrb[0].mxu0 %v816
  %v1194 = vpop.f32.mrb[0].mxu0
  %v1195 = vadd.f32 %v1098, %v1194
  %v1196 = vpop.f32.mrb[0].mxu0
  %v1197 = vpop.f32.mrb[0].mxu0
  %v1198 = vadd.f32 %v1101, %v1197
  %v1199 = vpop.f32.mrb[0].mxu0
  %1200 = vmatprep.mubr.bf16.mxu0 0
  %1201 = vmatmul.mubr.bf16.gmra.mrb[0].mxu0 %v819
  %v1202 = vpop.f32.mrb[0].mxu0
  %v1203 = vadd.f32 %v1106, %v1202
  %v1204 = vpop.f32.mrb[0].mxu0
  %v1205 = vpop.f32.mrb[0].mxu0
  %v1206 = vadd.f32 %v1109, %v1205
  %v1207 = vpop.f32.mrb[0].mxu0
  %1208 = vdwg.mxu0
  %v1209 = vadd.f32 %v36, %v1147
  %v1210 = vadd.f32 %v37, %v1150
  %v1211 = vadd.f32 %v38, %v1155
  %v1212 = vadd.f32 %v39, %v1158
  %v1213 = vadd.f32 %v40, %v1163
  %v1214 = vadd.f32 %v41, %v1166
  %v1215 = vadd.f32 %v42, %v1171
  %v1216 = vadd.f32 %v43, %v1174
  %v1217 = vadd.f32 %v44, %v1179
  %v1218 = vadd.f32 %v45, %v1182
  %v1219 = vadd.f32 %v46, %v1187
  %v1220 = vadd.f32 %v47, %v1190
  %v1221 = vadd.f32 %v48, %v1195
  %v1222 = vadd.f32 %v49, %v1198
  %v1223 = vadd.f32 %v50, %v1203
  %v1224 = vadd.f32 %v51, %v1206
  %vm1225 = vcmask 523264
  %1226 = vst.msk [vmem:[#allocation2] sm:$0xff] %vm1225, %v1209
  %1227 = vst.msk [vmem:[#allocation2 + $0x8] sm:$0xff] %vm1225, %v1210
  %1228 = vst.msk [vmem:[#allocation2 + $0x10] sm:$0xff] %vm1225, %v1211
  %1229 = vst.msk [vmem:[#allocation2 + $0x18] sm:$0xff] %vm1225, %v1212
  %1230 = vst.msk [vmem:[#allocation2 + $0x20] sm:$0xff] %vm1225, %v1213
  %1231 = vst.msk [vmem:[#allocation2 + $0x28] sm:$0xff] %vm1225, %v1214
  %1232 = vst.msk [vmem:[#allocation2 + $0x30] sm:$0xff] %vm1225, %v1215
  %1233 = vst.msk [vmem:[#allocation2 + $0x38] sm:$0xff] %vm1225, %v1216
  %1234 = vst.msk [vmem:[#allocation2 + $0x40] sm:$0xff] %vm1225, %v1217
  %1235 = vst.msk [vmem:[#allocation2 + $0x48] sm:$0xff] %vm1225, %v1218
  %1236 = vst.msk [vmem:[#allocation2 + $0x50] sm:$0xff] %vm1225, %v1219
  %1237 = vst.msk [vmem:[#allocation2 + $0x58] sm:$0xff] %vm1225, %v1220
  %1238 = vst.msk [vmem:[#allocation2 + $0x60] sm:$0xff] %vm1225, %v1221
  %1239 = vst.msk [vmem:[#allocation2 + $0x68] sm:$0xff] %vm1225, %v1222
  %1240 = vst.msk [vmem:[#allocation2 + $0x70] sm:$0xff] %vm1225, %v1223
  %1241 = vst.msk [vmem:[#allocation2 + $0x78] sm:$0xff] %vm1225, %v1224
  // Predicated region
  $region18: #{forward.8} parent=0 // pred_check
    %p1242 = pneg %p15
  $region19: #{forward.8} parent=0 // pred_check_branch
    %1244 = sbr.rel (%p1242) target = $region21
  $region20: #{forward.8} parent=0 // pred_region
    %v1245 = vld [vmem:[#allocation2] sm:$0xff]
    %v1246 = vld [vmem:[#allocation2 + $0x8] sm:$0xff]
    %v1247 = vld [vmem:[#allocation2 + $0x10] sm:$0xff]
    %v1248 = vld [vmem:[#allocation2 + $0x18] sm:$0xff]
    %v1249 = vld [vmem:[#allocation2 + $0x20] sm:$0xff]
    %v1250 = vld [vmem:[#allocation2 + $0x28] sm:$0xff]
    %v1251 = vld [vmem:[#allocation2 + $0x30] sm:$0xff]
    %v1252 = vld [vmem:[#allocation2 + $0x38] sm:$0xff]
    %v1253 = vld [vmem:[#allocation2 + $0x40] sm:$0xff]
    %v1254 = vld [vmem:[#allocation2 + $0x48] sm:$0xff]
    %v1255 = vld [vmem:[#allocation2 + $0x50] sm:$0xff]
    %v1256 = vld [vmem:[#allocation2 + $0x58] sm:$0xff]
    %v1257 = vld [vmem:[#allocation2 + $0x60] sm:$0xff]
    %v1258 = vld [vmem:[#allocation2 + $0x68] sm:$0xff]
    %v1259 = vld [vmem:[#allocation2 + $0x70] sm:$0xff]
    %v1260 = vld [vmem:[#allocation2 + $0x78] sm:$0xff]
    %v1261 = vld [vmem:[%s2] sm:$0x1]
    %v1263 = vlaneseq
    %v1264 = vshrl.u32 %v1263, 7
    %v1265 = vsub.s32 0, %v1264
    %v1266 = vrot.slane %v1261, %v1265
    %v1268 = vadd.f32 %v1245, %v1266
    %v1269 = vadd.f32 %v1246, %v1266
    %v1270 = vadd.f32 %v1247, %v1266
    %v1271 = vadd.f32 %v1248, %v1266
    %v1272 = vadd.f32 %v1249, %v1266
    %v1273 = vadd.f32 %v1250, %v1266
    %v1274 = vadd.f32 %v1251, %v1266
    %v1275 = vadd.f32 %v1252, %v1266
    %v1276 = vadd.f32 %v1253, %v1266
    %v1277 = vadd.f32 %v1254, %v1266
    %v1278 = vadd.f32 %v1255, %v1266
    %v1279 = vadd.f32 %v1256, %v1266
    %v1280 = vadd.f32 %v1257, %v1266
    %v1281 = vadd.f32 %v1258, %v1266
    %v1282 = vadd.f32 %v1259, %v1266
    %v1283 = vadd.f32 %v1260, %v1266
    %1284 = vst.msk [vmem:[%s3] sm:$0xff] %vm1225, %v1268
    %1285 = vst.msk [vmem:[%s3 + $0x8] sm:$0xff] %vm1225, %v1269
    %1286 = vst.msk [vmem:[%s3 + $0x10] sm:$0xff] %vm1225, %v1270
    %1287 = vst.msk [vmem:[%s3 + $0x18] sm:$0xff] %vm1225, %v1271
    %1288 = vst.msk [vmem:[%s3 + $0x20] sm:$0xff] %vm1225, %v1272
    %1289 = vst.msk [vmem:[%s3 + $0x28] sm:$0xff] %vm1225, %v1273
    %1290 = vst.msk [vmem:[%s3 + $0x30] sm:$0xff] %vm1225, %v1274
    %1291 = vst.msk [vmem:[%s3 + $0x38] sm:$0xff] %vm1225, %v1275
    %1292 = vst.msk [vmem:[%s3 + $0x40] sm:$0xff] %vm1225, %v1276
    %1293 = vst.msk [vmem:[%s3 + $0x48] sm:$0xff] %vm1225, %v1277
    %1294 = vst.msk [vmem:[%s3 + $0x50] sm:$0xff] %vm1225, %v1278
    %1295 = vst.msk [vmem:[%s3 + $0x58] sm:$0xff] %vm1225, %v1279
    %1296 = vst.msk [vmem:[%s3 + $0x60] sm:$0xff] %vm1225, %v1280
    %1297 = vst.msk [vmem:[%s3 + $0x68] sm:$0xff] %vm1225, %v1281
    %1298 = vst.msk [vmem:[%s3 + $0x70] sm:$0xff] %vm1225, %v1282
    %1299 = vst.msk [vmem:[%s3 + $0x78] sm:$0xff] %vm1225, %v1283
  $region21: #{forward.8} parent=0 // pred_fallthru
    _
  // Predicated region
  $region22: #{forward.8} parent=0 // pred_check
    _
  $region23: #{forward.8} parent=0 // pred_check_branch
    %1301 = sbr.rel (0) target = $region25
  $region24: #{forward.8} parent=0 // pred_region
    _
  $region25: #{forward.8} parent=0 // pred_fallthru
    _
  // Predicated region
  $region26: #{forward.8} parent=0 // pred_check
    _
  $region27: #{forward.8} parent=0 // pred_check_branch
    %1303 = sbr.rel (0) target = $region29
  $region28: #{forward.8} parent=0 // pred_region
    _
  $region29: #{forward.8} parent=0 // pred_fallthru
    _

// kernel: forward.9
$region0: #{forward.9}
  #allocation0 [shape = 'u32[]', space=smem, size = 0x4, offset = 0x4, fixed_abs, tag = 'smem constant byte address 0x4 - core index']
  #allocation1 [shape = 'u32[144,128]{1,0:T(1,128)}', space=vmem, size = 0x12000, scoped, tag = 'internal scratch']
  #allocation2 [shape = 'f32[128,32]{1,0:T(8,128)}', space=vmem, size = 0x10000, scoped, tag = 'scratch operand']
  %s0 = inlined_call_operand.vmem [shape: bf16[128,2048], index: 0, kind: input, shape index: {}]
  %s1 = inlined_call_operand.vmem [shape: bf16[2048,32], index: 1, kind: input, shape index: {}]
  %s2 = inlined_call_operand.vmem [shape: f32[1,32], index: 2, kind: input, shape index: {}]
  %s3 = inlined_call_operand.vmem [shape: f32[32,32], index: 3, kind: input, shape index: {}]
  %s4 = inlined_call_operand.vmem [shape: f32[1,32], index: 4, kind: input, shape index: {}]
  %s5 = inlined_call_operand.vmem [shape: bf16[128,32], index: 5, kind: output, shape index: {}]
  %s6 = sld [smem:[#allocation0]]
  $region84: #{forward.9} parent=0
    _
  %s8 = ssub.s32 1, %s6
  %s9 = scalar_select 0, %s8, %s6
  $region1: #{forward.9} parent=0
    #allocation3 [shape = 'u8[524288]{0}', space=vmem, size = 0x80000, scoped, tag = 'input window, operand 0']
    loop: start=0, step=1, limit=4
    $region2: #{forward.9} parent=1 // loop_pre_header
      _
    $region3: #{forward.9} parent=1 // loop_header
      %s11 = sphi 0, %s15
      %p12 = scmp.ge.s32.totalorder %s11, 4
      %s18 = sphi 0, %s30
      %s19 = sphi 0, %s26
      %s20 = sphi 0, %s18
      %s21 = sphi 0, %s19
      %s22 = sphi 0, %s20
      %s23 = sphi 0, %s21
      %s35 = sphi 0, %s37
      %s38 = sphi 0, %s35
      %s39 = sphi 0, %s38
      %s55 = sphi 0, %s39
      %s61 = sphi 0, %s63
      %s64 = sphi 0, %s61
      %s65 = sphi 0, %s64
      %s81 = sphi 0, %s65
      %s85 = sphi 0, %s85
      %s87 = sphi 0, %s85
      %s88 = sphi 0, %s87
      %s102 = sphi 0, %s88
      %s106 = sphi 0, %s106
      %s108 = sphi 0, %s106
      %s109 = sphi 0, %s108
      %s123 = sphi 0, %s109
      %s127 = sphi 0, %s127
      %s129 = sphi 0, %s127
      %s130 = sphi 0, %s129
      %s144 = sphi 0, %s130
      %s150 = sphi 0, %s152
      %s153 = sphi 0, %s150
      %s154 = sphi 0, %s153
      %s170 = sphi 0, %s154
    $region4: #{forward.9} parent=1 // loop_header_branch
      %14 = sbr.rel (%p12) target = $region8
    $region5: #{forward.9} parent=1 // loop_body
      %s16 = ssub.s32 %s11, 1
      %s17 = ssub.s32 %s11, 2
      %s24 = sadd.s32 1, %s19
      %p25 = scmp.ge.s32.totalorder %s24, 2
      %s26 = scalar_select %p25, 0, %s24
      %s27 = sadd.s32 1, %s18
      %s28 = scalar_select %p25, %s27, %s18
      %p29 = scmp.ge.s32.totalorder %s28, 1
      %s30 = scalar_select %p29, 0, %s28
      %s31 = ssub.s32 %s18, %s30
      %s32 = ssub.s32 %s19, %s26
      %s33 = sor.u32 %s31, %s32
      %p34 = scmp.eq.s32.totalorder %s33, 0
      %s36 = sadd.s32 %s35, 1
      %s37 = scalar_select %p34, %s35, %s36
      %p40 = pneg %p34
      %p41 = scmp.eq.s32.totalorder %s11, 1
      %p42 = por %p40, %p41
      %p43 = scmp.ne.s32.totalorder %s35, %s38
      %p44 = scmp.eq.s32.totalorder %s11, 0
      %p45 = por %p43, %p44
      %p46 = scmp.ne.s32.totalorder %s35, %s38
      %p47 = scmp.eq.s32.totalorder %s16, 1
      %p48 = por %p46, %p47
      %p49 = scmp.ne.s32.totalorder %s38, %s39
      %p50 = scmp.eq.s32.totalorder %s16, 0
      %p51 = por %p49, %p50
      %p52 = scmp.ne.s32.totalorder %s38, %s39
      %p53 = scmp.eq.s32.totalorder %s17, 1
      %p54 = por %p52, %p53
      %p56 = scmp.ne.s32.totalorder %s39, %s55
      %p57 = scmp.eq.s32.totalorder %s17, 0
      %p58 = por %p56, %p57
      %s59 = ssub.s32 %s19, %s26
      %p60 = scmp.eq.s32.totalorder %s59, 0
      %s62 = sadd.s32 %s61, 1
      %s63 = scalar_select %p60, %s61, %s62
      %p66 = pneg %p60
      %p67 = scmp.eq.s32.totalorder %s11, 1
      %p68 = por %p66, %p67
      %p69 = scmp.ne.s32.totalorder %s61, %s64
      %p70 = scmp.eq.s32.totalorder %s11, 0
      %p71 = por %p69, %p70
      %p72 = scmp.ne.s32.totalorder %s61, %s64
      %p73 = scmp.eq.s32.totalorder %s16, 1
      %p74 = por %p72, %p73
      %p75 = scmp.ne.s32.totalorder %s64, %s65
      %p76 = scmp.eq.s32.totalorder %s16, 0
      %p77 = por %p75, %p76
      %p78 = scmp.ne.s32.totalorder %s64, %s65
      %p79 = scmp.eq.s32.totalorder %s17, 1
      %p80 = por %p78, %p79
      %p82 = scmp.ne.s32.totalorder %s65, %s81
      %p83 = scmp.eq.s32.totalorder %s17, 0
      %p84 = por %p82, %p83
      %s86 = sadd.s32 %s85, 1
      %p89 = scmp.eq.s32.totalorder %s11, 1
      %p90 = scmp.ne.s32.totalorder %s85, %s87
      %p91 = scmp.eq.s32.totalorder %s11, 0
      %p92 = por %p90, %p91
      %p93 = scmp.ne.s32.totalorder %s85, %s87
      %p94 = scmp.eq.s32.totalorder %s16, 1
      %p95 = por %p93, %p94
      %p96 = scmp.ne.s32.totalorder %s87, %s88
      %p97 = scmp.eq.s32.totalorder %s16, 0
      %p98 = por %p96, %p97
      %p99 = scmp.ne.s32.totalorder %s87, %s88
      %p100 = scmp.eq.s32.totalorder %s17, 1
      %p101 = por %p99, %p100
      %p103 = scmp.ne.s32.totalorder %s88, %s102
      %p104 = scmp.eq.s32.totalorder %s17, 0
      %p105 = por %p103, %p104
      %s107 = sadd.s32 %s106, 1
      %p110 = scmp.eq.s32.totalorder %s11, 1
      %p111 = scmp.ne.s32.totalorder %s106, %s108
      %p112 = scmp.eq.s32.totalorder %s11, 0
      %p113 = por %p111, %p112
      %p114 = scmp.ne.s32.totalorder %s106, %s108
      %p115 = scmp.eq.s32.totalorder %s16, 1
      %p116 = por %p114, %p115
      %p117 = scmp.ne.s32.totalorder %s108, %s109
      %p118 = scmp.eq.s32.totalorder %s16, 0
      %p119 = por %p117, %p118
      %p120 = scmp.ne.s32.totalorder %s108, %s109
      %p121 = scmp.eq.s32.totalorder %s17, 1
      %p122 = por %p120, %p121
      %p124 = scmp.ne.s32.totalorder %s109, %s123
      %p125 = scmp.eq.s32.totalorder %s17, 0
      %p126 = por %p124, %p125
      %s128 = sadd.s32 %s127, 1
      %p131 = scmp.eq.s32.totalorder %s11, 1
      %p132 = scmp.ne.s32.totalorder %s127, %s129
      %p133 = scmp.eq.s32.totalorder %s11, 0
      %p134 = por %p132, %p133
      %p135 = scmp.ne.s32.totalorder %s127, %s129
      %p136 = scmp.eq.s32.totalorder %s16, 1
      %p137 = por %p135, %p136
      %p138 = scmp.ne.s32.totalorder %s129, %s130
      %p139 = scmp.eq.s32.totalorder %s16, 0
      %p140 = por %p138, %p139
      %p141 = scmp.ne.s32.totalorder %s129, %s130
      %p142 = scmp.eq.s32.totalorder %s17, 1
      %p143 = por %p141, %p142
      %p145 = scmp.ne.s32.totalorder %s130, %s144
      %p146 = scmp.eq.s32.totalorder %s17, 0
      %p147 = por %p145, %p146
      %s148 = ssub.s32 %s18, %s30
      %p149 = scmp.eq.s32.totalorder %s148, 0
      %s151 = sadd.s32 %s150, 1
      %s152 = scalar_select %p149, %s150, %s151
      %p155 = pneg %p149
      %p156 = scmp.eq.s32.totalorder %s11, 1
      %p157 = por %p155, %p156
      %p158 = scmp.ne.s32.totalorder %s150, %s153
      %p159 = scmp.eq.s32.totalorder %s11, 0
      %p160 = por %p158, %p159
      %p161 = scmp.ne.s32.totalorder %s150, %s153
      %p162 = scmp.eq.s32.totalorder %s16, 1
      %p163 = por %p161, %p162
      %p164 = scmp.ne.s32.totalorder %s153, %s154
      %p165 = scmp.eq.s32.totalorder %s16, 0
      %p166 = por %p164, %p165
      %p167 = scmp.ne.s32.totalorder %s153, %s154
      %p168 = scmp.eq.s32.totalorder %s17, 1
      %p169 = por %p167, %p168
      %p171 = scmp.ne.s32.totalorder %s154, %s170
      %p172 = scmp.eq.s32.totalorder %s17, 0
      %p173 = por %p171, %p172
      %p174 = scmp.le.s32.totalorder 1, %s11
      %p175 = scmp.lt.s32.totalorder %s11, 3
      %p176 = pnand %p174, %p175
      %p177 = pneg %p176
      // Predicated region
      $region9: #{forward.9} parent=5 // pred_check
        _
      $region10: #{forward.9} parent=5 // pred_check_branch
        %179 = sbr.rel (%p176) target = $region12
      $region11: #{forward.9} parent=5 // pred_region
        %s180 = ssub.s32 %s11, 1
        // Predicated region
        $region13: #{forward.9} parent=11 // pred_check
          %p181 = pneg %p98
        $region14: #{forward.9} parent=11 // pred_check_branch
          %183 = sbr.rel (%p181) target = $region16
        $region15: #{forward.9} parent=11 // pred_region
          _
        $region16: #{forward.9} parent=11 // pred_fallthru
          _
        // Predicated region
        $region17: #{forward.9} parent=11 // pred_check
          %p184 = pneg %p119
        $region18: #{forward.9} parent=11 // pred_check_branch
          %186 = sbr.rel (%p184) target = $region20
        $region19: #{forward.9} parent=11 // pred_region
          _
        $region20: #{forward.9} parent=11 // pred_fallthru
          _
        // Predicated region
        $region21: #{forward.9} parent=11 // pred_check
          %p187 = pneg %p140
        $region22: #{forward.9} parent=11 // pred_check_branch
          %189 = sbr.rel (%p187) target = $region24
        $region23: #{forward.9} parent=11 // pred_region
          _
        $region24: #{forward.9} parent=11 // pred_fallthru
          _
      $region12: #{forward.9} parent=5 // pred_fallthru
        _
      %p190 = scmp.lt.s32.totalorder %s11, 2
      // Predicated region
      $region25: #{forward.9} parent=5 // pred_check
        %p191 = pneg %p190
      $region26: #{forward.9} parent=5 // pred_check_branch
        %193 = sbr.rel (%p191) target = $region28
      $region27: #{forward.9} parent=5 // pred_region
        // Predicated region
        $region29: #{forward.9} parent=27 // pred_check
          %p194 = pneg %p45
        $region30: #{forward.9} parent=27 // pred_check_branch
          %196 = sbr.rel (%p194) target = $region32
        $region31: #{forward.9} parent=27 // pred_region
          %s197 = sand.u32 %s35, 1
          %s198 = sand.u32 %s35, 1
          %s199 = smul.addr %s198, 512
          %s200 = scalar_lea.vmem [#allocation3], %s199
          %s201 = smul.u32 16, %s18
          %s202 = smul.u32 8, %s19
          %s203 = smul.addr %s201, 16
          %s204 = sadd.s32 %s202, %s203
          %s205 = smul.addr %s204, 4
          %s206 = scalar_lea.vmem %s0, %s205
          // Predicated region
          $region33: #{forward.9} parent=31 // pred_check
            _
          $region34: #{forward.9} parent=31 // pred_check_branch
            %208 = sbr.rel (0) target = $region36
          $region35: #{forward.9} parent=31 // pred_region
            // Predicated region
            $region37: #{forward.9} parent=35 // pred_check
              _
            $region38: #{forward.9} parent=35 // pred_check_branch
              %210 = sbr.rel (0) target = $region40
            $region39: #{forward.9} parent=35 // pred_region
              loop: start=0, step=1, limit=1
              $region41: #{forward.9} parent=39 // loop_pre_header
                _
              $region42: #{forward.9} parent=39 // loop_header
                %s212 = sphi 0, %s216
                %p213 = scmp.ge.s32.totalorder %s212, 1
                %s217 = sphi %s206, %s206
                %s218 = sphi %s200, %s200
              $region43: #{forward.9} parent=39 // loop_header_branch
                %215 = sbr.rel (%p213) target = $region47
              $region44: #{forward.9} parent=39 // loop_body
                %v219 = vld [vmem:[%s217] sm:$0xff]
                %220 = vst [vmem:[%s218] sm:$0xff] %v219
                %v221 = vld [vmem:[%s217 + $0x8] sm:$0xff]
                %222 = vst [vmem:[%s218 + $0x8] sm:$0xff] %v221
                %v223 = vld [vmem:[%s217 + $0x10] sm:$0xff]
                %224 = vst [vmem:[%s218 + $0x10] sm:$0xff] %v223
                %v225 = vld [vmem:[%s217 + $0x18] sm:$0xff]
                %226 = vst [vmem:[%s218 + $0x18] sm:$0xff] %v225
                %v227 = vld [vmem:[%s217 + $0x40] sm:$0xff]
                %228 = vst [vmem:[%s218 + $0x20] sm:$0xff] %v227
                %v229 = vld [vmem:[%s217 + $0x48] sm:$0xff]
                %230 = vst [vmem:[%s218 + $0x28] sm:$0xff] %v229
                %v231 = vld [vmem:[%s217 + $0x50] sm:$0xff]
                %232 = vst [vmem:[%s218 + $0x30] sm:$0xff] %v231
                %v233 = vld [vmem:[%s217 + $0x58] sm:$0xff]
                %234 = vst [vmem:[%s218 + $0x38] sm:$0xff] %v233
                %v235 = vld [vmem:[%s217 + $0x80] sm:$0xff]
                %236 = vst [vmem:[%s218 + $0x40] sm:$0xff] %v235
                %v237 = vld [vmem:[%s217 + $0x88] sm:$0xff]
                %238 = vst [vmem:[%s218 + $0x48] sm:$0xff] %v237
                %v239 = vld [vmem:[%s217 + $0x90] sm:$0xff]
                %240 = vst [vmem:[%s218 + $0x50] sm:$0xff] %v239
                %v241 = vld [vmem:[%s217 + $0x98] sm:$0xff]
                %242 = vst [vmem:[%s218 + $0x58] sm:$0xff] %v241
                %v243 = vld [vmem:[%s217 + $0xc0] sm:$0xff]
                %244 = vst [vmem:[%s218 + $0x60] sm:$0xff] %v243
                %v245 = vld [vmem:[%s217 + $0xc8] sm:$0xff]
                %246 = vst [vmem:[%s218 + $0x68] sm:$0xff] %v245
                %v247 = vld [vmem:[%s217 + $0xd0] sm:$0xff]
                %248 = vst [vmem:[%s218 + $0x70] sm:$0xff] %v247
                %v249 = vld [vmem:[%s217 + $0xd8] sm:$0xff]
                %250 = vst [vmem:[%s218 + $0x78] sm:$0xff] %v249
                %v251 = vld [vmem:[%s217 + $0x100] sm:$0xff]
                %252 = vst [vmem:[%s218 + $0x80] sm:$0xff] %v251
                %v253 = vld [vmem:[%s217 + $0x108] sm:$0xff]
                %254 = vst [vmem:[%s218 + $0x88] sm:$0xff] %v253
                %v255 = vld [vmem:[%s217 + $0x110] sm:$0xff]
                %256 = vst [vmem:[%s218 + $0x90] sm:$0xff] %v255
                %v257 = vld [vmem:[%s217 + $0x118] sm:$0xff]
                %258 = vst [vmem:[%s218 + $0x98] sm:$0xff] %v257
                %v259 = vld [vmem:[%s217 + $0x140] sm:$0xff]
                %260 = vst [vmem:[%s218 + $0xa0] sm:$0xff] %v259
                %v261 = vld [vmem:[%s217 + $0x148] sm:$0xff]
                %262 = vst [vmem:[%s218 + $0xa8] sm:$0xff] %v261
                %v263 = vld [vmem:[%s217 + $0x150] sm:$0xff]
                %264 = vst [vmem:[%s218 + $0xb0] sm:$0xff] %v263
                %v265 = vld [vmem:[%s217 + $0x158] sm:$0xff]
                %266 = vst [vmem:[%s218 + $0xb8] sm:$0xff] %v265
                %v267 = vld [vmem:[%s217 + $0x180] sm:$0xff]
                %268 = vst [vmem:[%s218 + $0xc0] sm:$0xff] %v267
                %v269 = vld [vmem:[%s217 + $0x188] sm:$0xff]
                %270 = vst [vmem:[%s218 + $0xc8] sm:$0xff] %v269
                %v271 = vld [vmem:[%s217 + $0x190] sm:$0xff]
                %272 = vst [vmem:[%s218 + $0xd0] sm:$0xff] %v271
                %v273 = vld [vmem:[%s217 + $0x198] sm:$0xff]
                %274 = vst [vmem:[%s218 + $0xd8] sm:$0xff] %v273
                %v275 = vld [vmem:[%s217 + $0x1c0] sm:$0xff]
                %276 = vst [vmem:[%s218 + $0xe0] sm:$0xff] %v275
                %v277 = vld [vmem:[%s217 + $0x1c8] sm:$0xff]
                %278 = vst [vmem:[%s218 + $0xe8] sm:$0xff] %v277
                %v279 = vld [vmem:[%s217 + $0x1d0] sm:$0xff]
                %280 = vst [vmem:[%s218 + $0xf0] sm:$0xff] %v279
                %v281 = vld [vmem:[%s217 + $0x1d8] sm:$0xff]
                %282 = vst [vmem:[%s218 + $0xf8] sm:$0xff] %v281
                %v283 = vld [vmem:[%s217 + $0x200] sm:$0xff]
                %284 = vst [vmem:[%s218 + $0x100] sm:$0xff] %v283
                %v285 = vld [vmem:[%s217 + $0x208] sm:$0xff]
                %286 = vst [vmem:[%s218 + $0x108] sm:$0xff] %v285
                %v287 = vld [vmem:[%s217 + $0x210] sm:$0xff]
                %288 = vst [vmem:[%s218 + $0x110] sm:$0xff] %v287
                %v289 = vld [vmem:[%s217 + $0x218] sm:$0xff]
                %290 = vst [vmem:[%s218 + $0x118] sm:$0xff] %v289
                %v291 = vld [vmem:[%s217 + $0x240] sm:$0xff]
                %292 = vst [vmem:[%s218 + $0x120] sm:$0xff] %v291
                %v293 = vld [vmem:[%s217 + $0x248] sm:$0xff]
                %294 = vst [vmem:[%s218 + $0x128] sm:$0xff] %v293
                %v295 = vld [vmem:[%s217 + $0x250] sm:$0xff]
                %296 = vst [vmem:[%s218 + $0x130] sm:$0xff] %v295
                %v297 = vld [vmem:[%s217 + $0x258] sm:$0xff]
                %298 = vst [vmem:[%s218 + $0x138] sm:$0xff] %v297
                %v299 = vld [vmem:[%s217 + $0x280] sm:$0xff]
                %300 = vst [vmem:[%s218 + $0x140] sm:$0xff] %v299
                %v301 = vld [vmem:[%s217 + $0x288] sm:$0xff]
                %302 = vst [vmem:[%s218 + $0x148] sm:$0xff] %v301
                %v303 = vld [vmem:[%s217 + $0x290] sm:$0xff]
                %304 = vst [vmem:[%s218 + $0x150] sm:$0xff] %v303
                %v305 = vld [vmem:[%s217 + $0x298] sm:$0xff]
                %306 = vst [vmem:[%s218 + $0x158] sm:$0xff] %v305
                %v307 = vld [vmem:[%s217 + $0x2c0] sm:$0xff]
                %308 = vst [vmem:[%s218 + $0x160] sm:$0xff] %v307
                %v309 = vld [vmem:[%s217 + $0x2c8] sm:$0xff]
                %310 = vst [vmem:[%s218 + $0x168] sm:$0xff] %v309
                %v311 = vld [vmem:[%s217 + $0x2d0] sm:$0xff]
                %312 = vst [vmem:[%s218 + $0x170] sm:$0xff] %v311
                %v313 = vld [vmem:[%s217 + $0x2d8] sm:$0xff]
                %314 = vst [vmem:[%s218 + $0x178] sm:$0xff] %v313
                %v315 = vld [vmem:[%s217 + $0x300] sm:$0xff]
                %316 = vst [vmem:[%s218 + $0x180] sm:$0xff] %v315
                %v317 = vld [vmem:[%s217 + $0x308] sm:$0xff]
                %318 = vst [vmem:[%s218 + $0x188] sm:$0xff] %v317
                %v319 = vld [vmem:[%s217 + $0x310] sm:$0xff]
                %320 = vst [vmem:[%s218 + $0x190] sm:$0xff] %v319
                %v321 = vld [vmem:[%s217 + $0x318] sm:$0xff]
                %322 = vst [vmem:[%s218 + $0x198] sm:$0xff] %v321
                %v323 = vld [vmem:[%s217 + $0x340] sm:$0xff]
                %324 = vst [vmem:[%s218 + $0x1a0] sm:$0xff] %v323
                %v325 = vld [vmem:[%s217 + $0x348] sm:$0xff]
                %326 = vst [vmem:[%s218 + $0x1a8] sm:$0xff] %v325
                %v327 = vld [vmem:[%s217 + $0x350] sm:$0xff]
                %328 = vst [vmem:[%s218 + $0x1b0] sm:$0xff] %v327
                %v329 = vld [vmem:[%s217 + $0x358] sm:$0xff]
                %330 = vst [vmem:[%s218 + $0x1b8] sm:$0xff] %v329
                %v331 = vld [vmem:[%s217 + $0x380] sm:$0xff]
                %332 = vst [vmem:[%s218 + $0x1c0] sm:$0xff] %v331
                %v333 = vld [vmem:[%s217 + $0x388] sm:$0xff]
                %334 = vst [vmem:[%s218 + $0x1c8] sm:$0xff] %v333
                %v335 = vld [vmem:[%s217 + $0x390] sm:$0xff]
                %336 = vst [vmem:[%s218 + $0x1d0] sm:$0xff] %v335
                %v337 = vld [vmem:[%s217 + $0x398] sm:$0xff]
                %338 = vst [vmem:[%s218 + $0x1d8] sm:$0xff] %v337
                %v339 = vld [vmem:[%s217 + $0x3c0] sm:$0xff]
                %340 = vst [vmem:[%s218 + $0x1e0] sm:$0xff] %v339
                %v341 = vld [vmem:[%s217 + $0x3c8] sm:$0xff]
                %342 = vst [vmem:[%s218 + $0x1e8] sm:$0xff] %v341
                %v343 = vld [vmem:[%s217 + $0x3d0] sm:$0xff]
                %344 = vst [vmem:[%s218 + $0x1f0] sm:$0xff] %v343
                %v345 = vld [vmem:[%s217 + $0x3d8] sm:$0xff]
                %346 = vst [vmem:[%s218 + $0x1f8] sm:$0xff] %v345
              $region45: #{forward.9} parent=39 // loop_footer
                %s216 = sadd.s32 1, %s212
              $region46: #{forward.9} parent=39 // loop_footer_branch
                %211 = sbr.rel target = $region42
              $region47: #{forward.9} parent=39 // loop_exit
                _
            $region40: #{forward.9} parent=35 // pred_fallthru
              _
            // Predicated region
            $region48: #{forward.9} parent=35 // pred_check
              _
            $region49: #{forward.9} parent=35 // pred_check_branch
              %348 = sbr.rel target = $region51
            $region50: #{forward.9} parent=35 // pred_region
              _
            $region51: #{forward.9} parent=35 // pred_fallthru
              _
          $region36: #{forward.9} parent=31 // pred_fallthru
            _
          %349 = vnop
        $region32: #{forward.9} parent=27 // pred_fallthru
          _
        // Predicated region
        $region52: #{forward.9} parent=27 // pred_check
          %p350 = pneg %p71
        $region53: #{forward.9} parent=27 // pred_check_branch
          %352 = sbr.rel (%p350) target = $region55
        $region54: #{forward.9} parent=27 // pred_region
          %s353 = smul.u32 128, %s19
          %p354 = scmp.lt.s32.totalorder %s353, 255
          %s355 = scalar_select %p354, %s353, 255
          %s356 = smul.addr %s355, 4
          %s357 = scalar_lea.vmem %s1, %s356
          %s358 = smul.u32 128, %s19
        $region55: #{forward.9} parent=27 // pred_fallthru
          _
      $region28: #{forward.9} parent=5 // pred_fallthru
        _
      %p359 = scmp.le.s32.totalorder 1, %s11
      %p360 = scmp.lt.s32.totalorder %s11, 3
      %p361 = pnand %p359, %p360
      %p362 = pneg %p361
      // Predicated region
      $region56: #{forward.9} parent=5 // pred_check
        _
      $region57: #{forward.9} parent=5 // pred_check_branch
        %364 = sbr.rel (%p361) target = $region59
      $region58: #{forward.9} parent=5 // pred_region
        %s365 = ssub.s32 %s11, 1
        %s366 = sand.u32 %s38, 1
        %s367 = sand.u32 %s38, 1
        %s368 = smul.addr %s367, 512
        %s369 = scalar_lea.vmem [#allocation3], %s368
        // Predicated region
        $region60: #{forward.9} parent=58 // pred_check
          %p370 = pneg %p51
        $region61: #{forward.9} parent=58 // pred_check_branch
          %372 = sbr.rel (%p370) target = $region63
        $region62: #{forward.9} parent=58 // pred_region
          _
        $region63: #{forward.9} parent=58 // pred_fallthru
          _
        %s373 = sand.u32 %s38, 1
        %s374 = sand.u32 %s38, 1
        %s375 = smul.addr %s374, 512
        %s376 = scalar_lea.vmem [#allocation3], %s375
        %p377 = pneg %p51
        %p378 = pneg %p48
        %s379 = smul.u32 128, %s21
        %p380 = scmp.lt.s32.totalorder %s379, 255
        %s381 = scalar_select %p380, %s379, 255
        %s382 = smul.addr %s381, 4
        %s383 = scalar_lea.vmem %s1, %s382
        %p384 = pneg %p77
        %p385 = pneg %p74
        %p386 = pneg %p98
        %p387 = pneg %p95
        %p388 = pneg %p119
        %p389 = pneg %p116
        %p390 = pneg %p140
        %p391 = pneg %p137
        %p392 = pneg %p166
        %p393 = pneg %p163
        %s394 = smul.u32 16, %s20
        %p395 = scmp.lt.s32.totalorder %s394, 15
        %s396 = scalar_select %p395, %s394, 15
        %s397 = smul.addr %s396, 4
        %s398 = scalar_lea.vmem %s5, %s397
        %s399 = smul.u32 16, %s20
        %s400 = smul.u32 8, %s21
        %s401 = smul.u32 128, %s21
        %p402 = scmp.lt.s32.totalorder %s401, 255
        %s403 = scalar_select %p402, %s401, 255
        %s404 = smul.addr %s403, 4
        %s405 = scalar_lea.vmem %s1, %s404
        %s406 = smul.u32 128, %s21
        %s407 = smul.u32 16, %s20
        %p408 = scmp.lt.s32.totalorder %s407, 15
        %s409 = scalar_select %p408, %s407, 15
        %s410 = smul.addr %s409, 4
        %s411 = scalar_lea.vmem %s5, %s410
        %s412 = smul.u32 16, %s20
        %p414 = scmp.eq.s32.totalorder %s21, 0
        // Predicated region
        $region64: #{forward.9} parent=58 // pred_check
          %p415 = pneg %p414
        $region65: #{forward.9} parent=58 // pred_check_branch
          %417 = sbr.rel (%p415) target = $region67
        $region66: #{forward.9} parent=58 // pred_region
          %vm418 = vcmask 261120
          %419 = vst.msk [vmem:[#allocation2] sm:$0xff] %vm418, 0.0
          %420 = vst.msk [vmem:[#allocation2 + $0x8] sm:$0xff] %vm418, 0.0
          %421 = vst.msk [vmem:[#allocation2 + $0x10] sm:$0xff] %vm418, 0.0
          %422 = vst.msk [vmem:[#allocation2 + $0x18] sm:$0xff] %vm418, 0.0
          %423 = vst.msk [vmem:[#allocation2 + $0x20] sm:$0xff] %vm418, 0.0
          %424 = vst.msk [vmem:[#allocation2 + $0x28] sm:$0xff] %vm418, 0.0
          %425 = vst.msk [vmem:[#allocation2 + $0x30] sm:$0xff] %vm418, 0.0
          %426 = vst.msk [vmem:[#allocation2 + $0x38] sm:$0xff] %vm418, 0.0
          %427 = vst.msk [vmem:[#allocation2 + $0x40] sm:$0xff] %vm418, 0.0
          %428 = vst.msk [vmem:[#allocation2 + $0x48] sm:$0xff] %vm418, 0.0
          %429 = vst.msk [vmem:[#allocation2 + $0x50] sm:$0xff] %vm418, 0.0
          %430 = vst.msk [vmem:[#allocation2 + $0x58] sm:$0xff] %vm418, 0.0
          %431 = vst.msk [vmem:[#allocation2 + $0x60] sm:$0xff] %vm418, 0.0
          %432 = vst.msk [vmem:[#allocation2 + $0x68] sm:$0xff] %vm418, 0.0
          %433 = vst.msk [vmem:[#allocation2 + $0x70] sm:$0xff] %vm418, 0.0
          %434 = vst.msk [vmem:[#allocation2 + $0x78] sm:$0xff] %vm418, 0.0
        $region67: #{forward.9} parent=58 // pred_fallthru
          _
        %v435 = vld [vmem:[#allocation2] sm:$0xff]
        %v436 = vld [vmem:[#allocation2 + $0x8] sm:$0xff]
        %v437 = vld [vmem:[#allocation2 + $0x10] sm:$0xff]
        %v438 = vld [vmem:[#allocation2 + $0x18] sm:$0xff]
        %v439 = vld [vmem:[#allocation2 + $0x20] sm:$0xff]
        %v440 = vld [vmem:[#allocation2 + $0x28] sm:$0xff]
        %v441 = vld [vmem:[#allocation2 + $0x30] sm:$0xff]
        %v442 = vld [vmem:[#allocation2 + $0x38] sm:$0xff]
        %v443 = vld [vmem:[#allocation2 + $0x40] sm:$0xff]
        %v444 = vld [vmem:[#allocation2 + $0x48] sm:$0xff]
        %v445 = vld [vmem:[#allocation2 + $0x50] sm:$0xff]
        %v446 = vld [vmem:[#allocation2 + $0x58] sm:$0xff]
        %v447 = vld [vmem:[#allocation2 + $0x60] sm:$0xff]
        %v448 = vld [vmem:[#allocation2 + $0x68] sm:$0xff]
        %v449 = vld [vmem:[#allocation2 + $0x70] sm:$0xff]
        %v450 = vld [vmem:[#allocation2 + $0x78] sm:$0xff]
        %v451 = vld [vmem:[%s369] sm:$0xff]
        %v452 = vld [vmem:[%s369 + $0x8] sm:$0xff]
        %v453 = vld [vmem:[%s369 + $0x10] sm:$0xff]
        %v454 = vld [vmem:[%s369 + $0x18] sm:$0xff]
        %v455 = vld [vmem:[%s369 + $0x20] sm:$0xff]
        %v456 = vld [vmem:[%s369 + $0x28] sm:$0xff]
        %v457 = vld [vmem:[%s369 + $0x30] sm:$0xff]
        %v458 = vld [vmem:[%s369 + $0x38] sm:$0xff]
        %v459 = vld [vmem:[%s369 + $0x40] sm:$0xff]
        %v460 = vld [vmem:[%s369 + $0x48] sm:$0xff]
        %v461 = vld [vmem:[%s369 + $0x50] sm:$0xff]
        %v462 = vld [vmem:[%s369 + $0x58] sm:$0xff]
        %v463 = vld [vmem:[%s369 + $0x60] sm:$0xff]
        %v464 = vld [vmem:[%s369 + $0x68] sm:$0xff]
        %v465 = vld [vmem:[%s369 + $0x70] sm:$0xff]
        %v466 = vld [vmem:[%s369 + $0x78] sm:$0xff]
        %v467 = vld [vmem:[%s369 + $0x80] sm:$0xff]
        %v468 = vld [vmem:[%s369 + $0x88] sm:$0xff]
        %v469 = vld [vmem:[%s369 + $0x90] sm:$0xff]
        %v470 = vld [vmem:[%s369 + $0x98] sm:$0xff]
        %v471 = vld [vmem:[%s369 + $0xa0] sm:$0xff]
        %v472 = vld [vmem:[%s369 + $0xa8] sm:$0xff]
        %v473 = vld [vmem:[%s369 + $0xb0] sm:$0xff]
        %v474 = vld [vmem:[%s369 + $0xb8] sm:$0xff]
        %v475 = vld [vmem:[%s369 + $0xc0] sm:$0xff]
        %v476 = vld [vmem:[%s369 + $0xc8] sm:$0xff]
        %v477 = vld [vmem:[%s369 + $0xd0] sm:$0xff]
        %v478 = vld [vmem:[%s369 + $0xd8] sm:$0xff]
        %v479 = vld [vmem:[%s369 + $0xe0] sm:$0xff]
        %v480 = vld [vmem:[%s369 + $0xe8] sm:$0xff]
        %v481 = vld [vmem:[%s369 + $0xf0] sm:$0xff]
        %v482 = vld [vmem:[%s369 + $0xf8] sm:$0xff]
        %v483 = vld [vmem:[%s369 + $0x100] sm:$0xff]
        %v484 = vld [vmem:[%s369 + $0x108] sm:$0xff]
        %v485 = vld [vmem:[%s369 + $0x110] sm:$0xff]
        %v486 = vld [vmem:[%s369 + $0x118] sm:$0xff]
        %v487 = vld [vmem:[%s369 + $0x120] sm:$0xff]
        %v488 = vld [vmem:[%s369 + $0x128] sm:$0xff]
        %v489 = vld [vmem:[%s369 + $0x130] sm:$0xff]
        %v490 = vld [vmem:[%s369 + $0x138] sm:$0xff]
        %v491 = vld [vmem:[%s369 + $0x140] sm:$0xff]
        %v492 = vld [vmem:[%s369 + $0x148] sm:$0xff]
        %v493 = vld [vmem:[%s369 + $0x150] sm:$0xff]
        %v494 = vld [vmem:[%s369 + $0x158] sm:$0xff]
        %v495 = vld [vmem:[%s369 + $0x160] sm:$0xff]
        %v496 = vld [vmem:[%s369 + $0x168] sm:$0xff]
        %v497 = vld [vmem:[%s369 + $0x170] sm:$0xff]
        %v498 = vld [vmem:[%s369 + $0x178] sm:$0xff]
        %v499 = vld [vmem:[%s369 + $0x180] sm:$0xff]
        %v500 = vld [vmem:[%s369 + $0x188] sm:$0xff]
        %v501 = vld [vmem:[%s369 + $0x190] sm:$0xff]
        %v502 = vld [vmem:[%s369 + $0x198] sm:$0xff]
        %v503 = vld [vmem:[%s369 + $0x1a0] sm:$0xff]
        %v504 = vld [vmem:[%s369 + $0x1a8] sm:$0xff]
        %v505 = vld [vmem:[%s369 + $0x1b0] sm:$0xff]
        %v506 = vld [vmem:[%s369 + $0x1b8] sm:$0xff]
        %v507 = vld [vmem:[%s369 + $0x1c0] sm:$0xff]
        %v508 = vld [vmem:[%s369 + $0x1c8] sm:$0xff]
        %v509 = vld [vmem:[%s369 + $0x1d0] sm:$0xff]
        %v510 = vld [vmem:[%s369 + $0x1d8] sm:$0xff]
        %v511 = vld [vmem:[%s369 + $0x1e0] sm:$0xff]
        %v512 = vld [vmem:[%s369 + $0x1e8] sm:$0xff]
        %v513 = vld [vmem:[%s369 + $0x1f0] sm:$0xff]
        %v514 = vld [vmem:[%s369 + $0x1f8] sm:$0xff]
        %v515 = vld [vmem:[%s405] sm:$0xf]
        %v516 = vld [vmem:[%s405 + $0x4] sm:$0xf]
        %v517 = vld [vmem:[%s405 + $0x8] sm:$0xf]
        %v518 = vld [vmem:[%s405 + $0xc] sm:$0xf]
        %v519 = vld [vmem:[%s405 + $0x10] sm:$0xf]
        %v520 = vld [vmem:[%s405 + $0x14] sm:$0xf]
        %v521 = vld [vmem:[%s405 + $0x18] sm:$0xf]
        %v522 = vld [vmem:[%s405 + $0x1c] sm:$0xf]
        %v523 = vld [vmem:[%s405 + $0x20] sm:$0xf]
        %v524 = vld [vmem:[%s405 + $0x24] sm:$0xf]
        %v525 = vld [vmem:[%s405 + $0x28] sm:$0xf]
        %v526 = vld [vmem:[%s405 + $0x2c] sm:$0xf]
        %v527 = vld [vmem:[%s405 + $0x30] sm:$0xf]
        %v528 = vld [vmem:[%s405 + $0x34] sm:$0xf]
        %v529 = vld [vmem:[%s405 + $0x38] sm:$0xf]
        %v530 = vld [vmem:[%s405 + $0x3c] sm:$0xf]
        %v531 = vld [vmem:[%s405 + $0x40] sm:$0xf]
        %v532 = vld [vmem:[%s405 + $0x44] sm:$0xf]
        %v533 = vld [vmem:[%s405 + $0x48] sm:$0xf]
        %v534 = vld [vmem:[%s405 + $0x4c] sm:$0xf]
        %v535 = vld [vmem:[%s405 + $0x50] sm:$0xf]
        %v536 = vld [vmem:[%s405 + $0x54] sm:$0xf]
        %v537 = vld [vmem:[%s405 + $0x58] sm:$0xf]
        %v538 = vld [vmem:[%s405 + $0x5c] sm:$0xf]
        %v539 = vld [vmem:[%s405 + $0x60] sm:$0xf]
        %v540 = vld [vmem:[%s405 + $0x64] sm:$0xf]
        %v541 = vld [vmem:[%s405 + $0x68] sm:$0xf]
        %v542 = vld [vmem:[%s405 + $0x6c] sm:$0xf]
        %v543 = vld [vmem:[%s405 + $0x70] sm:$0xf]
        %v544 = vld [vmem:[%s405 + $0x74] sm:$0xf]
        %v545 = vld [vmem:[%s405 + $0x78] sm:$0xf]
        %v546 = vld [vmem:[%s405 + $0x7c] sm:$0xf]
        %v547 = vld [vmem:[%s405 + $0x80] sm:$0xf]
        %v548 = vld [vmem:[%s405 + $0x84] sm:$0xf]
        %v549 = vld [vmem:[%s405 + $0x88] sm:$0xf]
        %v550 = vld [vmem:[%s405 + $0x8c] sm:$0xf]
        %v551 = vld [vmem:[%s405 + $0x90] sm:$0xf]
        %v552 = vld [vmem:[%s405 + $0x94] sm:$0xf]
        %v553 = vld [vmem:[%s405 + $0x98] sm:$0xf]
        %v554 = vld [vmem:[%s405 + $0x9c] sm:$0xf]
        %v555 = vld [vmem:[%s405 + $0xa0] sm:$0xf]
        %v556 = vld [vmem:[%s405 + $0xa4] sm:$0xf]
        %v557 = vld [vmem:[%s405 + $0xa8] sm:$0xf]
        %v558 = vld [vmem:[%s405 + $0xac] sm:$0xf]
        %v559 = vld [vmem:[%s405 + $0xb0] sm:$0xf]
        %v560 = vld [vmem:[%s405 + $0xb4] sm:$0xf]
        %v561 = vld [vmem:[%s405 + $0xb8] sm:$0xf]
        %v562 = vld [vmem:[%s405 + $0xbc] sm:$0xf]
        %v563 = vld [vmem:[%s405 + $0xc0] sm:$0xf]
        %v564 = vld [vmem:[%s405 + $0xc4] sm:$0xf]
        %v565 = vld [vmem:[%s405 + $0xc8] sm:$0xf]
        %v566 = vld [vmem:[%s405 + $0xcc] sm:$0xf]
        %v567 = vld [vmem:[%s405 + $0xd0] sm:$0xf]
        %v568 = vld [vmem:[%s405 + $0xd4] sm:$0xf]
        %v569 = vld [vmem:[%s405 + $0xd8] sm:$0xf]
        %v570 = vld [vmem:[%s405 + $0xdc] sm:$0xf]
        %v571 = vld [vmem:[%s405 + $0xe0] sm:$0xf]
        %v572 = vld [vmem:[%s405 + $0xe4] sm:$0xf]
        %v573 = vld [vmem:[%s405 + $0xe8] sm:$0xf]
        %v574 = vld [vmem:[%s405 + $0xec] sm:$0xf]
        %v575 = vld [vmem:[%s405 + $0xf0] sm:$0xf]
        %v576 = vld [vmem:[%s405 + $0xf4] sm:$0xf]
        %v577 = vld [vmem:[%s405 + $0xf8] sm:$0xf]
        %v578 = vld [vmem:[%s405 + $0xfc] sm:$0xf]
        %v579 = vld [vmem:[%s405 + $0x100] sm:$0xf]
        %v580 = vld [vmem:[%s405 + $0x104] sm:$0xf]
        %v581 = vld [vmem:[%s405 + $0x108] sm:$0xf]
        %v582 = vld [vmem:[%s405 + $0x10c] sm:$0xf]
        %v583 = vld [vmem:[%s405 + $0x110] sm:$0xf]
        %v584 = vld [vmem:[%s405 + $0x114] sm:$0xf]
        %v585 = vld [vmem:[%s405 + $0x118] sm:$0xf]
        %v586 = vld [vmem:[%s405 + $0x11c] sm:$0xf]
        %v587 = vld [vmem:[%s405 + $0x120] sm:$0xf]
        %v588 = vld [vmem:[%s405 + $0x124] sm:$0xf]
        %v589 = vld [vmem:[%s405 + $0x128] sm:$0xf]
        %v590 = vld [vmem:[%s405 + $0x12c] sm:$0xf]
        %v591 = vld [vmem:[%s405 + $0x130] sm:$0xf]
        %v592 = vld [vmem:[%s405 + $0x134] sm:$0xf]
        %v593 = vld [vmem:[%s405 + $0x138] sm:$0xf]
        %v594 = vld [vmem:[%s405 + $0x13c] sm:$0xf]
        %v595 = vld [vmem:[%s405 + $0x140] sm:$0xf]
        %v596 = vld [vmem:[%s405 + $0x144] sm:$0xf]
        %v597 = vld [vmem:[%s405 + $0x148] sm:$0xf]
        %v598 = vld [vmem:[%s405 + $0x14c] sm:$0xf]
        %v599 = vld [vmem:[%s405 + $0x150] sm:$0xf]
        %v600 = vld [vmem:[%s405 + $0x154] sm:$0xf]
        %v601 = vld [vmem:[%s405 + $0x158] sm:$0xf]
        %v602 = vld [vmem:[%s405 + $0x15c] sm:$0xf]
        %v603 = vld [vmem:[%s405 + $0x160] sm:$0xf]
        %v604 = vld [vmem:[%s405 + $0x164] sm:$0xf]
        %v605 = vld [vmem:[%s405 + $0x168] sm:$0xf]
        %v606 = vld [vmem:[%s405 + $0x16c] sm:$0xf]
        %v607 = vld [vmem:[%s405 + $0x170] sm:$0xf]
        %v608 = vld [vmem:[%s405 + $0x174] sm:$0xf]
        %v609 = vld [vmem:[%s405 + $0x178] sm:$0xf]
        %v610 = vld [vmem:[%s405 + $0x17c] sm:$0xf]
        %v611 = vld [vmem:[%s405 + $0x180] sm:$0xf]
        %v612 = vld [vmem:[%s405 + $0x184] sm:$0xf]
        %v613 = vld [vmem:[%s405 + $0x188] sm:$0xf]
        %v614 = vld [vmem:[%s405 + $0x18c] sm:$0xf]
        %v615 = vld [vmem:[%s405 + $0x190] sm:$0xf]
        %v616 = vld [vmem:[%s405 + $0x194] sm:$0xf]
        %v617 = vld [vmem:[%s405 + $0x198] sm:$0xf]
        %v618 = vld [vmem:[%s405 + $0x19c] sm:$0xf]
        %v619 = vld [vmem:[%s405 + $0x1a0] sm:$0xf]
        %v620 = vld [vmem:[%s405 + $0x1a4] sm:$0xf]
        %v621 = vld [vmem:[%s405 + $0x1a8] sm:$0xf]
        %v622 = vld [vmem:[%s405 + $0x1ac] sm:$0xf]
        %v623 = vld [vmem:[%s405 + $0x1b0] sm:$0xf]
        %v624 = vld [vmem:[%s405 + $0x1b4] sm:$0xf]
        %v625 = vld [vmem:[%s405 + $0x1b8] sm:$0xf]
        %v626 = vld [vmem:[%s405 + $0x1bc] sm:$0xf]
        %v627 = vld [vmem:[%s405 + $0x1c0] sm:$0xf]
        %v628 = vld [vmem:[%s405 + $0x1c4] sm:$0xf]
        %v629 = vld [vmem:[%s405 + $0x1c8] sm:$0xf]
        %v630 = vld [vmem:[%s405 + $0x1cc] sm:$0xf]
        %v631 = vld [vmem:[%s405 + $0x1d0] sm:$0xf]
        %v632 = vld [vmem:[%s405 + $0x1d4] sm:$0xf]
        %v633 = vld [vmem:[%s405 + $0x1d8] sm:$0xf]
        %v634 = vld [vmem:[%s405 + $0x1dc] sm:$0xf]
        %v635 = vld [vmem:[%s405 + $0x1e0] sm:$0xf]
        %v636 = vld [vmem:[%s405 + $0x1e4] sm:$0xf]
        %v637 = vld [vmem:[%s405 + $0x1e8] sm:$0xf]
        %v638 = vld [vmem:[%s405 + $0x1ec] sm:$0xf]
        %v639 = vld [vmem:[%s405 + $0x1f0] sm:$0xf]
        %v640 = vld [vmem:[%s405 + $0x1f4] sm:$0xf]
        %v641 = vld [vmem:[%s405 + $0x1f8] sm:$0xf]
        %v642 = vld [vmem:[%s405 + $0x1fc] sm:$0xf]
        %v707 = vunpack.c.l.b16 %v451
        %v708 = vunpack.c.h.b16 %v451
        %v709 = vunpack.c.l.b16 %v452
        %v710 = vunpack.c.h.b16 %v452
        %v711 = vunpack.c.l.b16 %v453
        %v712 = vunpack.c.h.b16 %v453
        %v713 = vunpack.c.l.b16 %v454
        %v714 = vunpack.c.h.b16 %v454
        %v715 = vunpack.c.l.b16 %v455
        %v716 = vunpack.c.h.b16 %v455
        %v717 = vunpack.c.l.b16 %v456
        %v718 = vunpack.c.h.b16 %v456
        %v719 = vunpack.c.l.b16 %v457
        %v720 = vunpack.c.h.b16 %v457
        %v721 = vunpack.c.l.b16 %v458
        %v722 = vunpack.c.h.b16 %v458
        %v723 = vunpack.c.l.b16 %v459
        %v724 = vunpack.c.h.b16 %v459
        %v725 = vunpack.c.l.b16 %v460
        %v726 = vunpack.c.h.b16 %v460
        %v727 = vunpack.c.l.b16 %v461
        %v728 = vunpack.c.h.b16 %v461
        %v729 = vunpack.c.l.b16 %v462
        %v730 = vunpack.c.h.b16 %v462
        %v731 = vunpack.c.l.b16 %v463
        %v732 = vunpack.c.h.b16 %v463
        %v733 = vunpack.c.l.b16 %v464
        %v734 = vunpack.c.h.b16 %v464
        %v735 = vunpack.c.l.b16 %v465
        %v736 = vunpack.c.h.b16 %v465
        %v737 = vunpack.c.l.b16 %v466
        %v738 = vunpack.c.h.b16 %v466
        %v739 = vunpack.c.l.b16 %v467
        %v740 = vunpack.c.h.b16 %v467
        %v741 = vunpack.c.l.b16 %v468
        %v742 = vunpack.c.h.b16 %v468
        %v743 = vunpack.c.l.b16 %v469
        %v744 = vunpack.c.h.b16 %v469
        %v745 = vunpack.c.l.b16 %v470
        %v746 = vunpack.c.h.b16 %v470
        %v747 = vunpack.c.l.b16 %v471
        %v748 = vunpack.c.h.b16 %v471
        %v749 = vunpack.c.l.b16 %v472
        %v750 = vunpack.c.h.b16 %v472
        %v751 = vunpack.c.l.b16 %v473
        %v752 = vunpack.c.h.b16 %v473
        %v753 = vunpack.c.l.b16 %v474
        %v754 = vunpack.c.h.b16 %v474
        %v755 = vunpack.c.l.b16 %v475
        %v756 = vunpack.c.h.b16 %v475
        %v757 = vunpack.c.l.b16 %v476
        %v758 = vunpack.c.h.b16 %v476
        %v759 = vunpack.c.l.b16 %v477
        %v760 = vunpack.c.h.b16 %v477
        %v761 = vunpack.c.l.b16 %v478
        %v762 = vunpack.c.h.b16 %v478
        %v763 = vunpack.c.l.b16 %v479
        %v764 = vunpack.c.h.b16 %v479
        %v765 = vunpack.c.l.b16 %v480
        %v766 = vunpack.c.h.b16 %v480
        %v767 = vunpack.c.l.b16 %v481
        %v768 = vunpack.c.h.b16 %v481
        %v769 = vunpack.c.l.b16 %v482
        %v770 = vunpack.c.h.b16 %v482
        %v771 = vunpack.c.l.b16 %v483
        %v772 = vunpack.c.h.b16 %v483
        %v773 = vunpack.c.l.b16 %v484
        %v774 = vunpack.c.h.b16 %v484
        %v775 = vunpack.c.l.b16 %v485
        %v776 = vunpack.c.h.b16 %v485
        %v777 = vunpack.c.l.b16 %v486
        %v778 = vunpack.c.h.b16 %v486
        %v779 = vunpack.c.l.b16 %v487
        %v780 = vunpack.c.h.b16 %v487
        %v781 = vunpack.c.l.b16 %v488
        %v782 = vunpack.c.h.b16 %v488
        %v783 = vunpack.c.l.b16 %v489
        %v784 = vunpack.c.h.b16 %v489
        %v785 = vunpack.c.l.b16 %v490
        %v786 = vunpack.c.h.b16 %v490
        %v787 = vunpack.c.l.b16 %v491
        %v788 = vunpack.c.h.b16 %v491
        %v789 = vunpack.c.l.b16 %v492
        %v790 = vunpack.c.h.b16 %v492
        %v791 = vunpack.c.l.b16 %v493
        %v792 = vunpack.c.h.b16 %v493
        %v793 = vunpack.c.l.b16 %v494
        %v794 = vunpack.c.h.b16 %v494
        %v795 = vunpack.c.l.b16 %v495
        %v796 = vunpack.c.h.b16 %v495
        %v797 = vunpack.c.l.b16 %v496
        %v798 = vunpack.c.h.b16 %v496
        %v799 = vunpack.c.l.b16 %v497
        %v800 = vunpack.c.h.b16 %v497
        %v801 = vunpack.c.l.b16 %v498
        %v802 = vunpack.c.h.b16 %v498
        %v803 = vunpack.c.l.b16 %v499
        %v804 = vunpack.c.h.b16 %v499
        %v805 = vunpack.c.l.b16 %v500
        %v806 = vunpack.c.h.b16 %v500
        %v807 = vunpack.c.l.b16 %v501
        %v808 = vunpack.c.h.b16 %v501
        %v809 = vunpack.c.l.b16 %v502
        %v810 = vunpack.c.h.b16 %v502
        %v811 = vunpack.c.l.b16 %v503
        %v812 = vunpack.c.h.b16 %v503
        %v813 = vunpack.c.l.b16 %v504
        %v814 = vunpack.c.h.b16 %v504
        %v815 = vunpack.c.l.b16 %v505
        %v816 = vunpack.c.h.b16 %v505
        %v817 = vunpack.c.l.b16 %v506
        %v818 = vunpack.c.h.b16 %v506
        %v819 = vunpack.c.l.b16 %v507
        %v820 = vunpack.c.h.b16 %v507
        %v821 = vunpack.c.l.b16 %v508
        %v822 = vunpack.c.h.b16 %v508
        %v823 = vunpack.c.l.b16 %v509
        %v824 = vunpack.c.h.b16 %v509
        %v825 = vunpack.c.l.b16 %v510
        %v826 = vunpack.c.h.b16 %v510
        %v827 = vunpack.c.l.b16 %v511
        %v828 = vunpack.c.h.b16 %v511
        %v829 = vunpack.c.l.b16 %v512
        %v830 = vunpack.c.h.b16 %v512
        %v831 = vunpack.c.l.b16 %v513
        %v832 = vunpack.c.h.b16 %v513
        %v833 = vunpack.c.l.b16 %v514
        %v834 = vunpack.c.h.b16 %v514
        %v835 = vpack.c.b16 %v715, %v707
        %v836 = vpack.c.b16 %v716, %v708
        %v837 = vpack.c.b16 %v717, %v709
        %v838 = vpack.c.b16 %v718, %v710
        %v839 = vpack.c.b16 %v719, %v711
        %v840 = vpack.c.b16 %v720, %v712
        %v841 = vpack.c.b16 %v721, %v713
        %v842 = vpack.c.b16 %v722, %v714
        %v843 = vpack.c.b16 %v731, %v723
        %v844 = vpack.c.b16 %v732, %v724
        %v845 = vpack.c.b16 %v733, %v725
        %v846 = vpack.c.b16 %v734, %v726
        %v847 = vpack.c.b16 %v735, %v727
        %v848 = vpack.c.b16 %v736, %v728
        %v849 = vpack.c.b16 %v737, %v729
        %v850 = vpack.c.b16 %v738, %v730
        %v851 = vpack.c.b16 %v747, %v739
        %v852 = vpack.c.b16 %v748, %v740
        %v853 = vpack.c.b16 %v749, %v741
        %v854 = vpack.c.b16 %v750, %v742
        %v855 = vpack.c.b16 %v751, %v743
        %v856 = vpack.c.b16 %v752, %v744
        %v857 = vpack.c.b16 %v753, %v745
        %v858 = vpack.c.b16 %v754, %v746
        %v859 = vpack.c.b16 %v763, %v755
        %v860 = vpack.c.b16 %v764, %v756
        %v861 = vpack.c.b16 %v765, %v757
        %v862 = vpack.c.b16 %v766, %v758
        %v863 = vpack.c.b16 %v767, %v759
        %v864 = vpack.c.b16 %v768, %v760
        %v865 = vpack.c.b16 %v769, %v761
        %v866 = vpack.c.b16 %v770, %v762
        %v867 = vpack.c.b16 %v779, %v771
        %v868 = vpack.c.b16 %v780, %v772
        %v869 = vpack.c.b16 %v781, %v773
        %v870 = vpack.c.b16 %v782, %v774
        %v871 = vpack.c.b16 %v783, %v775
        %v872 = vpack.c.b16 %v784, %v776
        %v873 = vpack.c.b16 %v785, %v777
        %v874 = vpack.c.b16 %v786, %v778
        %v875 = vpack.c.b16 %v795, %v787
        %v876 = vpack.c.b16 %v796, %v788
        %v877 = vpack.c.b16 %v797, %v789
        %v878 = vpack.c.b16 %v798, %v790
        %v879 = vpack.c.b16 %v799, %v791
        %v880 = vpack.c.b16 %v800, %v792
        %v881 = vpack.c.b16 %v801, %v793
        %v882 = vpack.c.b16 %v802, %v794
        %v883 = vpack.c.b16 %v811, %v803
        %v884 = vpack.c.b16 %v812, %v804
        %v885 = vpack.c.b16 %v813, %v805
        %v886 = vpack.c.b16 %v814, %v806
        %v887 = vpack.c.b16 %v815, %v807
        %v888 = vpack.c.b16 %v816, %v808
        %v889 = vpack.c.b16 %v817, %v809
        %v890 = vpack.c.b16 %v818, %v810
        %v891 = vpack.c.b16 %v827, %v819
        %v892 = vpack.c.b16 %v828, %v820
        %v893 = vpack.c.b16 %v829, %v821
        %v894 = vpack.c.b16 %v830, %v822
        %v895 = vpack.c.b16 %v831, %v823
        %v896 = vpack.c.b16 %v832, %v824
        %v897 = vpack.c.b16 %v833, %v825
        %v898 = vpack.c.b16 %v834, %v826
        %v1091 = vunpack.c.l.b16 %v515
        %v1092 = vunpack.c.l.b16 %v516
        %v1093 = vunpack.c.l.b16 %v517
        %v1094 = vunpack.c.l.b16 %v518
        %v1095 = vunpack.c.l.b16 %v519
        %v1096 = vunpack.c.l.b16 %v520
        %v1097 = vunpack.c.l.b16 %v521
        %v1098 = vunpack.c.l.b16 %v522
        %v1099 = vunpack.c.l.b16 %v523
        %v1100 = vunpack.c.l.b16 %v524
        %v1101 = vunpack.c.l.b16 %v525
        %v1102 = vunpack.c.l.b16 %v526
        %v1103 = vunpack.c.l.b16 %v527
        %v1104 = vunpack.c.l.b16 %v528
        %v1105 = vunpack.c.l.b16 %v529
        %v1106 = vunpack.c.l.b16 %v530
        %v1107 = vunpack.c.l.b16 %v531
        %v1108 = vunpack.c.l.b16 %v532
        %v1109 = vunpack.c.l.b16 %v533
        %v1110 = vunpack.c.l.b16 %v534
        %v1111 = vunpack.c.l.b16 %v535
        %v1112 = vunpack.c.l.b16 %v536
        %v1113 = vunpack.c.l.b16 %v537
        %v1114 = vunpack.c.l.b16 %v538
        %v1115 = vunpack.c.l.b16 %v539
        %v1116 = vunpack.c.l.b16 %v540
        %v1117 = vunpack.c.l.b16 %v541
        %v1118 = vunpack.c.l.b16 %v542
        %v1119 = vunpack.c.l.b16 %v543
        %v1120 = vunpack.c.l.b16 %v544
        %v1121 = vunpack.c.l.b16 %v545
        %v1122 = vunpack.c.l.b16 %v546
        %v1123 = vunpack.c.l.b16 %v547
        %v1124 = vunpack.c.l.b16 %v548
        %v1125 = vunpack.c.l.b16 %v549
        %v1126 = vunpack.c.l.b16 %v550
        %v1127 = vunpack.c.l.b16 %v551
        %v1128 = vunpack.c.l.b16 %v552
        %v1129 = vunpack.c.l.b16 %v553
        %v1130 = vunpack.c.l.b16 %v554
        %v1131 = vunpack.c.l.b16 %v555
        %v1132 = vunpack.c.l.b16 %v556
        %v1133 = vunpack.c.l.b16 %v557
        %v1134 = vunpack.c.l.b16 %v558
        %v1135 = vunpack.c.l.b16 %v559
        %v1136 = vunpack.c.l.b16 %v560
        %v1137 = vunpack.c.l.b16 %v561
        %v1138 = vunpack.c.l.b16 %v562
        %v1139 = vunpack.c.l.b16 %v563
        %v1140 = vunpack.c.l.b16 %v564
        %v1141 = vunpack.c.l.b16 %v565
        %v1142 = vunpack.c.l.b16 %v566
        %v1143 = vunpack.c.l.b16 %v567
        %v1144 = vunpack.c.l.b16 %v568
        %v1145 = vunpack.c.l.b16 %v569
        %v1146 = vunpack.c.l.b16 %v570
        %v1147 = vunpack.c.l.b16 %v571
        %v1148 = vunpack.c.l.b16 %v572
        %v1149 = vunpack.c.l.b16 %v573
        %v1150 = vunpack.c.l.b16 %v574
        %v1151 = vunpack.c.l.b16 %v575
        %v1152 = vunpack.c.l.b16 %v576
        %v1153 = vunpack.c.l.b16 %v577
        %v1154 = vunpack.c.l.b16 %v578
        %v1155 = vunpack.c.l.b16 %v579
        %v1156 = vunpack.c.l.b16 %v580
        %v1157 = vunpack.c.l.b16 %v581
        %v1158 = vunpack.c.l.b16 %v582
        %v1159 = vunpack.c.l.b16 %v583
        %v1160 = vunpack.c.l.b16 %v584
        %v1161 = vunpack.c.l.b16 %v585
        %v1162 = vunpack.c.l.b16 %v586
        %v1163 = vunpack.c.l.b16 %v587
        %v1164 = vunpack.c.l.b16 %v588
        %v1165 = vunpack.c.l.b16 %v589
        %v1166 = vunpack.c.l.b16 %v590
        %v1167 = vunpack.c.l.b16 %v591
        %v1168 = vunpack.c.l.b16 %v592
        %v1169 = vunpack.c.l.b16 %v593
        %v1170 = vunpack.c.l.b16 %v594
        %v1171 = vunpack.c.l.b16 %v595
        %v1172 = vunpack.c.l.b16 %v596
        %v1173 = vunpack.c.l.b16 %v597
        %v1174 = vunpack.c.l.b16 %v598
        %v1175 = vunpack.c.l.b16 %v599
        %v1176 = vunpack.c.l.b16 %v600
        %v1177 = vunpack.c.l.b16 %v601
        %v1178 = vunpack.c.l.b16 %v602
        %v1179 = vunpack.c.l.b16 %v603
        %v1180 = vunpack.c.l.b16 %v604
        %v1181 = vunpack.c.l.b16 %v605
        %v1182 = vunpack.c.l.b16 %v606
        %v1183 = vunpack.c.l.b16 %v607
        %v1184 = vunpack.c.l.b16 %v608
        %v1185 = vunpack.c.l.b16 %v609
        %v1186 = vunpack.c.l.b16 %v610
        %v1187 = vunpack.c.l.b16 %v611
        %v1188 = vunpack.c.l.b16 %v612
        %v1189 = vunpack.c.l.b16 %v613
        %v1190 = vunpack.c.l.b16 %v614
        %v1191 = vunpack.c.l.b16 %v615
        %v1192 = vunpack.c.l.b16 %v616
        %v1193 = vunpack.c.l.b16 %v617
        %v1194 = vunpack.c.l.b16 %v618
        %v1195 = vunpack.c.l.b16 %v619
        %v1196 = vunpack.c.l.b16 %v620
        %v1197 = vunpack.c.l.b16 %v621
        %v1198 = vunpack.c.l.b16 %v622
        %v1199 = vunpack.c.l.b16 %v623
        %v1200 = vunpack.c.l.b16 %v624
        %v1201 = vunpack.c.l.b16 %v625
        %v1202 = vunpack.c.l.b16 %v626
        %v1203 = vunpack.c.l.b16 %v627
        %v1204 = vunpack.c.l.b16 %v628
        %v1205 = vunpack.c.l.b16 %v629
        %v1206 = vunpack.c.l.b16 %v630
        %v1207 = vunpack.c.l.b16 %v631
        %v1208 = vunpack.c.l.b16 %v632
        %v1209 = vunpack.c.l.b16 %v633
        %v1210 = vunpack.c.l.b16 %v634
        %v1211 = vunpack.c.l.b16 %v635
        %v1212 = vunpack.c.l.b16 %v636
        %v1213 = vunpack.c.l.b16 %v637
        %v1214 = vunpack.c.l.b16 %v638
        %v1215 = vunpack.c.l.b16 %v639
        %v1216 = vunpack.c.l.b16 %v640
        %v1217 = vunpack.c.l.b16 %v641
        %v1218 = vunpack.c.l.b16 %v642
        %v1219 = vpack.c.b16 %v1092, %v1091
        %v1220 = vpack.c.b16 %v1094, %v1093
        %v1221 = vpack.c.b16 %v1096, %v1095
        %v1222 = vpack.c.b16 %v1098, %v1097
        %v1223 = vpack.c.b16 %v1100, %v1099
        %v1224 = vpack.c.b16 %v1102, %v1101
        %v1225 = vpack.c.b16 %v1104, %v1103
        %v1226 = vpack.c.b16 %v1106, %v1105
        %v1227 = vpack.c.b16 %v1108, %v1107
        %v1228 = vpack.c.b16 %v1110, %v1109
        %v1229 = vpack.c.b16 %v1112, %v1111
        %v1230 = vpack.c.b16 %v1114, %v1113
        %v1231 = vpack.c.b16 %v1116, %v1115
        %v1232 = vpack.c.b16 %v1118, %v1117
        %v1233 = vpack.c.b16 %v1120, %v1119
        %v1234 = vpack.c.b16 %v1122, %v1121
        %v1235 = vpack.c.b16 %v1124, %v1123
        %v1236 = vpack.c.b16 %v1126, %v1125
        %v1237 = vpack.c.b16 %v1128, %v1127
        %v1238 = vpack.c.b16 %v1130, %v1129
        %v1239 = vpack.c.b16 %v1132, %v1131
        %v1240 = vpack.c.b16 %v1134, %v1133
        %v1241 = vpack.c.b16 %v1136, %v1135
        %v1242 = vpack.c.b16 %v1138, %v1137
        %v1243 = vpack.c.b16 %v1140, %v1139
        %v1244 = vpack.c.b16 %v1142, %v1141
        %v1245 = vpack.c.b16 %v1144, %v1143
        %v1246 = vpack.c.b16 %v1146, %v1145
        %v1247 = vpack.c.b16 %v1148, %v1147
        %v1248 = vpack.c.b16 %v1150, %v1149
        %v1249 = vpack.c.b16 %v1152, %v1151
        %v1250 = vpack.c.b16 %v1154, %v1153
        %v1251 = vpack.c.b16 %v1156, %v1155
        %v1252 = vpack.c.b16 %v1158, %v1157
        %v1253 = vpack.c.b16 %v1160, %v1159
        %v1254 = vpack.c.b16 %v1162, %v1161
        %v1255 = vpack.c.b16 %v1164, %v1163
        %v1256 = vpack.c.b16 %v1166, %v1165
        %v1257 = vpack.c.b16 %v1168, %v1167
        %v1258 = vpack.c.b16 %v1170, %v1169
        %v1259 = vpack.c.b16 %v1172, %v1171
        %v1260 = vpack.c.b16 %v1174, %v1173
        %v1261 = vpack.c.b16 %v1176, %v1175
        %v1262 = vpack.c.b16 %v1178, %v1177
        %v1263 = vpack.c.b16 %v1180, %v1179
        %v1264 = vpack.c.b16 %v1182, %v1181
        %v1265 = vpack.c.b16 %v1184, %v1183
        %v1266 = vpack.c.b16 %v1186, %v1185
        %v1267 = vpack.c.b16 %v1188, %v1187
        %v1268 = vpack.c.b16 %v1190, %v1189
        %v1269 = vpack.c.b16 %v1192, %v1191
        %v1270 = vpack.c.b16 %v1194, %v1193
        %v1271 = vpack.c.b16 %v1196, %v1195
        %v1272 = vpack.c.b16 %v1198, %v1197
        %v1273 = vpack.c.b16 %v1200, %v1199
        %v1274 = vpack.c.b16 %v1202, %v1201
        %v1275 = vpack.c.b16 %v1204, %v1203
        %v1276 = vpack.c.b16 %v1206, %v1205
        %v1277 = vpack.c.b16 %v1208, %v1207
        %v1278 = vpack.c.b16 %v1210, %v1209
        %v1279 = vpack.c.b16 %v1212, %v1211
        %v1280 = vpack.c.b16 %v1214, %v1213
        %v1281 = vpack.c.b16 %v1216, %v1215
        %v1282 = vpack.c.b16 %v1218, %v1217
        %1347 = vmatprep.subr.bf16.mxu0 0
        %1348 = vmatpush1.bf16.msra.mxu0 %v1219
        %1349 = vmatprep.subr.bf16.mxu0 0
        %1350 = vmatpush1.bf16.msra.mxu0 %v1220
        %1351 = vmatprep.subr.bf16.mxu0 0
        %1352 = vmatpush1.bf16.msra.mxu0 %v1221
        %1353 = vmatprep.subr.bf16.mxu0 0
        %1354 = vmatpush1.bf16.msra.mxu0 %v1222
        %1355 = vmatprep.subr.bf16.mxu0 0
        %1356 = vmatpush1.bf16.msra.mxu0 %v1223
        %1357 = vmatprep.subr.bf16.mxu0 0
        %1358 = vmatpush1.bf16.msra.mxu0 %v1224
        %1359 = vmatprep.subr.bf16.mxu0 0
        %1360 = vmatpush1.bf16.msra.mxu0 %v1225
        %1361 = vmatprep.subr.bf16.mxu0 0
        %1362 = vmatpush1.bf16.msra.mxu0 %v1226
        %1363 = vmatprep.subr.bf16.mxu0 0
        %1364 = vmatpush1.bf16.msra.mxu0 %v1227
        %1365 = vmatprep.subr.bf16.mxu0 0
        %1366 = vmatpush1.bf16.msra.mxu0 %v1228
        %1367 = vmatprep.subr.bf16.mxu0 0
        %1368 = vmatpush1.bf16.msra.mxu0 %v1229
        %1369 = vmatprep.subr.bf16.mxu0 0
        %1370 = vmatpush1.bf16.msra.mxu0 %v1230
        %1371 = vmatprep.subr.bf16.mxu0 0
        %1372 = vmatpush1.bf16.msra.mxu0 %v1231
        %1373 = vmatprep.subr.bf16.mxu0 0
        %1374 = vmatpush1.bf16.msra.mxu0 %v1232
        %1375 = vmatprep.subr.bf16.mxu0 0
        %1376 = vmatpush1.bf16.msra.mxu0 %v1233
        %1377 = vmatprep.subr.bf16.mxu0 0
        %1378 = vmatpush1.bf16.msra.mxu0 %v1234
        %1379 = vmatprep.mubr.bf16.mxu0 %v836
        %1380 = vmatmul.mubr.bf16.gmra.mrb[0].mxu0 %v835
        %v1381 = vpop.f32.mrb[0].mxu0
        %v1382 = vadd.f32 0.0, %v1381
        %v1383 = vpop.f32.mrb[0].mxu0
        %v1384 = vpop.f32.mrb[0].mxu0
        %v1385 = vadd.f32 0.0, %v1384
        %v1386 = vpop.f32.mrb[0].mxu0
        %1387 = vmatprep.mubr.bf16.mxu0 %v844
        %1388 = vmatmul.mubr.bf16.gmra.mrb[0].mxu0 %v843
        %v1389 = vpop.f32.mrb[0].mxu0
        %v1390 = vadd.f32 0.0, %v1389
        %v1391 = vpop.f32.mrb[0].mxu0
        %v1392 = vpop.f32.mrb[0].mxu0
        %v1393 = vadd.f32 0.0, %v1392
        %v1394 = vpop.f32.mrb[0].mxu0
        %1395 = vmatprep.mubr.bf16.mxu0 %v852
        %1396 = vmatmul.mubr.bf16.gmra.mrb[0].mxu0 %v851
        %v1397 = vpop.f32.mrb[0].mxu0
        %v1398 = vadd.f32 0.0, %v1397
        %v1399 = vpop.f32.mrb[0].mxu0
        %v1400 = vpop.f32.mrb[0].mxu0
        %v1401 = vadd.f32 0.0, %v1400
        %v1402 = vpop.f32.mrb[0].mxu0
        %1403 = vmatprep.mubr.bf16.mxu0 %v860
        %1404 = vmatmul.mubr.bf16.gmra.mrb[0].mxu0 %v859
        %v1405 = vpop.f32.mrb[0].mxu0
        %v1406 = vadd.f32 0.0, %v1405
        %v1407 = vpop.f32.mrb[0].mxu0
        %v1408 = vpop.f32.mrb[0].mxu0
        %v1409 = vadd.f32 0.0, %v1408
        %v1410 = vpop.f32.mrb[0].mxu0
        %1411 = vmatprep.mubr.bf16.mxu0 %v868
        %1412 = vmatmul.mubr.bf16.gmra.mrb[0].mxu0 %v867
        %v1413 = vpop.f32.mrb[0].mxu0
        %v1414 = vadd.f32 0.0, %v1413
        %v1415 = vpop.f32.mrb[0].mxu0
        %v1416 = vpop.f32.mrb[0].mxu0
        %v1417 = vadd.f32 0.0, %v1416
        %v1418 = vpop.f32.mrb[0].mxu0
        %1419 = vmatprep.mubr.bf16.mxu0 %v876
        %1420 = vmatmul.mubr.bf16.gmra.mrb[0].mxu0 %v875
        %v1421 = vpop.f32.mrb[0].mxu0
        %v1422 = vadd.f32 0.0, %v1421
        %v1423 = vpop.f32.mrb[0].mxu0
        %v1424 = vpop.f32.mrb[0].mxu0
        %v1425 = vadd.f32 0.0, %v1424
        %v1426 = vpop.f32.mrb[0].mxu0
        %1427 = vmatprep.mubr.bf16.mxu0 %v884
        %1428 = vmatmul.mubr.bf16.gmra.mrb[0].mxu0 %v883
        %v1429 = vpop.f32.mrb[0].mxu0
        %v1430 = vadd.f32 0.0, %v1429
        %v1431 = vpop.f32.mrb[0].mxu0
        %v1432 = vpop.f32.mrb[0].mxu0
        %v1433 = vadd.f32 0.0, %v1432
        %v1434 = vpop.f32.mrb[0].mxu0
        %1435 = vmatprep.mubr.bf16.mxu0 %v892
        %1436 = vmatmul.mubr.bf16.gmra.mrb[0].mxu0 %v891
        %v1437 = vpop.f32.mrb[0].mxu0
        %v1438 = vadd.f32 0.0, %v1437
        %v1439 = vpop.f32.mrb[0].mxu0
        %v1440 = vpop.f32.mrb[0].mxu0
        %v1441 = vadd.f32 0.0, %v1440
        %v1442 = vpop.f32.mrb[0].mxu0
        %1443 = vdwg.mxu0
        %1444 = vmatprep.subr.bf16.mxu0 0
        %1445 = vmatpush1.bf16.msra.mxu0 %v1235
        %1446 = vmatprep.subr.bf16.mxu0 0
        %1447 = vmatpush1.bf16.msra.mxu0 %v1236
        %1448 = vmatprep.subr.bf16.mxu0 0
        %1449 = vmatpush1.bf16.msra.mxu0 %v1237
        %1450 = vmatprep.subr.bf16.mxu0 0
        %1451 = vmatpush1.bf16.msra.mxu0 %v1238
        %1452 = vmatprep.subr.bf16.mxu0 0
        %1453 = vmatpush1.bf16.msra.mxu0 %v1239
        %1454 = vmatprep.subr.bf16.mxu0 0
        %1455 = vmatpush1.bf16.msra.mxu0 %v1240
        %1456 = vmatprep.subr.bf16.mxu0 0
        %1457 = vmatpush1.bf16.msra.mxu0 %v1241
        %1458 = vmatprep.subr.bf16.mxu0 0
        %1459 = vmatpush1.bf16.msra.mxu0 %v1242
        %1460 = vmatprep.subr.bf16.mxu0 0
        %1461 = vmatpush1.bf16.msra.mxu0 %v1243
        %1462 = vmatprep.subr.bf16.mxu0 0
        %1463 = vmatpush1.bf16.msra.mxu0 %v1244
        %1464 = vmatprep.subr.bf16.mxu0 0
        %1465 = vmatpush1.bf16.msra.mxu0 %v1245
        %1466 = vmatprep.subr.bf16.mxu0 0
        %1467 = vmatpush1.bf16.msra.mxu0 %v1246
        %1468 = vmatprep.subr.bf16.mxu0 0
        %1469 = vmatpush1.bf16.msra.mxu0 %v1247
        %1470 = vmatprep.subr.bf16.mxu0 0
        %1471 = vmatpush1.bf16.msra.mxu0 %v1248
        %1472 = vmatprep.subr.bf16.mxu0 0
        %1473 = vmatpush1.bf16.msra.mxu0 %v1249
        %1474 = vmatprep.subr.bf16.mxu0 0
        %1475 = vmatpush1.bf16.msra.mxu0 %v1250
        %1476 = vmatprep.mubr.bf16.mxu0 %v838
        %1477 = vmatmul.mubr.bf16.gmra.mrb[0].mxu0 %v837
        %v1478 = vpop.f32.mrb[0].mxu0
        %v1479 = vadd.f32 %v1382, %v1478
        %v1480 = vpop.f32.mrb[0].mxu0
        %v1481 = vpop.f32.mrb[0].mxu0
        %v1482 = vadd.f32 %v1385, %v1481
        %v1483 = vpop.f32.mrb[0].mxu0
        %1484 = vmatprep.mubr.bf16.mxu0 %v846
        %1485 = vmatmul.mubr.bf16.gmra.mrb[0].mxu0 %v845
        %v1486 = vpop.f32.mrb[0].mxu0
        %v1487 = vadd.f32 %v1390, %v1486
        %v1488 = vpop.f32.mrb[0].mxu0
        %v1489 = vpop.f32.mrb[0].mxu0
        %v1490 = vadd.f32 %v1393, %v1489
        %v1491 = vpop.f32.mrb[0].mxu0
        %1492 = vmatprep.mubr.bf16.mxu0 %v854
        %1493 = vmatmul.mubr.bf16.gmra.mrb[0].mxu0 %v853
        %v1494 = vpop.f32.mrb[0].mxu0
        %v1495 = vadd.f32 %v1398, %v1494
        %v1496 = vpop.f32.mrb[0].mxu0
        %v1497 = vpop.f32.mrb[0].mxu0
        %v1498 = vadd.f32 %v1401, %v1497
        %v1499 = vpop.f32.mrb[0].mxu0
        %1500 = vmatprep.mubr.bf16.mxu0 %v862
        %1501 = vmatmul.mubr.bf16.gmra.mrb[0].mxu0 %v861
        %v1502 = vpop.f32.mrb[0].mxu0
        %v1503 = vadd.f32 %v1406, %v1502
        %v1504 = vpop.f32.mrb[0].mxu0
        %v1505 = vpop.f32.mrb[0].mxu0
        %v1506 = vadd.f32 %v1409, %v1505
        %v1507 = vpop.f32.mrb[0].mxu0
        %1508 = vmatprep.mubr.bf16.mxu0 %v870
        %1509 = vmatmul.mubr.bf16.gmra.mrb[0].mxu0 %v869
        %v1510 = vpop.f32.mrb[0].mxu0
        %v1511 = vadd.f32 %v1414, %v1510
        %v1512 = vpop.f32.mrb[0].mxu0
        %v1513 = vpop.f32.mrb[0].mxu0
        %v1514 = vadd.f32 %v1417, %v1513
        %v1515 = vpop.f32.mrb[0].mxu0
        %1516 = vmatprep.mubr.bf16.mxu0 %v878
        %1517 = vmatmul.mubr.bf16.gmra.mrb[0].mxu0 %v877
        %v1518 = vpop.f32.mrb[0].mxu0
        %v1519 = vadd.f32 %v1422, %v1518
        %v1520 = vpop.f32.mrb[0].mxu0
        %v1521 = vpop.f32.mrb[0].mxu0
        %v1522 = vadd.f32 %v1425, %v1521
        %v1523 = vpop.f32.mrb[0].mxu0
        %1524 = vmatprep.mubr.bf16.mxu0 %v886
        %1525 = vmatmul.mubr.bf16.gmra.mrb[0].mxu0 %v885
        %v1526 = vpop.f32.mrb[0].mxu0
        %v1527 = vadd.f32 %v1430, %v1526
        %v1528 = vpop.f32.mrb[0].mxu0
        %v1529 = vpop.f32.mrb[0].mxu0
        %v1530 = vadd.f32 %v1433, %v1529
        %v1531 = vpop.f32.mrb[0].mxu0
        %1532 = vmatprep.mubr.bf16.mxu0 %v894
        %1533 = vmatmul.mubr.bf16.gmra.mrb[0].mxu0 %v893
        %v1534 = vpop.f32.mrb[0].mxu0
        %v1535 = vadd.f32 %v1438, %v1534
        %v1536 = vpop.f32.mrb[0].mxu0
        %v1537 = vpop.f32.mrb[0].mxu0
        %v1538 = vadd.f32 %v1441, %v1537
        %v1539 = vpop.f32.mrb[0].mxu0
        %1540 = vdwg.mxu0
        %1541 = vmatprep.subr.bf16.mxu0 0
        %1542 = vmatpush1.bf16.msra.mxu0 %v1251
        %1543 = vmatprep.subr.bf16.mxu0 0
        %1544 = vmatpush1.bf16.msra.mxu0 %v1252
        %1545 = vmatprep.subr.bf16.mxu0 0
        %1546 = vmatpush1.bf16.msra.mxu0 %v1253
        %1547 = vmatprep.subr.bf16.mxu0 0
        %1548 = vmatpush1.bf16.msra.mxu0 %v1254
        %1549 = vmatprep.subr.bf16.mxu0 0
        %1550 = vmatpush1.bf16.msra.mxu0 %v1255
        %1551 = vmatprep.subr.bf16.mxu0 0
        %1552 = vmatpush1.bf16.msra.mxu0 %v1256
        %1553 = vmatprep.subr.bf16.mxu0 0
        %1554 = vmatpush1.bf16.msra.mxu0 %v1257
        %1555 = vmatprep.subr.bf16.mxu0 0
        %1556 = vmatpush1.bf16.msra.mxu0 %v1258
        %1557 = vmatprep.subr.bf16.mxu0 0
        %1558 = vmatpush1.bf16.msra.mxu0 %v1259
        %1559 = vmatprep.subr.bf16.mxu0 0
        %1560 = vmatpush1.bf16.msra.mxu0 %v1260
        %1561 = vmatprep.subr.bf16.mxu0 0
        %1562 = vmatpush1.bf16.msra.mxu0 %v1261
        %1563 = vmatprep.subr.bf16.mxu0 0
        %1564 = vmatpush1.bf16.msra.mxu0 %v1262
        %1565 = vmatprep.subr.bf16.mxu0 0
        %1566 = vmatpush1.bf16.msra.mxu0 %v1263
        %1567 = vmatprep.subr.bf16.mxu0 0
        %1568 = vmatpush1.bf16.msra.mxu0 %v1264
        %1569 = vmatprep.subr.bf16.mxu0 0
        %1570 = vmatpush1.bf16.msra.mxu0 %v1265
        %1571 = vmatprep.subr.bf16.mxu0 0
        %1572 = vmatpush1.bf16.msra.mxu0 %v1266
        %1573 = vmatprep.mubr.bf16.mxu0 %v840
        %1574 = vmatmul.mubr.bf16.gmra.mrb[0].mxu0 %v839
        %v1575 = vpop.f32.mrb[0].mxu0
        %v1576 = vadd.f32 %v1479, %v1575
        %v1577 = vpop.f32.mrb[0].mxu0
        %v1578 = vpop.f32.mrb[0].mxu0
        %v1579 = vadd.f32 %v1482, %v1578
        %v1580 = vpop.f32.mrb[0].mxu0
        %1581 = vmatprep.mubr.bf16.mxu0 %v848
        %1582 = vmatmul.mubr.bf16.gmra.mrb[0].mxu0 %v847
        %v1583 = vpop.f32.mrb[0].mxu0
        %v1584 = vadd.f32 %v1487, %v1583
        %v1585 = vpop.f32.mrb[0].mxu0
        %v1586 = vpop.f32.mrb[0].mxu0
        %v1587 = vadd.f32 %v1490, %v1586
        %v1588 = vpop.f32.mrb[0].mxu0
        %1589 = vmatprep.mubr.bf16.mxu0 %v856
        %1590 = vmatmul.mubr.bf16.gmra.mrb[0].mxu0 %v855
        %v1591 = vpop.f32.mrb[0].mxu0
        %v1592 = vadd.f32 %v1495, %v1591
        %v1593 = vpop.f32.mrb[0].mxu0
        %v1594 = vpop.f32.mrb[0].mxu0
        %v1595 = vadd.f32 %v1498, %v1594
        %v1596 = vpop.f32.mrb[0].mxu0
        %1597 = vmatprep.mubr.bf16.mxu0 %v864
        %1598 = vmatmul.mubr.bf16.gmra.mrb[0].mxu0 %v863
        %v1599 = vpop.f32.mrb[0].mxu0
        %v1600 = vadd.f32 %v1503, %v1599
        %v1601 = vpop.f32.mrb[0].mxu0
        %v1602 = vpop.f32.mrb[0].mxu0
        %v1603 = vadd.f32 %v1506, %v1602
        %v1604 = vpop.f32.mrb[0].mxu0
        %1605 = vmatprep.mubr.bf16.mxu0 %v872
        %1606 = vmatmul.mubr.bf16.gmra.mrb[0].mxu0 %v871
        %v1607 = vpop.f32.mrb[0].mxu0
        %v1608 = vadd.f32 %v1511, %v1607
        %v1609 = vpop.f32.mrb[0].mxu0
        %v1610 = vpop.f32.mrb[0].mxu0
        %v1611 = vadd.f32 %v1514, %v1610
        %v1612 = vpop.f32.mrb[0].mxu0
        %1613 = vmatprep.mubr.bf16.mxu0 %v880
        %1614 = vmatmul.mubr.bf16.gmra.mrb[0].mxu0 %v879
        %v1615 = vpop.f32.mrb[0].mxu0
        %v1616 = vadd.f32 %v1519, %v1615
        %v1617 = vpop.f32.mrb[0].mxu0
        %v1618 = vpop.f32.mrb[0].mxu0
        %v1619 = vadd.f32 %v1522, %v1618
        %v1620 = vpop.f32.mrb[0].mxu0
        %1621 = vmatprep.mubr.bf16.mxu0 %v888
        %1622 = vmatmul.mubr.bf16.gmra.mrb[0].mxu0 %v887
        %v1623 = vpop.f32.mrb[0].mxu0
        %v1624 = vadd.f32 %v1527, %v1623
        %v1625 = vpop.f32.mrb[0].mxu0
        %v1626 = vpop.f32.mrb[0].mxu0
        %v1627 = vadd.f32 %v1530, %v1626
        %v1628 = vpop.f32.mrb[0].mxu0
        %1629 = vmatprep.mubr.bf16.mxu0 %v896
        %1630 = vmatmul.mubr.bf16.gmra.mrb[0].mxu0 %v895
        %v1631 = vpop.f32.mrb[0].mxu0
        %v1632 = vadd.f32 %v1535, %v1631
        %v1633 = vpop.f32.mrb[0].mxu0
        %v1634 = vpop.f32.mrb[0].mxu0
        %v1635 = vadd.f32 %v1538, %v1634
        %v1636 = vpop.f32.mrb[0].mxu0
        %1637 = vdwg.mxu0
        %1638 = vmatprep.subr.bf16.mxu0 0
        %1639 = vmatpush1.bf16.msra.mxu0 %v1267
        %1640 = vmatprep.subr.bf16.mxu0 0
        %1641 = vmatpush1.bf16.msra.mxu0 %v1268
        %1642 = vmatprep.subr.bf16.mxu0 0
        %1643 = vmatpush1.bf16.msra.mxu0 %v1269
        %1644 = vmatprep.subr.bf16.mxu0 0
        %1645 = vmatpush1.bf16.msra.mxu0 %v1270
        %1646 = vmatprep.subr.bf16.mxu0 0
        %1647 = vmatpush1.bf16.msra.mxu0 %v1271
        %1648 = vmatprep.subr.bf16.mxu0 0
        %1649 = vmatpush1.bf16.msra.mxu0 %v1272
        %1650 = vmatprep.subr.bf16.mxu0 0
        %1651 = vmatpush1.bf16.msra.mxu0 %v1273
        %1652 = vmatprep.subr.bf16.mxu0 0
        %1653 = vmatpush1.bf16.msra.mxu0 %v1274
        %1654 = vmatprep.subr.bf16.mxu0 0
        %1655 = vmatpush1.bf16.msra.mxu0 %v1275
        %1656 = vmatprep.subr.bf16.mxu0 0
        %1657 = vmatpush1.bf16.msra.mxu0 %v1276
        %1658 = vmatprep.subr.bf16.mxu0 0
        %1659 = vmatpush1.bf16.msra.mxu0 %v1277
        %1660 = vmatprep.subr.bf16.mxu0 0
        %1661 = vmatpush1.bf16.msra.mxu0 %v1278
        %1662 = vmatprep.subr.bf16.mxu0 0
        %1663 = vmatpush1.bf16.msra.mxu0 %v1279
        %1664 = vmatprep.subr.bf16.mxu0 0
        %1665 = vmatpush1.bf16.msra.mxu0 %v1280
        %1666 = vmatprep.subr.bf16.mxu0 0
        %1667 = vmatpush1.bf16.msra.mxu0 %v1281
        %1668 = vmatprep.subr.bf16.mxu0 0
        %1669 = vmatpush1.bf16.msra.mxu0 %v1282
        %1670 = vmatprep.mubr.bf16.mxu0 %v842
        %1671 = vmatmul.mubr.bf16.gmra.mrb[0].mxu0 %v841
        %v1672 = vpop.f32.mrb[0].mxu0
        %v1673 = vadd.f32 %v1576, %v1672
        %v1674 = vpop.f32.mrb[0].mxu0
        %v1675 = vpop.f32.mrb[0].mxu0
        %v1676 = vadd.f32 %v1579, %v1675
        %v1677 = vpop.f32.mrb[0].mxu0
        %1678 = vmatprep.mubr.bf16.mxu0 %v850
        %1679 = vmatmul.mubr.bf16.gmra.mrb[0].mxu0 %v849
        %v1680 = vpop.f32.mrb[0].mxu0
        %v1681 = vadd.f32 %v1584, %v1680
        %v1682 = vpop.f32.mrb[0].mxu0
        %v1683 = vpop.f32.mrb[0].mxu0
        %v1684 = vadd.f32 %v1587, %v1683
        %v1685 = vpop.f32.mrb[0].mxu0
        %1686 = vmatprep.mubr.bf16.mxu0 %v858
        %1687 = vmatmul.mubr.bf16.gmra.mrb[0].mxu0 %v857
        %v1688 = vpop.f32.mrb[0].mxu0
        %v1689 = vadd.f32 %v1592, %v1688
        %v1690 = vpop.f32.mrb[0].mxu0
        %v1691 = vpop.f32.mrb[0].mxu0
        %v1692 = vadd.f32 %v1595, %v1691
        %v1693 = vpop.f32.mrb[0].mxu0
        %1694 = vmatprep.mubr.bf16.mxu0 %v866
        %1695 = vmatmul.mubr.bf16.gmra.mrb[0].mxu0 %v865
        %v1696 = vpop.f32.mrb[0].mxu0
        %v1697 = vadd.f32 %v1600, %v1696
        %v1698 = vpop.f32.mrb[0].mxu0
        %v1699 = vpop.f32.mrb[0].mxu0
        %v1700 = vadd.f32 %v1603, %v1699
        %v1701 = vpop.f32.mrb[0].mxu0
        %1702 = vmatprep.mubr.bf16.mxu0 %v874
        %1703 = vmatmul.mubr.bf16.gmra.mrb[0].mxu0 %v873
        %v1704 = vpop.f32.mrb[0].mxu0
        %v1705 = vadd.f32 %v1608, %v1704
        %v1706 = vpop.f32.mrb[0].mxu0
        %v1707 = vpop.f32.mrb[0].mxu0
        %v1708 = vadd.f32 %v1611, %v1707
        %v1709 = vpop.f32.mrb[0].mxu0
        %1710 = vmatprep.mubr.bf16.mxu0 %v882
        %1711 = vmatmul.mubr.bf16.gmra.mrb[0].mxu0 %v881
        %v1712 = vpop.f32.mrb[0].mxu0
        %v1713 = vadd.f32 %v1616, %v1712
        %v1714 = vpop.f32.mrb[0].mxu0
        %v1715 = vpop.f32.mrb[0].mxu0
        %v1716 = vadd.f32 %v1619, %v1715
        %v1717 = vpop.f32.mrb[0].mxu0
        %1718 = vmatprep.mubr.bf16.mxu0 %v890
        %1719 = vmatmul.mubr.bf16.gmra.mrb[0].mxu0 %v889
        %v1720 = vpop.f32.mrb[0].mxu0
        %v1721 = vadd.f32 %v1624, %v1720
        %v1722 = vpop.f32.mrb[0].mxu0
        %v1723 = vpop.f32.mrb[0].mxu0
        %v1724 = vadd.f32 %v1627, %v1723
        %v1725 = vpop.f32.mrb[0].mxu0
        %1726 = vmatprep.mubr.bf16.mxu0 %v898
        %1727 = vmatmul.mubr.bf16.gmra.mrb[0].mxu0 %v897
        %v1728 = vpop.f32.mrb[0].mxu0
        %v1729 = vadd.f32 %v1632, %v1728
        %v1730 = vpop.f32.mrb[0].mxu0
        %v1731 = vpop.f32.mrb[0].mxu0
        %v1732 = vadd.f32 %v1635, %v1731
        %v1733 = vpop.f32.mrb[0].mxu0
        %1734 = vdwg.mxu0
        %v1735 = vadd.f32 %v435, %v1673
        %v1736 = vadd.f32 %v436, %v1676
        %v1737 = vadd.f32 %v437, %v1681
        %v1738 = vadd.f32 %v438, %v1684
        %v1739 = vadd.f32 %v439, %v1689
        %v1740 = vadd.f32 %v440, %v1692
        %v1741 = vadd.f32 %v441, %v1697
        %v1742 = vadd.f32 %v442, %v1700
        %v1743 = vadd.f32 %v443, %v1705
        %v1744 = vadd.f32 %v444, %v1708
        %v1745 = vadd.f32 %v445, %v1713
        %v1746 = vadd.f32 %v446, %v1716
        %v1747 = vadd.f32 %v447, %v1721
        %v1748 = vadd.f32 %v448, %v1724
        %v1749 = vadd.f32 %v449, %v1729
        %v1750 = vadd.f32 %v450, %v1732
        %vm1751 = vcmask 261120
        %1752 = vst.msk [vmem:[#allocation2] sm:$0xff] %vm1751, %v1735
        %1753 = vst.msk [vmem:[#allocation2 + $0x8] sm:$0xff] %vm1751, %v1736
        %1754 = vst.msk [vmem:[#allocation2 + $0x10] sm:$0xff] %vm1751, %v1737
        %1755 = vst.msk [vmem:[#allocation2 + $0x18] sm:$0xff] %vm1751, %v1738
        %1756 = vst.msk [vmem:[#allocation2 + $0x20] sm:$0xff] %vm1751, %v1739
        %1757 = vst.msk [vmem:[#allocation2 + $0x28] sm:$0xff] %vm1751, %v1740
        %1758 = vst.msk [vmem:[#allocation2 + $0x30] sm:$0xff] %vm1751, %v1741
        %1759 = vst.msk [vmem:[#allocation2 + $0x38] sm:$0xff] %vm1751, %v1742
        %1760 = vst.msk [vmem:[#allocation2 + $0x40] sm:$0xff] %vm1751, %v1743
        %1761 = vst.msk [vmem:[#allocation2 + $0x48] sm:$0xff] %vm1751, %v1744
        %1762 = vst.msk [vmem:[#allocation2 + $0x50] sm:$0xff] %vm1751, %v1745
        %1763 = vst.msk [vmem:[#allocation2 + $0x58] sm:$0xff] %vm1751, %v1746
        %1764 = vst.msk [vmem:[#allocation2 + $0x60] sm:$0xff] %vm1751, %v1747
        %1765 = vst.msk [vmem:[#allocation2 + $0x68] sm:$0xff] %vm1751, %v1748
        %1766 = vst.msk [vmem:[#allocation2 + $0x70] sm:$0xff] %vm1751, %v1749
        %1767 = vst.msk [vmem:[#allocation2 + $0x78] sm:$0xff] %vm1751, %v1750
        %p1768 = scmp.eq.s32.totalorder %s21, 1
        // Predicated region
        $region68: #{forward.9} parent=58 // pred_check
          %p1769 = pneg %p1768
        $region69: #{forward.9} parent=58 // pred_check_branch
          %1771 = sbr.rel (%p1769) target = $region71
        $region70: #{forward.9} parent=58 // pred_region
          %v1772 = vld [vmem:[#allocation2] sm:$0xff]
          %v1773 = vld [vmem:[#allocation2 + $0x8] sm:$0xff]
          %v1774 = vld [vmem:[#allocation2 + $0x10] sm:$0xff]
          %v1775 = vld [vmem:[#allocation2 + $0x18] sm:$0xff]
          %v1776 = vld [vmem:[#allocation2 + $0x20] sm:$0xff]
          %v1777 = vld [vmem:[#allocation2 + $0x28] sm:$0xff]
          %v1778 = vld [vmem:[#allocation2 + $0x30] sm:$0xff]
          %v1779 = vld [vmem:[#allocation2 + $0x38] sm:$0xff]
          %v1780 = vld [vmem:[#allocation2 + $0x40] sm:$0xff]
          %v1781 = vld [vmem:[#allocation2 + $0x48] sm:$0xff]
          %v1782 = vld [vmem:[#allocation2 + $0x50] sm:$0xff]
          %v1783 = vld [vmem:[#allocation2 + $0x58] sm:$0xff]
          %v1784 = vld [vmem:[#allocation2 + $0x60] sm:$0xff]
          %v1785 = vld [vmem:[#allocation2 + $0x68] sm:$0xff]
          %v1786 = vld [vmem:[#allocation2 + $0x70] sm:$0xff]
          %v1787 = vld [vmem:[#allocation2 + $0x78] sm:$0xff]
          %v1788 = vld [vmem:[%s2] sm:$0x1]
          %v1790 = vlaneseq
          %v1791 = vshrl.u32 %v1790, 7
          %v1792 = vsub.s32 0, %v1791
          %v1793 = vrot.slane %v1788, %v1792
          %v1795 = vadd.f32 %v1772, %v1793
          %v1796 = vadd.f32 %v1773, %v1793
          %v1797 = vadd.f32 %v1774, %v1793
          %v1798 = vadd.f32 %v1775, %v1793
          %v1799 = vadd.f32 %v1776, %v1793
          %v1800 = vadd.f32 %v1777, %v1793
          %v1801 = vadd.f32 %v1778, %v1793
          %v1802 = vadd.f32 %v1779, %v1793
          %v1803 = vadd.f32 %v1780, %v1793
          %v1804 = vadd.f32 %v1781, %v1793
          %v1805 = vadd.f32 %v1782, %v1793
          %v1806 = vadd.f32 %v1783, %v1793
          %v1807 = vadd.f32 %v1784, %v1793
          %v1808 = vadd.f32 %v1785, %v1793
          %v1809 = vadd.f32 %v1786, %v1793
          %v1810 = vadd.f32 %v1787, %v1793
          %v1811 = vmul.f32 %v1795, %v1795
          %v1812 = vmul.f32 %v1796, %v1796
          %v1813 = vmul.f32 %v1797, %v1797
          %v1814 = vmul.f32 %v1798, %v1798
          %v1815 = vmul.f32 %v1799, %v1799
          %v1816 = vmul.f32 %v1800, %v1800
          %v1817 = vmul.f32 %v1801, %v1801
          %v1818 = vmul.f32 %v1802, %v1802
          %v1819 = vmul.f32 %v1803, %v1803
          %v1820 = vmul.f32 %v1804, %v1804
          %v1821 = vmul.f32 %v1805, %v1805
          %v1822 = vmul.f32 %v1806, %v1806
          %v1823 = vmul.f32 %v1807, %v1807
          %v1824 = vmul.f32 %v1808, %v1808
          %v1825 = vmul.f32 %v1809, %v1809
          %v1826 = vmul.f32 %v1810, %v1810
          %v1827 = vld [vmem:[%s3] sm:$0xff]
          %v1828 = vld [vmem:[%s3 + $0x8] sm:$0xff]
          %v1829 = vld [vmem:[%s3 + $0x10] sm:$0xff]
          %v1830 = vld [vmem:[%s3 + $0x18] sm:$0xff]
          %v1831 = vld [vmem:[%s4] sm:$0x1]
          %v1833 = vlaneseq
          %v1834 = vshrl.u32 %v1833, 7
          %v1835 = vsub.s32 0, %v1834
          %v1836 = vrot.slane %v1831, %v1835
          %v1839 = vsel %vm1751, %v1811, 0
          %v1842 = vsel %vm1751, %v1812, 0
          %v1845 = vsel %vm1751, %v1813, 0
          %v1848 = vsel %vm1751, %v1814, 0
          %v1851 = vsel %vm1751, %v1815, 0
          %v1854 = vsel %vm1751, %v1816, 0
          %v1857 = vsel %vm1751, %v1817, 0
          %v1860 = vsel %vm1751, %v1818, 0
          %v1863 = vsel %vm1751, %v1819, 0
          %v1866 = vsel %vm1751, %v1820, 0
          %v1869 = vsel %vm1751, %v1821, 0
          %v1872 = vsel %vm1751, %v1822, 0
          %v1875 = vsel %vm1751, %v1823, 0
          %v1878 = vsel %vm1751, %v1824, 0
          %v1881 = vsel %vm1751, %v1825, 0
          %v1884 = vsel %vm1751, %v1826, 0
          %1886 = vmatprep.subr.mxu0 0.0
          %1887 = vmatpush1.msra.mxu0 %v1827
          %1888 = vmatprep.subr.mxu0 0.0
          %1889 = vmatpush1.msra.mxu0 %v1828
          %1890 = vmatprep.subr.mxu0 0.0
          %1891 = vmatpush1.msra.mxu0 %v1829
          %1892 = vmatprep.subr.mxu0 0.0
          %1893 = vmatpush1.msra.mxu0 %v1830
          %1894 = vmatprep.subr.mxu0 0.0
          %1895 = vmatpush1.msra.mxu0 0.0
          %1896 = vmatprep.subr.mxu0 0.0
          %1897 = vmatpush1.msra.mxu0 0.0
          %1898 = vmatprep.subr.mxu0 0.0
          %1899 = vmatpush1.msra.mxu0 0.0
          %1900 = vmatprep.subr.mxu0 0.0
          %1901 = vmatpush1.msra.mxu0 0.0
          %1902 = vmatprep.subr.mxu0 0.0
          %1903 = vmatpush1.msra.mxu0 0.0
          %1904 = vmatprep.subr.mxu0 0.0
          %1905 = vmatpush1.msra.mxu0 0.0
          %1906 = vmatprep.subr.mxu0 0.0
          %1907 = vmatpush1.msra.mxu0 0.0
          %1908 = vmatprep.subr.mxu0 0.0
          %1909 = vmatpush1.msra.mxu0 0.0
          %1910 = vmatprep.subr.mxu0 0.0
          %1911 = vmatpush1.msra.mxu0 0.0
          %1912 = vmatprep.subr.mxu0 0.0
          %1913 = vmatpush1.msra.mxu0 0.0
          %1914 = vmatprep.subr.mxu0 0.0
          %1915 = vmatpush1.msra.mxu0 0.0
          %1916 = vmatprep.subr.mxu0 0.0
          %1917 = vmatpush1.msra.mxu0 0.0
          %1918 = vmatprep.subr.mxu0 0.0
          %1919 = vmatpush1.msra.mxu0 0.0
          %1920 = vmatprep.subr.mxu0 0.0
          %1921 = vmatpush1.msra.mxu0 0.0
          %1922 = vmatprep.subr.mxu0 0.0
          %1923 = vmatpush1.msra.mxu0 0.0
          %1924 = vmatprep.subr.mxu0 0.0
          %1925 = vmatpush1.msra.mxu0 0.0
          %1926 = vmatprep.subr.mxu0 0.0
          %1927 = vmatpush1.msra.mxu0 0.0
          %1928 = vmatprep.subr.mxu0 0.0
          %1929 = vmatpush1.msra.mxu0 0.0
          %1930 = vmatprep.subr.mxu0 0.0
          %1931 = vmatpush1.msra.mxu0 0.0
          %1932 = vmatprep.subr.mxu0 0.0
          %1933 = vmatpush1.msra.mxu0 0.0
          %1934 = vmatprep.subr.mxu0 0.0
          %1935 = vmatpush1.msra.mxu0 0.0
          %1936 = vmatprep.subr.mxu0 0.0
          %1937 = vmatpush1.msra.mxu0 0.0
          %1938 = vmatprep.subr.mxu0 0.0
          %1939 = vmatpush1.msra.mxu0 0.0
          %1940 = vmatprep.subr.mxu0 0.0
          %1941 = vmatpush1.msra.mxu0 0.0
          %1942 = vmatprep.subr.mxu0 0.0
          %1943 = vmatpush1.msra.mxu0 0.0
          %1944 = vmatprep.subr.mxu0 0.0
          %1945 = vmatpush1.msra.mxu0 0.0
          %1946 = vmatprep.subr.mxu0 0.0
          %1947 = vmatpush1.msra.mxu0 0.0
          %1948 = vmatprep.subr.mxu0 0.0
          %1949 = vmatpush1.msra.mxu0 0.0
          %1950 = vmatprep.mubr.f32.mxu0 0.0
          %1951 = vmatmul.mubr.f32.gmra.mrb[0].mxu0 %v1839
          %v1952 = vpop.f32.mrb[0].mxu0
          %v1953 = vadd.f32 %v1836, %v1952
          %v1954 = vpop.f32.mrb[0].mxu0
          %1955 = vmatprep.mubr.f32.mxu0 0.0
          %1956 = vmatmul.mubr.f32.gmra.mrb[0].mxu0 %v1842
          %v1957 = vpop.f32.mrb[0].mxu0
          %v1958 = vadd.f32 %v1836, %v1957
          %v1959 = vpop.f32.mrb[0].mxu0
          %1960 = vmatprep.mubr.f32.mxu0 0.0
          %1961 = vmatmul.mubr.f32.gmra.mrb[0].mxu0 %v1845
          %v1962 = vpop.f32.mrb[0].mxu0
          %v1963 = vadd.f32 %v1836, %v1962
          %v1964 = vpop.f32.mrb[0].mxu0
          %1965 = vmatprep.mubr.f32.mxu0 0.0
          %1966 = vmatmul.mubr.f32.gmra.mrb[0].mxu0 %v1848
          %v1967 = vpop.f32.mrb[0].mxu0
          %v1968 = vadd.f32 %v1836, %v1967
          %v1969 = vpop.f32.mrb[0].mxu0
          %1970 = vmatprep.mubr.f32.mxu0 0.0
          %1971 = vmatmul.mubr.f32.gmra.mrb[0].mxu0 %v1851
          %v1972 = vpop.f32.mrb[0].mxu0
          %v1973 = vadd.f32 %v1836, %v1972
          %v1974 = vpop.f32.mrb[0].mxu0
          %1975 = vmatprep.mubr.f32.mxu0 0.0
          %1976 = vmatmul.mubr.f32.gmra.mrb[0].mxu0 %v1854
          %v1977 = vpop.f32.mrb[0].mxu0
          %v1978 = vadd.f32 %v1836, %v1977
          %v1979 = vpop.f32.mrb[0].mxu0
          %1980 = vmatprep.mubr.f32.mxu0 0.0
          %1981 = vmatmul.mubr.f32.gmra.mrb[0].mxu0 %v1857
          %v1982 = vpop.f32.mrb[0].mxu0
          %v1983 = vadd.f32 %v1836, %v1982
          %v1984 = vpop.f32.mrb[0].mxu0
          %1985 = vmatprep.mubr.f32.mxu0 0.0
          %1986 = vmatmul.mubr.f32.gmra.mrb[0].mxu0 %v1860
          %v1987 = vpop.f32.mrb[0].mxu0
          %v1988 = vadd.f32 %v1836, %v1987
          %v1989 = vpop.f32.mrb[0].mxu0
          %1990 = vmatprep.mubr.f32.mxu0 0.0
          %1991 = vmatmul.mubr.f32.gmra.mrb[0].mxu0 %v1863
          %v1992 = vpop.f32.mrb[0].mxu0
          %v1993 = vadd.f32 %v1836, %v1992
          %v1994 = vpop.f32.mrb[0].mxu0
          %1995 = vmatprep.mubr.f32.mxu0 0.0
          %1996 = vmatmul.mubr.f32.gmra.mrb[0].mxu0 %v1866
          %v1997 = vpop.f32.mrb[0].mxu0
          %v1998 = vadd.f32 %v1836, %v1997
          %v1999 = vpop.f32.mrb[0].mxu0
          %2000 = vmatprep.mubr.f32.mxu0 0.0
          %2001 = vmatmul.mubr.f32.gmra.mrb[0].mxu0 %v1869
          %v2002 = vpop.f32.mrb[0].mxu0
          %v2003 = vadd.f32 %v1836, %v2002
          %v2004 = vpop.f32.mrb[0].mxu0
          %2005 = vmatprep.mubr.f32.mxu0 0.0
          %2006 = vmatmul.mubr.f32.gmra.mrb[0].mxu0 %v1872
          %v2007 = vpop.f32.mrb[0].mxu0
          %v2008 = vadd.f32 %v1836, %v2007
          %v2009 = vpop.f32.mrb[0].mxu0
          %2010 = vmatprep.mubr.f32.mxu0 0.0
          %2011 = vmatmul.mubr.f32.gmra.mrb[0].mxu0 %v1875
          %v2012 = vpop.f32.mrb[0].mxu0
          %v2013 = vadd.f32 %v1836, %v2012
          %v2014 = vpop.f32.mrb[0].mxu0
          %2015 = vmatprep.mubr.f32.mxu0 0.0
          %2016 = vmatmul.mubr.f32.gmra.mrb[0].mxu0 %v1878
          %v2017 = vpop.f32.mrb[0].mxu0
          %v2018 = vadd.f32 %v1836, %v2017
          %v2019 = vpop.f32.mrb[0].mxu0
          %2020 = vmatprep.mubr.f32.mxu0 0.0
          %2021 = vmatmul.mubr.f32.gmra.mrb[0].mxu0 %v1881
          %v2022 = vpop.f32.mrb[0].mxu0
          %v2023 = vadd.f32 %v1836, %v2022
          %v2024 = vpop.f32.mrb[0].mxu0
          %2025 = vmatprep.mubr.f32.mxu0 0.0
          %2026 = vmatmul.mubr.f32.gmra.mrb[0].mxu0 %v1884
          %v2027 = vpop.f32.mrb[0].mxu0
          %v2028 = vadd.f32 %v1836, %v2027
          %v2029 = vpop.f32.mrb[0].mxu0
          %2030 = vdwg.mxu0
          %v2031 = vrsqrt.pop %v1953
          %v2032 = vmul.f32 %v1953, %v2031
          %vm2033 = vcmp.eq.f32.partialorder %v1953, inf
          %v2034 = vsel %vm2033, %v1953, %v2032
          %vm2035 = vcmp.eq.f32.partialorder %v1953, 0.0
          %v2036 = vand.u32 %v1953, 2147483648
          %v2037 = vsel %vm2035, %v2036, %v2034
          %v2038 = vrsqrt.pop %v1958
          %v2039 = vmul.f32 %v1958, %v2038
          %vm2040 = vcmp.eq.f32.partialorder %v1958, inf
          %v2041 = vsel %vm2040, %v1958, %v2039
          %vm2042 = vcmp.eq.f32.partialorder %v1958, 0.0
          %v2043 = vand.u32 %v1958, 2147483648
          %v2044 = vsel %vm2042, %v2043, %v2041
          %v2045 = vrsqrt.pop %v1963
          %v2046 = vmul.f32 %v1963, %v2045
          %vm2047 = vcmp.eq.f32.partialorder %v1963, inf
          %v2048 = vsel %vm2047, %v1963, %v2046
          %vm2049 = vcmp.eq.f32.partialorder %v1963, 0.0
          %v2050 = vand.u32 %v1963, 2147483648
          %v2051 = vsel %vm2049, %v2050, %v2048
          %v2052 = vrsqrt.pop %v1968
          %v2053 = vmul.f32 %v1968, %v2052
          %vm2054 = vcmp.eq.f32.partialorder %v1968, inf
          %v2055 = vsel %vm2054, %v1968, %v2053
          %vm2056 = vcmp.eq.f32.partialorder %v1968, 0.0
          %v2057 = vand.u32 %v1968, 2147483648
          %v2058 = vsel %vm2056, %v2057, %v2055
          %v2059 = vrsqrt.pop %v1973
          %v2060 = vmul.f32 %v1973, %v2059
          %vm2061 = vcmp.eq.f32.partialorder %v1973, inf
          %v2062 = vsel %vm2061, %v1973, %v2060
          %vm2063 = vcmp.eq.f32.partialorder %v1973, 0.0
          %v2064 = vand.u32 %v1973, 2147483648
          %v2065 = vsel %vm2063, %v2064, %v2062
          %v2066 = vrsqrt.pop %v1978
          %v2067 = vmul.f32 %v1978, %v2066
          %vm2068 = vcmp.eq.f32.partialorder %v1978, inf
          %v2069 = vsel %vm2068, %v1978, %v2067
          %vm2070 = vcmp.eq.f32.partialorder %v1978, 0.0
          %v2071 = vand.u32 %v1978, 2147483648
          %v2072 = vsel %vm2070, %v2071, %v2069
          %v2073 = vrsqrt.pop %v1983
          %v2074 = vmul.f32 %v1983, %v2073
          %vm2075 = vcmp.eq.f32.partialorder %v1983, inf
          %v2076 = vsel %vm2075, %v1983, %v2074
          %vm2077 = vcmp.eq.f32.partialorder %v1983, 0.0
          %v2078 = vand.u32 %v1983, 2147483648
          %v2079 = vsel %vm2077, %v2078, %v2076
          %v2080 = vrsqrt.pop %v1988
          %v2081 = vmul.f32 %v1988, %v2080
          %vm2082 = vcmp.eq.f32.partialorder %v1988, inf
          %v2083 = vsel %vm2082, %v1988, %v2081
          %vm2084 = vcmp.eq.f32.partialorder %v1988, 0.0
          %v2085 = vand.u32 %v1988, 2147483648
          %v2086 = vsel %vm2084, %v2085, %v2083
          %v2087 = vrsqrt.pop %v1993
          %v2088 = vmul.f32 %v1993, %v2087
          %vm2089 = vcmp.eq.f32.partialorder %v1993, inf
          %v2090 = vsel %vm2089, %v1993, %v2088
          %vm2091 = vcmp.eq.f32.partialorder %v1993, 0.0
          %v2092 = vand.u32 %v1993, 2147483648
          %v2093 = vsel %vm2091, %v2092, %v2090
          %v2094 = vrsqrt.pop %v1998
          %v2095 = vmul.f32 %v1998, %v2094
          %vm2096 = vcmp.eq.f32.partialorder %v1998, inf
          %v2097 = vsel %vm2096, %v1998, %v2095
          %vm2098 = vcmp.eq.f32.partialorder %v1998, 0.0
          %v2099 = vand.u32 %v1998, 2147483648
          %v2100 = vsel %vm2098, %v2099, %v2097
          %v2101 = vrsqrt.pop %v2003
          %v2102 = vmul.f32 %v2003, %v2101
          %vm2103 = vcmp.eq.f32.partialorder %v2003, inf
          %v2104 = vsel %vm2103, %v2003, %v2102
          %vm2105 = vcmp.eq.f32.partialorder %v2003, 0.0
          %v2106 = vand.u32 %v2003, 2147483648
          %v2107 = vsel %vm2105, %v2106, %v2104
          %v2108 = vrsqrt.pop %v2008
          %v2109 = vmul.f32 %v2008, %v2108
          %vm2110 = vcmp.eq.f32.partialorder %v2008, inf
          %v2111 = vsel %vm2110, %v2008, %v2109
          %vm2112 = vcmp.eq.f32.partialorder %v2008, 0.0
          %v2113 = vand.u32 %v2008, 2147483648
          %v2114 = vsel %vm2112, %v2113, %v2111
          %v2115 = vrsqrt.pop %v2013
          %v2116 = vmul.f32 %v2013, %v2115
          %vm2117 = vcmp.eq.f32.partialorder %v2013, inf
          %v2118 = vsel %vm2117, %v2013, %v2116
          %vm2119 = vcmp.eq.f32.partialorder %v2013, 0.0
          %v2120 = vand.u32 %v2013, 2147483648
          %v2121 = vsel %vm2119, %v2120, %v2118
          %v2122 = vrsqrt.pop %v2018
          %v2123 = vmul.f32 %v2018, %v2122
          %vm2124 = vcmp.eq.f32.partialorder %v2018, inf
          %v2125 = vsel %vm2124, %v2018, %v2123
          %vm2126 = vcmp.eq.f32.partialorder %v2018, 0.0
          %v2127 = vand.u32 %v2018, 2147483648
          %v2128 = vsel %vm2126, %v2127, %v2125
          %v2129 = vrsqrt.pop %v2023
          %v2130 = vmul.f32 %v2023, %v2129
          %vm2131 = vcmp.eq.f32.partialorder %v2023, inf
          %v2132 = vsel %vm2131, %v2023, %v2130
          %vm2133 = vcmp.eq.f32.partialorder %v2023, 0.0
          %v2134 = vand.u32 %v2023, 2147483648
          %v2135 = vsel %vm2133, %v2134, %v2132
          %v2136 = vrsqrt.pop %v2028
          %v2137 = vmul.f32 %v2028, %v2136
          %vm2138 = vcmp.eq.f32.partialorder %v2028, inf
          %v2139 = vsel %vm2138, %v2028, %v2137
          %vm2140 = vcmp.eq.f32.partialorder %v2028, 0.0
          %v2141 = vand.u32 %v2028, 2147483648
          %v2142 = vsel %vm2140, %v2141, %v2139
          %v2143 = vmul.f32 %v1795, %v2037
          %v2144 = vmul.f32 %v1796, %v2044
          %v2145 = vmul.f32 %v1797, %v2051
          %v2146 = vmul.f32 %v1798, %v2058
          %v2147 = vmul.f32 %v1799, %v2065
          %v2148 = vmul.f32 %v1800, %v2072
          %v2149 = vmul.f32 %v1801, %v2079
          %v2150 = vmul.f32 %v1802, %v2086
          %v2151 = vmul.f32 %v1803, %v2093
          %v2152 = vmul.f32 %v1804, %v2100
          %v2153 = vmul.f32 %v1805, %v2107
          %v2154 = vmul.f32 %v1806, %v2114
          %v2155 = vmul.f32 %v1807, %v2121
          %v2156 = vmul.f32 %v1808, %v2128
          %v2157 = vmul.f32 %v1809, %v2135
          %v2158 = vmul.f32 %v1810, %v2142
          %v2159 = vpack.c.bf16 %v2144, %v2143
          %v2160 = vpack.c.bf16 %v2146, %v2145
          %v2161 = vpack.c.bf16 %v2148, %v2147
          %v2162 = vpack.c.bf16 %v2150, %v2149
          %v2163 = vpack.c.bf16 %v2152, %v2151
          %v2164 = vpack.c.bf16 %v2154, %v2153
          %v2165 = vpack.c.bf16 %v2156, %v2155
          %v2166 = vpack.c.bf16 %v2158, %v2157
          %v2175 = vunpack.c.l.b16 %v2159
          %v2176 = vunpack.c.h.b16 %v2159
          %v2177 = vunpack.c.l.b16 %v2160
          %v2178 = vunpack.c.h.b16 %v2160
          %v2179 = vunpack.c.l.b16 %v2161
          %v2180 = vunpack.c.h.b16 %v2161
          %v2181 = vunpack.c.l.b16 %v2162
          %v2182 = vunpack.c.h.b16 %v2162
          %v2183 = vunpack.c.l.b16 %v2163
          %v2184 = vunpack.c.h.b16 %v2163
          %v2185 = vunpack.c.l.b16 %v2164
          %v2186 = vunpack.c.h.b16 %v2164
          %v2187 = vunpack.c.l.b16 %v2165
          %v2188 = vunpack.c.h.b16 %v2165
          %v2189 = vunpack.c.l.b16 %v2166
          %v2190 = vunpack.c.h.b16 %v2166
          %v2191 = vpack.c.b16 %v2175, %v2175
          %v2192 = vpack.c.b16 %v2176, %v2176
          %v2193 = vpack.c.b16 %v2177, %v2177
          %v2194 = vpack.c.b16 %v2178, %v2178
          %v2195 = vpack.c.b16 %v2179, %v2179
          %v2196 = vpack.c.b16 %v2180, %v2180
          %v2197 = vpack.c.b16 %v2181, %v2181
          %v2198 = vpack.c.b16 %v2182, %v2182
          %v2199 = vpack.c.b16 %v2183, %v2183
          %v2200 = vpack.c.b16 %v2184, %v2184
          %v2201 = vpack.c.b16 %v2185, %v2185
          %v2202 = vpack.c.b16 %v2186, %v2186
          %v2203 = vpack.c.b16 %v2187, %v2187
          %v2204 = vpack.c.b16 %v2188, %v2188
          %v2205 = vpack.c.b16 %v2189, %v2189
          %v2206 = vpack.c.b16 %v2190, %v2190
          %vm2223 = vcmask 257024
          %2224 = vst.msk [vmem:[%s411] sm:$0xf] %vm2223, %v2191
          %2225 = vst.msk [vmem:[%s411 + $0x4] sm:$0xf] %vm2223, %v2192
          %2226 = vst.msk [vmem:[%s411 + $0x8] sm:$0xf] %vm2223, %v2193
          %2227 = vst.msk [vmem:[%s411 + $0xc] sm:$0xf] %vm2223, %v2194
          %2228 = vst.msk [vmem:[%s411 + $0x10] sm:$0xf] %vm2223, %v2195
          %2229 = vst.msk [vmem:[%s411 + $0x14] sm:$0xf] %vm2223, %v2196
          %2230 = vst.msk [vmem:[%s411 + $0x18] sm:$0xf] %vm2223, %v2197
          %2231 = vst.msk [vmem:[%s411 + $0x1c] sm:$0xf] %vm2223, %v2198
          %2232 = vst.msk [vmem:[%s411 + $0x20] sm:$0xf] %vm2223, %v2199
          %2233 = vst.msk [vmem:[%s411 + $0x24] sm:$0xf] %vm2223, %v2200
          %2234 = vst.msk [vmem:[%s411 + $0x28] sm:$0xf] %vm2223, %v2201
          %2235 = vst.msk [vmem:[%s411 + $0x2c] sm:$0xf] %vm2223, %v2202
          %2236 = vst.msk [vmem:[%s411 + $0x30] sm:$0xf] %vm2223, %v2203
          %2237 = vst.msk [vmem:[%s411 + $0x34] sm:$0xf] %vm2223, %v2204
          %2238 = vst.msk [vmem:[%s411 + $0x38] sm:$0xf] %vm2223, %v2205
          %2239 = vst.msk [vmem:[%s411 + $0x3c] sm:$0xf] %vm2223, %v2206
        $region71: #{forward.9} parent=58 // pred_fallthru
          _
        %s2240 = smul.u32 16, %s20
        %p2241 = scmp.lt.s32.totalorder %s2240, 15
        %s2242 = scalar_select %p2241, %s2240, 15
        %s2243 = smul.addr %s2242, 4
        %s2244 = scalar_lea.vmem %s5, %s2243
        // Predicated region
        $region72: #{forward.9} parent=58 // pred_check
          %p2245 = pneg %p163
        $region73: #{forward.9} parent=58 // pred_check_branch
          %2247 = sbr.rel (%p2245) target = $region75
        $region74: #{forward.9} parent=58 // pred_region
          %s2248 = smul.u32 16, %s20
        $region75: #{forward.9} parent=58 // pred_fallthru
          _
        // Predicated region
        $region76: #{forward.9} parent=58 // pred_check
          %p2249 = pneg %p163
        $region77: #{forward.9} parent=58 // pred_check_branch
          %2251 = sbr.rel (%p2249) target = $region79
        $region78: #{forward.9} parent=58 // pred_region
          %s2252 = smul.u32 16, %s20
          %p2253 = scmp.lt.s32.totalorder %s2252, 15
          %s2254 = scalar_select %p2253, %s2252, 15
          %s2255 = smul.addr %s2254, 4
          %s2256 = scalar_lea.vmem %s5, %s2255
        $region79: #{forward.9} parent=58 // pred_fallthru
          _
      $region59: #{forward.9} parent=5 // pred_fallthru
        _
      %p2257 = scmp.le.s32.totalorder 2, %s11
      // Predicated region
      $region80: #{forward.9} parent=5 // pred_check
        %p2258 = pneg %p2257
      $region81: #{forward.9} parent=5 // pred_check_branch
        %2260 = sbr.rel (%p2258) target = $region83
      $region82: #{forward.9} parent=5 // pred_region
        %s2261 = ssub.s32 %s11, 2
      $region83: #{forward.9} parent=5 // pred_fallthru
        _
    $region6: #{forward.9} parent=1 // loop_footer
      %s15 = sadd.s32 1, %s11
    $region7: #{forward.9} parent=1 // loop_footer_branch
      %10 = sbr.rel target = $region3
    $region8: #{forward.9} parent=1 // loop_exit
      _

// kernel: forward.10
$region0: #{forward.10}
  #allocation0 [shape = 'u32[]', space=smem, size = 0x4, offset = 0x4, fixed_abs, tag = 'smem constant byte address 0x4 - core index']
  #allocation1 [shape = 'u32[144,128]{1,0:T(1,128)}', space=vmem, size = 0x12000, scoped, tag = 'internal scratch']
  #allocation2 [shape = 'f32[128,16]{1,0:T(8,128)}', space=vmem, size = 0x10000, scoped, tag = 'scratch operand']
  %s0 = inlined_call_operand.vmem [shape: bf16[128,800], index: 0, kind: input, shape index: {}]
  %s1 = inlined_call_operand.vmem [shape: bf16[800,16], index: 1, kind: input, shape index: {}]
  %s2 = inlined_call_operand.vmem [shape: f32[1,16], index: 2, kind: input, shape index: {}]
  %s3 = inlined_call_operand.vmem [shape: f32[16,16], index: 3, kind: input, shape index: {}]
  %s4 = inlined_call_operand.vmem [shape: f32[1,16], index: 4, kind: input, shape index: {}]
  %s5 = inlined_call_operand.vmem [shape: bf16[128,16], index: 5, kind: output, shape index: {}]
  %s6 = sld [smem:[#allocation0]]
  $region38: #{forward.10} parent=0
    _
  %s8 = ssub.s32 1, %s6
  %s9 = scalar_select 0, %s8, %s6
  // Predicated region
  $region2: #{forward.10} parent=0 // pred_check
    _
  $region3: #{forward.10} parent=0 // pred_check_branch
    %11 = sbr.rel (0) target = $region5
  $region4: #{forward.10} parent=0 // pred_region
    _
  $region5: #{forward.10} parent=0 // pred_fallthru
    _
  // Predicated region
  $region6: #{forward.10} parent=0 // pred_check
    _
  $region7: #{forward.10} parent=0 // pred_check_branch
    %13 = sbr.rel (0) target = $region9
  $region8: #{forward.10} parent=0 // pred_region
    _
  $region9: #{forward.10} parent=0 // pred_fallthru
    _
  // Predicated region
  $region10: #{forward.10} parent=0 // pred_check
    _
  $region11: #{forward.10} parent=0 // pred_check_branch
    %15 = sbr.rel (0) target = $region13
  $region12: #{forward.10} parent=0 // pred_region
    _
  $region13: #{forward.10} parent=0 // pred_fallthru
    _
  // Predicated region
  $region14: #{forward.10} parent=0 // pred_check
    _
  $region15: #{forward.10} parent=0 // pred_check_branch
    %17 = sbr.rel (0) target = $region17
  $region16: #{forward.10} parent=0 // pred_region
    _
  $region17: #{forward.10} parent=0 // pred_fallthru
    _
  // Predicated region
  $region18: #{forward.10} parent=0 // pred_check
    _
  $region19: #{forward.10} parent=0 // pred_check_branch
    %19 = sbr.rel (0) target = $region21
  $region20: #{forward.10} parent=0 // pred_region
    _
  $region21: #{forward.10} parent=0 // pred_fallthru
    _
  %p21 = scmp.eq.s32.totalorder 0, 0
  // Predicated region
  $region22: #{forward.10} parent=0 // pred_check
    %p22 = pneg %p21
  $region23: #{forward.10} parent=0 // pred_check_branch
    %24 = sbr.rel (%p22) target = $region25
  $region24: #{forward.10} parent=0 // pred_region
    %vm25 = vcmask 130048
    %26 = vst.msk [vmem:[#allocation2] sm:$0xff] %vm25, 0.0
    %27 = vst.msk [vmem:[#allocation2 + $0x8] sm:$0xff] %vm25, 0.0
    %28 = vst.msk [vmem:[#allocation2 + $0x10] sm:$0xff] %vm25, 0.0
    %29 = vst.msk [vmem:[#allocation2 + $0x18] sm:$0xff] %vm25, 0.0
    %30 = vst.msk [vmem:[#allocation2 + $0x20] sm:$0xff] %vm25, 0.0
    %31 = vst.msk [vmem:[#allocation2 + $0x28] sm:$0xff] %vm25, 0.0
    %32 = vst.msk [vmem:[#allocation2 + $0x30] sm:$0xff] %vm25, 0.0
    %33 = vst.msk [vmem:[#allocation2 + $0x38] sm:$0xff] %vm25, 0.0
    %34 = vst.msk [vmem:[#allocation2 + $0x40] sm:$0xff] %vm25, 0.0
    %35 = vst.msk [vmem:[#allocation2 + $0x48] sm:$0xff] %vm25, 0.0
    %36 = vst.msk [vmem:[#allocation2 + $0x50] sm:$0xff] %vm25, 0.0
    %37 = vst.msk [vmem:[#allocation2 + $0x58] sm:$0xff] %vm25, 0.0
    %38 = vst.msk [vmem:[#allocation2 + $0x60] sm:$0xff] %vm25, 0.0
    %39 = vst.msk [vmem:[#allocation2 + $0x68] sm:$0xff] %vm25, 0.0
    %40 = vst.msk [vmem:[#allocation2 + $0x70] sm:$0xff] %vm25, 0.0
    %41 = vst.msk [vmem:[#allocation2 + $0x78] sm:$0xff] %vm25, 0.0
  $region25: #{forward.10} parent=0 // pred_fallthru
    _
  %v42 = vld [vmem:[#allocation2] sm:$0xff]
  %v43 = vld [vmem:[#allocation2 + $0x8] sm:$0xff]
  %v44 = vld [vmem:[#allocation2 + $0x10] sm:$0xff]
  %v45 = vld [vmem:[#allocation2 + $0x18] sm:$0xff]
  %v46 = vld [vmem:[#allocation2 + $0x20] sm:$0xff]
  %v47 = vld [vmem:[#allocation2 + $0x28] sm:$0xff]
  %v48 = vld [vmem:[#allocation2 + $0x30] sm:$0xff]
  %v49 = vld [vmem:[#allocation2 + $0x38] sm:$0xff]
  %v50 = vld [vmem:[#allocation2 + $0x40] sm:$0xff]
  %v51 = vld [vmem:[#allocation2 + $0x48] sm:$0xff]
  %v52 = vld [vmem:[#allocation2 + $0x50] sm:$0xff]
  %v53 = vld [vmem:[#allocation2 + $0x58] sm:$0xff]
  %v54 = vld [vmem:[#allocation2 + $0x60] sm:$0xff]
  %v55 = vld [vmem:[#allocation2 + $0x68] sm:$0xff]
  %v56 = vld [vmem:[#allocation2 + $0x70] sm:$0xff]
  %v57 = vld [vmem:[#allocation2 + $0x78] sm:$0xff]
  %v58 = vld [vmem:[%s0] sm:$0xff]
  %v59 = vld [vmem:[%s0 + $0x8] sm:$0xff]
  %v60 = vld [vmem:[%s0 + $0x10] sm:$0xff]
  %v61 = vld [vmem:[%s0 + $0x18] sm:$0xf]
  %v62 = vld [vmem:[%s0 + $0x1c] sm:$0xff]
  %v63 = vld [vmem:[%s0 + $0x24] sm:$0xff]
  %v64 = vld [vmem:[%s0 + $0x2c] sm:$0xff]
  %v65 = vld [vmem:[%s0 + $0x34] sm:$0xf]
  %v66 = vld [vmem:[%s0 + $0x38] sm:$0xff]
  %v67 = vld [vmem:[%s0 + $0x40] sm:$0xff]
  %v68 = vld [vmem:[%s0 + $0x48] sm:$0xff]
  %v69 = vld [vmem:[%s0 + $0x50] sm:$0xf]
  %v70 = vld [vmem:[%s0 + $0x54] sm:$0xff]
  %v71 = vld [vmem:[%s0 + $0x5c] sm:$0xff]
  %v72 = vld [vmem:[%s0 + $0x64] sm:$0xff]
  %v73 = vld [vmem:[%s0 + $0x6c] sm:$0xf]
  %v74 = vld [vmem:[%s0 + $0x70] sm:$0xff]
  %v75 = vld [vmem:[%s0 + $0x78] sm:$0xff]
  %v76 = vld [vmem:[%s0 + $0x80] sm:$0xff]
  %v77 = vld [vmem:[%s0 + $0x88] sm:$0xf]
  %v78 = vld [vmem:[%s0 + $0x8c] sm:$0xff]
  %v79 = vld [vmem:[%s0 + $0x94] sm:$0xff]
  %v80 = vld [vmem:[%s0 + $0x9c] sm:$0xff]
  %v81 = vld [vmem:[%s0 + $0xa4] sm:$0xf]
  %v82 = vld [vmem:[%s0 + $0xa8] sm:$0xff]
  %v83 = vld [vmem:[%s0 + $0xb0] sm:$0xff]
  %v84 = vld [vmem:[%s0 + $0xb8] sm:$0xff]
  %v85 = vld [vmem:[%s0 + $0xc0] sm:$0xf]
  %v86 = vld [vmem:[%s0 + $0xc4] sm:$0xff]
  %v87 = vld [vmem:[%s0 + $0xcc] sm:$0xff]
  %v88 = vld [vmem:[%s0 + $0xd4] sm:$0xff]
  %v89 = vld [vmem:[%s0 + $0xdc] sm:$0xf]
  %v90 = vld [vmem:[%s0 + $0xe0] sm:$0xff]
  %v91 = vld [vmem:[%s0 + $0xe8] sm:$0xff]
  %v92 = vld [vmem:[%s0 + $0xf0] sm:$0xff]
  %v93 = vld [vmem:[%s0 + $0xf8] sm:$0xf]
  %v94 = vld [vmem:[%s0 + $0xfc] sm:$0xff]
  %v95 = vld [vmem:[%s0 + $0x104] sm:$0xff]
  %v96 = vld [vmem:[%s0 + $0x10c] sm:$0xff]
  %v97 = vld [vmem:[%s0 + $0x114] sm:$0xf]
  %v98 = vld [vmem:[%s0 + $0x118] sm:$0xff]
  %v99 = vld [vmem:[%s0 + $0x120] sm:$0xff]
  %v100 = vld [vmem:[%s0 + $0x128] sm:$0xff]
  %v101 = vld [vmem:[%s0 + $0x130] sm:$0xf]
  %v102 = vld [vmem:[%s0 + $0x134] sm:$0xff]
  %v103 = vld [vmem:[%s0 + $0x13c] sm:$0xff]
  %v104 = vld [vmem:[%s0 + $0x144] sm:$0xff]
  %v105 = vld [vmem:[%s0 + $0x14c] sm:$0xf]
  %v106 = vld [vmem:[%s0 + $0x150] sm:$0xff]
  %v107 = vld [vmem:[%s0 + $0x158] sm:$0xff]
  %v108 = vld [vmem:[%s0 + $0x160] sm:$0xff]
  %v109 = vld [vmem:[%s0 + $0x168] sm:$0xf]
  %v110 = vld [vmem:[%s0 + $0x16c] sm:$0xff]
  %v111 = vld [vmem:[%s0 + $0x174] sm:$0xff]
  %v112 = vld [vmem:[%s0 + $0x17c] sm:$0xff]
  %v113 = vld [vmem:[%s0 + $0x184] sm:$0xf]
  %v114 = vld [vmem:[%s0 + $0x188] sm:$0xff]
  %v115 = vld [vmem:[%s0 + $0x190] sm:$0xff]
  %v116 = vld [vmem:[%s0 + $0x198] sm:$0xff]
  %v117 = vld [vmem:[%s0 + $0x1a0] sm:$0xf]
  %v118 = vld [vmem:[%s0 + $0x1a4] sm:$0xff]
  %v119 = vld [vmem:[%s0 + $0x1ac] sm:$0xff]
  %v120 = vld [vmem:[%s0 + $0x1b4] sm:$0xff]
  %v121 = vld [vmem:[%s0 + $0x1bc] sm:$0xf]
  %v122 = vld [vmem:[%s1] sm:$0xf]
  %v123 = vld [vmem:[%s1 + $0x4] sm:$0xf]
  %v124 = vld [vmem:[%s1 + $0x8] sm:$0xf]
  %v125 = vld [vmem:[%s1 + $0xc] sm:$0xf]
  %v126 = vld [vmem:[%s1 + $0x10] sm:$0xf]
  %v127 = vld [vmem:[%s1 + $0x14] sm:$0xf]
  %v128 = vld [vmem:[%s1 + $0x18] sm:$0xf]
  %v129 = vld [vmem:[%s1 + $0x1c] sm:$0xf]
  %v130 = vld [vmem:[%s1 + $0x20] sm:$0xf]
  %v131 = vld [vmem:[%s1 + $0x24] sm:$0xf]
  %v132 = vld [vmem:[%s1 + $0x28] sm:$0xf]
  %v133 = vld [vmem:[%s1 + $0x2c] sm:$0xf]
  %v134 = vld [vmem:[%s1 + $0x30] sm:$0xf]
  %v135 = vld [vmem:[%s1 + $0x34] sm:$0xf]
  %v136 = vld [vmem:[%s1 + $0x38] sm:$0xf]
  %v137 = vld [vmem:[%s1 + $0x3c] sm:$0xf]
  %v138 = vld [vmem:[%s1 + $0x40] sm:$0xf]
  %v139 = vld [vmem:[%s1 + $0x44] sm:$0xf]
  %v140 = vld [vmem:[%s1 + $0x48] sm:$0xf]
  %v141 = vld [vmem:[%s1 + $0x4c] sm:$0xf]
  %v142 = vld [vmem:[%s1 + $0x50] sm:$0xf]
  %v143 = vld [vmem:[%s1 + $0x54] sm:$0xf]
  %v144 = vld [vmem:[%s1 + $0x58] sm:$0xf]
  %v145 = vld [vmem:[%s1 + $0x5c] sm:$0xf]
  %v146 = vld [vmem:[%s1 + $0x60] sm:$0xf]
  %v147 = vld [vmem:[%s1 + $0x64] sm:$0xf]
  %v148 = vld [vmem:[%s1 + $0x68] sm:$0xf]
  %v149 = vld [vmem:[%s1 + $0x6c] sm:$0xf]
  %v150 = vld [vmem:[%s1 + $0x70] sm:$0xf]
  %v151 = vld [vmem:[%s1 + $0x74] sm:$0xf]
  %v152 = vld [vmem:[%s1 + $0x78] sm:$0xf]
  %v153 = vld [vmem:[%s1 + $0x7c] sm:$0xf]
  %v154 = vld [vmem:[%s1 + $0x80] sm:$0xf]
  %v155 = vld [vmem:[%s1 + $0x84] sm:$0xf]
  %v156 = vld [vmem:[%s1 + $0x88] sm:$0xf]
  %v157 = vld [vmem:[%s1 + $0x8c] sm:$0xf]
  %v158 = vld [vmem:[%s1 + $0x90] sm:$0xf]
  %v159 = vld [vmem:[%s1 + $0x94] sm:$0xf]
  %v160 = vld [vmem:[%s1 + $0x98] sm:$0xf]
  %v161 = vld [vmem:[%s1 + $0x9c] sm:$0xf]
  %v162 = vld [vmem:[%s1 + $0xa0] sm:$0xf]
  %v163 = vld [vmem:[%s1 + $0xa4] sm:$0xf]
  %v164 = vld [vmem:[%s1 + $0xa8] sm:$0xf]
  %v165 = vld [vmem:[%s1 + $0xac] sm:$0xf]
  %v166 = vld [vmem:[%s1 + $0xb0] sm:$0xf]
  %v167 = vld [vmem:[%s1 + $0xb4] sm:$0xf]
  %v168 = vld [vmem:[%s1 + $0xb8] sm:$0xf]
  %v169 = vld [vmem:[%s1 + $0xbc] sm:$0xf]
  %v170 = vld [vmem:[%s1 + $0xc0] sm:$0xf]
  %v171 = vld [vmem:[%s1 + $0xc4] sm:$0xf]
  %v172 = vld [vmem:[%s1 + $0xc8] sm:$0xf]
  %v173 = vld [vmem:[%s1 + $0xcc] sm:$0xf]
  %v174 = vld [vmem:[%s1 + $0xd0] sm:$0xf]
  %v175 = vld [vmem:[%s1 + $0xd4] sm:$0xf]
  %v176 = vld [vmem:[%s1 + $0xd8] sm:$0xf]
  %v177 = vld [vmem:[%s1 + $0xdc] sm:$0xf]
  %v178 = vld [vmem:[%s1 + $0xe0] sm:$0xf]
  %v179 = vld [vmem:[%s1 + $0xe4] sm:$0xf]
  %v180 = vld [vmem:[%s1 + $0xe8] sm:$0xf]
  %v181 = vld [vmem:[%s1 + $0xec] sm:$0xf]
  %v182 = vld [vmem:[%s1 + $0xf0] sm:$0xf]
  %v183 = vld [vmem:[%s1 + $0xf4] sm:$0xf]
  %v184 = vld [vmem:[%s1 + $0xf8] sm:$0xf]
  %v185 = vld [vmem:[%s1 + $0xfc] sm:$0xf]
  %v186 = vld [vmem:[%s1 + $0x100] sm:$0xf]
  %v187 = vld [vmem:[%s1 + $0x104] sm:$0xf]
  %v188 = vld [vmem:[%s1 + $0x108] sm:$0xf]
  %v189 = vld [vmem:[%s1 + $0x10c] sm:$0xf]
  %v190 = vld [vmem:[%s1 + $0x110] sm:$0xf]
  %v191 = vld [vmem:[%s1 + $0x114] sm:$0xf]
  %v192 = vld [vmem:[%s1 + $0x118] sm:$0xf]
  %v193 = vld [vmem:[%s1 + $0x11c] sm:$0xf]
  %v194 = vld [vmem:[%s1 + $0x120] sm:$0xf]
  %v195 = vld [vmem:[%s1 + $0x124] sm:$0xf]
  %v196 = vld [vmem:[%s1 + $0x128] sm:$0xf]
  %v197 = vld [vmem:[%s1 + $0x12c] sm:$0xf]
  %v198 = vld [vmem:[%s1 + $0x130] sm:$0xf]
  %v199 = vld [vmem:[%s1 + $0x134] sm:$0xf]
  %v200 = vld [vmem:[%s1 + $0x138] sm:$0xf]
  %v201 = vld [vmem:[%s1 + $0x13c] sm:$0xf]
  %v202 = vld [vmem:[%s1 + $0x140] sm:$0xf]
  %v203 = vld [vmem:[%s1 + $0x144] sm:$0xf]
  %v204 = vld [vmem:[%s1 + $0x148] sm:$0xf]
  %v205 = vld [vmem:[%s1 + $0x14c] sm:$0xf]
  %v206 = vld [vmem:[%s1 + $0x150] sm:$0xf]
  %v207 = vld [vmem:[%s1 + $0x154] sm:$0xf]
  %v208 = vld [vmem:[%s1 + $0x158] sm:$0xf]
  %v209 = vld [vmem:[%s1 + $0x15c] sm:$0xf]
  %v210 = vld [vmem:[%s1 + $0x160] sm:$0xf]
  %v211 = vld [vmem:[%s1 + $0x164] sm:$0xf]
  %v212 = vld [vmem:[%s1 + $0x168] sm:$0xf]
  %v213 = vld [vmem:[%s1 + $0x16c] sm:$0xf]
  %v214 = vld [vmem:[%s1 + $0x170] sm:$0xf]
  %v215 = vld [vmem:[%s1 + $0x174] sm:$0xf]
  %v216 = vld [vmem:[%s1 + $0x178] sm:$0xf]
  %v217 = vld [vmem:[%s1 + $0x17c] sm:$0xf]
  %v218 = vld [vmem:[%s1 + $0x180] sm:$0xf]
  %v219 = vld [vmem:[%s1 + $0x184] sm:$0xf]
  %v220 = vld [vmem:[%s1 + $0x188] sm:$0xf]
  %v221 = vld [vmem:[%s1 + $0x18c] sm:$0xf]
  %v286 = vunpack.c.l.b16 %v58
  %v287 = vunpack.c.h.b16 %v58
  %v288 = vunpack.c.l.b16 %v59
  %v289 = vunpack.c.h.b16 %v59
  %v290 = vunpack.c.l.b16 %v60
  %v291 = vunpack.c.h.b16 %v60
  %v292 = vunpack.c.l.b16 %v61
  %v293 = vunpack.c.l.b16 %v62
  %v294 = vunpack.c.h.b16 %v62
  %v295 = vunpack.c.l.b16 %v63
  %v296 = vunpack.c.h.b16 %v63
  %v297 = vunpack.c.l.b16 %v64
  %v298 = vunpack.c.h.b16 %v64
  %v299 = vunpack.c.l.b16 %v65
  %v300 = vunpack.c.l.b16 %v66
  %v301 = vunpack.c.h.b16 %v66
  %v302 = vunpack.c.l.b16 %v67
  %v303 = vunpack.c.h.b16 %v67
  %v304 = vunpack.c.l.b16 %v68
  %v305 = vunpack.c.h.b16 %v68
  %v306 = vunpack.c.l.b16 %v69
  %v307 = vunpack.c.l.b16 %v70
  %v308 = vunpack.c.h.b16 %v70
  %v309 = vunpack.c.l.b16 %v71
  %v310 = vunpack.c.h.b16 %v71
  %v311 = vunpack.c.l.b16 %v72
  %v312 = vunpack.c.h.b16 %v72
  %v313 = vunpack.c.l.b16 %v73
  %v314 = vunpack.c.l.b16 %v74
  %v315 = vunpack.c.h.b16 %v74
  %v316 = vunpack.c.l.b16 %v75
  %v317 = vunpack.c.h.b16 %v75
  %v318 = vunpack.c.l.b16 %v76
  %v319 = vunpack.c.h.b16 %v76
  %v320 = vunpack.c.l.b16 %v77
  %v321 = vunpack.c.l.b16 %v78
  %v322 = vunpack.c.h.b16 %v78
  %v323 = vunpack.c.l.b16 %v79
  %v324 = vunpack.c.h.b16 %v79
  %v325 = vunpack.c.l.b16 %v80
  %v326 = vunpack.c.h.b16 %v80
  %v327 = vunpack.c.l.b16 %v81
  %v328 = vunpack.c.l.b16 %v82
  %v329 = vunpack.c.h.b16 %v82
  %v330 = vunpack.c.l.b16 %v83
  %v331 = vunpack.c.h.b16 %v83
  %v332 = vunpack.c.l.b16 %v84
  %v333 = vunpack.c.h.b16 %v84
  %v334 = vunpack.c.l.b16 %v85
  %v335 = vunpack.c.l.b16 %v86
  %v336 = vunpack.c.h.b16 %v86
  %v337 = vunpack.c.l.b16 %v87
  %v338 = vunpack.c.h.b16 %v87
  %v339 = vunpack.c.l.b16 %v88
  %v340 = vunpack.c.h.b16 %v88
  %v341 = vunpack.c.l.b16 %v89
  %v342 = vunpack.c.l.b16 %v90
  %v343 = vunpack.c.h.b16 %v90
  %v344 = vunpack.c.l.b16 %v91
  %v345 = vunpack.c.h.b16 %v91
  %v346 = vunpack.c.l.b16 %v92
  %v347 = vunpack.c.h.b16 %v92
  %v348 = vunpack.c.l.b16 %v93
  %v349 = vunpack.c.l.b16 %v94
  %v350 = vunpack.c.h.b16 %v94
  %v351 = vunpack.c.l.b16 %v95
  %v352 = vunpack.c.h.b16 %v95
  %v353 = vunpack.c.l.b16 %v96
  %v354 = vunpack.c.h.b16 %v96
  %v355 = vunpack.c.l.b16 %v97
  %v356 = vunpack.c.l.b16 %v98
  %v357 = vunpack.c.h.b16 %v98
  %v358 = vunpack.c.l.b16 %v99
  %v359 = vunpack.c.h.b16 %v99
  %v360 = vunpack.c.l.b16 %v100
  %v361 = vunpack.c.h.b16 %v100
  %v362 = vunpack.c.l.b16 %v101
  %v363 = vunpack.c.l.b16 %v102
  %v364 = vunpack.c.h.b16 %v102
  %v365 = vunpack.c.l.b16 %v103
  %v366 = vunpack.c.h.b16 %v103
  %v367 = vunpack.c.l.b16 %v104
  %v368 = vunpack.c.h.b16 %v104
  %v369 = vunpack.c.l.b16 %v105
  %v370 = vunpack.c.l.b16 %v106
  %v371 = vunpack.c.h.b16 %v106
  %v372 = vunpack.c.l.b16 %v107
  %v373 = vunpack.c.h.b16 %v107
  %v374 = vunpack.c.l.b16 %v108
  %v375 = vunpack.c.h.b16 %v108
  %v376 = vunpack.c.l.b16 %v109
  %v377 = vunpack.c.l.b16 %v110
  %v378 = vunpack.c.h.b16 %v110
  %v379 = vunpack.c.l.b16 %v111
  %v380 = vunpack.c.h.b16 %v111
  %v381 = vunpack.c.l.b16 %v112
  %v382 = vunpack.c.h.b16 %v112
  %v383 = vunpack.c.l.b16 %v113
  %v384 = vunpack.c.l.b16 %v114
  %v385 = vunpack.c.h.b16 %v114
  %v386 = vunpack.c.l.b16 %v115
  %v387 = vunpack.c.h.b16 %v115
  %v388 = vunpack.c.l.b16 %v116
  %v389 = vunpack.c.h.b16 %v116
  %v390 = vunpack.c.l.b16 %v117
  %v391 = vunpack.c.l.b16 %v118
  %v392 = vunpack.c.h.b16 %v118
  %v393 = vunpack.c.l.b16 %v119
  %v394 = vunpack.c.h.b16 %v119
  %v395 = vunpack.c.l.b16 %v120
  %v396 = vunpack.c.h.b16 %v120
  %v397 = vunpack.c.l.b16 %v121
  %v398 = vpack.c.b16 %v293, %v286
  %v399 = vpack.c.b16 %v294, %v287
  %v400 = vpack.c.b16 %v295, %v288
  %v401 = vpack.c.b16 %v296, %v289
  %v402 = vpack.c.b16 %v297, %v290
  %v403 = vpack.c.b16 %v298, %v291
  %v404 = vpack.c.b16 %v299, %v292
  %v405 = vpack.c.b16 %v307, %v300
  %v406 = vpack.c.b16 %v308, %v301
  %v407 = vpack.c.b16 %v309, %v302
  %v408 = vpack.c.b16 %v310, %v303
  %v409 = vpack.c.b16 %v311, %v304
  %v410 = vpack.c.b16 %v312, %v305
  %v411 = vpack.c.b16 %v313, %v306
  %v412 = vpack.c.b16 %v321, %v314
  %v413 = vpack.c.b16 %v322, %v315
  %v414 = vpack.c.b16 %v323, %v316
  %v415 = vpack.c.b16 %v324, %v317
  %v416 = vpack.c.b16 %v325, %v318
  %v417 = vpack.c.b16 %v326, %v319
  %v418 = vpack.c.b16 %v327, %v320
  %v419 = vpack.c.b16 %v335, %v328
  %v420 = vpack.c.b16 %v336, %v329
  %v421 = vpack.c.b16 %v337, %v330
  %v422 = vpack.c.b16 %v338, %v331
  %v423 = vpack.c.b16 %v339, %v332
  %v424 = vpack.c.b16 %v340, %v333
  %v425 = vpack.c.b16 %v341, %v334
  %v426 = vpack.c.b16 %v349, %v342
  %v427 = vpack.c.b16 %v350, %v343
  %v428 = vpack.c.b16 %v351, %v344
  %v429 = vpack.c.b16 %v352, %v345
  %v430 = vpack.c.b16 %v353, %v346
  %v431 = vpack.c.b16 %v354, %v347
  %v432 = vpack.c.b16 %v355, %v348
  %v433 = vpack.c.b16 %v363, %v356
  %v434 = vpack.c.b16 %v364, %v357
  %v435 = vpack.c.b16 %v365, %v358
  %v436 = vpack.c.b16 %v366, %v359
  %v437 = vpack.c.b16 %v367, %v360
  %v438 = vpack.c.b16 %v368, %v361
  %v439 = vpack.c.b16 %v369, %v362
  %v440 = vpack.c.b16 %v377, %v370
  %v441 = vpack.c.b16 %v378, %v371
  %v442 = vpack.c.b16 %v379, %v372
  %v443 = vpack.c.b16 %v380, %v373
  %v444 = vpack.c.b16 %v381, %v374
  %v445 = vpack.c.b16 %v382, %v375
  %v446 = vpack.c.b16 %v383, %v376
  %v447 = vpack.c.b16 %v391, %v384
  %v448 = vpack.c.b16 %v392, %v385
  %v449 = vpack.c.b16 %v393, %v386
  %v450 = vpack.c.b16 %v394, %v387
  %v451 = vpack.c.b16 %v395, %v388
  %v452 = vpack.c.b16 %v396, %v389
  %v453 = vpack.c.b16 %v397, %v390
  %v602 = vunpack.c.l.b16 %v122
  %v603 = vunpack.c.l.b16 %v123
  %v604 = vunpack.c.l.b16 %v124
  %v605 = vunpack.c.l.b16 %v125
  %v606 = vunpack.c.l.b16 %v126
  %v607 = vunpack.c.l.b16 %v127
  %v608 = vunpack.c.l.b16 %v128
  %v609 = vunpack.c.l.b16 %v129
  %v610 = vunpack.c.l.b16 %v130
  %v611 = vunpack.c.l.b16 %v131
  %v612 = vunpack.c.l.b16 %v132
  %v613 = vunpack.c.l.b16 %v133
  %v614 = vunpack.c.l.b16 %v134
  %v615 = vunpack.c.l.b16 %v135
  %v616 = vunpack.c.l.b16 %v136
  %v617 = vunpack.c.l.b16 %v137
  %v618 = vunpack.c.l.b16 %v138
  %v619 = vunpack.c.l.b16 %v139
  %v620 = vunpack.c.l.b16 %v140
  %v621 = vunpack.c.l.b16 %v141
  %v622 = vunpack.c.l.b16 %v142
  %v623 = vunpack.c.l.b16 %v143
  %v624 = vunpack.c.l.b16 %v144
  %v625 = vunpack.c.l.b16 %v145
  %v626 = vunpack.c.l.b16 %v146
  %v627 = vunpack.c.l.b16 %v147
  %v628 = vunpack.c.l.b16 %v148
  %v629 = vunpack.c.l.b16 %v149
  %v630 = vunpack.c.l.b16 %v150
  %v631 = vunpack.c.l.b16 %v151
  %v632 = vunpack.c.l.b16 %v152
  %v633 = vunpack.c.l.b16 %v153
  %v634 = vunpack.c.l.b16 %v154
  %v635 = vunpack.c.l.b16 %v155
  %v636 = vunpack.c.l.b16 %v156
  %v637 = vunpack.c.l.b16 %v157
  %v638 = vunpack.c.l.b16 %v158
  %v639 = vunpack.c.l.b16 %v159
  %v640 = vunpack.c.l.b16 %v160
  %v641 = vunpack.c.l.b16 %v161
  %v642 = vunpack.c.l.b16 %v162
  %v643 = vunpack.c.l.b16 %v163
  %v644 = vunpack.c.l.b16 %v164
  %v645 = vunpack.c.l.b16 %v165
  %v646 = vunpack.c.l.b16 %v166
  %v647 = vunpack.c.l.b16 %v167
  %v648 = vunpack.c.l.b16 %v168
  %v649 = vunpack.c.l.b16 %v169
  %v650 = vunpack.c.l.b16 %v170
  %v651 = vunpack.c.l.b16 %v171
  %v652 = vunpack.c.l.b16 %v172
  %v653 = vunpack.c.l.b16 %v173
  %v654 = vunpack.c.l.b16 %v174
  %v655 = vunpack.c.l.b16 %v175
  %v656 = vunpack.c.l.b16 %v176
  %v657 = vunpack.c.l.b16 %v177
  %v658 = vunpack.c.l.b16 %v178
  %v659 = vunpack.c.l.b16 %v179
  %v660 = vunpack.c.l.b16 %v180
  %v661 = vunpack.c.l.b16 %v181
  %v662 = vunpack.c.l.b16 %v182
  %v663 = vunpack.c.l.b16 %v183
  %v664 = vunpack.c.l.b16 %v184
  %v665 = vunpack.c.l.b16 %v185
  %v666 = vunpack.c.l.b16 %v186
  %v667 = vunpack.c.l.b16 %v187
  %v668 = vunpack.c.l.b16 %v188
  %v669 = vunpack.c.l.b16 %v189
  %v670 = vunpack.c.l.b16 %v190
  %v671 = vunpack.c.l.b16 %v191
  %v672 = vunpack.c.l.b16 %v192
  %v673 = vunpack.c.l.b16 %v193
  %v674 = vunpack.c.l.b16 %v194
  %v675 = vunpack.c.l.b16 %v195
  %v676 = vunpack.c.l.b16 %v196
  %v677 = vunpack.c.l.b16 %v197
  %v678 = vunpack.c.l.b16 %v198
  %v679 = vunpack.c.l.b16 %v199
  %v680 = vunpack.c.l.b16 %v200
  %v681 = vunpack.c.l.b16 %v201
  %v682 = vunpack.c.l.b16 %v202
  %v683 = vunpack.c.l.b16 %v203
  %v684 = vunpack.c.l.b16 %v204
  %v685 = vunpack.c.l.b16 %v205
  %v686 = vunpack.c.l.b16 %v206
  %v687 = vunpack.c.l.b16 %v207
  %v688 = vunpack.c.l.b16 %v208
  %v689 = vunpack.c.l.b16 %v209
  %v690 = vunpack.c.l.b16 %v210
  %v691 = vunpack.c.l.b16 %v211
  %v692 = vunpack.c.l.b16 %v212
  %v693 = vunpack.c.l.b16 %v213
  %v694 = vunpack.c.l.b16 %v214
  %v695 = vunpack.c.l.b16 %v215
  %v696 = vunpack.c.l.b16 %v216
  %v697 = vunpack.c.l.b16 %v217
  %v698 = vunpack.c.l.b16 %v218
  %v699 = vunpack.c.l.b16 %v219
  %v700 = vunpack.c.l.b16 %v220
  %v701 = vunpack.c.l.b16 %v221
  %v702 = vpack.c.b16 %v603, %v602
  %v703 = vpack.c.b16 %v605, %v604
  %v704 = vpack.c.b16 %v607, %v606
  %v705 = vpack.c.b16 %v609, %v608
  %v706 = vpack.c.b16 %v611, %v610
  %v707 = vpack.c.b16 %v613, %v612
  %v708 = vpack.c.b16 %v615, %v614
  %v709 = vpack.c.b16 %v617, %v616
  %v710 = vpack.c.b16 %v619, %v618
  %v711 = vpack.c.b16 %v621, %v620
  %v712 = vpack.c.b16 %v623, %v622
  %v713 = vpack.c.b16 %v625, %v624
  %v714 = vpack.c.b16 %v627, %v626
  %v715 = vpack.c.b16 %v629, %v628
  %v716 = vpack.c.b16 %v631, %v630
  %v717 = vpack.c.b16 %v633, %v632
  %v718 = vpack.c.b16 %v635, %v634
  %v719 = vpack.c.b16 %v637, %v636
  %v720 = vpack.c.b16 %v639, %v638
  %v721 = vpack.c.b16 %v641, %v640
  %v722 = vpack.c.b16 %v643, %v642
  %v723 = vpack.c.b16 %v645, %v644
  %v724 = vpack.c.b16 %v647, %v646
  %v725 = vpack.c.b16 %v649, %v648
  %v726 = vpack.c.b16 %v651, %v650
  %v727 = vpack.c.b16 %v653, %v652
  %v728 = vpack.c.b16 %v655, %v654
  %v729 = vpack.c.b16 %v657, %v656
  %v730 = vpack.c.b16 %v659, %v658
  %v731 = vpack.c.b16 %v661, %v660
  %v732 = vpack.c.b16 %v663, %v662
  %v733 = vpack.c.b16 %v665, %v664
  %v734 = vpack.c.b16 %v667, %v666
  %v735 = vpack.c.b16 %v669, %v668
  %v736 = vpack.c.b16 %v671, %v670
  %v737 = vpack.c.b16 %v673, %v672
  %v738 = vpack.c.b16 %v675, %v674
  %v739 = vpack.c.b16 %v677, %v676
  %v740 = vpack.c.b16 %v679, %v678
  %v741 = vpack.c.b16 %v681, %v680
  %v742 = vpack.c.b16 %v683, %v682
  %v743 = vpack.c.b16 %v685, %v684
  %v744 = vpack.c.b16 %v687, %v686
  %v745 = vpack.c.b16 %v689, %v688
  %v746 = vpack.c.b16 %v691, %v690
  %v747 = vpack.c.b16 %v693, %v692
  %v748 = vpack.c.b16 %v695, %v694
  %v749 = vpack.c.b16 %v697, %v696
  %v750 = vpack.c.b16 %v699, %v698
  %v751 = vpack.c.b16 %v701, %v700
  %vm802 = vcmask 261120
  %v804 = vsel %vm802, %v404, 0
  %v807 = vsel %vm802, %v411, 0
  %v810 = vsel %vm802, %v418, 0
  %v813 = vsel %vm802, %v425, 0
  %v816 = vsel %vm802, %v432, 0
  %v819 = vsel %vm802, %v439, 0
  %v822 = vsel %vm802, %v446, 0
  %v825 = vsel %vm802, %v453, 0
  %827 = vmatprep.subr.bf16.mxu0 0
  %828 = vmatpush1.bf16.msra.mxu0 %v702
  %829 = vmatprep.subr.bf16.mxu0 0
  %830 = vmatpush1.bf16.msra.mxu0 %v703
  %831 = vmatprep.subr.bf16.mxu0 0
  %832 = vmatpush1.bf16.msra.mxu0 %v704
  %833 = vmatprep.subr.bf16.mxu0 0
  %834 = vmatpush1.bf16.msra.mxu0 %v705
  %835 = vmatprep.subr.bf16.mxu0 0
  %836 = vmatpush1.bf16.msra.mxu0 %v706
  %837 = vmatprep.subr.bf16.mxu0 0
  %838 = vmatpush1.bf16.msra.mxu0 %v707
  %839 = vmatprep.subr.bf16.mxu0 0
  %840 = vmatpush1.bf16.msra.mxu0 %v708
  %841 = vmatprep.subr.bf16.mxu0 0
  %842 = vmatpush1.bf16.msra.mxu0 %v709
  %843 = vmatprep.subr.bf16.mxu0 0
  %844 = vmatpush1.bf16.msra.mxu0 %v710
  %845 = vmatprep.subr.bf16.mxu0 0
  %846 = vmatpush1.bf16.msra.mxu0 %v711
  %847 = vmatprep.subr.bf16.mxu0 0
  %848 = vmatpush1.bf16.msra.mxu0 %v712
  %849 = vmatprep.subr.bf16.mxu0 0
  %850 = vmatpush1.bf16.msra.mxu0 %v713
  %851 = vmatprep.subr.bf16.mxu0 0
  %852 = vmatpush1.bf16.msra.mxu0 %v714
  %853 = vmatprep.subr.bf16.mxu0 0
  %854 = vmatpush1.bf16.msra.mxu0 %v715
  %855 = vmatprep.subr.bf16.mxu0 0
  %856 = vmatpush1.bf16.msra.mxu0 %v716
  %857 = vmatprep.subr.bf16.mxu0 0
  %858 = vmatpush1.bf16.msra.mxu0 %v717
  %859 = vmatprep.mubr.bf16.mxu0 %v399
  %860 = vmatmul.mubr.bf16.gmra.mrb[0].mxu0 %v398
  %v861 = vpop.f32.mrb[0].mxu0
  %v862 = vadd.f32 0.0, %v861
  %v863 = vpop.f32.mrb[0].mxu0
  %v864 = vpop.f32.mrb[0].mxu0
  %v865 = vadd.f32 0.0, %v864
  %v866 = vpop.f32.mrb[0].mxu0
  %867 = vmatprep.mubr.bf16.mxu0 %v406
  %868 = vmatmul.mubr.bf16.gmra.mrb[0].mxu0 %v405
  %v869 = vpop.f32.mrb[0].mxu0
  %v870 = vadd.f32 0.0, %v869
  %v871 = vpop.f32.mrb[0].mxu0
  %v872 = vpop.f32.mrb[0].mxu0
  %v873 = vadd.f32 0.0, %v872
  %v874 = vpop.f32.mrb[0].mxu0
  %875 = vmatprep.mubr.bf16.mxu0 %v413
  %876 = vmatmul.mubr.bf16.gmra.mrb[0].mxu0 %v412
  %v877 = vpop.f32.mrb[0].mxu0
  %v878 = vadd.f32 0.0, %v877
  %v879 = vpop.f32.mrb[0].mxu0
  %v880 = vpop.f32.mrb[0].mxu0
  %v881 = vadd.f32 0.0, %v880
  %v882 = vpop.f32.mrb[0].mxu0
  %883 = vmatprep.mubr.bf16.mxu0 %v420
  %884 = vmatmul.mubr.bf16.gmra.mrb[0].mxu0 %v419
  %v885 = vpop.f32.mrb[0].mxu0
  %v886 = vadd.f32 0.0, %v885
  %v887 = vpop.f32.mrb[0].mxu0
  %v888 = vpop.f32.mrb[0].mxu0
  %v889 = vadd.f32 0.0, %v888
  %v890 = vpop.f32.mrb[0].mxu0
  %891 = vmatprep.mubr.bf16.mxu0 %v427
  %892 = vmatmul.mubr.bf16.gmra.mrb[0].mxu0 %v426
  %v893 = vpop.f32.mrb[0].mxu0
  %v894 = vadd.f32 0.0, %v893
  %v895 = vpop.f32.mrb[0].mxu0
  %v896 = vpop.f32.mrb[0].mxu0
  %v897 = vadd.f32 0.0, %v896
  %v898 = vpop.f32.mrb[0].mxu0
  %899 = vmatprep.mubr.bf16.mxu0 %v434
  %900 = vmatmul.mubr.bf16.gmra.mrb[0].mxu0 %v433
  %v901 = vpop.f32.mrb[0].mxu0
  %v902 = vadd.f32 0.0, %v901
  %v903 = vpop.f32.mrb[0].mxu0
  %v904 = vpop.f32.mrb[0].mxu0
  %v905 = vadd.f32 0.0, %v904
  %v906 = vpop.f32.mrb[0].mxu0
  %907 = vmatprep.mubr.bf16.mxu0 %v441
  %908 = vmatmul.mubr.bf16.gmra.mrb[0].mxu0 %v440
  %v909 = vpop.f32.mrb[0].mxu0
  %v910 = vadd.f32 0.0, %v909
  %v911 = vpop.f32.mrb[0].mxu0
  %v912 = vpop.f32.mrb[0].mxu0
  %v913 = vadd.f32 0.0, %v912
  %v914 = vpop.f32.mrb[0].mxu0
  %915 = vmatprep.mubr.bf16.mxu0 %v448
  %916 = vmatmul.mubr.bf16.gmra.mrb[0].mxu0 %v447
  %v917 = vpop.f32.mrb[0].mxu0
  %v918 = vadd.f32 0.0, %v917
  %v919 = vpop.f32.mrb[0].mxu0
  %v920 = vpop.f32.mrb[0].mxu0
  %v921 = vadd.f32 0.0, %v920
  %v922 = vpop.f32.mrb[0].mxu0
  %923 = vdwg.mxu0
  %924 = vmatprep.subr.bf16.mxu0 0
  %925 = vmatpush1.bf16.msra.mxu0 %v718
  %926 = vmatprep.subr.bf16.mxu0 0
  %927 = vmatpush1.bf16.msra.mxu0 %v719
  %928 = vmatprep.subr.bf16.mxu0 0
  %929 = vmatpush1.bf16.msra.mxu0 %v720
  %930 = vmatprep.subr.bf16.mxu0 0
  %931 = vmatpush1.bf16.msra.mxu0 %v721
  %932 = vmatprep.subr.bf16.mxu0 0
  %933 = vmatpush1.bf16.msra.mxu0 %v722
  %934 = vmatprep.subr.bf16.mxu0 0
  %935 = vmatpush1.bf16.msra.mxu0 %v723
  %936 = vmatprep.subr.bf16.mxu0 0
  %937 = vmatpush1.bf16.msra.mxu0 %v724
  %938 = vmatprep.subr.bf16.mxu0 0
  %939 = vmatpush1.bf16.msra.mxu0 %v725
  %940 = vmatprep.subr.bf16.mxu0 0
  %941 = vmatpush1.bf16.msra.mxu0 %v726
  %942 = vmatprep.subr.bf16.mxu0 0
  %943 = vmatpush1.bf16.msra.mxu0 %v727
  %944 = vmatprep.subr.bf16.mxu0 0
  %945 = vmatpush1.bf16.msra.mxu0 %v728
  %946 = vmatprep.subr.bf16.mxu0 0
  %947 = vmatpush1.bf16.msra.mxu0 %v729
  %948 = vmatprep.subr.bf16.mxu0 0
  %949 = vmatpush1.bf16.msra.mxu0 %v730
  %950 = vmatprep.subr.bf16.mxu0 0
  %951 = vmatpush1.bf16.msra.mxu0 %v731
  %952 = vmatprep.subr.bf16.mxu0 0
  %953 = vmatpush1.bf16.msra.mxu0 %v732
  %954 = vmatprep.subr.bf16.mxu0 0
  %955 = vmatpush1.bf16.msra.mxu0 %v733
  %956 = vmatprep.mubr.bf16.mxu0 %v401
  %957 = vmatmul.mubr.bf16.gmra.mrb[0].mxu0 %v400
  %v958 = vpop.f32.mrb[0].mxu0
  %v959 = vadd.f32 %v862, %v958
  %v960 = vpop.f32.mrb[0].mxu0
  %v961 = vpop.f32.mrb[0].mxu0
  %v962 = vadd.f32 %v865, %v961
  %v963 = vpop.f32.mrb[0].mxu0
  %964 = vmatprep.mubr.bf16.mxu0 %v408
  %965 = vmatmul.mubr.bf16.gmra.mrb[0].mxu0 %v407
  %v966 = vpop.f32.mrb[0].mxu0
  %v967 = vadd.f32 %v870, %v966
  %v968 = vpop.f32.mrb[0].mxu0
  %v969 = vpop.f32.mrb[0].mxu0
  %v970 = vadd.f32 %v873, %v969
  %v971 = vpop.f32.mrb[0].mxu0
  %972 = vmatprep.mubr.bf16.mxu0 %v415
  %973 = vmatmul.mubr.bf16.gmra.mrb[0].mxu0 %v414
  %v974 = vpop.f32.mrb[0].mxu0
  %v975 = vadd.f32 %v878, %v974
  %v976 = vpop.f32.mrb[0].mxu0
  %v977 = vpop.f32.mrb[0].mxu0
  %v978 = vadd.f32 %v881, %v977
  %v979 = vpop.f32.mrb[0].mxu0
  %980 = vmatprep.mubr.bf16.mxu0 %v422
  %981 = vmatmul.mubr.bf16.gmra.mrb[0].mxu0 %v421
  %v982 = vpop.f32.mrb[0].mxu0
  %v983 = vadd.f32 %v886, %v982
  %v984 = vpop.f32.mrb[0].mxu0
  %v985 = vpop.f32.mrb[0].mxu0
  %v986 = vadd.f32 %v889, %v985
  %v987 = vpop.f32.mrb[0].mxu0
  %988 = vmatprep.mubr.bf16.mxu0 %v429
  %989 = vmatmul.mubr.bf16.gmra.mrb[0].mxu0 %v428
  %v990 = vpop.f32.mrb[0].mxu0
  %v991 = vadd.f32 %v894, %v990
  %v992 = vpop.f32.mrb[0].mxu0
  %v993 = vpop.f32.mrb[0].mxu0
  %v994 = vadd.f32 %v897, %v993
  %v995 = vpop.f32.mrb[0].mxu0
  %996 = vmatprep.mubr.bf16.mxu0 %v436
  %997 = vmatmul.mubr.bf16.gmra.mrb[0].mxu0 %v435
  %v998 = vpop.f32.mrb[0].mxu0
  %v999 = vadd.f32 %v902, %v998
  %v1000 = vpop.f32.mrb[0].mxu0
  %v1001 = vpop.f32.mrb[0].mxu0
  %v1002 = vadd.f32 %v905, %v1001
  %v1003 = vpop.f32.mrb[0].mxu0
  %1004 = vmatprep.mubr.bf16.mxu0 %v443
  %1005 = vmatmul.mubr.bf16.gmra.mrb[0].mxu0 %v442
  %v1006 = vpop.f32.mrb[0].mxu0
  %v1007 = vadd.f32 %v910, %v1006
  %v1008 = vpop.f32.mrb[0].mxu0
  %v1009 = vpop.f32.mrb[0].mxu0
  %v1010 = vadd.f32 %v913, %v1009
  %v1011 = vpop.f32.mrb[0].mxu0
  %1012 = vmatprep.mubr.bf16.mxu0 %v450
  %1013 = vmatmul.mubr.bf16.gmra.mrb[0].mxu0 %v449
  %v1014 = vpop.f32.mrb[0].mxu0
  %v1015 = vadd.f32 %v918, %v1014
  %v1016 = vpop.f32.mrb[0].mxu0
  %v1017 = vpop.f32.mrb[0].mxu0
  %v1018 = vadd.f32 %v921, %v1017
  %v1019 = vpop.f32.mrb[0].mxu0
  %1020 = vdwg.mxu0
  %1021 = vmatprep.subr.bf16.mxu0 0
  %1022 = vmatpush1.bf16.msra.mxu0 %v734
  %1023 = vmatprep.subr.bf16.mxu0 0
  %1024 = vmatpush1.bf16.msra.mxu0 %v735
  %1025 = vmatprep.subr.bf16.mxu0 0
  %1026 = vmatpush1.bf16.msra.mxu0 %v736
  %1027 = vmatprep.subr.bf16.mxu0 0
  %1028 = vmatpush1.bf16.msra.mxu0 %v737
  %1029 = vmatprep.subr.bf16.mxu0 0
  %1030 = vmatpush1.bf16.msra.mxu0 %v738
  %1031 = vmatprep.subr.bf16.mxu0 0
  %1032 = vmatpush1.bf16.msra.mxu0 %v739
  %1033 = vmatprep.subr.bf16.mxu0 0
  %1034 = vmatpush1.bf16.msra.mxu0 %v740
  %1035 = vmatprep.subr.bf16.mxu0 0
  %1036 = vmatpush1.bf16.msra.mxu0 %v741
  %1037 = vmatprep.subr.bf16.mxu0 0
  %1038 = vmatpush1.bf16.msra.mxu0 %v742
  %1039 = vmatprep.subr.bf16.mxu0 0
  %1040 = vmatpush1.bf16.msra.mxu0 %v743
  %1041 = vmatprep.subr.bf16.mxu0 0
  %1042 = vmatpush1.bf16.msra.mxu0 %v744
  %1043 = vmatprep.subr.bf16.mxu0 0
  %1044 = vmatpush1.bf16.msra.mxu0 %v745
  %1045 = vmatprep.subr.bf16.mxu0 0
  %1046 = vmatpush1.bf16.msra.mxu0 %v746
  %1047 = vmatprep.subr.bf16.mxu0 0
  %1048 = vmatpush1.bf16.msra.mxu0 %v747
  %1049 = vmatprep.subr.bf16.mxu0 0
  %1050 = vmatpush1.bf16.msra.mxu0 %v748
  %1051 = vmatprep.subr.bf16.mxu0 0
  %1052 = vmatpush1.bf16.msra.mxu0 %v749
  %1053 = vmatprep.mubr.bf16.mxu0 %v403
  %1054 = vmatmul.mubr.bf16.gmra.mrb[0].mxu0 %v402
  %v1055 = vpop.f32.mrb[0].mxu0
  %v1056 = vadd.f32 %v959, %v1055
  %v1057 = vpop.f32.mrb[0].mxu0
  %v1058 = vpop.f32.mrb[0].mxu0
  %v1059 = vadd.f32 %v962, %v1058
  %v1060 = vpop.f32.mrb[0].mxu0
  %1061 = vmatprep.mubr.bf16.mxu0 %v410
  %1062 = vmatmul.mubr.bf16.gmra.mrb[0].mxu0 %v409
  %v1063 = vpop.f32.mrb[0].mxu0
  %v1064 = vadd.f32 %v967, %v1063
  %v1065 = vpop.f32.mrb[0].mxu0
  %v1066 = vpop.f32.mrb[0].mxu0
  %v1067 = vadd.f32 %v970, %v1066
  %v1068 = vpop.f32.mrb[0].mxu0
  %1069 = vmatprep.mubr.bf16.mxu0 %v417
  %1070 = vmatmul.mubr.bf16.gmra.mrb[0].mxu0 %v416
  %v1071 = vpop.f32.mrb[0].mxu0
  %v1072 = vadd.f32 %v975, %v1071
  %v1073 = vpop.f32.mrb[0].mxu0
  %v1074 = vpop.f32.mrb[0].mxu0
  %v1075 = vadd.f32 %v978, %v1074
  %v1076 = vpop.f32.mrb[0].mxu0
  %1077 = vmatprep.mubr.bf16.mxu0 %v424
  %1078 = vmatmul.mubr.bf16.gmra.mrb[0].mxu0 %v423
  %v1079 = vpop.f32.mrb[0].mxu0
  %v1080 = vadd.f32 %v983, %v1079
  %v1081 = vpop.f32.mrb[0].mxu0
  %v1082 = vpop.f32.mrb[0].mxu0
  %v1083 = vadd.f32 %v986, %v1082
  %v1084 = vpop.f32.mrb[0].mxu0
  %1085 = vmatprep.mubr.bf16.mxu0 %v431
  %1086 = vmatmul.mubr.bf16.gmra.mrb[0].mxu0 %v430
  %v1087 = vpop.f32.mrb[0].mxu0
  %v1088 = vadd.f32 %v991, %v1087
  %v1089 = vpop.f32.mrb[0].mxu0
  %v1090 = vpop.f32.mrb[0].mxu0
  %v1091 = vadd.f32 %v994, %v1090
  %v1092 = vpop.f32.mrb[0].mxu0
  %1093 = vmatprep.mubr.bf16.mxu0 %v438
  %1094 = vmatmul.mubr.bf16.gmra.mrb[0].mxu0 %v437
  %v1095 = vpop.f32.mrb[0].mxu0
  %v1096 = vadd.f32 %v999, %v1095
  %v1097 = vpop.f32.mrb[0].mxu0
  %v1098 = vpop.f32.mrb[0].mxu0
  %v1099 = vadd.f32 %v1002, %v1098
  %v1100 = vpop.f32.mrb[0].mxu0
  %1101 = vmatprep.mubr.bf16.mxu0 %v445
  %1102 = vmatmul.mubr.bf16.gmra.mrb[0].mxu0 %v444
  %v1103 = vpop.f32.mrb[0].mxu0
  %v1104 = vadd.f32 %v1007, %v1103
  %v1105 = vpop.f32.mrb[0].mxu0
  %v1106 = vpop.f32.mrb[0].mxu0
  %v1107 = vadd.f32 %v1010, %v1106
  %v1108 = vpop.f32.mrb[0].mxu0
  %1109 = vmatprep.mubr.bf16.mxu0 %v452
  %1110 = vmatmul.mubr.bf16.gmra.mrb[0].mxu0 %v451
  %v1111 = vpop.f32.mrb[0].mxu0
  %v1112 = vadd.f32 %v1015, %v1111
  %v1113 = vpop.f32.mrb[0].mxu0
  %v1114 = vpop.f32.mrb[0].mxu0
  %v1115 = vadd.f32 %v1018, %v1114
  %v1116 = vpop.f32.mrb[0].mxu0
  %1117 = vdwg.mxu0
  %1118 = vmatprep.subr.bf16.mxu0 0
  %1119 = vmatpush1.bf16.msra.mxu0 %v750
  %1120 = vmatprep.subr.bf16.mxu0 0
  %1121 = vmatpush1.bf16.msra.mxu0 %v751
  %1122 = vmatprep.subr.bf16.mxu0 0
  %1123 = vmatpush1.bf16.msra.mxu0 0
  %1124 = vmatprep.subr.bf16.mxu0 0
  %1125 = vmatpush1.bf16.msra.mxu0 0
  %1126 = vmatprep.subr.bf16.mxu0 0
  %1127 = vmatpush1.bf16.msra.mxu0 0
  %1128 = vmatprep.subr.bf16.mxu0 0
  %1129 = vmatpush1.bf16.msra.mxu0 0
  %1130 = vmatprep.subr.bf16.mxu0 0
  %1131 = vmatpush1.bf16.msra.mxu0 0
  %1132 = vmatprep.subr.bf16.mxu0 0
  %1133 = vmatpush1.bf16.msra.mxu0 0
  %1134 = vmatprep.subr.bf16.mxu0 0
  %1135 = vmatpush1.bf16.msra.mxu0 0
  %1136 = vmatprep.subr.bf16.mxu0 0
  %1137 = vmatpush1.bf16.msra.mxu0 0
  %1138 = vmatprep.subr.bf16.mxu0 0
  %1139 = vmatpush1.bf16.msra.mxu0 0
  %1140 = vmatprep.subr.bf16.mxu0 0
  %1141 = vmatpush1.bf16.msra.mxu0 0
  %1142 = vmatprep.subr.bf16.mxu0 0
  %1143 = vmatpush1.bf16.msra.mxu0 0
  %1144 = vmatprep.subr.bf16.mxu0 0
  %1145 = vmatpush1.bf16.msra.mxu0 0
  %1146 = vmatprep.subr.bf16.mxu0 0
  %1147 = vmatpush1.bf16.msra.mxu0 0
  %1148 = vmatprep.subr.bf16.mxu0 0
  %1149 = vmatpush1.bf16.msra.mxu0 0
  %1150 = vmatprep.mubr.bf16.mxu0 0
  %1151 = vmatmul.mubr.bf16.gmra.mrb[0].mxu0 %v804
  %v1152 = vpop.f32.mrb[0].mxu0
  %v1153 = vadd.f32 %v1056, %v1152
  %v1154 = vpop.f32.mrb[0].mxu0
  %v1155 = vpop.f32.mrb[0].mxu0
  %v1156 = vadd.f32 %v1059, %v1155
  %v1157 = vpop.f32.mrb[0].mxu0
  %1158 = vmatprep.mubr.bf16.mxu0 0
  %1159 = vmatmul.mubr.bf16.gmra.mrb[0].mxu0 %v807
  %v1160 = vpop.f32.mrb[0].mxu0
  %v1161 = vadd.f32 %v1064, %v1160
  %v1162 = vpop.f32.mrb[0].mxu0
  %v1163 = vpop.f32.mrb[0].mxu0
  %v1164 = vadd.f32 %v1067, %v1163
  %v1165 = vpop.f32.mrb[0].mxu0
  %1166 = vmatprep.mubr.bf16.mxu0 0
  %1167 = vmatmul.mubr.bf16.gmra.mrb[0].mxu0 %v810
  %v1168 = vpop.f32.mrb[0].mxu0
  %v1169 = vadd.f32 %v1072, %v1168
  %v1170 = vpop.f32.mrb[0].mxu0
  %v1171 = vpop.f32.mrb[0].mxu0
  %v1172 = vadd.f32 %v1075, %v1171
  %v1173 = vpop.f32.mrb[0].mxu0
  %1174 = vmatprep.mubr.bf16.mxu0 0
  %1175 = vmatmul.mubr.bf16.gmra.mrb[0].mxu0 %v813
  %v1176 = vpop.f32.mrb[0].mxu0
  %v1177 = vadd.f32 %v1080, %v1176
  %v1178 = vpop.f32.mrb[0].mxu0
  %v1179 = vpop.f32.mrb[0].mxu0
  %v1180 = vadd.f32 %v1083, %v1179
  %v1181 = vpop.f32.mrb[0].mxu0
  %1182 = vmatprep.mubr.bf16.mxu0 0
  %1183 = vmatmul.mubr.bf16.gmra.mrb[0].mxu0 %v816
  %v1184 = vpop.f32.mrb[0].mxu0
  %v1185 = vadd.f32 %v1088, %v1184
  %v1186 = vpop.f32.mrb[0].mxu0
  %v1187 = vpop.f32.mrb[0].mxu0
  %v1188 = vadd.f32 %v1091, %v1187
  %v1189 = vpop.f32.mrb[0].mxu0
  %1190 = vmatprep.mubr.bf16.mxu0 0
  %1191 = vmatmul.mubr.bf16.gmra.mrb[0].mxu0 %v819
  %v1192 = vpop.f32.mrb[0].mxu0
  %v1193 = vadd.f32 %v1096, %v1192
  %v1194 = vpop.f32.mrb[0].mxu0
  %v1195 = vpop.f32.mrb[0].mxu0
  %v1196 = vadd.f32 %v1099, %v1195
  %v1197 = vpop.f32.mrb[0].mxu0
  %1198 = vmatprep.mubr.bf16.mxu0 0
  %1199 = vmatmul.mubr.bf16.gmra.mrb[0].mxu0 %v822
  %v1200 = vpop.f32.mrb[0].mxu0
  %v1201 = vadd.f32 %v1104, %v1200
  %v1202 = vpop.f32.mrb[0].mxu0
  %v1203 = vpop.f32.mrb[0].mxu0
  %v1204 = vadd.f32 %v1107, %v1203
  %v1205 = vpop.f32.mrb[0].mxu0
  %1206 = vmatprep.mubr.bf16.mxu0 0
  %1207 = vmatmul.mubr.bf16.gmra.mrb[0].mxu0 %v825
  %v1208 = vpop.f32.mrb[0].mxu0
  %v1209 = vadd.f32 %v1112, %v1208
  %v1210 = vpop.f32.mrb[0].mxu0
  %v1211 = vpop.f32.mrb[0].mxu0
  %v1212 = vadd.f32 %v1115, %v1211
  %v1213 = vpop.f32.mrb[0].mxu0
  %1214 = vdwg.mxu0
  %v1215 = vadd.f32 %v42, %v1153
  %v1216 = vadd.f32 %v43, %v1156
  %v1217 = vadd.f32 %v44, %v1161
  %v1218 = vadd.f32 %v45, %v1164
  %v1219 = vadd.f32 %v46, %v1169
  %v1220 = vadd.f32 %v47, %v1172
  %v1221 = vadd.f32 %v48, %v1177
  %v1222 = vadd.f32 %v49, %v1180
  %v1223 = vadd.f32 %v50, %v1185
  %v1224 = vadd.f32 %v51, %v1188
  %v1225 = vadd.f32 %v52, %v1193
  %v1226 = vadd.f32 %v53, %v1196
  %v1227 = vadd.f32 %v54, %v1201
  %v1228 = vadd.f32 %v55, %v1204
  %v1229 = vadd.f32 %v56, %v1209
  %v1230 = vadd.f32 %v57, %v1212
  %vm1231 = vcmask 130048
  %1232 = vst.msk [vmem:[#allocation2] sm:$0xff] %vm1231, %v1215
  %1233 = vst.msk [vmem:[#allocation2 + $0x8] sm:$0xff] %vm1231, %v1216
  %1234 = vst.msk [vmem:[#allocation2 + $0x10] sm:$0xff] %vm1231, %v1217
  %1235 = vst.msk [vmem:[#allocation2 + $0x18] sm:$0xff] %vm1231, %v1218
  %1236 = vst.msk [vmem:[#allocation2 + $0x20] sm:$0xff] %vm1231, %v1219
  %1237 = vst.msk [vmem:[#allocation2 + $0x28] sm:$0xff] %vm1231, %v1220
  %1238 = vst.msk [vmem:[#allocation2 + $0x30] sm:$0xff] %vm1231, %v1221
  %1239 = vst.msk [vmem:[#allocation2 + $0x38] sm:$0xff] %vm1231, %v1222
  %1240 = vst.msk [vmem:[#allocation2 + $0x40] sm:$0xff] %vm1231, %v1223
  %1241 = vst.msk [vmem:[#allocation2 + $0x48] sm:$0xff] %vm1231, %v1224
  %1242 = vst.msk [vmem:[#allocation2 + $0x50] sm:$0xff] %vm1231, %v1225
  %1243 = vst.msk [vmem:[#allocation2 + $0x58] sm:$0xff] %vm1231, %v1226
  %1244 = vst.msk [vmem:[#allocation2 + $0x60] sm:$0xff] %vm1231, %v1227
  %1245 = vst.msk [vmem:[#allocation2 + $0x68] sm:$0xff] %vm1231, %v1228
  %1246 = vst.msk [vmem:[#allocation2 + $0x70] sm:$0xff] %vm1231, %v1229
  %1247 = vst.msk [vmem:[#allocation2 + $0x78] sm:$0xff] %vm1231, %v1230
  // Predicated region
  $region26: #{forward.10} parent=0 // pred_check
    %p1248 = pneg %p21
  $region27: #{forward.10} parent=0 // pred_check_branch
    %1250 = sbr.rel (%p1248) target = $region29
  $region28: #{forward.10} parent=0 // pred_region
    %v1251 = vld [vmem:[#allocation2] sm:$0xff]
    %v1252 = vld [vmem:[#allocation2 + $0x8] sm:$0xff]
    %v1253 = vld [vmem:[#allocation2 + $0x10] sm:$0xff]
    %v1254 = vld [vmem:[#allocation2 + $0x18] sm:$0xff]
    %v1255 = vld [vmem:[#allocation2 + $0x20] sm:$0xff]
    %v1256 = vld [vmem:[#allocation2 + $0x28] sm:$0xff]
    %v1257 = vld [vmem:[#allocation2 + $0x30] sm:$0xff]
    %v1258 = vld [vmem:[#allocation2 + $0x38] sm:$0xff]
    %v1259 = vld [vmem:[#allocation2 + $0x40] sm:$0xff]
    %v1260 = vld [vmem:[#allocation2 + $0x48] sm:$0xff]
    %v1261 = vld [vmem:[#allocation2 + $0x50] sm:$0xff]
    %v1262 = vld [vmem:[#allocation2 + $0x58] sm:$0xff]
    %v1263 = vld [vmem:[#allocation2 + $0x60] sm:$0xff]
    %v1264 = vld [vmem:[#allocation2 + $0x68] sm:$0xff]
    %v1265 = vld [vmem:[#allocation2 + $0x70] sm:$0xff]
    %v1266 = vld [vmem:[#allocation2 + $0x78] sm:$0xff]
    %v1267 = vld [vmem:[%s2] sm:$0x1]
    %v1269 = vlaneseq
    %v1270 = vshrl.u32 %v1269, 7
    %v1271 = vsub.s32 0, %v1270
    %v1272 = vrot.slane %v1267, %v1271
    %v1274 = vadd.f32 %v1251, %v1272
    %v1275 = vadd.f32 %v1252, %v1272
    %v1276 = vadd.f32 %v1253, %v1272
    %v1277 = vadd.f32 %v1254, %v1272
    %v1278 = vadd.f32 %v1255, %v1272
    %v1279 = vadd.f32 %v1256, %v1272
    %v1280 = vadd.f32 %v1257, %v1272
    %v1281 = vadd.f32 %v1258, %v1272
    %v1282 = vadd.f32 %v1259, %v1272
    %v1283 = vadd.f32 %v1260, %v1272
    %v1284 = vadd.f32 %v1261, %v1272
    %v1285 = vadd.f32 %v1262, %v1272
    %v1286 = vadd.f32 %v1263, %v1272
    %v1287 = vadd.f32 %v1264, %v1272
    %v1288 = vadd.f32 %v1265, %v1272
    %v1289 = vadd.f32 %v1266, %v1272
    %v1290 = vmul.f32 %v1274, %v1274
    %v1291 = vmul.f32 %v1275, %v1275
    %v1292 = vmul.f32 %v1276, %v1276
    %v1293 = vmul.f32 %v1277, %v1277
    %v1294 = vmul.f32 %v1278, %v1278
    %v1295 = vmul.f32 %v1279, %v1279
    %v1296 = vmul.f32 %v1280, %v1280
    %v1297 = vmul.f32 %v1281, %v1281
    %v1298 = vmul.f32 %v1282, %v1282
    %v1299 = vmul.f32 %v1283, %v1283
    %v1300 = vmul.f32 %v1284, %v1284
    %v1301 = vmul.f32 %v1285, %v1285
    %v1302 = vmul.f32 %v1286, %v1286
    %v1303 = vmul.f32 %v1287, %v1287
    %v1304 = vmul.f32 %v1288, %v1288
    %v1305 = vmul.f32 %v1289, %v1289
    %v1306 = vld [vmem:[%s3] sm:$0xff]
    %v1307 = vld [vmem:[%s3 + $0x8] sm:$0xff]
    %v1308 = vld [vmem:[%s4] sm:$0x1]
    %v1310 = vlaneseq
    %v1311 = vshrl.u32 %v1310, 7
    %v1312 = vsub.s32 0, %v1311
    %v1313 = vrot.slane %v1308, %v1312
    %v1316 = vsel %vm1231, %v1290, 0
    %v1319 = vsel %vm1231, %v1291, 0
    %v1322 = vsel %vm1231, %v1292, 0
    %v1325 = vsel %vm1231, %v1293, 0
    %v1328 = vsel %vm1231, %v1294, 0
    %v1331 = vsel %vm1231, %v1295, 0
    %v1334 = vsel %vm1231, %v1296, 0
    %v1337 = vsel %vm1231, %v1297, 0
    %v1340 = vsel %vm1231, %v1298, 0
    %v1343 = vsel %vm1231, %v1299, 0
    %v1346 = vsel %vm1231, %v1300, 0
    %v1349 = vsel %vm1231, %v1301, 0
    %v1352 = vsel %vm1231, %v1302, 0
    %v1355 = vsel %vm1231, %v1303, 0
    %v1358 = vsel %vm1231, %v1304, 0
    %v1361 = vsel %vm1231, %v1305, 0
    %1363 = vmatprep.subr.mxu0 0.0
    %1364 = vmatpush1.msra.mxu0 %v1306
    %1365 = vmatprep.subr.mxu0 0.0
    %1366 = vmatpush1.msra.mxu0 %v1307
    %1367 = vmatprep.subr.mxu0 0.0
    %1368 = vmatpush1.msra.mxu0 0.0
    %1369 = vmatprep.subr.mxu0 0.0
    %1370 = vmatpush1.msra.mxu0 0.0
    %1371 = vmatprep.subr.mxu0 0.0
    %1372 = vmatpush1.msra.mxu0 0.0
    %1373 = vmatprep.subr.mxu0 0.0
    %1374 = vmatpush1.msra.mxu0 0.0
    %1375 = vmatprep.subr.mxu0 0.0
    %1376 = vmatpush1.msra.mxu0 0.0
    %1377 = vmatprep.subr.mxu0 0.0
    %1378 = vmatpush1.msra.mxu0 0.0
    %1379 = vmatprep.subr.mxu0 0.0
    %1380 = vmatpush1.msra.mxu0 0.0
    %1381 = vmatprep.subr.mxu0 0.0
    %1382 = vmatpush1.msra.mxu0 0.0
    %1383 = vmatprep.subr.mxu0 0.0
    %1384 = vmatpush1.msra.mxu0 0.0
    %1385 = vmatprep.subr.mxu0 0.0
    %1386 = vmatpush1.msra.mxu0 0.0
    %1387 = vmatprep.subr.mxu0 0.0
    %1388 = vmatpush1.msra.mxu0 0.0
    %1389 = vmatprep.subr.mxu0 0.0
    %1390 = vmatpush1.msra.mxu0 0.0
    %1391 = vmatprep.subr.mxu0 0.0
    %1392 = vmatpush1.msra.mxu0 0.0
    %1393 = vmatprep.subr.mxu0 0.0
    %1394 = vmatpush1.msra.mxu0 0.0
    %1395 = vmatprep.subr.mxu0 0.0
    %1396 = vmatpush1.msra.mxu0 0.0
    %1397 = vmatprep.subr.mxu0 0.0
    %1398 = vmatpush1.msra.mxu0 0.0
    %1399 = vmatprep.subr.mxu0 0.0
    %1400 = vmatpush1.msra.mxu0 0.0
    %1401 = vmatprep.subr.mxu0 0.0
    %1402 = vmatpush1.msra.mxu0 0.0
    %1403 = vmatprep.subr.mxu0 0.0
    %1404 = vmatpush1.msra.mxu0 0.0
    %1405 = vmatprep.subr.mxu0 0.0
    %1406 = vmatpush1.msra.mxu0 0.0
    %1407 = vmatprep.subr.mxu0 0.0
    %1408 = vmatpush1.msra.mxu0 0.0
    %1409 = vmatprep.subr.mxu0 0.0
    %1410 = vmatpush1.msra.mxu0 0.0
    %1411 = vmatprep.subr.mxu0 0.0
    %1412 = vmatpush1.msra.mxu0 0.0
    %1413 = vmatprep.subr.mxu0 0.0
    %1414 = vmatpush1.msra.mxu0 0.0
    %1415 = vmatprep.subr.mxu0 0.0
    %1416 = vmatpush1.msra.mxu0 0.0
    %1417 = vmatprep.subr.mxu0 0.0
    %1418 = vmatpush1.msra.mxu0 0.0
    %1419 = vmatprep.subr.mxu0 0.0
    %1420 = vmatpush1.msra.mxu0 0.0
    %1421 = vmatprep.subr.mxu0 0.0
    %1422 = vmatpush1.msra.mxu0 0.0
    %1423 = vmatprep.subr.mxu0 0.0
    %1424 = vmatpush1.msra.mxu0 0.0
    %1425 = vmatprep.subr.mxu0 0.0
    %1426 = vmatpush1.msra.mxu0 0.0
    %1427 = vmatprep.mubr.f32.mxu0 0.0
    %1428 = vmatmul.mubr.f32.gmra.mrb[0].mxu0 %v1316
    %v1429 = vpop.f32.mrb[0].mxu0
    %v1430 = vadd.f32 %v1313, %v1429
    %v1431 = vpop.f32.mrb[0].mxu0
    %1432 = vmatprep.mubr.f32.mxu0 0.0
    %1433 = vmatmul.mubr.f32.gmra.mrb[0].mxu0 %v1319
    %v1434 = vpop.f32.mrb[0].mxu0
    %v1435 = vadd.f32 %v1313, %v1434
    %v1436 = vpop.f32.mrb[0].mxu0
    %1437 = vmatprep.mubr.f32.mxu0 0.0
    %1438 = vmatmul.mubr.f32.gmra.mrb[0].mxu0 %v1322
    %v1439 = vpop.f32.mrb[0].mxu0
    %v1440 = vadd.f32 %v1313, %v1439
    %v1441 = vpop.f32.mrb[0].mxu0
    %1442 = vmatprep.mubr.f32.mxu0 0.0
    %1443 = vmatmul.mubr.f32.gmra.mrb[0].mxu0 %v1325
    %v1444 = vpop.f32.mrb[0].mxu0
    %v1445 = vadd.f32 %v1313, %v1444
    %v1446 = vpop.f32.mrb[0].mxu0
    %1447 = vmatprep.mubr.f32.mxu0 0.0
    %1448 = vmatmul.mubr.f32.gmra.mrb[0].mxu0 %v1328
    %v1449 = vpop.f32.mrb[0].mxu0
    %v1450 = vadd.f32 %v1313, %v1449
    %v1451 = vpop.f32.mrb[0].mxu0
    %1452 = vmatprep.mubr.f32.mxu0 0.0
    %1453 = vmatmul.mubr.f32.gmra.mrb[0].mxu0 %v1331
    %v1454 = vpop.f32.mrb[0].mxu0
    %v1455 = vadd.f32 %v1313, %v1454
    %v1456 = vpop.f32.mrb[0].mxu0
    %1457 = vmatprep.mubr.f32.mxu0 0.0
    %1458 = vmatmul.mubr.f32.gmra.mrb[0].mxu0 %v1334
    %v1459 = vpop.f32.mrb[0].mxu0
    %v1460 = vadd.f32 %v1313, %v1459
    %v1461 = vpop.f32.mrb[0].mxu0
    %1462 = vmatprep.mubr.f32.mxu0 0.0
    %1463 = vmatmul.mubr.f32.gmra.mrb[0].mxu0 %v1337
    %v1464 = vpop.f32.mrb[0].mxu0
    %v1465 = vadd.f32 %v1313, %v1464
    %v1466 = vpop.f32.mrb[0].mxu0
    %1467 = vmatprep.mubr.f32.mxu0 0.0
    %1468 = vmatmul.mubr.f32.gmra.mrb[0].mxu0 %v1340
    %v1469 = vpop.f32.mrb[0].mxu0
    %v1470 = vadd.f32 %v1313, %v1469
    %v1471 = vpop.f32.mrb[0].mxu0
    %1472 = vmatprep.mubr.f32.mxu0 0.0
    %1473 = vmatmul.mubr.f32.gmra.mrb[0].mxu0 %v1343
    %v1474 = vpop.f32.mrb[0].mxu0
    %v1475 = vadd.f32 %v1313, %v1474
    %v1476 = vpop.f32.mrb[0].mxu0
    %1477 = vmatprep.mubr.f32.mxu0 0.0
    %1478 = vmatmul.mubr.f32.gmra.mrb[0].mxu0 %v1346
    %v1479 = vpop.f32.mrb[0].mxu0
    %v1480 = vadd.f32 %v1313, %v1479
    %v1481 = vpop.f32.mrb[0].mxu0
    %1482 = vmatprep.mubr.f32.mxu0 0.0
    %1483 = vmatmul.mubr.f32.gmra.mrb[0].mxu0 %v1349
    %v1484 = vpop.f32.mrb[0].mxu0
    %v1485 = vadd.f32 %v1313, %v1484
    %v1486 = vpop.f32.mrb[0].mxu0
    %1487 = vmatprep.mubr.f32.mxu0 0.0
    %1488 = vmatmul.mubr.f32.gmra.mrb[0].mxu0 %v1352
    %v1489 = vpop.f32.mrb[0].mxu0
    %v1490 = vadd.f32 %v1313, %v1489
    %v1491 = vpop.f32.mrb[0].mxu0
    %1492 = vmatprep.mubr.f32.mxu0 0.0
    %1493 = vmatmul.mubr.f32.gmra.mrb[0].mxu0 %v1355
    %v1494 = vpop.f32.mrb[0].mxu0
    %v1495 = vadd.f32 %v1313, %v1494
    %v1496 = vpop.f32.mrb[0].mxu0
    %1497 = vmatprep.mubr.f32.mxu0 0.0
    %1498 = vmatmul.mubr.f32.gmra.mrb[0].mxu0 %v1358
    %v1499 = vpop.f32.mrb[0].mxu0
    %v1500 = vadd.f32 %v1313, %v1499
    %v1501 = vpop.f32.mrb[0].mxu0
    %1502 = vmatprep.mubr.f32.mxu0 0.0
    %1503 = vmatmul.mubr.f32.gmra.mrb[0].mxu0 %v1361
    %v1504 = vpop.f32.mrb[0].mxu0
    %v1505 = vadd.f32 %v1313, %v1504
    %v1506 = vpop.f32.mrb[0].mxu0
    %1507 = vdwg.mxu0
    %v1508 = vrsqrt.pop %v1430
    %v1509 = vmul.f32 %v1430, %v1508
    %vm1510 = vcmp.eq.f32.partialorder %v1430, inf
    %v1511 = vsel %vm1510, %v1430, %v1509
    %vm1512 = vcmp.eq.f32.partialorder %v1430, 0.0
    %v1513 = vand.u32 %v1430, 2147483648
    %v1514 = vsel %vm1512, %v1513, %v1511
    %v1515 = vrsqrt.pop %v1435
    %v1516 = vmul.f32 %v1435, %v1515
    %vm1517 = vcmp.eq.f32.partialorder %v1435, inf
    %v1518 = vsel %vm1517, %v1435, %v1516
    %vm1519 = vcmp.eq.f32.partialorder %v1435, 0.0
    %v1520 = vand.u32 %v1435, 2147483648
    %v1521 = vsel %vm1519, %v1520, %v1518
    %v1522 = vrsqrt.pop %v1440
    %v1523 = vmul.f32 %v1440, %v1522
    %vm1524 = vcmp.eq.f32.partialorder %v1440, inf
    %v1525 = vsel %vm1524, %v1440, %v1523
    %vm1526 = vcmp.eq.f32.partialorder %v1440, 0.0
    %v1527 = vand.u32 %v1440, 2147483648
    %v1528 = vsel %vm1526, %v1527, %v1525
    %v1529 = vrsqrt.pop %v1445
    %v1530 = vmul.f32 %v1445, %v1529
    %vm1531 = vcmp.eq.f32.partialorder %v1445, inf
    %v1532 = vsel %vm1531, %v1445, %v1530
    %vm1533 = vcmp.eq.f32.partialorder %v1445, 0.0
    %v1534 = vand.u32 %v1445, 2147483648
    %v1535 = vsel %vm1533, %v1534, %v1532
    %v1536 = vrsqrt.pop %v1450
    %v1537 = vmul.f32 %v1450, %v1536
    %vm1538 = vcmp.eq.f32.partialorder %v1450, inf
    %v1539 = vsel %vm1538, %v1450, %v1537
    %vm1540 = vcmp.eq.f32.partialorder %v1450, 0.0
    %v1541 = vand.u32 %v1450, 2147483648
    %v1542 = vsel %vm1540, %v1541, %v1539
    %v1543 = vrsqrt.pop %v1455
    %v1544 = vmul.f32 %v1455, %v1543
    %vm1545 = vcmp.eq.f32.partialorder %v1455, inf
    %v1546 = vsel %vm1545, %v1455, %v1544
    %vm1547 = vcmp.eq.f32.partialorder %v1455, 0.0
    %v1548 = vand.u32 %v1455, 2147483648
    %v1549 = vsel %vm1547, %v1548, %v1546
    %v1550 = vrsqrt.pop %v1460
    %v1551 = vmul.f32 %v1460, %v1550
    %vm1552 = vcmp.eq.f32.partialorder %v1460, inf
    %v1553 = vsel %vm1552, %v1460, %v1551
    %vm1554 = vcmp.eq.f32.partialorder %v1460, 0.0
    %v1555 = vand.u32 %v1460, 2147483648
    %v1556 = vsel %vm1554, %v1555, %v1553
    %v1557 = vrsqrt.pop %v1465
    %v1558 = vmul.f32 %v1465, %v1557
    %vm1559 = vcmp.eq.f32.partialorder %v1465, inf
    %v1560 = vsel %vm1559, %v1465, %v1558
    %vm1561 = vcmp.eq.f32.partialorder %v1465, 0.0
    %v1562 = vand.u32 %v1465, 2147483648
    %v1563 = vsel %vm1561, %v1562, %v1560
    %v1564 = vrsqrt.pop %v1470
    %v1565 = vmul.f32 %v1470, %v1564
    %vm1566 = vcmp.eq.f32.partialorder %v1470, inf
    %v1567 = vsel %vm1566, %v1470, %v1565
    %vm1568 = vcmp.eq.f32.partialorder %v1470, 0.0
    %v1569 = vand.u32 %v1470, 2147483648
    %v1570 = vsel %vm1568, %v1569, %v1567
    %v1571 = vrsqrt.pop %v1475
    %v1572 = vmul.f32 %v1475, %v1571
    %vm1573 = vcmp.eq.f32.partialorder %v1475, inf
    %v1574 = vsel %vm1573, %v1475, %v1572
    %vm1575 = vcmp.eq.f32.partialorder %v1475, 0.0
    %v1576 = vand.u32 %v1475, 2147483648
    %v1577 = vsel %vm1575, %v1576, %v1574
    %v1578 = vrsqrt.pop %v1480
    %v1579 = vmul.f32 %v1480, %v1578
    %vm1580 = vcmp.eq.f32.partialorder %v1480, inf
    %v1581 = vsel %vm1580, %v1480, %v1579
    %vm1582 = vcmp.eq.f32.partialorder %v1480, 0.0
    %v1583 = vand.u32 %v1480, 2147483648
    %v1584 = vsel %vm1582, %v1583, %v1581
    %v1585 = vrsqrt.pop %v1485
    %v1586 = vmul.f32 %v1485, %v1585
    %vm1587 = vcmp.eq.f32.partialorder %v1485, inf
    %v1588 = vsel %vm1587, %v1485, %v1586
    %vm1589 = vcmp.eq.f32.partialorder %v1485, 0.0
    %v1590 = vand.u32 %v1485, 2147483648
    %v1591 = vsel %vm1589, %v1590, %v1588
    %v1592 = vrsqrt.pop %v1490
    %v1593 = vmul.f32 %v1490, %v1592
    %vm1594 = vcmp.eq.f32.partialorder %v1490, inf
    %v1595 = vsel %vm1594, %v1490, %v1593
    %vm1596 = vcmp.eq.f32.partialorder %v1490, 0.0
    %v1597 = vand.u32 %v1490, 2147483648
    %v1598 = vsel %vm1596, %v1597, %v1595
    %v1599 = vrsqrt.pop %v1495
    %v1600 = vmul.f32 %v1495, %v1599
    %vm1601 = vcmp.eq.f32.partialorder %v1495, inf
    %v1602 = vsel %vm1601, %v1495, %v1600
    %vm1603 = vcmp.eq.f32.partialorder %v1495, 0.0
    %v1604 = vand.u32 %v1495, 2147483648
    %v1605 = vsel %vm1603, %v1604, %v1602
    %v1606 = vrsqrt.pop %v1500
    %v1607 = vmul.f32 %v1500, %v1606
    %vm1608 = vcmp.eq.f32.partialorder %v1500, inf
    %v1609 = vsel %vm1608, %v1500, %v1607
    %vm1610 = vcmp.eq.f32.partialorder %v1500, 0.0
    %v1611 = vand.u32 %v1500, 2147483648
    %v1612 = vsel %vm1610, %v1611, %v1609
    %v1613 = vrsqrt.pop %v1505
    %v1614 = vmul.f32 %v1505, %v1613
    %vm1615 = vcmp.eq.f32.partialorder %v1505, inf
    %v1616 = vsel %vm1615, %v1505, %v1614
    %vm1617 = vcmp.eq.f32.partialorder %v1505, 0.0
    %v1618 = vand.u32 %v1505, 2147483648
    %v1619 = vsel %vm1617, %v1618, %v1616
    %v1620 = vmul.f32 %v1274, %v1514
    %v1621 = vmul.f32 %v1275, %v1521
    %v1622 = vmul.f32 %v1276, %v1528
    %v1623 = vmul.f32 %v1277, %v1535
    %v1624 = vmul.f32 %v1278, %v1542
    %v1625 = vmul.f32 %v1279, %v1549
    %v1626 = vmul.f32 %v1280, %v1556
    %v1627 = vmul.f32 %v1281, %v1563
    %v1628 = vmul.f32 %v1282, %v1570
    %v1629 = vmul.f32 %v1283, %v1577
    %v1630 = vmul.f32 %v1284, %v1584
    %v1631 = vmul.f32 %v1285, %v1591
    %v1632 = vmul.f32 %v1286, %v1598
    %v1633 = vmul.f32 %v1287, %v1605
    %v1634 = vmul.f32 %v1288, %v1612
    %v1635 = vmul.f32 %v1289, %v1619
    %v1636 = vpack.c.bf16 %v1621, %v1620
    %v1637 = vpack.c.bf16 %v1623, %v1622
    %v1638 = vpack.c.bf16 %v1625, %v1624
    %v1639 = vpack.c.bf16 %v1627, %v1626
    %v1640 = vpack.c.bf16 %v1629, %v1628
    %v1641 = vpack.c.bf16 %v1631, %v1630
    %v1642 = vpack.c.bf16 %v1633, %v1632
    %v1643 = vpack.c.bf16 %v1635, %v1634
    %v1652 = vunpack.c.l.b16 %v1636
    %v1653 = vunpack.c.h.b16 %v1636
    %v1654 = vunpack.c.l.b16 %v1637
    %v1655 = vunpack.c.h.b16 %v1637
    %v1656 = vunpack.c.l.b16 %v1638
    %v1657 = vunpack.c.h.b16 %v1638
    %v1658 = vunpack.c.l.b16 %v1639
    %v1659 = vunpack.c.h.b16 %v1639
    %v1660 = vunpack.c.l.b16 %v1640
    %v1661 = vunpack.c.h.b16 %v1640
    %v1662 = vunpack.c.l.b16 %v1641
    %v1663 = vunpack.c.h.b16 %v1641
    %v1664 = vunpack.c.l.b16 %v1642
    %v1665 = vunpack.c.h.b16 %v1642
    %v1666 = vunpack.c.l.b16 %v1643
    %v1667 = vunpack.c.h.b16 %v1643
    %v1668 = vpack.c.b16 %v1652, %v1652
    %v1669 = vpack.c.b16 %v1653, %v1653
    %v1670 = vpack.c.b16 %v1654, %v1654
    %v1671 = vpack.c.b16 %v1655, %v1655
    %v1672 = vpack.c.b16 %v1656, %v1656
    %v1673 = vpack.c.b16 %v1657, %v1657
    %v1674 = vpack.c.b16 %v1658, %v1658
    %v1675 = vpack.c.b16 %v1659, %v1659
    %v1676 = vpack.c.b16 %v1660, %v1660
    %v1677 = vpack.c.b16 %v1661, %v1661
    %v1678 = vpack.c.b16 %v1662, %v1662
    %v1679 = vpack.c.b16 %v1663, %v1663
    %v1680 = vpack.c.b16 %v1664, %v1664
    %v1681 = vpack.c.b16 %v1665, %v1665
    %v1682 = vpack.c.b16 %v1666, %v1666
    %v1683 = vpack.c.b16 %v1667, %v1667
    %vm1700 = vcmask 125952
    %1701 = vst.msk [vmem:[%s5] sm:$0xf] %vm1700, %v1668
    %1702 = vst.msk [vmem:[%s5 + $0x4] sm:$0xf] %vm1700, %v1669
    %1703 = vst.msk [vmem:[%s5 + $0x8] sm:$0xf] %vm1700, %v1670
    %1704 = vst.msk [vmem:[%s5 + $0xc] sm:$0xf] %vm1700, %v1671
    %1705 = vst.msk [vmem:[%s5 + $0x10] sm:$0xf] %vm1700, %v1672
    %1706 = vst.msk [vmem:[%s5 + $0x14] sm:$0xf] %vm1700, %v1673
    %1707 = vst.msk [vmem:[%s5 + $0x18] sm:$0xf] %vm1700, %v1674
    %1708 = vst.msk [vmem:[%s5 + $0x1c] sm:$0xf] %vm1700, %v1675
    %1709 = vst.msk [vmem:[%s5 + $0x20] sm:$0xf] %vm1700, %v1676
    %1710 = vst.msk [vmem:[%s5 + $0x24] sm:$0xf] %vm1700, %v1677
    %1711 = vst.msk [vmem:[%s5 + $0x28] sm:$0xf] %vm1700, %v1678
    %1712 = vst.msk [vmem:[%s5 + $0x2c] sm:$0xf] %vm1700, %v1679
    %1713 = vst.msk [vmem:[%s5 + $0x30] sm:$0xf] %vm1700, %v1680
    %1714 = vst.msk [vmem:[%s5 + $0x34] sm:$0xf] %vm1700, %v1681
    %1715 = vst.msk [vmem:[%s5 + $0x38] sm:$0xf] %vm1700, %v1682
    %1716 = vst.msk [vmem:[%s5 + $0x3c] sm:$0xf] %vm1700, %v1683
  $region29: #{forward.10} parent=0 // pred_fallthru
    _
  // Predicated region
  $region30: #{forward.10} parent=0 // pred_check
    _
  $region31: #{forward.10} parent=0 // pred_check_branch
    %1718 = sbr.rel (0) target = $region33
  $region32: #{forward.10} parent=0 // pred_region
    _
  $region33: #{forward.10} parent=0 // pred_fallthru
    _
  // Predicated region
  $region34: #{forward.10} parent=0 // pred_check
    _
  $region35: #{forward.10} parent=0 // pred_check_branch
    %1720 = sbr.rel (0) target = $region37
  $region36: #{forward.10} parent=0 // pred_region
    _
  $region37: #{forward.10} parent=0 // pred_fallthru
    _

// kernel: forward.11
$region0: #{forward.11}
  #allocation0 [shape = 'u32[]', space=smem, size = 0x4, offset = 0x4, fixed_abs, tag = 'smem constant byte address 0x4 - core index']
  #allocation1 [shape = 'u32[144,128]{1,0:T(1,128)}', space=vmem, size = 0x12000, scoped, tag = 'internal scratch']
  #allocation2 [shape = 'f32[256,8]{1,0:T(8,128)}', space=vmem, size = 0x20000, scoped, tag = 'scratch operand']
  %s0 = inlined_call_operand.vmem [shape: bf16[512,400], index: 0, kind: input, shape index: {}]
  %s1 = inlined_call_operand.vmem [shape: bf16[400,8], index: 1, kind: input, shape index: {}]
  %s2 = inlined_call_operand.vmem [shape: f32[1,8], index: 2, kind: input, shape index: {}]
  %s3 = inlined_call_operand.vmem [shape: f32[512,8], index: 3, kind: output, shape index: {}]
  %s4 = sld [smem:[#allocation0]]
  $region53: #{forward.11} parent=0
    _
  %s6 = ssub.s32 1, %s4
  %s7 = scalar_select 0, %s6, %s4
  loop: start=0, step=1, limit=4
  $region2: #{forward.11} parent=0 // loop_pre_header
    _
  $region3: #{forward.11} parent=0 // loop_header
    %s9 = sphi 0, %s13
    %p10 = scmp.ge.s32.totalorder %s9, 4
    %s16 = sphi 0, %s28
    %s17 = sphi 0, %s24
    %s18 = sphi 0, %s16
    %s19 = sphi 0, %s17
    %s20 = sphi 0, %s18
    %s21 = sphi 0, %s19
    %s33 = sphi 0, %s35
    %s36 = sphi 0, %s33
    %s37 = sphi 0, %s36
    %s53 = sphi 0, %s37
    %s59 = sphi 0, %s61
    %s62 = sphi 0, %s59
    %s63 = sphi 0, %s62
    %s79 = sphi 0, %s63
    %s83 = sphi 0, %s83
    %s85 = sphi 0, %s83
    %s86 = sphi 0, %s85
    %s100 = sphi 0, %s86
    %s106 = sphi 0, %s108
    %s109 = sphi 0, %s106
    %s110 = sphi 0, %s109
    %s126 = sphi 0, %s110
  $region4: #{forward.11} parent=0 // loop_header_branch
    %12 = sbr.rel (%p10) target = $region8
  $region5: #{forward.11} parent=0 // loop_body
    %s14 = ssub.s32 %s9, 1
    %s15 = ssub.s32 %s9, 2
    %s22 = sadd.s32 1, %s17
    %p23 = scmp.ge.s32.totalorder %s22, 1
    %s24 = scalar_select %p23, 0, %s22
    %s25 = sadd.s32 1, %s16
    %s26 = scalar_select %p23, %s25, %s16
    %p27 = scmp.ge.s32.totalorder %s26, 2
    %s28 = scalar_select %p27, 0, %s26
    %s29 = ssub.s32 %s16, %s28
    %s30 = ssub.s32 %s17, %s24
    %s31 = sor.u32 %s29, %s30
    %p32 = scmp.eq.s32.totalorder %s31, 0
    %s34 = sadd.s32 %s33, 1
    %s35 = scalar_select %p32, %s33, %s34
    %p38 = pneg %p32
    %p39 = scmp.eq.s32.totalorder %s9, 1
    %p40 = por %p38, %p39
    %p41 = scmp.ne.s32.totalorder %s33, %s36
    %p42 = scmp.eq.s32.totalorder %s9, 0
    %p43 = por %p41, %p42
    %p44 = scmp.ne.s32.totalorder %s33, %s36
    %p45 = scmp.eq.s32.totalorder %s14, 1
    %p46 = por %p44, %p45
    %p47 = scmp.ne.s32.totalorder %s36, %s37
    %p48 = scmp.eq.s32.totalorder %s14, 0
    %p49 = por %p47, %p48
    %p50 = scmp.ne.s32.totalorder %s36, %s37
    %p51 = scmp.eq.s32.totalorder %s15, 1
    %p52 = por %p50, %p51
    %p54 = scmp.ne.s32.totalorder %s37, %s53
    %p55 = scmp.eq.s32.totalorder %s15, 0
    %p56 = por %p54, %p55
    %s57 = ssub.s32 %s17, %s24
    %p58 = scmp.eq.s32.totalorder %s57, 0
    %s60 = sadd.s32 %s59, 1
    %s61 = scalar_select %p58, %s59, %s60
    %p64 = pneg %p58
    %p65 = scmp.eq.s32.totalorder %s9, 1
    %p66 = por %p64, %p65
    %p67 = scmp.ne.s32.totalorder %s59, %s62
    %p68 = scmp.eq.s32.totalorder %s9, 0
    %p69 = por %p67, %p68
    %p70 = scmp.ne.s32.totalorder %s59, %s62
    %p71 = scmp.eq.s32.totalorder %s14, 1
    %p72 = por %p70, %p71
    %p73 = scmp.ne.s32.totalorder %s62, %s63
    %p74 = scmp.eq.s32.totalorder %s14, 0
    %p75 = por %p73, %p74
    %p76 = scmp.ne.s32.totalorder %s62, %s63
    %p77 = scmp.eq.s32.totalorder %s15, 1
    %p78 = por %p76, %p77
    %p80 = scmp.ne.s32.totalorder %s63, %s79
    %p81 = scmp.eq.s32.totalorder %s15, 0
    %p82 = por %p80, %p81
    %s84 = sadd.s32 %s83, 1
    %p87 = scmp.eq.s32.totalorder %s9, 1
    %p88 = scmp.ne.s32.totalorder %s83, %s85
    %p89 = scmp.eq.s32.totalorder %s9, 0
    %p90 = por %p88, %p89
    %p91 = scmp.ne.s32.totalorder %s83, %s85
    %p92 = scmp.eq.s32.totalorder %s14, 1
    %p93 = por %p91, %p92
    %p94 = scmp.ne.s32.totalorder %s85, %s86
    %p95 = scmp.eq.s32.totalorder %s14, 0
    %p96 = por %p94, %p95
    %p97 = scmp.ne.s32.totalorder %s85, %s86
    %p98 = scmp.eq.s32.totalorder %s15, 1
    %p99 = por %p97, %p98
    %p101 = scmp.ne.s32.totalorder %s86, %s100
    %p102 = scmp.eq.s32.totalorder %s15, 0
    %p103 = por %p101, %p102
    %s104 = ssub.s32 %s16, %s28
    %p105 = scmp.eq.s32.totalorder %s104, 0
    %s107 = sadd.s32 %s106, 1
    %s108 = scalar_select %p105, %s106, %s107
    %p111 = pneg %p105
    %p112 = scmp.eq.s32.totalorder %s9, 1
    %p113 = por %p111, %p112
    %p114 = scmp.ne.s32.totalorder %s106, %s109
    %p115 = scmp.eq.s32.totalorder %s9, 0
    %p116 = por %p114, %p115
    %p117 = scmp.ne.s32.totalorder %s106, %s109
    %p118 = scmp.eq.s32.totalorder %s14, 1
    %p119 = por %p117, %p118
    %p120 = scmp.ne.s32.totalorder %s109, %s110
    %p121 = scmp.eq.s32.totalorder %s14, 0
    %p122 = por %p120, %p121
    %p123 = scmp.ne.s32.totalorder %s109, %s110
    %p124 = scmp.eq.s32.totalorder %s15, 1
    %p125 = por %p123, %p124
    %p127 = scmp.ne.s32.totalorder %s110, %s126
    %p128 = scmp.eq.s32.totalorder %s15, 0
    %p129 = por %p127, %p128
    %p130 = scmp.le.s32.totalorder 1, %s9
    %p131 = scmp.lt.s32.totalorder %s9, 3
    %p132 = pnand %p130, %p131
    %p133 = pneg %p132
    // Predicated region
    $region9: #{forward.11} parent=5 // pred_check
      _
    $region10: #{forward.11} parent=5 // pred_check_branch
      %135 = sbr.rel (%p132) target = $region12
    $region11: #{forward.11} parent=5 // pred_region
      %s136 = ssub.s32 %s9, 1
      // Predicated region
      $region13: #{forward.11} parent=11 // pred_check
        %p137 = pneg %p75
      $region14: #{forward.11} parent=11 // pred_check_branch
        %139 = sbr.rel (%p137) target = $region16
      $region15: #{forward.11} parent=11 // pred_region
        %s140 = smul.u32 50, %s19
        %p141 = scmp.lt.s32.totalorder %s140, 49
        %s142 = scalar_select %p141, %s140, 49
        %s143 = smul.addr %s142, 4
        %s144 = scalar_lea.vmem %s1, %s143
        %s145 = smul.u32 50, %s19
      $region16: #{forward.11} parent=11 // pred_fallthru
        _
      // Predicated region
      $region17: #{forward.11} parent=11 // pred_check
        %p146 = pneg %p96
      $region18: #{forward.11} parent=11 // pred_check_branch
        %148 = sbr.rel (%p146) target = $region20
      $region19: #{forward.11} parent=11 // pred_region
        _
      $region20: #{forward.11} parent=11 // pred_fallthru
        _
    $region12: #{forward.11} parent=5 // pred_fallthru
      _
    %p149 = scmp.lt.s32.totalorder %s9, 2
    // Predicated region
    $region21: #{forward.11} parent=5 // pred_check
      %p150 = pneg %p149
    $region22: #{forward.11} parent=5 // pred_check_branch
      %152 = sbr.rel (%p150) target = $region24
    $region23: #{forward.11} parent=5 // pred_region
      // Predicated region
      $region25: #{forward.11} parent=23 // pred_check
        %p153 = pneg %p43
      $region26: #{forward.11} parent=23 // pred_check_branch
        %155 = sbr.rel (%p153) target = $region28
      $region27: #{forward.11} parent=23 // pred_region
        %s156 = smul.u32 32, %s16
        %s157 = smul.u32 4, %s17
        %p158 = scmp.lt.s32.totalorder %s156, 63
        %s159 = scalar_select %p158, %s156, 63
        %p160 = scmp.lt.s32.totalorder %s157, 3
        %s161 = scalar_select %p160, %s157, 3
        %s162 = smul.addr %s159, 4
        %s163 = sadd.s32 %s161, %s162
        %s164 = smul.addr %s163, 4
        %s165 = scalar_lea.vmem %s0, %s164
        %s166 = smul.u32 32, %s16
        %s167 = smul.u32 4, %s17
      $region28: #{forward.11} parent=23 // pred_fallthru
        _
    $region24: #{forward.11} parent=5 // pred_fallthru
      _
    %p168 = scmp.le.s32.totalorder 1, %s9
    %p169 = scmp.lt.s32.totalorder %s9, 3
    %p170 = pnand %p168, %p169
    %p171 = pneg %p170
    // Predicated region
    $region29: #{forward.11} parent=5 // pred_check
      _
    $region30: #{forward.11} parent=5 // pred_check_branch
      %173 = sbr.rel (%p170) target = $region32
    $region31: #{forward.11} parent=5 // pred_region
      %s174 = ssub.s32 %s9, 1
      %s175 = smul.u32 32, %s18
      %s176 = smul.u32 4, %s19
      %p177 = scmp.lt.s32.totalorder %s175, 63
      %s178 = scalar_select %p177, %s175, 63
      %p179 = scmp.lt.s32.totalorder %s176, 3
      %s180 = scalar_select %p179, %s176, 3
      %s181 = smul.addr %s178, 4
      %s182 = sadd.s32 %s180, %s181
      %s183 = smul.addr %s182, 4
      %s184 = scalar_lea.vmem %s0, %s183
      %p185 = pneg %p49
      %p186 = pneg %p46
      %s187 = smul.u32 50, %s19
      %p188 = scmp.lt.s32.totalorder %s187, 49
      %s189 = scalar_select %p188, %s187, 49
      %s190 = smul.addr %s189, 4
      %s191 = scalar_lea.vmem %s1, %s190
      %p192 = pneg %p75
      %p193 = pneg %p72
      %p194 = pneg %p96
      %p195 = pneg %p93
      %p196 = pneg %p122
      %p197 = pneg %p119
      %s198 = smul.u32 32, %s18
      %p199 = scmp.lt.s32.totalorder %s198, 63
      %s200 = scalar_select %p199, %s198, 63
      %s201 = smul.addr %s200, 8
      %s202 = scalar_lea.vmem %s3, %s201
      %s203 = smul.u32 32, %s18
      %s204 = smul.u32 4, %s19
      %p205 = scmp.lt.s32.totalorder %s203, 63
      %s206 = scalar_select %p205, %s203, 63
      %p207 = scmp.lt.s32.totalorder %s204, 3
      %s208 = scalar_select %p207, %s204, 3
      %s209 = smul.addr %s206, 4
      %s210 = sadd.s32 %s208, %s209
      %s211 = smul.addr %s210, 4
      %s212 = scalar_lea.vmem %s0, %s211
      %s213 = smul.u32 32, %s18
      %s214 = smul.u32 4, %s19
      %s215 = smul.u32 50, %s19
      %p216 = scmp.lt.s32.totalorder %s215, 49
      %s217 = scalar_select %p216, %s215, 49
      %s218 = smul.addr %s217, 4
      %s219 = scalar_lea.vmem %s1, %s218
      %s220 = smul.u32 50, %s19
      %s221 = smul.u32 32, %s18
      %p222 = scmp.lt.s32.totalorder %s221, 63
      %s223 = scalar_select %p222, %s221, 63
      %s224 = smul.addr %s223, 8
      %s225 = scalar_lea.vmem %s3, %s224
      %s226 = smul.u32 32, %s18
      %p228 = scmp.eq.s32.totalorder %s19, 0
      // Predicated region
      $region33: #{forward.11} parent=31 // pred_check
        %p229 = pneg %p228
      $region34: #{forward.11} parent=31 // pred_check_branch
        %231 = sbr.rel (%p229) target = $region36
      $region35: #{forward.11} parent=31 // pred_region
        %vm232 = vcmask 64512
        %233 = vst.msk [vmem:[#allocation2] sm:$0xff] %vm232, 0.0
        %234 = vst.msk [vmem:[#allocation2 + $0x8] sm:$0xff] %vm232, 0.0
        %235 = vst.msk [vmem:[#allocation2 + $0x10] sm:$0xff] %vm232, 0.0
        %236 = vst.msk [vmem:[#allocation2 + $0x18] sm:$0xff] %vm232, 0.0
        %237 = vst.msk [vmem:[#allocation2 + $0x20] sm:$0xff] %vm232, 0.0
        %238 = vst.msk [vmem:[#allocation2 + $0x28] sm:$0xff] %vm232, 0.0
        %239 = vst.msk [vmem:[#allocation2 + $0x30] sm:$0xff] %vm232, 0.0
        %240 = vst.msk [vmem:[#allocation2 + $0x38] sm:$0xff] %vm232, 0.0
        %241 = vst.msk [vmem:[#allocation2 + $0x40] sm:$0xff] %vm232, 0.0
        %242 = vst.msk [vmem:[#allocation2 + $0x48] sm:$0xff] %vm232, 0.0
        %243 = vst.msk [vmem:[#allocation2 + $0x50] sm:$0xff] %vm232, 0.0
        %244 = vst.msk [vmem:[#allocation2 + $0x58] sm:$0xff] %vm232, 0.0
        %245 = vst.msk [vmem:[#allocation2 + $0x60] sm:$0xff] %vm232, 0.0
        %246 = vst.msk [vmem:[#allocation2 + $0x68] sm:$0xff] %vm232, 0.0
        %247 = vst.msk [vmem:[#allocation2 + $0x70] sm:$0xff] %vm232, 0.0
        %248 = vst.msk [vmem:[#allocation2 + $0x78] sm:$0xff] %vm232, 0.0
        %249 = vst.msk [vmem:[#allocation2 + $0x80] sm:$0xff] %vm232, 0.0
        %250 = vst.msk [vmem:[#allocation2 + $0x88] sm:$0xff] %vm232, 0.0
        %251 = vst.msk [vmem:[#allocation2 + $0x90] sm:$0xff] %vm232, 0.0
        %252 = vst.msk [vmem:[#allocation2 + $0x98] sm:$0xff] %vm232, 0.0
        %253 = vst.msk [vmem:[#allocation2 + $0xa0] sm:$0xff] %vm232, 0.0
        %254 = vst.msk [vmem:[#allocation2 + $0xa8] sm:$0xff] %vm232, 0.0
        %255 = vst.msk [vmem:[#allocation2 + $0xb0] sm:$0xff] %vm232, 0.0
        %256 = vst.msk [vmem:[#allocation2 + $0xb8] sm:$0xff] %vm232, 0.0
        %257 = vst.msk [vmem:[#allocation2 + $0xc0] sm:$0xff] %vm232, 0.0
        %258 = vst.msk [vmem:[#allocation2 + $0xc8] sm:$0xff] %vm232, 0.0
        %259 = vst.msk [vmem:[#allocation2 + $0xd0] sm:$0xff] %vm232, 0.0
        %260 = vst.msk [vmem:[#allocation2 + $0xd8] sm:$0xff] %vm232, 0.0
        %261 = vst.msk [vmem:[#allocation2 + $0xe0] sm:$0xff] %vm232, 0.0
        %262 = vst.msk [vmem:[#allocation2 + $0xe8] sm:$0xff] %vm232, 0.0
        %263 = vst.msk [vmem:[#allocation2 + $0xf0] sm:$0xff] %vm232, 0.0
        %264 = vst.msk [vmem:[#allocation2 + $0xf8] sm:$0xff] %vm232, 0.0
      $region36: #{forward.11} parent=31 // pred_fallthru
        _
      %v265 = vld [vmem:[#allocation2] sm:$0xff]
      %v266 = vld [vmem:[#allocation2 + $0x8] sm:$0xff]
      %v267 = vld [vmem:[#allocation2 + $0x10] sm:$0xff]
      %v268 = vld [vmem:[#allocation2 + $0x18] sm:$0xff]
      %v269 = vld [vmem:[#allocation2 + $0x20] sm:$0xff]
      %v270 = vld [vmem:[#allocation2 + $0x28] sm:$0xff]
      %v271 = vld [vmem:[#allocation2 + $0x30] sm:$0xff]
      %v272 = vld [vmem:[#allocation2 + $0x38] sm:$0xff]
      %v273 = vld [vmem:[#allocation2 + $0x40] sm:$0xff]
      %v274 = vld [vmem:[#allocation2 + $0x48] sm:$0xff]
      %v275 = vld [vmem:[#allocation2 + $0x50] sm:$0xff]
      %v276 = vld [vmem:[#allocation2 + $0x58] sm:$0xff]
      %v277 = vld [vmem:[#allocation2 + $0x60] sm:$0xff]
      %v278 = vld [vmem:[#allocation2 + $0x68] sm:$0xff]
      %v279 = vld [vmem:[#allocation2 + $0x70] sm:$0xff]
      %v280 = vld [vmem:[#allocation2 + $0x78] sm:$0xff]
      %v281 = vld [vmem:[#allocation2 + $0x80] sm:$0xff]
      %v282 = vld [vmem:[#allocation2 + $0x88] sm:$0xff]
      %v283 = vld [vmem:[#allocation2 + $0x90] sm:$0xff]
      %v284 = vld [vmem:[#allocation2 + $0x98] sm:$0xff]
      %v285 = vld [vmem:[#allocation2 + $0xa0] sm:$0xff]
      %v286 = vld [vmem:[#allocation2 + $0xa8] sm:$0xff]
      %v287 = vld [vmem:[#allocation2 + $0xb0] sm:$0xff]
      %v288 = vld [vmem:[#allocation2 + $0xb8] sm:$0xff]
      %v289 = vld [vmem:[#allocation2 + $0xc0] sm:$0xff]
      %v290 = vld [vmem:[#allocation2 + $0xc8] sm:$0xff]
      %v291 = vld [vmem:[#allocation2 + $0xd0] sm:$0xff]
      %v292 = vld [vmem:[#allocation2 + $0xd8] sm:$0xff]
      %v293 = vld [vmem:[#allocation2 + $0xe0] sm:$0xff]
      %v294 = vld [vmem:[#allocation2 + $0xe8] sm:$0xff]
      %v295 = vld [vmem:[#allocation2 + $0xf0] sm:$0xff]
      %v296 = vld [vmem:[#allocation2 + $0xf8] sm:$0xff]
      %v297 = vld [vmem:[%s212] sm:$0xff]
      %v298 = vld [vmem:[%s212 + $0x8] sm:$0xff]
      %v299 = vld [vmem:[%s212 + $0x10] sm:$0xff]
      %v300 = vld [vmem:[%s212 + $0x18] sm:$0xff]
      %v301 = vld [vmem:[%s212 + $0x20] sm:$0xff]
      %v302 = vld [vmem:[%s212 + $0x28] sm:$0xff]
      %v303 = vld [vmem:[%s212 + $0x30] sm:$0xff]
      %v304 = vld [vmem:[%s212 + $0x38] sm:$0xff]
      %v305 = vld [vmem:[%s212 + $0x40] sm:$0xff]
      %v306 = vld [vmem:[%s212 + $0x48] sm:$0xff]
      %v307 = vld [vmem:[%s212 + $0x50] sm:$0xff]
      %v308 = vld [vmem:[%s212 + $0x58] sm:$0xff]
      %v309 = vld [vmem:[%s212 + $0x60] sm:$0xff]
      %v310 = vld [vmem:[%s212 + $0x68] sm:$0xff]
      %v311 = vld [vmem:[%s212 + $0x70] sm:$0xff]
      %v312 = vld [vmem:[%s212 + $0x78] sm:$0xff]
      %v313 = vld [vmem:[%s212 + $0x80] sm:$0xff]
      %v314 = vld [vmem:[%s212 + $0x88] sm:$0xff]
      %v315 = vld [vmem:[%s212 + $0x90] sm:$0xff]
      %v316 = vld [vmem:[%s212 + $0x98] sm:$0xff]
      %v317 = vld [vmem:[%s212 + $0xa0] sm:$0xff]
      %v318 = vld [vmem:[%s212 + $0xa8] sm:$0xff]
      %v319 = vld [vmem:[%s212 + $0xb0] sm:$0xff]
      %v320 = vld [vmem:[%s212 + $0xb8] sm:$0xff]
      %v321 = vld [vmem:[%s212 + $0xc0] sm:$0xff]
      %v322 = vld [vmem:[%s212 + $0xc8] sm:$0xff]
      %v323 = vld [vmem:[%s212 + $0xd0] sm:$0xff]
      %v324 = vld [vmem:[%s212 + $0xd8] sm:$0xff]
      %v325 = vld [vmem:[%s212 + $0xe0] sm:$0xff]
      %v326 = vld [vmem:[%s212 + $0xe8] sm:$0xff]
      %v327 = vld [vmem:[%s212 + $0xf0] sm:$0xff]
      %v328 = vld [vmem:[%s212 + $0xf8] sm:$0xff]
      %v329 = vld [vmem:[%s212 + $0x100] sm:$0xff]
      %v330 = vld [vmem:[%s212 + $0x108] sm:$0xff]
      %v331 = vld [vmem:[%s212 + $0x110] sm:$0xff]
      %v332 = vld [vmem:[%s212 + $0x118] sm:$0xff]
      %v333 = vld [vmem:[%s212 + $0x120] sm:$0xff]
      %v334 = vld [vmem:[%s212 + $0x128] sm:$0xff]
      %v335 = vld [vmem:[%s212 + $0x130] sm:$0xff]
      %v336 = vld [vmem:[%s212 + $0x138] sm:$0xff]
      %v337 = vld [vmem:[%s212 + $0x140] sm:$0xff]
      %v338 = vld [vmem:[%s212 + $0x148] sm:$0xff]
      %v339 = vld [vmem:[%s212 + $0x150] sm:$0xff]
      %v340 = vld [vmem:[%s212 + $0x158] sm:$0xff]
      %v341 = vld [vmem:[%s212 + $0x160] sm:$0xff]
      %v342 = vld [vmem:[%s212 + $0x168] sm:$0xff]
      %v343 = vld [vmem:[%s212 + $0x170] sm:$0xff]
      %v344 = vld [vmem:[%s212 + $0x178] sm:$0xff]
      %v345 = vld [vmem:[%s212 + $0x180] sm:$0xff]
      %v346 = vld [vmem:[%s212 + $0x188] sm:$0xff]
      %v347 = vld [vmem:[%s212 + $0x190] sm:$0xff]
      %v348 = vld [vmem:[%s212 + $0x198] sm:$0xff]
      %v349 = vld [vmem:[%s212 + $0x1a0] sm:$0xff]
      %v350 = vld [vmem:[%s212 + $0x1a8] sm:$0xff]
      %v351 = vld [vmem:[%s212 + $0x1b0] sm:$0xff]
      %v352 = vld [vmem:[%s212 + $0x1b8] sm:$0xff]
      %v353 = vld [vmem:[%s212 + $0x1c0] sm:$0xff]
      %v354 = vld [vmem:[%s212 + $0x1c8] sm:$0xff]
      %v355 = vld [vmem:[%s212 + $0x1d0] sm:$0xff]
      %v356 = vld [vmem:[%s212 + $0x1d8] sm:$0xff]
      %v357 = vld [vmem:[%s212 + $0x1e0] sm:$0xff]
      %v358 = vld [vmem:[%s212 + $0x1e8] sm:$0xff]
      %v359 = vld [vmem:[%s212 + $0x1f0] sm:$0xff]
      %v360 = vld [vmem:[%s212 + $0x1f8] sm:$0xff]
      %v361 = vld [vmem:[%s219] sm:$0xf]
      %v362 = vld [vmem:[%s219 + $0x4] sm:$0xf]
      %v363 = vld [vmem:[%s219 + $0x8] sm:$0xf]
      %v364 = vld [vmem:[%s219 + $0xc] sm:$0xf]
      %v365 = vld [vmem:[%s219 + $0x10] sm:$0xf]
      %v366 = vld [vmem:[%s219 + $0x14] sm:$0xf]
      %v367 = vld [vmem:[%s219 + $0x18] sm:$0xf]
      %v368 = vld [vmem:[%s219 + $0x1c] sm:$0xf]
      %v369 = vld [vmem:[%s219 + $0x20] sm:$0xf]
      %v370 = vld [vmem:[%s219 + $0x24] sm:$0xf]
      %v371 = vld [vmem:[%s219 + $0x28] sm:$0xf]
      %v372 = vld [vmem:[%s219 + $0x2c] sm:$0xf]
      %v373 = vld [vmem:[%s219 + $0x30] sm:$0xf]
      %v374 = vld [vmem:[%s219 + $0x34] sm:$0xf]
      %v375 = vld [vmem:[%s219 + $0x38] sm:$0xf]
      %v376 = vld [vmem:[%s219 + $0x3c] sm:$0xf]
      %v377 = vld [vmem:[%s219 + $0x40] sm:$0xf]
      %v378 = vld [vmem:[%s219 + $0x44] sm:$0xf]
      %v379 = vld [vmem:[%s219 + $0x48] sm:$0xf]
      %v380 = vld [vmem:[%s219 + $0x4c] sm:$0xf]
      %v381 = vld [vmem:[%s219 + $0x50] sm:$0xf]
      %v382 = vld [vmem:[%s219 + $0x54] sm:$0xf]
      %v383 = vld [vmem:[%s219 + $0x58] sm:$0xf]
      %v384 = vld [vmem:[%s219 + $0x5c] sm:$0xf]
      %v385 = vld [vmem:[%s219 + $0x60] sm:$0xf]
      %v386 = vld [vmem:[%s219 + $0x64] sm:$0xf]
      %v387 = vld [vmem:[%s219 + $0x68] sm:$0xf]
      %v388 = vld [vmem:[%s219 + $0x6c] sm:$0xf]
      %v389 = vld [vmem:[%s219 + $0x70] sm:$0xf]
      %v390 = vld [vmem:[%s219 + $0x74] sm:$0xf]
      %v391 = vld [vmem:[%s219 + $0x78] sm:$0xf]
      %v392 = vld [vmem:[%s219 + $0x7c] sm:$0xf]
      %v393 = vld [vmem:[%s219 + $0x80] sm:$0xf]
      %v394 = vld [vmem:[%s219 + $0x84] sm:$0xf]
      %v395 = vld [vmem:[%s219 + $0x88] sm:$0xf]
      %v396 = vld [vmem:[%s219 + $0x8c] sm:$0xf]
      %v397 = vld [vmem:[%s219 + $0x90] sm:$0xf]
      %v398 = vld [vmem:[%s219 + $0x94] sm:$0xf]
      %v399 = vld [vmem:[%s219 + $0x98] sm:$0xf]
      %v400 = vld [vmem:[%s219 + $0x9c] sm:$0xf]
      %v401 = vld [vmem:[%s219 + $0xa0] sm:$0xf]
      %v402 = vld [vmem:[%s219 + $0xa4] sm:$0xf]
      %v403 = vld [vmem:[%s219 + $0xa8] sm:$0xf]
      %v404 = vld [vmem:[%s219 + $0xac] sm:$0xf]
      %v405 = vld [vmem:[%s219 + $0xb0] sm:$0xf]
      %v406 = vld [vmem:[%s219 + $0xb4] sm:$0xf]
      %v407 = vld [vmem:[%s219 + $0xb8] sm:$0xf]
      %v408 = vld [vmem:[%s219 + $0xbc] sm:$0xf]
      %v409 = vld [vmem:[%s219 + $0xc0] sm:$0xf]
      %v410 = vld [vmem:[%s219 + $0xc4] sm:$0xf]
      %v475 = vunpack.c.l.b16 %v297
      %v476 = vunpack.c.h.b16 %v297
      %v477 = vunpack.c.l.b16 %v298
      %v478 = vunpack.c.h.b16 %v298
      %v479 = vunpack.c.l.b16 %v299
      %v480 = vunpack.c.h.b16 %v299
      %v481 = vunpack.c.l.b16 %v300
      %v482 = vunpack.c.h.b16 %v300
      %v483 = vunpack.c.l.b16 %v301
      %v484 = vunpack.c.h.b16 %v301
      %v485 = vunpack.c.l.b16 %v302
      %v486 = vunpack.c.h.b16 %v302
      %v487 = vunpack.c.l.b16 %v303
      %v488 = vunpack.c.h.b16 %v303
      %v489 = vunpack.c.l.b16 %v304
      %v490 = vunpack.c.h.b16 %v304
      %v491 = vunpack.c.l.b16 %v305
      %v492 = vunpack.c.h.b16 %v305
      %v493 = vunpack.c.l.b16 %v306
      %v494 = vunpack.c.h.b16 %v306
      %v495 = vunpack.c.l.b16 %v307
      %v496 = vunpack.c.h.b16 %v307
      %v497 = vunpack.c.l.b16 %v308
      %v498 = vunpack.c.h.b16 %v308
      %v499 = vunpack.c.l.b16 %v309
      %v500 = vunpack.c.h.b16 %v309
      %v501 = vunpack.c.l.b16 %v310
      %v502 = vunpack.c.h.b16 %v310
      %v503 = vunpack.c.l.b16 %v311
      %v504 = vunpack.c.h.b16 %v311
      %v505 = vunpack.c.l.b16 %v312
      %v506 = vunpack.c.h.b16 %v312
      %v507 = vunpack.c.l.b16 %v313
      %v508 = vunpack.c.h.b16 %v313
      %v509 = vunpack.c.l.b16 %v314
      %v510 = vunpack.c.h.b16 %v314
      %v511 = vunpack.c.l.b16 %v315
      %v512 = vunpack.c.h.b16 %v315
      %v513 = vunpack.c.l.b16 %v316
      %v514 = vunpack.c.h.b16 %v316
      %v515 = vunpack.c.l.b16 %v317
      %v516 = vunpack.c.h.b16 %v317
      %v517 = vunpack.c.l.b16 %v318
      %v518 = vunpack.c.h.b16 %v318
      %v519 = vunpack.c.l.b16 %v319
      %v520 = vunpack.c.h.b16 %v319
      %v521 = vunpack.c.l.b16 %v320
      %v522 = vunpack.c.h.b16 %v320
      %v523 = vunpack.c.l.b16 %v321
      %v524 = vunpack.c.h.b16 %v321
      %v525 = vunpack.c.l.b16 %v322
      %v526 = vunpack.c.h.b16 %v322
      %v527 = vunpack.c.l.b16 %v323
      %v528 = vunpack.c.h.b16 %v323
      %v529 = vunpack.c.l.b16 %v324
      %v530 = vunpack.c.h.b16 %v324
      %v531 = vunpack.c.l.b16 %v325
      %v532 = vunpack.c.h.b16 %v325
      %v533 = vunpack.c.l.b16 %v326
      %v534 = vunpack.c.h.b16 %v326
      %v535 = vunpack.c.l.b16 %v327
      %v536 = vunpack.c.h.b16 %v327
      %v537 = vunpack.c.l.b16 %v328
      %v538 = vunpack.c.h.b16 %v328
      %v539 = vunpack.c.l.b16 %v329
      %v540 = vunpack.c.h.b16 %v329
      %v541 = vunpack.c.l.b16 %v330
      %v542 = vunpack.c.h.b16 %v330
      %v543 = vunpack.c.l.b16 %v331
      %v544 = vunpack.c.h.b16 %v331
      %v545 = vunpack.c.l.b16 %v332
      %v546 = vunpack.c.h.b16 %v332
      %v547 = vunpack.c.l.b16 %v333
      %v548 = vunpack.c.h.b16 %v333
      %v549 = vunpack.c.l.b16 %v334
      %v550 = vunpack.c.h.b16 %v334
      %v551 = vunpack.c.l.b16 %v335
      %v552 = vunpack.c.h.b16 %v335
      %v553 = vunpack.c.l.b16 %v336
      %v554 = vunpack.c.h.b16 %v336
      %v555 = vunpack.c.l.b16 %v337
      %v556 = vunpack.c.h.b16 %v337
      %v557 = vunpack.c.l.b16 %v338
      %v558 = vunpack.c.h.b16 %v338
      %v559 = vunpack.c.l.b16 %v339
      %v560 = vunpack.c.h.b16 %v339
      %v561 = vunpack.c.l.b16 %v340
      %v562 = vunpack.c.h.b16 %v340
      %v563 = vunpack.c.l.b16 %v341
      %v564 = vunpack.c.h.b16 %v341
      %v565 = vunpack.c.l.b16 %v342
      %v566 = vunpack.c.h.b16 %v342
      %v567 = vunpack.c.l.b16 %v343
      %v568 = vunpack.c.h.b16 %v343
      %v569 = vunpack.c.l.b16 %v344
      %v570 = vunpack.c.h.b16 %v344
      %v571 = vunpack.c.l.b16 %v345
      %v572 = vunpack.c.h.b16 %v345
      %v573 = vunpack.c.l.b16 %v346
      %v574 = vunpack.c.h.b16 %v346
      %v575 = vunpack.c.l.b16 %v347
      %v576 = vunpack.c.h.b16 %v347
      %v577 = vunpack.c.l.b16 %v348
      %v578 = vunpack.c.h.b16 %v348
      %v579 = vunpack.c.l.b16 %v349
      %v580 = vunpack.c.h.b16 %v349
      %v581 = vunpack.c.l.b16 %v350
      %v582 = vunpack.c.h.b16 %v350
      %v583 = vunpack.c.l.b16 %v351
      %v584 = vunpack.c.h.b16 %v351
      %v585 = vunpack.c.l.b16 %v352
      %v586 = vunpack.c.h.b16 %v352
      %v587 = vunpack.c.l.b16 %v353
      %v588 = vunpack.c.h.b16 %v353
      %v589 = vunpack.c.l.b16 %v354
      %v590 = vunpack.c.h.b16 %v354
      %v591 = vunpack.c.l.b16 %v355
      %v592 = vunpack.c.h.b16 %v355
      %v593 = vunpack.c.l.b16 %v356
      %v594 = vunpack.c.h.b16 %v356
      %v595 = vunpack.c.l.b16 %v357
      %v596 = vunpack.c.h.b16 %v357
      %v597 = vunpack.c.l.b16 %v358
      %v598 = vunpack.c.h.b16 %v358
      %v599 = vunpack.c.l.b16 %v359
      %v600 = vunpack.c.h.b16 %v359
      %v601 = vunpack.c.l.b16 %v360
      %v602 = vunpack.c.h.b16 %v360
      %v603 = vpack.c.b16 %v479, %v475
      %v604 = vpack.c.b16 %v480, %v476
      %v605 = vpack.c.b16 %v481, %v477
      %v606 = vpack.c.b16 %v482, %v478
      %v607 = vpack.c.b16 %v487, %v483
      %v608 = vpack.c.b16 %v488, %v484
      %v609 = vpack.c.b16 %v489, %v485
      %v610 = vpack.c.b16 %v490, %v486
      %v611 = vpack.c.b16 %v495, %v491
      %v612 = vpack.c.b16 %v496, %v492
      %v613 = vpack.c.b16 %v497, %v493
      %v614 = vpack.c.b16 %v498, %v494
      %v615 = vpack.c.b16 %v503, %v499
      %v616 = vpack.c.b16 %v504, %v500
      %v617 = vpack.c.b16 %v505, %v501
      %v618 = vpack.c.b16 %v506, %v502
      %v619 = vpack.c.b16 %v511, %v507
      %v620 = vpack.c.b16 %v512, %v508
      %v621 = vpack.c.b16 %v513, %v509
      %v622 = vpack.c.b16 %v514, %v510
      %v623 = vpack.c.b16 %v519, %v515
      %v624 = vpack.c.b16 %v520, %v516
      %v625 = vpack.c.b16 %v521, %v517
      %v626 = vpack.c.b16 %v522, %v518
      %v627 = vpack.c.b16 %v527, %v523
      %v628 = vpack.c.b16 %v528, %v524
      %v629 = vpack.c.b16 %v529, %v525
      %v630 = vpack.c.b16 %v530, %v526
      %v631 = vpack.c.b16 %v535, %v531
      %v632 = vpack.c.b16 %v536, %v532
      %v633 = vpack.c.b16 %v537, %v533
      %v634 = vpack.c.b16 %v538, %v534
      %v635 = vpack.c.b16 %v543, %v539
      %v636 = vpack.c.b16 %v544, %v540
      %v637 = vpack.c.b16 %v545, %v541
      %v638 = vpack.c.b16 %v546, %v542
      %v639 = vpack.c.b16 %v551, %v547
      %v640 = vpack.c.b16 %v552, %v548
      %v641 = vpack.c.b16 %v553, %v549
      %v642 = vpack.c.b16 %v554, %v550
      %v643 = vpack.c.b16 %v559, %v555
      %v644 = vpack.c.b16 %v560, %v556
      %v645 = vpack.c.b16 %v561, %v557
      %v646 = vpack.c.b16 %v562, %v558
      %v647 = vpack.c.b16 %v567, %v563
      %v648 = vpack.c.b16 %v568, %v564
      %v649 = vpack.c.b16 %v569, %v565
      %v650 = vpack.c.b16 %v570, %v566
      %v651 = vpack.c.b16 %v575, %v571
      %v652 = vpack.c.b16 %v576, %v572
      %v653 = vpack.c.b16 %v577, %v573
      %v654 = vpack.c.b16 %v578, %v574
      %v655 = vpack.c.b16 %v583, %v579
      %v656 = vpack.c.b16 %v584, %v580
      %v657 = vpack.c.b16 %v585, %v581
      %v658 = vpack.c.b16 %v586, %v582
      %v659 = vpack.c.b16 %v591, %v587
      %v660 = vpack.c.b16 %v592, %v588
      %v661 = vpack.c.b16 %v593, %v589
      %v662 = vpack.c.b16 %v594, %v590
      %v663 = vpack.c.b16 %v599, %v595
      %v664 = vpack.c.b16 %v600, %v596
      %v665 = vpack.c.b16 %v601, %v597
      %v666 = vpack.c.b16 %v602, %v598
      %v765 = vunpack.c.l.b16 %v361
      %v766 = vunpack.c.l.b16 %v362
      %v767 = vunpack.c.l.b16 %v363
      %v768 = vunpack.c.l.b16 %v364
      %v769 = vunpack.c.l.b16 %v365
      %v770 = vunpack.c.l.b16 %v366
      %v771 = vunpack.c.l.b16 %v367
      %v772 = vunpack.c.l.b16 %v368
      %v773 = vunpack.c.l.b16 %v369
      %v774 = vunpack.c.l.b16 %v370
      %v775 = vunpack.c.l.b16 %v371
      %v776 = vunpack.c.l.b16 %v372
      %v777 = vunpack.c.l.b16 %v373
      %v778 = vunpack.c.l.b16 %v374
      %v779 = vunpack.c.l.b16 %v375
      %v780 = vunpack.c.l.b16 %v376
      %v781 = vunpack.c.l.b16 %v377
      %v782 = vunpack.c.l.b16 %v378
      %v783 = vunpack.c.l.b16 %v379
      %v784 = vunpack.c.l.b16 %v380
      %v785 = vunpack.c.l.b16 %v381
      %v786 = vunpack.c.l.b16 %v382
      %v787 = vunpack.c.l.b16 %v383
      %v788 = vunpack.c.l.b16 %v384
      %v789 = vunpack.c.l.b16 %v385
      %v790 = vunpack.c.l.b16 %v386
      %v791 = vunpack.c.l.b16 %v387
      %v792 = vunpack.c.l.b16 %v388
      %v793 = vunpack.c.l.b16 %v389
      %v794 = vunpack.c.l.b16 %v390
      %v795 = vunpack.c.l.b16 %v391
      %v796 = vunpack.c.l.b16 %v392
      %v797 = vunpack.c.l.b16 %v393
      %v798 = vunpack.c.l.b16 %v394
      %v799 = vunpack.c.l.b16 %v395
      %v800 = vunpack.c.l.b16 %v396
      %v801 = vunpack.c.l.b16 %v397
      %v802 = vunpack.c.l.b16 %v398
      %v803 = vunpack.c.l.b16 %v399
      %v804 = vunpack.c.l.b16 %v400
      %v805 = vunpack.c.l.b16 %v401
      %v806 = vunpack.c.l.b16 %v402
      %v807 = vunpack.c.l.b16 %v403
      %v808 = vunpack.c.l.b16 %v404
      %v809 = vunpack.c.l.b16 %v405
      %v810 = vunpack.c.l.b16 %v406
      %v811 = vunpack.c.l.b16 %v407
      %v812 = vunpack.c.l.b16 %v408
      %v813 = vunpack.c.l.b16 %v409
      %v814 = vunpack.c.l.b16 %v410
      %v815 = vpack.c.b16 %v766, %v765
      %v816 = vpack.c.b16 %v768, %v767
      %v817 = vpack.c.b16 %v770, %v769
      %v818 = vpack.c.b16 %v772, %v771
      %v819 = vpack.c.b16 %v774, %v773
      %v820 = vpack.c.b16 %v776, %v775
      %v821 = vpack.c.b16 %v778, %v777
      %v822 = vpack.c.b16 %v780, %v779
      %v823 = vpack.c.b16 %v782, %v781
      %v824 = vpack.c.b16 %v784, %v783
      %v825 = vpack.c.b16 %v786, %v785
      %v826 = vpack.c.b16 %v788, %v787
      %v827 = vpack.c.b16 %v790, %v789
      %v828 = vpack.c.b16 %v792, %v791
      %v829 = vpack.c.b16 %v794, %v793
      %v830 = vpack.c.b16 %v796, %v795
      %v831 = vpack.c.b16 %v798, %v797
      %v832 = vpack.c.b16 %v800, %v799
      %v833 = vpack.c.b16 %v802, %v801
      %v834 = vpack.c.b16 %v804, %v803
      %v835 = vpack.c.b16 %v806, %v805
      %v836 = vpack.c.b16 %v808, %v807
      %v837 = vpack.c.b16 %v810, %v809
      %v838 = vpack.c.b16 %v812, %v811
      %v839 = vpack.c.b16 %v814, %v813
      %vm865 = vcmask 130048
      %v867 = vsel %vm865, %v606, 0
      %v870 = vsel %vm865, %v610, 0
      %v873 = vsel %vm865, %v614, 0
      %v876 = vsel %vm865, %v618, 0
      %v879 = vsel %vm865, %v622, 0
      %v882 = vsel %vm865, %v626, 0
      %v885 = vsel %vm865, %v630, 0
      %v888 = vsel %vm865, %v634, 0
      %v891 = vsel %vm865, %v638, 0
      %v894 = vsel %vm865, %v642, 0
      %v897 = vsel %vm865, %v646, 0
      %v900 = vsel %vm865, %v650, 0
      %v903 = vsel %vm865, %v654, 0
      %v906 = vsel %vm865, %v658, 0
      %v909 = vsel %vm865, %v662, 0
      %v912 = vsel %vm865, %v666, 0
      %914 = vmatprep.subr.bf16.mxu0 0
      %915 = vmatpush1.bf16.msra.mxu0 %v815
      %916 = vmatprep.subr.bf16.mxu0 0
      %917 = vmatpush1.bf16.msra.mxu0 %v816
      %918 = vmatprep.subr.bf16.mxu0 0
      %919 = vmatpush1.bf16.msra.mxu0 %v817
      %920 = vmatprep.subr.bf16.mxu0 0
      %921 = vmatpush1.bf16.msra.mxu0 %v818
      %922 = vmatprep.subr.bf16.mxu0 0
      %923 = vmatpush1.bf16.msra.mxu0 %v819
      %924 = vmatprep.subr.bf16.mxu0 0
      %925 = vmatpush1.bf16.msra.mxu0 %v820
      %926 = vmatprep.subr.bf16.mxu0 0
      %927 = vmatpush1.bf16.msra.mxu0 %v821
      %928 = vmatprep.subr.bf16.mxu0 0
      %929 = vmatpush1.bf16.msra.mxu0 %v822
      %930 = vmatprep.subr.bf16.mxu0 0
      %931 = vmatpush1.bf16.msra.mxu0 %v823
      %932 = vmatprep.subr.bf16.mxu0 0
      %933 = vmatpush1.bf16.msra.mxu0 %v824
      %934 = vmatprep.subr.bf16.mxu0 0
      %935 = vmatpush1.bf16.msra.mxu0 %v825
      %936 = vmatprep.subr.bf16.mxu0 0
      %937 = vmatpush1.bf16.msra.mxu0 %v826
      %938 = vmatprep.subr.bf16.mxu0 0
      %939 = vmatpush1.bf16.msra.mxu0 %v827
      %940 = vmatprep.subr.bf16.mxu0 0
      %941 = vmatpush1.bf16.msra.mxu0 %v828
      %942 = vmatprep.subr.bf16.mxu0 0
      %943 = vmatpush1.bf16.msra.mxu0 %v829
      %944 = vmatprep.subr.bf16.mxu0 0
      %945 = vmatpush1.bf16.msra.mxu0 %v830
      %946 = vmatprep.mubr.bf16.mxu0 %v604
      %947 = vmatmul.mubr.bf16.gmra.mrb[0].mxu0 %v603
      %v948 = vpop.f32.mrb[0].mxu0
      %v949 = vadd.f32 0.0, %v948
      %v950 = vpop.f32.mrb[0].mxu0
      %v951 = vpop.f32.mrb[0].mxu0
      %v952 = vadd.f32 0.0, %v951
      %v953 = vpop.f32.mrb[0].mxu0
      %954 = vmatprep.mubr.bf16.mxu0 %v608
      %955 = vmatmul.mubr.bf16.gmra.mrb[0].mxu0 %v607
      %v956 = vpop.f32.mrb[0].mxu0
      %v957 = vadd.f32 0.0, %v956
      %v958 = vpop.f32.mrb[0].mxu0
      %v959 = vpop.f32.mrb[0].mxu0
      %v960 = vadd.f32 0.0, %v959
      %v961 = vpop.f32.mrb[0].mxu0
      %962 = vmatprep.mubr.bf16.mxu0 %v612
      %963 = vmatmul.mubr.bf16.gmra.mrb[0].mxu0 %v611
      %v964 = vpop.f32.mrb[0].mxu0
      %v965 = vadd.f32 0.0, %v964
      %v966 = vpop.f32.mrb[0].mxu0
      %v967 = vpop.f32.mrb[0].mxu0
      %v968 = vadd.f32 0.0, %v967
      %v969 = vpop.f32.mrb[0].mxu0
      %970 = vmatprep.mubr.bf16.mxu0 %v616
      %971 = vmatmul.mubr.bf16.gmra.mrb[0].mxu0 %v615
      %v972 = vpop.f32.mrb[0].mxu0
      %v973 = vadd.f32 0.0, %v972
      %v974 = vpop.f32.mrb[0].mxu0
      %v975 = vpop.f32.mrb[0].mxu0
      %v976 = vadd.f32 0.0, %v975
      %v977 = vpop.f32.mrb[0].mxu0
      %978 = vmatprep.mubr.bf16.mxu0 %v620
      %979 = vmatmul.mubr.bf16.gmra.mrb[0].mxu0 %v619
      %v980 = vpop.f32.mrb[0].mxu0
      %v981 = vadd.f32 0.0, %v980
      %v982 = vpop.f32.mrb[0].mxu0
      %v983 = vpop.f32.mrb[0].mxu0
      %v984 = vadd.f32 0.0, %v983
      %v985 = vpop.f32.mrb[0].mxu0
      %986 = vmatprep.mubr.bf16.mxu0 %v624
      %987 = vmatmul.mubr.bf16.gmra.mrb[0].mxu0 %v623
      %v988 = vpop.f32.mrb[0].mxu0
      %v989 = vadd.f32 0.0, %v988
      %v990 = vpop.f32.mrb[0].mxu0
      %v991 = vpop.f32.mrb[0].mxu0
      %v992 = vadd.f32 0.0, %v991
      %v993 = vpop.f32.mrb[0].mxu0
      %994 = vmatprep.mubr.bf16.mxu0 %v628
      %995 = vmatmul.mubr.bf16.gmra.mrb[0].mxu0 %v627
      %v996 = vpop.f32.mrb[0].mxu0
      %v997 = vadd.f32 0.0, %v996
      %v998 = vpop.f32.mrb[0].mxu0
      %v999 = vpop.f32.mrb[0].mxu0
      %v1000 = vadd.f32 0.0, %v999
      %v1001 = vpop.f32.mrb[0].mxu0
      %1002 = vmatprep.mubr.bf16.mxu0 %v632
      %1003 = vmatmul.mubr.bf16.gmra.mrb[0].mxu0 %v631
      %v1004 = vpop.f32.mrb[0].mxu0
      %v1005 = vadd.f32 0.0, %v1004
      %v1006 = vpop.f32.mrb[0].mxu0
      %v1007 = vpop.f32.mrb[0].mxu0
      %v1008 = vadd.f32 0.0, %v1007
      %v1009 = vpop.f32.mrb[0].mxu0
      %1010 = vmatprep.mubr.bf16.mxu0 %v636
      %1011 = vmatmul.mubr.bf16.gmra.mrb[0].mxu0 %v635
      %v1012 = vpop.f32.mrb[0].mxu0
      %v1013 = vadd.f32 0.0, %v1012
      %v1014 = vpop.f32.mrb[0].mxu0
      %v1015 = vpop.f32.mrb[0].mxu0
      %v1016 = vadd.f32 0.0, %v1015
      %v1017 = vpop.f32.mrb[0].mxu0
      %1018 = vmatprep.mubr.bf16.mxu0 %v640
      %1019 = vmatmul.mubr.bf16.gmra.mrb[0].mxu0 %v639
      %v1020 = vpop.f32.mrb[0].mxu0
      %v1021 = vadd.f32 0.0, %v1020
      %v1022 = vpop.f32.mrb[0].mxu0
      %v1023 = vpop.f32.mrb[0].mxu0
      %v1024 = vadd.f32 0.0, %v1023
      %v1025 = vpop.f32.mrb[0].mxu0
      %1026 = vmatprep.mubr.bf16.mxu0 %v644
      %1027 = vmatmul.mubr.bf16.gmra.mrb[0].mxu0 %v643
      %v1028 = vpop.f32.mrb[0].mxu0
      %v1029 = vadd.f32 0.0, %v1028
      %v1030 = vpop.f32.mrb[0].mxu0
      %v1031 = vpop.f32.mrb[0].mxu0
      %v1032 = vadd.f32 0.0, %v1031
      %v1033 = vpop.f32.mrb[0].mxu0
      %1034 = vmatprep.mubr.bf16.mxu0 %v648
      %1035 = vmatmul.mubr.bf16.gmra.mrb[0].mxu0 %v647
      %v1036 = vpop.f32.mrb[0].mxu0
      %v1037 = vadd.f32 0.0, %v1036
      %v1038 = vpop.f32.mrb[0].mxu0
      %v1039 = vpop.f32.mrb[0].mxu0
      %v1040 = vadd.f32 0.0, %v1039
      %v1041 = vpop.f32.mrb[0].mxu0
      %1042 = vmatprep.mubr.bf16.mxu0 %v652
      %1043 = vmatmul.mubr.bf16.gmra.mrb[0].mxu0 %v651
      %v1044 = vpop.f32.mrb[0].mxu0
      %v1045 = vadd.f32 0.0, %v1044
      %v1046 = vpop.f32.mrb[0].mxu0
      %v1047 = vpop.f32.mrb[0].mxu0
      %v1048 = vadd.f32 0.0, %v1047
      %v1049 = vpop.f32.mrb[0].mxu0
      %1050 = vmatprep.mubr.bf16.mxu0 %v656
      %1051 = vmatmul.mubr.bf16.gmra.mrb[0].mxu0 %v655
      %v1052 = vpop.f32.mrb[0].mxu0
      %v1053 = vadd.f32 0.0, %v1052
      %v1054 = vpop.f32.mrb[0].mxu0
      %v1055 = vpop.f32.mrb[0].mxu0
      %v1056 = vadd.f32 0.0, %v1055
      %v1057 = vpop.f32.mrb[0].mxu0
      %1058 = vmatprep.mubr.bf16.mxu0 %v660
      %1059 = vmatmul.mubr.bf16.gmra.mrb[0].mxu0 %v659
      %v1060 = vpop.f32.mrb[0].mxu0
      %v1061 = vadd.f32 0.0, %v1060
      %v1062 = vpop.f32.mrb[0].mxu0
      %v1063 = vpop.f32.mrb[0].mxu0
      %v1064 = vadd.f32 0.0, %v1063
      %v1065 = vpop.f32.mrb[0].mxu0
      %1066 = vmatprep.mubr.bf16.mxu0 %v664
      %1067 = vmatmul.mubr.bf16.gmra.mrb[0].mxu0 %v663
      %v1068 = vpop.f32.mrb[0].mxu0
      %v1069 = vadd.f32 0.0, %v1068
      %v1070 = vpop.f32.mrb[0].mxu0
      %v1071 = vpop.f32.mrb[0].mxu0
      %v1072 = vadd.f32 0.0, %v1071
      %v1073 = vpop.f32.mrb[0].mxu0
      %1074 = vdwg.mxu0
      %1075 = vmatprep.subr.bf16.mxu0 0
      %1076 = vmatpush1.bf16.msra.mxu0 %v831
      %1077 = vmatprep.subr.bf16.mxu0 0
      %1078 = vmatpush1.bf16.msra.mxu0 %v832
      %1079 = vmatprep.subr.bf16.mxu0 0
      %1080 = vmatpush1.bf16.msra.mxu0 %v833
      %1081 = vmatprep.subr.bf16.mxu0 0
      %1082 = vmatpush1.bf16.msra.mxu0 %v834
      %1083 = vmatprep.subr.bf16.mxu0 0
      %1084 = vmatpush1.bf16.msra.mxu0 %v835
      %1085 = vmatprep.subr.bf16.mxu0 0
      %1086 = vmatpush1.bf16.msra.mxu0 %v836
      %1087 = vmatprep.subr.bf16.mxu0 0
      %1088 = vmatpush1.bf16.msra.mxu0 %v837
      %1089 = vmatprep.subr.bf16.mxu0 0
      %1090 = vmatpush1.bf16.msra.mxu0 %v838
      %1091 = vmatprep.subr.bf16.mxu0 0
      %1092 = vmatpush1.bf16.msra.mxu0 %v839
      %1093 = vmatprep.subr.bf16.mxu0 0
      %1094 = vmatpush1.bf16.msra.mxu0 0
      %1095 = vmatprep.subr.bf16.mxu0 0
      %1096 = vmatpush1.bf16.msra.mxu0 0
      %1097 = vmatprep.subr.bf16.mxu0 0
      %1098 = vmatpush1.bf16.msra.mxu0 0
      %1099 = vmatprep.subr.bf16.mxu0 0
      %1100 = vmatpush1.bf16.msra.mxu0 0
      %1101 = vmatprep.subr.bf16.mxu0 0
      %1102 = vmatpush1.bf16.msra.mxu0 0
      %1103 = vmatprep.subr.bf16.mxu0 0
      %1104 = vmatpush1.bf16.msra.mxu0 0
      %1105 = vmatprep.subr.bf16.mxu0 0
      %1106 = vmatpush1.bf16.msra.mxu0 0
      %1107 = vmatprep.mubr.bf16.mxu0 %v867
      %1108 = vmatmul.mubr.bf16.gmra.mrb[0].mxu0 %v605
      %v1109 = vpop.f32.mrb[0].mxu0
      %v1110 = vadd.f32 %v949, %v1109
      %v1111 = vpop.f32.mrb[0].mxu0
      %v1112 = vpop.f32.mrb[0].mxu0
      %v1113 = vadd.f32 %v952, %v1112
      %v1114 = vpop.f32.mrb[0].mxu0
      %1115 = vmatprep.mubr.bf16.mxu0 %v870
      %1116 = vmatmul.mubr.bf16.gmra.mrb[0].mxu0 %v609
      %v1117 = vpop.f32.mrb[0].mxu0
      %v1118 = vadd.f32 %v957, %v1117
      %v1119 = vpop.f32.mrb[0].mxu0
      %v1120 = vpop.f32.mrb[0].mxu0
      %v1121 = vadd.f32 %v960, %v1120
      %v1122 = vpop.f32.mrb[0].mxu0
      %1123 = vmatprep.mubr.bf16.mxu0 %v873
      %1124 = vmatmul.mubr.bf16.gmra.mrb[0].mxu0 %v613
      %v1125 = vpop.f32.mrb[0].mxu0
      %v1126 = vadd.f32 %v965, %v1125
      %v1127 = vpop.f32.mrb[0].mxu0
      %v1128 = vpop.f32.mrb[0].mxu0
      %v1129 = vadd.f32 %v968, %v1128
      %v1130 = vpop.f32.mrb[0].mxu0
      %1131 = vmatprep.mubr.bf16.mxu0 %v876
      %1132 = vmatmul.mubr.bf16.gmra.mrb[0].mxu0 %v617
      %v1133 = vpop.f32.mrb[0].mxu0
      %v1134 = vadd.f32 %v973, %v1133
      %v1135 = vpop.f32.mrb[0].mxu0
      %v1136 = vpop.f32.mrb[0].mxu0
      %v1137 = vadd.f32 %v976, %v1136
      %v1138 = vpop.f32.mrb[0].mxu0
      %1139 = vmatprep.mubr.bf16.mxu0 %v879
      %1140 = vmatmul.mubr.bf16.gmra.mrb[0].mxu0 %v621
      %v1141 = vpop.f32.mrb[0].mxu0
      %v1142 = vadd.f32 %v981, %v1141
      %v1143 = vpop.f32.mrb[0].mxu0
      %v1144 = vpop.f32.mrb[0].mxu0
      %v1145 = vadd.f32 %v984, %v1144
      %v1146 = vpop.f32.mrb[0].mxu0
      %1147 = vmatprep.mubr.bf16.mxu0 %v882
      %1148 = vmatmul.mubr.bf16.gmra.mrb[0].mxu0 %v625
      %v1149 = vpop.f32.mrb[0].mxu0
      %v1150 = vadd.f32 %v989, %v1149
      %v1151 = vpop.f32.mrb[0].mxu0
      %v1152 = vpop.f32.mrb[0].mxu0
      %v1153 = vadd.f32 %v992, %v1152
      %v1154 = vpop.f32.mrb[0].mxu0
      %1155 = vmatprep.mubr.bf16.mxu0 %v885
      %1156 = vmatmul.mubr.bf16.gmra.mrb[0].mxu0 %v629
      %v1157 = vpop.f32.mrb[0].mxu0
      %v1158 = vadd.f32 %v997, %v1157
      %v1159 = vpop.f32.mrb[0].mxu0
      %v1160 = vpop.f32.mrb[0].mxu0
      %v1161 = vadd.f32 %v1000, %v1160
      %v1162 = vpop.f32.mrb[0].mxu0
      %1163 = vmatprep.mubr.bf16.mxu0 %v888
      %1164 = vmatmul.mubr.bf16.gmra.mrb[0].mxu0 %v633
      %v1165 = vpop.f32.mrb[0].mxu0
      %v1166 = vadd.f32 %v1005, %v1165
      %v1167 = vpop.f32.mrb[0].mxu0
      %v1168 = vpop.f32.mrb[0].mxu0
      %v1169 = vadd.f32 %v1008, %v1168
      %v1170 = vpop.f32.mrb[0].mxu0
      %1171 = vmatprep.mubr.bf16.mxu0 %v891
      %1172 = vmatmul.mubr.bf16.gmra.mrb[0].mxu0 %v637
      %v1173 = vpop.f32.mrb[0].mxu0
      %v1174 = vadd.f32 %v1013, %v1173
      %v1175 = vpop.f32.mrb[0].mxu0
      %v1176 = vpop.f32.mrb[0].mxu0
      %v1177 = vadd.f32 %v1016, %v1176
      %v1178 = vpop.f32.mrb[0].mxu0
      %1179 = vmatprep.mubr.bf16.mxu0 %v894
      %1180 = vmatmul.mubr.bf16.gmra.mrb[0].mxu0 %v641
      %v1181 = vpop.f32.mrb[0].mxu0
      %v1182 = vadd.f32 %v1021, %v1181
      %v1183 = vpop.f32.mrb[0].mxu0
      %v1184 = vpop.f32.mrb[0].mxu0
      %v1185 = vadd.f32 %v1024, %v1184
      %v1186 = vpop.f32.mrb[0].mxu0
      %1187 = vmatprep.mubr.bf16.mxu0 %v897
      %1188 = vmatmul.mubr.bf16.gmra.mrb[0].mxu0 %v645
      %v1189 = vpop.f32.mrb[0].mxu0
      %v1190 = vadd.f32 %v1029, %v1189
      %v1191 = vpop.f32.mrb[0].mxu0
      %v1192 = vpop.f32.mrb[0].mxu0
      %v1193 = vadd.f32 %v1032, %v1192
      %v1194 = vpop.f32.mrb[0].mxu0
      %1195 = vmatprep.mubr.bf16.mxu0 %v900
      %1196 = vmatmul.mubr.bf16.gmra.mrb[0].mxu0 %v649
      %v1197 = vpop.f32.mrb[0].mxu0
      %v1198 = vadd.f32 %v1037, %v1197
      %v1199 = vpop.f32.mrb[0].mxu0
      %v1200 = vpop.f32.mrb[0].mxu0
      %v1201 = vadd.f32 %v1040, %v1200
      %v1202 = vpop.f32.mrb[0].mxu0
      %1203 = vmatprep.mubr.bf16.mxu0 %v903
      %1204 = vmatmul.mubr.bf16.gmra.mrb[0].mxu0 %v653
      %v1205 = vpop.f32.mrb[0].mxu0
      %v1206 = vadd.f32 %v1045, %v1205
      %v1207 = vpop.f32.mrb[0].mxu0
      %v1208 = vpop.f32.mrb[0].mxu0
      %v1209 = vadd.f32 %v1048, %v1208
      %v1210 = vpop.f32.mrb[0].mxu0
      %1211 = vmatprep.mubr.bf16.mxu0 %v906
      %1212 = vmatmul.mubr.bf16.gmra.mrb[0].mxu0 %v657
      %v1213 = vpop.f32.mrb[0].mxu0
      %v1214 = vadd.f32 %v1053, %v1213
      %v1215 = vpop.f32.mrb[0].mxu0
      %v1216 = vpop.f32.mrb[0].mxu0
      %v1217 = vadd.f32 %v1056, %v1216
      %v1218 = vpop.f32.mrb[0].mxu0
      %1219 = vmatprep.mubr.bf16.mxu0 %v909
      %1220 = vmatmul.mubr.bf16.gmra.mrb[0].mxu0 %v661
      %v1221 = vpop.f32.mrb[0].mxu0
      %v1222 = vadd.f32 %v1061, %v1221
      %v1223 = vpop.f32.mrb[0].mxu0
      %v1224 = vpop.f32.mrb[0].mxu0
      %v1225 = vadd.f32 %v1064, %v1224
      %v1226 = vpop.f32.mrb[0].mxu0
      %1227 = vmatprep.mubr.bf16.mxu0 %v912
      %1228 = vmatmul.mubr.bf16.gmra.mrb[0].mxu0 %v665
      %v1229 = vpop.f32.mrb[0].mxu0
      %v1230 = vadd.f32 %v1069, %v1229
      %v1231 = vpop.f32.mrb[0].mxu0
      %v1232 = vpop.f32.mrb[0].mxu0
      %v1233 = vadd.f32 %v1072, %v1232
      %v1234 = vpop.f32.mrb[0].mxu0
      %1235 = vdwg.mxu0
      %v1236 = vadd.f32 %v265, %v1110
      %v1237 = vadd.f32 %v266, %v1113
      %v1238 = vadd.f32 %v267, %v1118
      %v1239 = vadd.f32 %v268, %v1121
      %v1240 = vadd.f32 %v269, %v1126
      %v1241 = vadd.f32 %v270, %v1129
      %v1242 = vadd.f32 %v271, %v1134
      %v1243 = vadd.f32 %v272, %v1137
      %v1244 = vadd.f32 %v273, %v1142
      %v1245 = vadd.f32 %v274, %v1145
      %v1246 = vadd.f32 %v275, %v1150
      %v1247 = vadd.f32 %v276, %v1153
      %v1248 = vadd.f32 %v277, %v1158
      %v1249 = vadd.f32 %v278, %v1161
      %v1250 = vadd.f32 %v279, %v1166
      %v1251 = vadd.f32 %v280, %v1169
      %v1252 = vadd.f32 %v281, %v1174
      %v1253 = vadd.f32 %v282, %v1177
      %v1254 = vadd.f32 %v283, %v1182
      %v1255 = vadd.f32 %v284, %v1185
      %v1256 = vadd.f32 %v285, %v1190
      %v1257 = vadd.f32 %v286, %v1193
      %v1258 = vadd.f32 %v287, %v1198
      %v1259 = vadd.f32 %v288, %v1201
      %v1260 = vadd.f32 %v289, %v1206
      %v1261 = vadd.f32 %v290, %v1209
      %v1262 = vadd.f32 %v291, %v1214
      %v1263 = vadd.f32 %v292, %v1217
      %v1264 = vadd.f32 %v293, %v1222
      %v1265 = vadd.f32 %v294, %v1225
      %v1266 = vadd.f32 %v295, %v1230
      %v1267 = vadd.f32 %v296, %v1233
      %vm1268 = vcmask 64512
      %1269 = vst.msk [vmem:[#allocation2] sm:$0xff] %vm1268, %v1236
      %1270 = vst.msk [vmem:[#allocation2 + $0x8] sm:$0xff] %vm1268, %v1237
      %1271 = vst.msk [vmem:[#allocation2 + $0x10] sm:$0xff] %vm1268, %v1238
      %1272 = vst.msk [vmem:[#allocation2 + $0x18] sm:$0xff] %vm1268, %v1239
      %1273 = vst.msk [vmem:[#allocation2 + $0x20] sm:$0xff] %vm1268, %v1240
      %1274 = vst.msk [vmem:[#allocation2 + $0x28] sm:$0xff] %vm1268, %v1241
      %1275 = vst.msk [vmem:[#allocation2 + $0x30] sm:$0xff] %vm1268, %v1242
      %1276 = vst.msk [vmem:[#allocation2 + $0x38] sm:$0xff] %vm1268, %v1243
      %1277 = vst.msk [vmem:[#allocation2 + $0x40] sm:$0xff] %vm1268, %v1244
      %1278 = vst.msk [vmem:[#allocation2 + $0x48] sm:$0xff] %vm1268, %v1245
      %1279 = vst.msk [vmem:[#allocation2 + $0x50] sm:$0xff] %vm1268, %v1246
      %1280 = vst.msk [vmem:[#allocation2 + $0x58] sm:$0xff] %vm1268, %v1247
      %1281 = vst.msk [vmem:[#allocation2 + $0x60] sm:$0xff] %vm1268, %v1248
      %1282 = vst.msk [vmem:[#allocation2 + $0x68] sm:$0xff] %vm1268, %v1249
      %1283 = vst.msk [vmem:[#allocation2 + $0x70] sm:$0xff] %vm1268, %v1250
      %1284 = vst.msk [vmem:[#allocation2 + $0x78] sm:$0xff] %vm1268, %v1251
      %1285 = vst.msk [vmem:[#allocation2 + $0x80] sm:$0xff] %vm1268, %v1252
      %1286 = vst.msk [vmem:[#allocation2 + $0x88] sm:$0xff] %vm1268, %v1253
      %1287 = vst.msk [vmem:[#allocation2 + $0x90] sm:$0xff] %vm1268, %v1254
      %1288 = vst.msk [vmem:[#allocation2 + $0x98] sm:$0xff] %vm1268, %v1255
      %1289 = vst.msk [vmem:[#allocation2 + $0xa0] sm:$0xff] %vm1268, %v1256
      %1290 = vst.msk [vmem:[#allocation2 + $0xa8] sm:$0xff] %vm1268, %v1257
      %1291 = vst.msk [vmem:[#allocation2 + $0xb0] sm:$0xff] %vm1268, %v1258
      %1292 = vst.msk [vmem:[#allocation2 + $0xb8] sm:$0xff] %vm1268, %v1259
      %1293 = vst.msk [vmem:[#allocation2 + $0xc0] sm:$0xff] %vm1268, %v1260
      %1294 = vst.msk [vmem:[#allocation2 + $0xc8] sm:$0xff] %vm1268, %v1261
      %1295 = vst.msk [vmem:[#allocation2 + $0xd0] sm:$0xff] %vm1268, %v1262
      %1296 = vst.msk [vmem:[#allocation2 + $0xd8] sm:$0xff] %vm1268, %v1263
      %1297 = vst.msk [vmem:[#allocation2 + $0xe0] sm:$0xff] %vm1268, %v1264
      %1298 = vst.msk [vmem:[#allocation2 + $0xe8] sm:$0xff] %vm1268, %v1265
      %1299 = vst.msk [vmem:[#allocation2 + $0xf0] sm:$0xff] %vm1268, %v1266
      %1300 = vst.msk [vmem:[#allocation2 + $0xf8] sm:$0xff] %vm1268, %v1267
      // Predicated region
      $region37: #{forward.11} parent=31 // pred_check
        %p1301 = pneg %p228
      $region38: #{forward.11} parent=31 // pred_check_branch
        %1303 = sbr.rel (%p1301) target = $region40
      $region39: #{forward.11} parent=31 // pred_region
        %v1304 = vld [vmem:[#allocation2] sm:$0xff]
        %v1305 = vld [vmem:[#allocation2 + $0x8] sm:$0xff]
        %v1306 = vld [vmem:[#allocation2 + $0x10] sm:$0xff]
        %v1307 = vld [vmem:[#allocation2 + $0x18] sm:$0xff]
        %v1308 = vld [vmem:[#allocation2 + $0x20] sm:$0xff]
        %v1309 = vld [vmem:[#allocation2 + $0x28] sm:$0xff]
        %v1310 = vld [vmem:[#allocation2 + $0x30] sm:$0xff]
        %v1311 = vld [vmem:[#allocation2 + $0x38] sm:$0xff]
        %v1312 = vld [vmem:[#allocation2 + $0x40] sm:$0xff]
        %v1313 = vld [vmem:[#allocation2 + $0x48] sm:$0xff]
        %v1314 = vld [vmem:[#allocation2 + $0x50] sm:$0xff]
        %v1315 = vld [vmem:[#allocation2 + $0x58] sm:$0xff]
        %v1316 = vld [vmem:[#allocation2 + $0x60] sm:$0xff]
        %v1317 = vld [vmem:[#allocation2 + $0x68] sm:$0xff]
        %v1318 = vld [vmem:[#allocation2 + $0x70] sm:$0xff]
        %v1319 = vld [vmem:[#allocation2 + $0x78] sm:$0xff]
        %v1320 = vld [vmem:[#allocation2 + $0x80] sm:$0xff]
        %v1321 = vld [vmem:[#allocation2 + $0x88] sm:$0xff]
        %v1322 = vld [vmem:[#allocation2 + $0x90] sm:$0xff]
        %v1323 = vld [vmem:[#allocation2 + $0x98] sm:$0xff]
        %v1324 = vld [vmem:[#allocation2 + $0xa0] sm:$0xff]
        %v1325 = vld [vmem:[#allocation2 + $0xa8] sm:$0xff]
        %v1326 = vld [vmem:[#allocation2 + $0xb0] sm:$0xff]
        %v1327 = vld [vmem:[#allocation2 + $0xb8] sm:$0xff]
        %v1328 = vld [vmem:[#allocation2 + $0xc0] sm:$0xff]
        %v1329 = vld [vmem:[#allocation2 + $0xc8] sm:$0xff]
        %v1330 = vld [vmem:[#allocation2 + $0xd0] sm:$0xff]
        %v1331 = vld [vmem:[#allocation2 + $0xd8] sm:$0xff]
        %v1332 = vld [vmem:[#allocation2 + $0xe0] sm:$0xff]
        %v1333 = vld [vmem:[#allocation2 + $0xe8] sm:$0xff]
        %v1334 = vld [vmem:[#allocation2 + $0xf0] sm:$0xff]
        %v1335 = vld [vmem:[#allocation2 + $0xf8] sm:$0xff]
        %v1336 = vld [vmem:[%s2] sm:$0x1]
        %v1338 = vlaneseq
        %v1339 = vshrl.u32 %v1338, 7
        %v1340 = vsub.s32 0, %v1339
        %v1341 = vrot.slane %v1336, %v1340
        %v1343 = vadd.f32 %v1304, %v1341
        %v1344 = vadd.f32 %v1305, %v1341
        %v1345 = vadd.f32 %v1306, %v1341
        %v1346 = vadd.f32 %v1307, %v1341
        %v1347 = vadd.f32 %v1308, %v1341
        %v1348 = vadd.f32 %v1309, %v1341
        %v1349 = vadd.f32 %v1310, %v1341
        %v1350 = vadd.f32 %v1311, %v1341
        %v1351 = vadd.f32 %v1312, %v1341
        %v1352 = vadd.f32 %v1313, %v1341
        %v1353 = vadd.f32 %v1314, %v1341
        %v1354 = vadd.f32 %v1315, %v1341
        %v1355 = vadd.f32 %v1316, %v1341
        %v1356 = vadd.f32 %v1317, %v1341
        %v1357 = vadd.f32 %v1318, %v1341
        %v1358 = vadd.f32 %v1319, %v1341
        %v1359 = vadd.f32 %v1320, %v1341
        %v1360 = vadd.f32 %v1321, %v1341
        %v1361 = vadd.f32 %v1322, %v1341
        %v1362 = vadd.f32 %v1323, %v1341
        %v1363 = vadd.f32 %v1324, %v1341
        %v1364 = vadd.f32 %v1325, %v1341
        %v1365 = vadd.f32 %v1326, %v1341
        %v1366 = vadd.f32 %v1327, %v1341
        %v1367 = vadd.f32 %v1328, %v1341
        %v1368 = vadd.f32 %v1329, %v1341
        %v1369 = vadd.f32 %v1330, %v1341
        %v1370 = vadd.f32 %v1331, %v1341
        %v1371 = vadd.f32 %v1332, %v1341
        %v1372 = vadd.f32 %v1333, %v1341
        %v1373 = vadd.f32 %v1334, %v1341
        %v1374 = vadd.f32 %v1335, %v1341
        %1375 = vst.msk [vmem:[%s225] sm:$0xff] %vm1268, %v1343
        %1376 = vst.msk [vmem:[%s225 + $0x8] sm:$0xff] %vm1268, %v1344
        %1377 = vst.msk [vmem:[%s225 + $0x10] sm:$0xff] %vm1268, %v1345
        %1378 = vst.msk [vmem:[%s225 + $0x18] sm:$0xff] %vm1268, %v1346
        %1379 = vst.msk [vmem:[%s225 + $0x20] sm:$0xff] %vm1268, %v1347
        %1380 = vst.msk [vmem:[%s225 + $0x28] sm:$0xff] %vm1268, %v1348
        %1381 = vst.msk [vmem:[%s225 + $0x30] sm:$0xff] %vm1268, %v1349
        %1382 = vst.msk [vmem:[%s225 + $0x38] sm:$0xff] %vm1268, %v1350
        %1383 = vst.msk [vmem:[%s225 + $0x40] sm:$0xff] %vm1268, %v1351
        %1384 = vst.msk [vmem:[%s225 + $0x48] sm:$0xff] %vm1268, %v1352
        %1385 = vst.msk [vmem:[%s225 + $0x50] sm:$0xff] %vm1268, %v1353
        %1386 = vst.msk [vmem:[%s225 + $0x58] sm:$0xff] %vm1268, %v1354
        %1387 = vst.msk [vmem:[%s225 + $0x60] sm:$0xff] %vm1268, %v1355
        %1388 = vst.msk [vmem:[%s225 + $0x68] sm:$0xff] %vm1268, %v1356
        %1389 = vst.msk [vmem:[%s225 + $0x70] sm:$0xff] %vm1268, %v1357
        %1390 = vst.msk [vmem:[%s225 + $0x78] sm:$0xff] %vm1268, %v1358
        %1391 = vst.msk [vmem:[%s225 + $0x80] sm:$0xff] %vm1268, %v1359
        %1392 = vst.msk [vmem:[%s225 + $0x88] sm:$0xff] %vm1268, %v1360
        %1393 = vst.msk [vmem:[%s225 + $0x90] sm:$0xff] %vm1268, %v1361
        %1394 = vst.msk [vmem:[%s225 + $0x98] sm:$0xff] %vm1268, %v1362
        %1395 = vst.msk [vmem:[%s225 + $0xa0] sm:$0xff] %vm1268, %v1363
        %1396 = vst.msk [vmem:[%s225 + $0xa8] sm:$0xff] %vm1268, %v1364
        %1397 = vst.msk [vmem:[%s225 + $0xb0] sm:$0xff] %vm1268, %v1365
        %1398 = vst.msk [vmem:[%s225 + $0xb8] sm:$0xff] %vm1268, %v1366
        %1399 = vst.msk [vmem:[%s225 + $0xc0] sm:$0xff] %vm1268, %v1367
        %1400 = vst.msk [vmem:[%s225 + $0xc8] sm:$0xff] %vm1268, %v1368
        %1401 = vst.msk [vmem:[%s225 + $0xd0] sm:$0xff] %vm1268, %v1369
        %1402 = vst.msk [vmem:[%s225 + $0xd8] sm:$0xff] %vm1268, %v1370
        %1403 = vst.msk [vmem:[%s225 + $0xe0] sm:$0xff] %vm1268, %v1371
        %1404 = vst.msk [vmem:[%s225 + $0xe8] sm:$0xff] %vm1268, %v1372
        %1405 = vst.msk [vmem:[%s225 + $0xf0] sm:$0xff] %vm1268, %v1373
        %1406 = vst.msk [vmem:[%s225 + $0xf8] sm:$0xff] %vm1268, %v1374
      $region40: #{forward.11} parent=31 // pred_fallthru
        _
      %s1407 = smul.u32 32, %s18
      %p1408 = scmp.lt.s32.totalorder %s1407, 63
      %s1409 = scalar_select %p1408, %s1407, 63
      %s1410 = smul.addr %s1409, 8
      %s1411 = scalar_lea.vmem %s3, %s1410
      // Predicated region
      $region41: #{forward.11} parent=31 // pred_check
        %p1412 = pneg %p119
      $region42: #{forward.11} parent=31 // pred_check_branch
        %1414 = sbr.rel (%p1412) target = $region44
      $region43: #{forward.11} parent=31 // pred_region
        %s1415 = smul.u32 32, %s18
      $region44: #{forward.11} parent=31 // pred_fallthru
        _
    $region32: #{forward.11} parent=5 // pred_fallthru
      _
    %p1416 = scmp.le.s32.totalorder 2, %s9
    // Predicated region
    $region45: #{forward.11} parent=5 // pred_check
      %p1417 = pneg %p1416
    $region46: #{forward.11} parent=5 // pred_check_branch
      %1419 = sbr.rel (%p1417) target = $region48
    $region47: #{forward.11} parent=5 // pred_region
      %s1420 = ssub.s32 %s9, 2
      // Predicated region
      $region49: #{forward.11} parent=47 // pred_check
        %p1421 = pneg %p125
      $region50: #{forward.11} parent=47 // pred_check_branch
        %1423 = sbr.rel (%p1421) target = $region52
      $region51: #{forward.11} parent=47 // pred_region
        %s1424 = smul.u32 32, %s20
        %p1425 = scmp.lt.s32.totalorder %s1424, 63
        %s1426 = scalar_select %p1425, %s1424, 63
        %s1427 = smul.addr %s1426, 8
        %s1428 = scalar_lea.vmem %s3, %s1427
      $region52: #{forward.11} parent=47 // pred_fallthru
        _
    $region48: #{forward.11} parent=5 // pred_fallthru
      _
  $region6: #{forward.11} parent=0 // loop_footer
    %s13 = sadd.s32 1, %s9
  $region7: #{forward.11} parent=0 // loop_footer_branch
    %8 = sbr.rel target = $region3
  $region8: #{forward.11} parent=0 // loop_exit
    _

</llo_original>
